<compile_context>
chip_gen: v7x
topology: tpu7x:2x2x1
jax: 0.10.0
libtpu: 0.0.40
codegen_flags: <defaults>
</compile_context>

<pallas_src>
import functools
import math

import jax
import jax.numpy as jnp
from jax.experimental import pallas as pl
from jax.experimental.pallas import tpu as pltpu


def _block_kernel(x_ref, dww_ref, dwb_ref, w1_ref, b1_ref, gamma_ref,
                  w2_ref, b2_ref, o_ref, xpad_ref, h_ref, *,
                  rows_per_strip, gelu_approximate):
    # Static block shapes.
    _, H, W, C = x_ref.shape
    C4 = w1_ref.shape[1]
    RS = rows_per_strip
    num_strips = H // RS

    pad_dt = xpad_ref.dtype

    # ---- build the zero-padded tile (3-px halo) in VMEM scratch ----
    # Only the halo frame is zeroed (cheap); the interior is fully overwritten below.
    zrows = jnp.zeros((3, W + 6, C), pad_dt)
    xpad_ref[0:3, :, :] = zrows
    xpad_ref[H + 3:H + 6, :, :] = zrows
    zcols = jnp.zeros((H, 3, C), pad_dt)
    xpad_ref[3:H + 3, 0:3, :] = zcols
    xpad_ref[3:H + 3, W + 3:W + 6, :] = zcols
    xpad_ref[3:H + 3, 3:W + 3, :] = x_ref[0].astype(pad_dt)

    # Hoisted small operands (kept as SSA values across the strip loop).
    dww = dww_ref[...]                       # (49, C) f32
    dwb_row = dwb_ref[0, :]                  # (C,)
    b1_row = b1_ref[0, :][None, :]           # (1, 4C)

    inv_sqrt2 = 1.0 / math.sqrt(2.0)
    c_tanh = math.sqrt(2.0 / math.pi)

    def strip_body(s, ssq):
        r0 = s * RS
        # (RS+6, W+6, C) slab for this strip of output rows.
        slab = xpad_ref[pl.ds(r0, RS + 6), :, :]

        # ---- depthwise 7x7 (cross-correlation, padding=3, groups=C) ----
        # 7 strip-sized unaligned W-slices; dy taps are cheap outer-dim slices.
        acc = jnp.zeros((RS, W, C), jnp.float32)
        for dx in range(7):
            xs = slab[:, dx:dx + W, :].astype(jnp.float32)      # (RS+6, W, C)
            for dy in range(7):
                acc = acc + xs[dy:dy + RS] * dww[dy * 7 + dx][None, None, :]
        acc = acc + dwb_row[None, None, :]

        # ---- LayerNorm over channels (eps=1e-6); affine folded into pwconv1 ----
        u = jnp.mean(acc, axis=-1, keepdims=True)
        v = jnp.mean((acc - u) ** 2, axis=-1, keepdims=True)
        xn = ((acc - u) * jax.lax.rsqrt(v + 1e-6)).reshape(RS * W, C)
        xn = xn.astype(jnp.bfloat16)

        # ---- pwconv1 (bf16 MXU operands, f32 acc) + GELU ----
        h = jnp.dot(xn, w1_ref[...], preferred_element_type=jnp.float32) + b1_row
        if gelu_approximate:
            # tanh-GELU: runs on the EUP, frees VALU slots.
            h = 0.5 * h * (1.0 + jnp.tanh(c_tanh * (h + 0.044715 * (h * h * h))))
        else:
            # exact erf (nn.GELU default)
            h = 0.5 * h * (1.0 + jax.lax.erf(h * inv_sqrt2))

        # ---- GRN sum-of-squares fused into this pass (stats stay f32) ----
        ssq = ssq + jnp.sum(h * h, axis=0, keepdims=True)       # (1, 4C)

        # Post-GELU activation kept in bf16 between GELU and the GRN scale.
        h_ref[pl.ds(r0 * W, RS * W), :] = h.astype(jnp.bfloat16)
        return ssq

    ssq = jax.lax.fori_loop(0, num_strips, strip_body,
                            jnp.zeros((1, C4), jnp.float32), unroll=True)

    # ---- GRN scale (per batch element); beta folded into pwconv2 bias ----
    gx = jnp.sqrt(ssq)                                           # (1, 4C)
    nx = gx / (jnp.mean(gx, axis=-1, keepdims=True) + 1e-6)
    # gamma*(h*nx) + beta + h == h*(gamma*nx + 1) + beta ; beta handled via b2_eff.
    scale = gamma_ref[0, :][None, :] * nx + 1.0                  # (1, 4C) f32

    # ---- pwconv2: bf16 MXU operands, f32 accumulation ----
    hb = (h_ref[...] * scale).astype(jnp.bfloat16)               # (H*W, 4C)
    y = jnp.dot(hb, w2_ref[...], preferred_element_type=jnp.float32)
    y = y + b2_ref[0, :][None, :]

    # ---- residual (drop_path = 0.0 -> identity) ----
    o_ref[0] = x_ref[0] + y.reshape(H, W, C)


def _pick_rows_per_strip(H, W, C, budget_bytes=96 * 1024):
    """Largest divisor of H whose f32 strip accumulator fits the vreg-ish budget."""
    best = 1
    for rs in range(1, H + 1):
        if H % rs == 0 and rs * W * C * 4 <= budget_bytes:
            best = rs
    return best


def _vmem_limit_bytes(H, W, C, rs):
    C4 = 4 * C
    f32, bf16 = 4, 2
    io_tiles = 2 * (H * W * C * f32) * 2                       # in + out, double-buffered
    xpad = (H + 6) * (W + 6) * C * f32
    h_scr = H * W * C4 * bf16
    weights = (49 * C + C + C4 + C4 + C) * f32 + (C * C4 + C4 * C) * bf16
    strip = ((rs + 6) * (W + 6) * C + 3 * (rs + 6) * W * C + 3 * rs * W * C) * f32 \
            + rs * W * C4 * (f32 + bf16) + rs * W * C * bf16
    phase2 = H * W * C4 * (f32 + bf16) + H * W * C * f32       # hb temps + y
    est = int((io_tiles + xpad + h_scr + 2 * weights + strip + phase2) * 1.4)
    # Cap well under v7x's 64 MiB physical VMEM per TensorCore.
    return max(16 * 1024 * 1024, min(48 * 1024 * 1024, est))


def convnextv2_block_nhwc(x_nhwc, params, *, gelu_approximate=True):
    """ConvNeXtV2 block on a channels-last (N, H, W, C) float activation."""
    N, H, W, C = x_nhwc.shape
    dww, dwb, lnw, lnb, w1, b1, gamma, beta, w2, b2 = params
    C4 = 4 * C

    # Fold LayerNorm affine into pwconv1 and GRN beta (+ b2) into pwconv2's bias.
    w1_eff = (lnw.reshape(C, 1) * w1).astype(jnp.bfloat16)                     # (C, 4C)
    b1_eff = (b1.reshape(1, C4) + lnb.reshape(1, C) @ w1).astype(jnp.float32)  # (1, 4C)
    w2_eff = w2.astype(jnp.bfloat16)                                           # (4C, C)
    b2_eff = (b2.reshape(1, C) + beta.reshape(1, C4) @ w2).astype(jnp.float32)  # (1, C)

    x = x_nhwc.astype(jnp.float32)
    rs = _pick_rows_per_strip(H, W, C)

    spatial_spec = pl.BlockSpec((1, H, W, C), lambda b: (b, 0, 0, 0))
    param_spec = lambda shape: pl.BlockSpec(shape, lambda b: (0, 0))

    kernel = functools.partial(_block_kernel, rows_per_strip=rs,
                               gelu_approximate=gelu_approximate)

    return pl.pallas_call(
        kernel,
        out_shape=jax.ShapeDtypeStruct((N, H, W, C), jnp.float32),
        grid=(N,),
        in_specs=[
            spatial_spec,                 # x: conv input AND residual (single DMA)
            param_spec((49, C)),          # depthwise weight, (ky*7+kx, C)
            param_spec((1, C)),           # depthwise bias
            param_spec((C, C4)),          # pwconv1 weight (LN affine folded), bf16
            param_spec((1, C4)),          # pwconv1 bias (LN affine folded)
            param_spec((1, C4)),          # GRN gamma
            param_spec((C4, C)),          # pwconv2 weight, bf16
            param_spec((1, C)),           # pwconv2 bias (GRN beta folded)
        ],
        out_specs=spatial_spec,
        scratch_shapes=[
            pltpu.VMEM((H + 6, W + 6, C), jnp.float32),   # padded halo tile
            pltpu.VMEM((H * W, C4), jnp.bfloat16),        # post-GELU activations
        ],
        compiler_params=pltpu.CompilerParams(
            dimension_semantics=("parallel",),
            vmem_limit_bytes=_vmem_limit_bytes(H, W, C, rs)),
    )(x, dww, dwb, w1_eff, b1_eff, gamma, w2_eff, b2_eff)


def convnextv2_block(x_nchw, params, *, gelu_approximate=True):
    """NCHW wrapper matching the PyTorch module interface (transposes once per call)."""
    x = jnp.transpose(x_nchw, (0, 2, 3, 1))
    out = convnextv2_block_nhwc(x, params, gelu_approximate=gelu_approximate)
    return jnp.transpose(out, (0, 3, 1, 2))


def init_params(key, dim):
    """Deterministic synthetic parameters (module __init__ shapes)."""
    ks = jax.random.split(key, 8)
    c4 = 4 * dim
    dww = 0.1 * jax.random.normal(ks[0], (49, dim), jnp.float32)     # (7*7, C) depthwise
    dwb = 0.1 * jax.random.normal(ks[1], (1, dim), jnp.float32)
    lnw = jnp.ones((1, dim), jnp.float32)
    lnb = jnp.zeros((1, dim), jnp.float32)
    w1 = 0.1 * jax.random.normal(ks[2], (dim, c4), jnp.float32)
    b1 = 0.1 * jax.random.normal(ks[3], (1, c4), jnp.float32)
    # GRN params are zeros in the module; use small random values so the GRN
    # path is actually exercised (still deterministic).
    gamma = 0.1 * jax.random.normal(ks[4], (1, c4), jnp.float32)
    beta = 0.1 * jax.random.normal(ks[5], (1, c4), jnp.float32)
    w2 = 0.1 * jax.random.normal(ks[6], (c4, dim), jnp.float32)
    b2 = 0.1 * jax.random.normal(ks[7], (1, dim), jnp.float32)
    return (dww, dwb, lnw, lnb, w1, b1, gamma, beta, w2, b2)


def _reference_block(x_nchw, params):
    """Pure-JAX f32 reference (exact-erf GELU, unfolded LN/GRN), for a sanity check."""
    dww, dwb, lnw, lnb, w1, b1, gamma, beta, w2, b2 = params
    N, C, H, W = x_nchw.shape
    x = jnp.transpose(x_nchw, (0, 2, 3, 1))
    xp = jnp.pad(x, ((0, 0), (3, 3), (3, 3), (0, 0)))
    acc = jnp.zeros_like(x)
    for dy in range(7):
        for dx in range(7):
            acc = acc + xp[:, dy:dy + H, dx:dx + W, :] * dww[dy * 7 + dx][None, None, None, :]
    acc = acc + dwb[0][None, None, None, :]
    u = acc.mean(-1, keepdims=True)
    s = ((acc - u) ** 2).mean(-1, keepdims=True)
    xn = (acc - u) / jnp.sqrt(s + 1e-6) * lnw[0] + lnb[0]
    h = xn @ w1 + b1[0]
    h = 0.5 * h * (1.0 + jax.lax.erf(h / jnp.sqrt(2.0)))
    gx = jnp.sqrt(jnp.sum(h * h, axis=(1, 2), keepdims=True))
    nx = gx / (gx.mean(-1, keepdims=True) + 1e-6)
    h = gamma[0] * (h * nx) + beta[0] + h
    y = h @ w2 + b2[0]
    return jnp.transpose(x + y, (0, 3, 1, 2))


if __name__ == "__main__":
    key = jax.random.PRNGKey(0)
    kx, kp = jax.random.split(key)

    N, C, H, W = 2, 4, 16, 16
    x = jax.random.normal(kx, (N, C, H, W), jnp.float32)
    params = init_params(kp, C)

    out = convnextv2_block(x, params)
    out = jax.block_until_ready(out)
    assert out.shape == (N, C, H, W)

    # Loose-tolerance sanity check (kernel uses bf16 matmul operands + tanh-GELU).
    ref = _reference_block(x, params)
    err = float(jnp.max(jnp.abs(out - ref)))
    assert err < 0.06, f"max abs err vs reference: {err}"
    print("KERNEL_OK")
</pallas_src>

<mosaic_0001>
module attributes {stable_mosaic.version = 11 : i64} {
  func.func @_block_kernel(%arg0: i32, %arg1: memref<1x16x16x4xf32, #tpu.memory_space<vmem>>, %arg2: memref<49x4xf32, #tpu.memory_space<vmem>>, %arg3: memref<1x4xf32, #tpu.memory_space<vmem>>, %arg4: memref<4x16xbf16, #tpu.memory_space<vmem>>, %arg5: memref<1x16xf32, #tpu.memory_space<vmem>>, %arg6: memref<1x16xf32, #tpu.memory_space<vmem>>, %arg7: memref<16x4xbf16, #tpu.memory_space<vmem>>, %arg8: memref<1x4xf32, #tpu.memory_space<vmem>>, %arg9: memref<1x16x16x4xf32, #tpu.memory_space<vmem>>, %arg10: memref<22x22x4xf32, #tpu.memory_space<vmem>>, %arg11: memref<256x16xbf16, #tpu.memory_space<vmem>>) attributes {dimension_semantics = [#tpu.dimension_semantics<parallel>], iteration_bounds = array<i64: 2>, scalar_prefetch = 0 : i64, scratch_operands = 2 : i64, tpu.core_type = #tpu.core_type<tc>, window_params = [{transform_indices = @transform_0, window_bounds = array<i64: 1, 16, 16, 4>}, {pipeline_mode = #tpu.pipeline_mode<synchronous>, transform_indices = @transform_1, window_bounds = array<i64: 49, 4>}, {pipeline_mode = #tpu.pipeline_mode<synchronous>, transform_indices = @transform_2, window_bounds = array<i64: 1, 4>}, {pipeline_mode = #tpu.pipeline_mode<synchronous>, transform_indices = @transform_3, window_bounds = array<i64: 4, 16>}, {pipeline_mode = #tpu.pipeline_mode<synchronous>, transform_indices = @transform_4, window_bounds = array<i64: 1, 16>}, {pipeline_mode = #tpu.pipeline_mode<synchronous>, transform_indices = @transform_5, window_bounds = array<i64: 1, 16>}, {pipeline_mode = #tpu.pipeline_mode<synchronous>, transform_indices = @transform_6, window_bounds = array<i64: 16, 4>}, {pipeline_mode = #tpu.pipeline_mode<synchronous>, transform_indices = @transform_7, window_bounds = array<i64: 1, 4>}, {transform_indices = @transform_8, window_bounds = array<i64: 1, 16, 16, 4>}]} {
    %cst = arith.constant 0.000000e+00 : f32
    %0 = vector.broadcast %cst : f32 to vector<3x22x4xf32>
    %c0 = arith.constant 0 : index
    %c0_0 = arith.constant 0 : index
    %c0_1 = arith.constant 0 : index
    %1 = vector.load %arg10[%c0, %c0_0, %c0_1] : memref<22x22x4xf32, #tpu.memory_space<vmem>>, vector<3x22x4xf32>
    tpu.vector_store %arg10[%c0, %c0_0, %c0_1], %0 {strides = array<i32>} : memref<22x22x4xf32, #tpu.memory_space<vmem>>, vector<3x22x4xf32>,
    %c19 = arith.constant 19 : index
    %c0_2 = arith.constant 0 : index
    %c0_3 = arith.constant 0 : index
    %2 = vector.load %arg10[%c19, %c0_2, %c0_3] : memref<22x22x4xf32, #tpu.memory_space<vmem>>, vector<3x22x4xf32>
    tpu.vector_store %arg10[%c19, %c0_2, %c0_3], %0 {strides = array<i32>} : memref<22x22x4xf32, #tpu.memory_space<vmem>>, vector<3x22x4xf32>,
    %cst_4 = arith.constant 0.000000e+00 : f32
    %3 = vector.broadcast %cst_4 : f32 to vector<16x3x4xf32>
    %c3 = arith.constant 3 : index
    %c0_5 = arith.constant 0 : index
    %c0_6 = arith.constant 0 : index
    %4 = vector.load %arg10[%c3, %c0_5, %c0_6] : memref<22x22x4xf32, #tpu.memory_space<vmem>>, vector<16x3x4xf32>
    tpu.vector_store %arg10[%c3, %c0_5, %c0_6], %3 {strides = array<i32>} : memref<22x22x4xf32, #tpu.memory_space<vmem>>, vector<16x3x4xf32>,
    %c3_7 = arith.constant 3 : index
    %c19_8 = arith.constant 19 : index
    %c0_9 = arith.constant 0 : index
    %5 = vector.load %arg10[%c3_7, %c19_8, %c0_9] : memref<22x22x4xf32, #tpu.memory_space<vmem>>, vector<16x3x4xf32>
    tpu.vector_store %arg10[%c3_7, %c19_8, %c0_9], %3 {strides = array<i32>} : memref<22x22x4xf32, #tpu.memory_space<vmem>>, vector<16x3x4xf32>,
    %c0_10 = arith.constant 0 : index
    %c0_11 = arith.constant 0 : index
    %c0_12 = arith.constant 0 : index
    %c0_13 = arith.constant 0 : index
    %6 = vector.load %arg1[%c0_10, %c0_11, %c0_12, %c0_13] : memref<1x16x16x4xf32, #tpu.memory_space<vmem>>, vector<1x16x16x4xf32>
    %7 = vector.shape_cast %6 : vector<1x16x16x4xf32> to vector<16x16x4xf32>
    %c3_14 = arith.constant 3 : index
    %c3_15 = arith.constant 3 : index
    %c0_16 = arith.constant 0 : index
    %8 = vector.load %arg10[%c3_14, %c3_15, %c0_16] : memref<22x22x4xf32, #tpu.memory_space<vmem>>, vector<16x16x4xf32>
    tpu.vector_store %arg10[%c3_14, %c3_15, %c0_16], %7 {strides = array<i32>} : memref<22x22x4xf32, #tpu.memory_space<vmem>>, vector<16x16x4xf32>,
    %c0_17 = arith.constant 0 : index
    %c0_18 = arith.constant 0 : index
    %9 = vector.load %arg2[%c0_17, %c0_18] : memref<49x4xf32, #tpu.memory_space<vmem>>, vector<49x4xf32>
    %c0_19 = arith.constant 0 : index
    %c0_20 = arith.constant 0 : index
    %10 = vector.load %arg3[%c0_19, %c0_20] : memref<1x4xf32, #tpu.memory_space<vmem>>, vector<1x4xf32>
    %11 = vector.shape_cast %10 : vector<1x4xf32> to vector<4xf32>
    %c0_21 = arith.constant 0 : index
    %c0_22 = arith.constant 0 : index
    %12 = vector.load %arg5[%c0_21, %c0_22] : memref<1x16xf32, #tpu.memory_space<vmem>>, vector<1x16xf32>
    %13 = vector.shape_cast %12 : vector<1x16xf32> to vector<16xf32>
    %14 = vector.shape_cast %13 : vector<16xf32> to vector<1x16xf32>
    %cst_23 = arith.constant 0.000000e+00 : f32
    %15 = vector.broadcast %cst_23 : f32 to vector<1x16xf32>
    %c0_i32 = arith.constant 0 : i32
    %c16_i32 = arith.constant 16 : i32
    %16 = arith.muli %c0_i32, %c16_i32 : i32
    %17 = arith.index_cast %16 : i32 to index
    %c0_24 = arith.constant 0 : index
    %c0_25 = arith.constant 0 : index
    %18 = vector.load %arg10[%17, %c0_24, %c0_25] : memref<22x22x4xf32, #tpu.memory_space<vmem>>, vector<22x22x4xf32>
    %cst_26 = arith.constant 0.000000e+00 : f32
    %19 = vector.broadcast %cst_26 : f32 to vector<16x16x4xf32>
    %20 = vector.extract_strided_slice %18 {offsets = [0, 0, 0], sizes = [22, 16, 4], strides = [1, 1, 1]} : vector<22x22x4xf32> to vector<22x16x4xf32>
    %21 = vector.extract_strided_slice %20 {offsets = [0, 0, 0], sizes = [16, 16, 4], strides = [1, 1, 1]} : vector<22x16x4xf32> to vector<16x16x4xf32>
    %22 = vector.extract_strided_slice %9 {offsets = [0, 0], sizes = [1, 4], strides = [1, 1]} : vector<49x4xf32> to vector<1x4xf32>
    %23 = vector.shape_cast %22 : vector<1x4xf32> to vector<4xf32>
    %24 = vector.shape_cast %23 : vector<4xf32> to vector<1x1x4xf32>
    %25 = vector.broadcast %24 : vector<1x1x4xf32> to vector<16x16x4xf32>
    %26 = arith.mulf %21, %25 : vector<16x16x4xf32>
    %27 = arith.addf %19, %26 : vector<16x16x4xf32>
    %28 = vector.extract_strided_slice %20 {offsets = [1, 0, 0], sizes = [16, 16, 4], strides = [1, 1, 1]} : vector<22x16x4xf32> to vector<16x16x4xf32>
    %29 = vector.extract_strided_slice %9 {offsets = [7, 0], sizes = [1, 4], strides = [1, 1]} : vector<49x4xf32> to vector<1x4xf32>
    %30 = vector.shape_cast %29 : vector<1x4xf32> to vector<4xf32>
    %31 = vector.shape_cast %30 : vector<4xf32> to vector<1x1x4xf32>
    %32 = vector.broadcast %31 : vector<1x1x4xf32> to vector<16x16x4xf32>
    %33 = arith.mulf %28, %32 : vector<16x16x4xf32>
    %34 = arith.addf %27, %33 : vector<16x16x4xf32>
    %35 = vector.extract_strided_slice %20 {offsets = [2, 0, 0], sizes = [16, 16, 4], strides = [1, 1, 1]} : vector<22x16x4xf32> to vector<16x16x4xf32>
    %36 = vector.extract_strided_slice %9 {offsets = [14, 0], sizes = [1, 4], strides = [1, 1]} : vector<49x4xf32> to vector<1x4xf32>
    %37 = vector.shape_cast %36 : vector<1x4xf32> to vector<4xf32>
    %38 = vector.shape_cast %37 : vector<4xf32> to vector<1x1x4xf32>
    %39 = vector.broadcast %38 : vector<1x1x4xf32> to vector<16x16x4xf32>
    %40 = arith.mulf %35, %39 : vector<16x16x4xf32>
    %41 = arith.addf %34, %40 : vector<16x16x4xf32>
    %42 = vector.extract_strided_slice %20 {offsets = [3, 0, 0], sizes = [16, 16, 4], strides = [1, 1, 1]} : vector<22x16x4xf32> to vector<16x16x4xf32>
    %43 = vector.extract_strided_slice %9 {offsets = [21, 0], sizes = [1, 4], strides = [1, 1]} : vector<49x4xf32> to vector<1x4xf32>
    %44 = vector.shape_cast %43 : vector<1x4xf32> to vector<4xf32>
    %45 = vector.shape_cast %44 : vector<4xf32> to vector<1x1x4xf32>
    %46 = vector.broadcast %45 : vector<1x1x4xf32> to vector<16x16x4xf32>
    %47 = arith.mulf %42, %46 : vector<16x16x4xf32>
    %48 = arith.addf %41, %47 : vector<16x16x4xf32>
    %49 = vector.extract_strided_slice %20 {offsets = [4, 0, 0], sizes = [16, 16, 4], strides = [1, 1, 1]} : vector<22x16x4xf32> to vector<16x16x4xf32>
    %50 = vector.extract_strided_slice %9 {offsets = [28, 0], sizes = [1, 4], strides = [1, 1]} : vector<49x4xf32> to vector<1x4xf32>
    %51 = vector.shape_cast %50 : vector<1x4xf32> to vector<4xf32>
    %52 = vector.shape_cast %51 : vector<4xf32> to vector<1x1x4xf32>
    %53 = vector.broadcast %52 : vector<1x1x4xf32> to vector<16x16x4xf32>
    %54 = arith.mulf %49, %53 : vector<16x16x4xf32>
    %55 = arith.addf %48, %54 : vector<16x16x4xf32>
    %56 = vector.extract_strided_slice %20 {offsets = [5, 0, 0], sizes = [16, 16, 4], strides = [1, 1, 1]} : vector<22x16x4xf32> to vector<16x16x4xf32>
    %57 = vector.extract_strided_slice %9 {offsets = [35, 0], sizes = [1, 4], strides = [1, 1]} : vector<49x4xf32> to vector<1x4xf32>
    %58 = vector.shape_cast %57 : vector<1x4xf32> to vector<4xf32>
    %59 = vector.shape_cast %58 : vector<4xf32> to vector<1x1x4xf32>
    %60 = vector.broadcast %59 : vector<1x1x4xf32> to vector<16x16x4xf32>
    %61 = arith.mulf %56, %60 : vector<16x16x4xf32>
    %62 = arith.addf %55, %61 : vector<16x16x4xf32>
    %63 = vector.extract_strided_slice %20 {offsets = [6, 0, 0], sizes = [16, 16, 4], strides = [1, 1, 1]} : vector<22x16x4xf32> to vector<16x16x4xf32>
    %64 = vector.extract_strided_slice %9 {offsets = [42, 0], sizes = [1, 4], strides = [1, 1]} : vector<49x4xf32> to vector<1x4xf32>
    %65 = vector.shape_cast %64 : vector<1x4xf32> to vector<4xf32>
    %66 = vector.shape_cast %65 : vector<4xf32> to vector<1x1x4xf32>
    %67 = vector.broadcast %66 : vector<1x1x4xf32> to vector<16x16x4xf32>
    %68 = arith.mulf %63, %67 : vector<16x16x4xf32>
    %69 = arith.addf %62, %68 : vector<16x16x4xf32>
    %70 = vector.extract_strided_slice %18 {offsets = [0, 1, 0], sizes = [22, 16, 4], strides = [1, 1, 1]} : vector<22x22x4xf32> to vector<22x16x4xf32>
    %71 = vector.extract_strided_slice %70 {offsets = [0, 0, 0], sizes = [16, 16, 4], strides = [1, 1, 1]} : vector<22x16x4xf32> to vector<16x16x4xf32>
    %72 = vector.extract_strided_slice %9 {offsets = [1, 0], sizes = [1, 4], strides = [1, 1]} : vector<49x4xf32> to vector<1x4xf32>
    %73 = vector.shape_cast %72 : vector<1x4xf32> to vector<4xf32>
    %74 = vector.shape_cast %73 : vector<4xf32> to vector<1x1x4xf32>
    %75 = vector.broadcast %74 : vector<1x1x4xf32> to vector<16x16x4xf32>
    %76 = arith.mulf %71, %75 : vector<16x16x4xf32>
    %77 = arith.addf %69, %76 : vector<16x16x4xf32>
    %78 = vector.extract_strided_slice %70 {offsets = [1, 0, 0], sizes = [16, 16, 4], strides = [1, 1, 1]} : vector<22x16x4xf32> to vector<16x16x4xf32>
    %79 = vector.extract_strided_slice %9 {offsets = [8, 0], sizes = [1, 4], strides = [1, 1]} : vector<49x4xf32> to vector<1x4xf32>
    %80 = vector.shape_cast %79 : vector<1x4xf32> to vector<4xf32>
    %81 = vector.shape_cast %80 : vector<4xf32> to vector<1x1x4xf32>
    %82 = vector.broadcast %81 : vector<1x1x4xf32> to vector<16x16x4xf32>
    %83 = arith.mulf %78, %82 : vector<16x16x4xf32>
    %84 = arith.addf %77, %83 : vector<16x16x4xf32>
    %85 = vector.extract_strided_slice %70 {offsets = [2, 0, 0], sizes = [16, 16, 4], strides = [1, 1, 1]} : vector<22x16x4xf32> to vector<16x16x4xf32>
    %86 = vector.extract_strided_slice %9 {offsets = [15, 0], sizes = [1, 4], strides = [1, 1]} : vector<49x4xf32> to vector<1x4xf32>
    %87 = vector.shape_cast %86 : vector<1x4xf32> to vector<4xf32>
    %88 = vector.shape_cast %87 : vector<4xf32> to vector<1x1x4xf32>
    %89 = vector.broadcast %88 : vector<1x1x4xf32> to vector<16x16x4xf32>
    %90 = arith.mulf %85, %89 : vector<16x16x4xf32>
    %91 = arith.addf %84, %90 : vector<16x16x4xf32>
    %92 = vector.extract_strided_slice %70 {offsets = [3, 0, 0], sizes = [16, 16, 4], strides = [1, 1, 1]} : vector<22x16x4xf32> to vector<16x16x4xf32>
    %93 = vector.extract_strided_slice %9 {offsets = [22, 0], sizes = [1, 4], strides = [1, 1]} : vector<49x4xf32> to vector<1x4xf32>
    %94 = vector.shape_cast %93 : vector<1x4xf32> to vector<4xf32>
    %95 = vector.shape_cast %94 : vector<4xf32> to vector<1x1x4xf32>
    %96 = vector.broadcast %95 : vector<1x1x4xf32> to vector<16x16x4xf32>
    %97 = arith.mulf %92, %96 : vector<16x16x4xf32>
    %98 = arith.addf %91, %97 : vector<16x16x4xf32>
    %99 = vector.extract_strided_slice %70 {offsets = [4, 0, 0], sizes = [16, 16, 4], strides = [1, 1, 1]} : vector<22x16x4xf32> to vector<16x16x4xf32>
    %100 = vector.extract_strided_slice %9 {offsets = [29, 0], sizes = [1, 4], strides = [1, 1]} : vector<49x4xf32> to vector<1x4xf32>
    %101 = vector.shape_cast %100 : vector<1x4xf32> to vector<4xf32>
    %102 = vector.shape_cast %101 : vector<4xf32> to vector<1x1x4xf32>
    %103 = vector.broadcast %102 : vector<1x1x4xf32> to vector<16x16x4xf32>
    %104 = arith.mulf %99, %103 : vector<16x16x4xf32>
    %105 = arith.addf %98, %104 : vector<16x16x4xf32>
    %106 = vector.extract_strided_slice %70 {offsets = [5, 0, 0], sizes = [16, 16, 4], strides = [1, 1, 1]} : vector<22x16x4xf32> to vector<16x16x4xf32>
    %107 = vector.extract_strided_slice %9 {offsets = [36, 0], sizes = [1, 4], strides = [1, 1]} : vector<49x4xf32> to vector<1x4xf32>
    %108 = vector.shape_cast %107 : vector<1x4xf32> to vector<4xf32>
    %109 = vector.shape_cast %108 : vector<4xf32> to vector<1x1x4xf32>
    %110 = vector.broadcast %109 : vector<1x1x4xf32> to vector<16x16x4xf32>
    %111 = arith.mulf %106, %110 : vector<16x16x4xf32>
    %112 = arith.addf %105, %111 : vector<16x16x4xf32>
    %113 = vector.extract_strided_slice %70 {offsets = [6, 0, 0], sizes = [16, 16, 4], strides = [1, 1, 1]} : vector<22x16x4xf32> to vector<16x16x4xf32>
    %114 = vector.extract_strided_slice %9 {offsets = [43, 0], sizes = [1, 4], strides = [1, 1]} : vector<49x4xf32> to vector<1x4xf32>
    %115 = vector.shape_cast %114 : vector<1x4xf32> to vector<4xf32>
    %116 = vector.shape_cast %115 : vector<4xf32> to vector<1x1x4xf32>
    %117 = vector.broadcast %116 : vector<1x1x4xf32> to vector<16x16x4xf32>
    %118 = arith.mulf %113, %117 : vector<16x16x4xf32>
    %119 = arith.addf %112, %118 : vector<16x16x4xf32>
    %120 = vector.extract_strided_slice %18 {offsets = [0, 2, 0], sizes = [22, 16, 4], strides = [1, 1, 1]} : vector<22x22x4xf32> to vector<22x16x4xf32>
    %121 = vector.extract_strided_slice %120 {offsets = [0, 0, 0], sizes = [16, 16, 4], strides = [1, 1, 1]} : vector<22x16x4xf32> to vector<16x16x4xf32>
    %122 = vector.extract_strided_slice %9 {offsets = [2, 0], sizes = [1, 4], strides = [1, 1]} : vector<49x4xf32> to vector<1x4xf32>
    %123 = vector.shape_cast %122 : vector<1x4xf32> to vector<4xf32>
    %124 = vector.shape_cast %123 : vector<4xf32> to vector<1x1x4xf32>
    %125 = vector.broadcast %124 : vector<1x1x4xf32> to vector<16x16x4xf32>
    %126 = arith.mulf %121, %125 : vector<16x16x4xf32>
    %127 = arith.addf %119, %126 : vector<16x16x4xf32>
    %128 = vector.extract_strided_slice %120 {offsets = [1, 0, 0], sizes = [16, 16, 4], strides = [1, 1, 1]} : vector<22x16x4xf32> to vector<16x16x4xf32>
    %129 = vector.extract_strided_slice %9 {offsets = [9, 0], sizes = [1, 4], strides = [1, 1]} : vector<49x4xf32> to vector<1x4xf32>
    %130 = vector.shape_cast %129 : vector<1x4xf32> to vector<4xf32>
    %131 = vector.shape_cast %130 : vector<4xf32> to vector<1x1x4xf32>
    %132 = vector.broadcast %131 : vector<1x1x4xf32> to vector<16x16x4xf32>
    %133 = arith.mulf %128, %132 : vector<16x16x4xf32>
    %134 = arith.addf %127, %133 : vector<16x16x4xf32>
    %135 = vector.extract_strided_slice %120 {offsets = [2, 0, 0], sizes = [16, 16, 4], strides = [1, 1, 1]} : vector<22x16x4xf32> to vector<16x16x4xf32>
    %136 = vector.extract_strided_slice %9 {offsets = [16, 0], sizes = [1, 4], strides = [1, 1]} : vector<49x4xf32> to vector<1x4xf32>
    %137 = vector.shape_cast %136 : vector<1x4xf32> to vector<4xf32>
    %138 = vector.shape_cast %137 : vector<4xf32> to vector<1x1x4xf32>
    %139 = vector.broadcast %138 : vector<1x1x4xf32> to vector<16x16x4xf32>
    %140 = arith.mulf %135, %139 : vector<16x16x4xf32>
    %141 = arith.addf %134, %140 : vector<16x16x4xf32>
    %142 = vector.extract_strided_slice %120 {offsets = [3, 0, 0], sizes = [16, 16, 4], strides = [1, 1, 1]} : vector<22x16x4xf32> to vector<16x16x4xf32>
    %143 = vector.extract_strided_slice %9 {offsets = [23, 0], sizes = [1, 4], strides = [1, 1]} : vector<49x4xf32> to vector<1x4xf32>
    %144 = vector.shape_cast %143 : vector<1x4xf32> to vector<4xf32>
    %145 = vector.shape_cast %144 : vector<4xf32> to vector<1x1x4xf32>
    %146 = vector.broadcast %145 : vector<1x1x4xf32> to vector<16x16x4xf32>
    %147 = arith.mulf %142, %146 : vector<16x16x4xf32>
    %148 = arith.addf %141, %147 : vector<16x16x4xf32>
    %149 = vector.extract_strided_slice %120 {offsets = [4, 0, 0], sizes = [16, 16, 4], strides = [1, 1, 1]} : vector<22x16x4xf32> to vector<16x16x4xf32>
    %150 = vector.extract_strided_slice %9 {offsets = [30, 0], sizes = [1, 4], strides = [1, 1]} : vector<49x4xf32> to vector<1x4xf32>
    %151 = vector.shape_cast %150 : vector<1x4xf32> to vector<4xf32>
    %152 = vector.shape_cast %151 : vector<4xf32> to vector<1x1x4xf32>
    %153 = vector.broadcast %152 : vector<1x1x4xf32> to vector<16x16x4xf32>
    %154 = arith.mulf %149, %153 : vector<16x16x4xf32>
    %155 = arith.addf %148, %154 : vector<16x16x4xf32>
    %156 = vector.extract_strided_slice %120 {offsets = [5, 0, 0], sizes = [16, 16, 4], strides = [1, 1, 1]} : vector<22x16x4xf32> to vector<16x16x4xf32>
    %157 = vector.extract_strided_slice %9 {offsets = [37, 0], sizes = [1, 4], strides = [1, 1]} : vector<49x4xf32> to vector<1x4xf32>
    %158 = vector.shape_cast %157 : vector<1x4xf32> to vector<4xf32>
    %159 = vector.shape_cast %158 : vector<4xf32> to vector<1x1x4xf32>
    %160 = vector.broadcast %159 : vector<1x1x4xf32> to vector<16x16x4xf32>
    %161 = arith.mulf %156, %160 : vector<16x16x4xf32>
    %162 = arith.addf %155, %161 : vector<16x16x4xf32>
    %163 = vector.extract_strided_slice %120 {offsets = [6, 0, 0], sizes = [16, 16, 4], strides = [1, 1, 1]} : vector<22x16x4xf32> to vector<16x16x4xf32>
    %164 = vector.extract_strided_slice %9 {offsets = [44, 0], sizes = [1, 4], strides = [1, 1]} : vector<49x4xf32> to vector<1x4xf32>
    %165 = vector.shape_cast %164 : vector<1x4xf32> to vector<4xf32>
    %166 = vector.shape_cast %165 : vector<4xf32> to vector<1x1x4xf32>
    %167 = vector.broadcast %166 : vector<1x1x4xf32> to vector<16x16x4xf32>
    %168 = arith.mulf %163, %167 : vector<16x16x4xf32>
    %169 = arith.addf %162, %168 : vector<16x16x4xf32>
    %170 = vector.extract_strided_slice %18 {offsets = [0, 3, 0], sizes = [22, 16, 4], strides = [1, 1, 1]} : vector<22x22x4xf32> to vector<22x16x4xf32>
    %171 = vector.extract_strided_slice %170 {offsets = [0, 0, 0], sizes = [16, 16, 4], strides = [1, 1, 1]} : vector<22x16x4xf32> to vector<16x16x4xf32>
    %172 = vector.extract_strided_slice %9 {offsets = [3, 0], sizes = [1, 4], strides = [1, 1]} : vector<49x4xf32> to vector<1x4xf32>
    %173 = vector.shape_cast %172 : vector<1x4xf32> to vector<4xf32>
    %174 = vector.shape_cast %173 : vector<4xf32> to vector<1x1x4xf32>
    %175 = vector.broadcast %174 : vector<1x1x4xf32> to vector<16x16x4xf32>
    %176 = arith.mulf %171, %175 : vector<16x16x4xf32>
    %177 = arith.addf %169, %176 : vector<16x16x4xf32>
    %178 = vector.extract_strided_slice %170 {offsets = [1, 0, 0], sizes = [16, 16, 4], strides = [1, 1, 1]} : vector<22x16x4xf32> to vector<16x16x4xf32>
    %179 = vector.extract_strided_slice %9 {offsets = [10, 0], sizes = [1, 4], strides = [1, 1]} : vector<49x4xf32> to vector<1x4xf32>
    %180 = vector.shape_cast %179 : vector<1x4xf32> to vector<4xf32>
    %181 = vector.shape_cast %180 : vector<4xf32> to vector<1x1x4xf32>
    %182 = vector.broadcast %181 : vector<1x1x4xf32> to vector<16x16x4xf32>
    %183 = arith.mulf %178, %182 : vector<16x16x4xf32>
    %184 = arith.addf %177, %183 : vector<16x16x4xf32>
    %185 = vector.extract_strided_slice %170 {offsets = [2, 0, 0], sizes = [16, 16, 4], strides = [1, 1, 1]} : vector<22x16x4xf32> to vector<16x16x4xf32>
    %186 = vector.extract_strided_slice %9 {offsets = [17, 0], sizes = [1, 4], strides = [1, 1]} : vector<49x4xf32> to vector<1x4xf32>
    %187 = vector.shape_cast %186 : vector<1x4xf32> to vector<4xf32>
    %188 = vector.shape_cast %187 : vector<4xf32> to vector<1x1x4xf32>
    %189 = vector.broadcast %188 : vector<1x1x4xf32> to vector<16x16x4xf32>
    %190 = arith.mulf %185, %189 : vector<16x16x4xf32>
    %191 = arith.addf %184, %190 : vector<16x16x4xf32>
    %192 = vector.extract_strided_slice %170 {offsets = [3, 0, 0], sizes = [16, 16, 4], strides = [1, 1, 1]} : vector<22x16x4xf32> to vector<16x16x4xf32>
    %193 = vector.extract_strided_slice %9 {offsets = [24, 0], sizes = [1, 4], strides = [1, 1]} : vector<49x4xf32> to vector<1x4xf32>
    %194 = vector.shape_cast %193 : vector<1x4xf32> to vector<4xf32>
    %195 = vector.shape_cast %194 : vector<4xf32> to vector<1x1x4xf32>
    %196 = vector.broadcast %195 : vector<1x1x4xf32> to vector<16x16x4xf32>
    %197 = arith.mulf %192, %196 : vector<16x16x4xf32>
    %198 = arith.addf %191, %197 : vector<16x16x4xf32>
    %199 = vector.extract_strided_slice %170 {offsets = [4, 0, 0], sizes = [16, 16, 4], strides = [1, 1, 1]} : vector<22x16x4xf32> to vector<16x16x4xf32>
    %200 = vector.extract_strided_slice %9 {offsets = [31, 0], sizes = [1, 4], strides = [1, 1]} : vector<49x4xf32> to vector<1x4xf32>
    %201 = vector.shape_cast %200 : vector<1x4xf32> to vector<4xf32>
    %202 = vector.shape_cast %201 : vector<4xf32> to vector<1x1x4xf32>
    %203 = vector.broadcast %202 : vector<1x1x4xf32> to vector<16x16x4xf32>
    %204 = arith.mulf %199, %203 : vector<16x16x4xf32>
    %205 = arith.addf %198, %204 : vector<16x16x4xf32>
    %206 = vector.extract_strided_slice %170 {offsets = [5, 0, 0], sizes = [16, 16, 4], strides = [1, 1, 1]} : vector<22x16x4xf32> to vector<16x16x4xf32>
    %207 = vector.extract_strided_slice %9 {offsets = [38, 0], sizes = [1, 4], strides = [1, 1]} : vector<49x4xf32> to vector<1x4xf32>
    %208 = vector.shape_cast %207 : vector<1x4xf32> to vector<4xf32>
    %209 = vector.shape_cast %208 : vector<4xf32> to vector<1x1x4xf32>
    %210 = vector.broadcast %209 : vector<1x1x4xf32> to vector<16x16x4xf32>
    %211 = arith.mulf %206, %210 : vector<16x16x4xf32>
    %212 = arith.addf %205, %211 : vector<16x16x4xf32>
    %213 = vector.extract_strided_slice %170 {offsets = [6, 0, 0], sizes = [16, 16, 4], strides = [1, 1, 1]} : vector<22x16x4xf32> to vector<16x16x4xf32>
    %214 = vector.extract_strided_slice %9 {offsets = [45, 0], sizes = [1, 4], strides = [1, 1]} : vector<49x4xf32> to vector<1x4xf32>
    %215 = vector.shape_cast %214 : vector<1x4xf32> to vector<4xf32>
    %216 = vector.shape_cast %215 : vector<4xf32> to vector<1x1x4xf32>
    %217 = vector.broadcast %216 : vector<1x1x4xf32> to vector<16x16x4xf32>
    %218 = arith.mulf %213, %217 : vector<16x16x4xf32>
    %219 = arith.addf %212, %218 : vector<16x16x4xf32>
    %220 = vector.extract_strided_slice %18 {offsets = [0, 4, 0], sizes = [22, 16, 4], strides = [1, 1, 1]} : vector<22x22x4xf32> to vector<22x16x4xf32>
    %221 = vector.extract_strided_slice %220 {offsets = [0, 0, 0], sizes = [16, 16, 4], strides = [1, 1, 1]} : vector<22x16x4xf32> to vector<16x16x4xf32>
    %222 = vector.extract_strided_slice %9 {offsets = [4, 0], sizes = [1, 4], strides = [1, 1]} : vector<49x4xf32> to vector<1x4xf32>
    %223 = vector.shape_cast %222 : vector<1x4xf32> to vector<4xf32>
    %224 = vector.shape_cast %223 : vector<4xf32> to vector<1x1x4xf32>
    %225 = vector.broadcast %224 : vector<1x1x4xf32> to vector<16x16x4xf32>
    %226 = arith.mulf %221, %225 : vector<16x16x4xf32>
    %227 = arith.addf %219, %226 : vector<16x16x4xf32>
    %228 = vector.extract_strided_slice %220 {offsets = [1, 0, 0], sizes = [16, 16, 4], strides = [1, 1, 1]} : vector<22x16x4xf32> to vector<16x16x4xf32>
    %229 = vector.extract_strided_slice %9 {offsets = [11, 0], sizes = [1, 4], strides = [1, 1]} : vector<49x4xf32> to vector<1x4xf32>
    %230 = vector.shape_cast %229 : vector<1x4xf32> to vector<4xf32>
    %231 = vector.shape_cast %230 : vector<4xf32> to vector<1x1x4xf32>
    %232 = vector.broadcast %231 : vector<1x1x4xf32> to vector<16x16x4xf32>
    %233 = arith.mulf %228, %232 : vector<16x16x4xf32>
    %234 = arith.addf %227, %233 : vector<16x16x4xf32>
    %235 = vector.extract_strided_slice %220 {offsets = [2, 0, 0], sizes = [16, 16, 4], strides = [1, 1, 1]} : vector<22x16x4xf32> to vector<16x16x4xf32>
    %236 = vector.extract_strided_slice %9 {offsets = [18, 0], sizes = [1, 4], strides = [1, 1]} : vector<49x4xf32> to vector<1x4xf32>
    %237 = vector.shape_cast %236 : vector<1x4xf32> to vector<4xf32>
    %238 = vector.shape_cast %237 : vector<4xf32> to vector<1x1x4xf32>
    %239 = vector.broadcast %238 : vector<1x1x4xf32> to vector<16x16x4xf32>
    %240 = arith.mulf %235, %239 : vector<16x16x4xf32>
    %241 = arith.addf %234, %240 : vector<16x16x4xf32>
    %242 = vector.extract_strided_slice %220 {offsets = [3, 0, 0], sizes = [16, 16, 4], strides = [1, 1, 1]} : vector<22x16x4xf32> to vector<16x16x4xf32>
    %243 = vector.extract_strided_slice %9 {offsets = [25, 0], sizes = [1, 4], strides = [1, 1]} : vector<49x4xf32> to vector<1x4xf32>
    %244 = vector.shape_cast %243 : vector<1x4xf32> to vector<4xf32>
    %245 = vector.shape_cast %244 : vector<4xf32> to vector<1x1x4xf32>
    %246 = vector.broadcast %245 : vector<1x1x4xf32> to vector<16x16x4xf32>
    %247 = arith.mulf %242, %246 : vector<16x16x4xf32>
    %248 = arith.addf %241, %247 : vector<16x16x4xf32>
    %249 = vector.extract_strided_slice %220 {offsets = [4, 0, 0], sizes = [16, 16, 4], strides = [1, 1, 1]} : vector<22x16x4xf32> to vector<16x16x4xf32>
    %250 = vector.extract_strided_slice %9 {offsets = [32, 0], sizes = [1, 4], strides = [1, 1]} : vector<49x4xf32> to vector<1x4xf32>
    %251 = vector.shape_cast %250 : vector<1x4xf32> to vector<4xf32>
    %252 = vector.shape_cast %251 : vector<4xf32> to vector<1x1x4xf32>
    %253 = vector.broadcast %252 : vector<1x1x4xf32> to vector<16x16x4xf32>
    %254 = arith.mulf %249, %253 : vector<16x16x4xf32>
    %255 = arith.addf %248, %254 : vector<16x16x4xf32>
    %256 = vector.extract_strided_slice %220 {offsets = [5, 0, 0], sizes = [16, 16, 4], strides = [1, 1, 1]} : vector<22x16x4xf32> to vector<16x16x4xf32>
    %257 = vector.extract_strided_slice %9 {offsets = [39, 0], sizes = [1, 4], strides = [1, 1]} : vector<49x4xf32> to vector<1x4xf32>
    %258 = vector.shape_cast %257 : vector<1x4xf32> to vector<4xf32>
    %259 = vector.shape_cast %258 : vector<4xf32> to vector<1x1x4xf32>
    %260 = vector.broadcast %259 : vector<1x1x4xf32> to vector<16x16x4xf32>
    %261 = arith.mulf %256, %260 : vector<16x16x4xf32>
    %262 = arith.addf %255, %261 : vector<16x16x4xf32>
    %263 = vector.extract_strided_slice %220 {offsets = [6, 0, 0], sizes = [16, 16, 4], strides = [1, 1, 1]} : vector<22x16x4xf32> to vector<16x16x4xf32>
    %264 = vector.extract_strided_slice %9 {offsets = [46, 0], sizes = [1, 4], strides = [1, 1]} : vector<49x4xf32> to vector<1x4xf32>
    %265 = vector.shape_cast %264 : vector<1x4xf32> to vector<4xf32>
    %266 = vector.shape_cast %265 : vector<4xf32> to vector<1x1x4xf32>
    %267 = vector.broadcast %266 : vector<1x1x4xf32> to vector<16x16x4xf32>
    %268 = arith.mulf %263, %267 : vector<16x16x4xf32>
    %269 = arith.addf %262, %268 : vector<16x16x4xf32>
    %270 = vector.extract_strided_slice %18 {offsets = [0, 5, 0], sizes = [22, 16, 4], strides = [1, 1, 1]} : vector<22x22x4xf32> to vector<22x16x4xf32>
    %271 = vector.extract_strided_slice %270 {offsets = [0, 0, 0], sizes = [16, 16, 4], strides = [1, 1, 1]} : vector<22x16x4xf32> to vector<16x16x4xf32>
    %272 = vector.extract_strided_slice %9 {offsets = [5, 0], sizes = [1, 4], strides = [1, 1]} : vector<49x4xf32> to vector<1x4xf32>
    %273 = vector.shape_cast %272 : vector<1x4xf32> to vector<4xf32>
    %274 = vector.shape_cast %273 : vector<4xf32> to vector<1x1x4xf32>
    %275 = vector.broadcast %274 : vector<1x1x4xf32> to vector<16x16x4xf32>
    %276 = arith.mulf %271, %275 : vector<16x16x4xf32>
    %277 = arith.addf %269, %276 : vector<16x16x4xf32>
    %278 = vector.extract_strided_slice %270 {offsets = [1, 0, 0], sizes = [16, 16, 4], strides = [1, 1, 1]} : vector<22x16x4xf32> to vector<16x16x4xf32>
    %279 = vector.extract_strided_slice %9 {offsets = [12, 0], sizes = [1, 4], strides = [1, 1]} : vector<49x4xf32> to vector<1x4xf32>
    %280 = vector.shape_cast %279 : vector<1x4xf32> to vector<4xf32>
    %281 = vector.shape_cast %280 : vector<4xf32> to vector<1x1x4xf32>
    %282 = vector.broadcast %281 : vector<1x1x4xf32> to vector<16x16x4xf32>
    %283 = arith.mulf %278, %282 : vector<16x16x4xf32>
    %284 = arith.addf %277, %283 : vector<16x16x4xf32>
    %285 = vector.extract_strided_slice %270 {offsets = [2, 0, 0], sizes = [16, 16, 4], strides = [1, 1, 1]} : vector<22x16x4xf32> to vector<16x16x4xf32>
    %286 = vector.extract_strided_slice %9 {offsets = [19, 0], sizes = [1, 4], strides = [1, 1]} : vector<49x4xf32> to vector<1x4xf32>
    %287 = vector.shape_cast %286 : vector<1x4xf32> to vector<4xf32>
    %288 = vector.shape_cast %287 : vector<4xf32> to vector<1x1x4xf32>
    %289 = vector.broadcast %288 : vector<1x1x4xf32> to vector<16x16x4xf32>
    %290 = arith.mulf %285, %289 : vector<16x16x4xf32>
    %291 = arith.addf %284, %290 : vector<16x16x4xf32>
    %292 = vector.extract_strided_slice %270 {offsets = [3, 0, 0], sizes = [16, 16, 4], strides = [1, 1, 1]} : vector<22x16x4xf32> to vector<16x16x4xf32>
    %293 = vector.extract_strided_slice %9 {offsets = [26, 0], sizes = [1, 4], strides = [1, 1]} : vector<49x4xf32> to vector<1x4xf32>
    %294 = vector.shape_cast %293 : vector<1x4xf32> to vector<4xf32>
    %295 = vector.shape_cast %294 : vector<4xf32> to vector<1x1x4xf32>
    %296 = vector.broadcast %295 : vector<1x1x4xf32> to vector<16x16x4xf32>
    %297 = arith.mulf %292, %296 : vector<16x16x4xf32>
    %298 = arith.addf %291, %297 : vector<16x16x4xf32>
    %299 = vector.extract_strided_slice %270 {offsets = [4, 0, 0], sizes = [16, 16, 4], strides = [1, 1, 1]} : vector<22x16x4xf32> to vector<16x16x4xf32>
    %300 = vector.extract_strided_slice %9 {offsets = [33, 0], sizes = [1, 4], strides = [1, 1]} : vector<49x4xf32> to vector<1x4xf32>
    %301 = vector.shape_cast %300 : vector<1x4xf32> to vector<4xf32>
    %302 = vector.shape_cast %301 : vector<4xf32> to vector<1x1x4xf32>
    %303 = vector.broadcast %302 : vector<1x1x4xf32> to vector<16x16x4xf32>
    %304 = arith.mulf %299, %303 : vector<16x16x4xf32>
    %305 = arith.addf %298, %304 : vector<16x16x4xf32>
    %306 = vector.extract_strided_slice %270 {offsets = [5, 0, 0], sizes = [16, 16, 4], strides = [1, 1, 1]} : vector<22x16x4xf32> to vector<16x16x4xf32>
    %307 = vector.extract_strided_slice %9 {offsets = [40, 0], sizes = [1, 4], strides = [1, 1]} : vector<49x4xf32> to vector<1x4xf32>
    %308 = vector.shape_cast %307 : vector<1x4xf32> to vector<4xf32>
    %309 = vector.shape_cast %308 : vector<4xf32> to vector<1x1x4xf32>
    %310 = vector.broadcast %309 : vector<1x1x4xf32> to vector<16x16x4xf32>
    %311 = arith.mulf %306, %310 : vector<16x16x4xf32>
    %312 = arith.addf %305, %311 : vector<16x16x4xf32>
    %313 = vector.extract_strided_slice %270 {offsets = [6, 0, 0], sizes = [16, 16, 4], strides = [1, 1, 1]} : vector<22x16x4xf32> to vector<16x16x4xf32>
    %314 = vector.extract_strided_slice %9 {offsets = [47, 0], sizes = [1, 4], strides = [1, 1]} : vector<49x4xf32> to vector<1x4xf32>
    %315 = vector.shape_cast %314 : vector<1x4xf32> to vector<4xf32>
    %316 = vector.shape_cast %315 : vector<4xf32> to vector<1x1x4xf32>
    %317 = vector.broadcast %316 : vector<1x1x4xf32> to vector<16x16x4xf32>
    %318 = arith.mulf %313, %317 : vector<16x16x4xf32>
    %319 = arith.addf %312, %318 : vector<16x16x4xf32>
    %320 = vector.extract_strided_slice %18 {offsets = [0, 6, 0], sizes = [22, 16, 4], strides = [1, 1, 1]} : vector<22x22x4xf32> to vector<22x16x4xf32>
    %321 = vector.extract_strided_slice %320 {offsets = [0, 0, 0], sizes = [16, 16, 4], strides = [1, 1, 1]} : vector<22x16x4xf32> to vector<16x16x4xf32>
    %322 = vector.extract_strided_slice %9 {offsets = [6, 0], sizes = [1, 4], strides = [1, 1]} : vector<49x4xf32> to vector<1x4xf32>
    %323 = vector.shape_cast %322 : vector<1x4xf32> to vector<4xf32>
    %324 = vector.shape_cast %323 : vector<4xf32> to vector<1x1x4xf32>
    %325 = vector.broadcast %324 : vector<1x1x4xf32> to vector<16x16x4xf32>
    %326 = arith.mulf %321, %325 : vector<16x16x4xf32>
    %327 = arith.addf %319, %326 : vector<16x16x4xf32>
    %328 = vector.extract_strided_slice %320 {offsets = [1, 0, 0], sizes = [16, 16, 4], strides = [1, 1, 1]} : vector<22x16x4xf32> to vector<16x16x4xf32>
    %329 = vector.extract_strided_slice %9 {offsets = [13, 0], sizes = [1, 4], strides = [1, 1]} : vector<49x4xf32> to vector<1x4xf32>
    %330 = vector.shape_cast %329 : vector<1x4xf32> to vector<4xf32>
    %331 = vector.shape_cast %330 : vector<4xf32> to vector<1x1x4xf32>
    %332 = vector.broadcast %331 : vector<1x1x4xf32> to vector<16x16x4xf32>
    %333 = arith.mulf %328, %332 : vector<16x16x4xf32>
    %334 = arith.addf %327, %333 : vector<16x16x4xf32>
    %335 = vector.extract_strided_slice %320 {offsets = [2, 0, 0], sizes = [16, 16, 4], strides = [1, 1, 1]} : vector<22x16x4xf32> to vector<16x16x4xf32>
    %336 = vector.extract_strided_slice %9 {offsets = [20, 0], sizes = [1, 4], strides = [1, 1]} : vector<49x4xf32> to vector<1x4xf32>
    %337 = vector.shape_cast %336 : vector<1x4xf32> to vector<4xf32>
    %338 = vector.shape_cast %337 : vector<4xf32> to vector<1x1x4xf32>
    %339 = vector.broadcast %338 : vector<1x1x4xf32> to vector<16x16x4xf32>
    %340 = arith.mulf %335, %339 : vector<16x16x4xf32>
    %341 = arith.addf %334, %340 : vector<16x16x4xf32>
    %342 = vector.extract_strided_slice %320 {offsets = [3, 0, 0], sizes = [16, 16, 4], strides = [1, 1, 1]} : vector<22x16x4xf32> to vector<16x16x4xf32>
    %343 = vector.extract_strided_slice %9 {offsets = [27, 0], sizes = [1, 4], strides = [1, 1]} : vector<49x4xf32> to vector<1x4xf32>
    %344 = vector.shape_cast %343 : vector<1x4xf32> to vector<4xf32>
    %345 = vector.shape_cast %344 : vector<4xf32> to vector<1x1x4xf32>
    %346 = vector.broadcast %345 : vector<1x1x4xf32> to vector<16x16x4xf32>
    %347 = arith.mulf %342, %346 : vector<16x16x4xf32>
    %348 = arith.addf %341, %347 : vector<16x16x4xf32>
    %349 = vector.extract_strided_slice %320 {offsets = [4, 0, 0], sizes = [16, 16, 4], strides = [1, 1, 1]} : vector<22x16x4xf32> to vector<16x16x4xf32>
    %350 = vector.extract_strided_slice %9 {offsets = [34, 0], sizes = [1, 4], strides = [1, 1]} : vector<49x4xf32> to vector<1x4xf32>
    %351 = vector.shape_cast %350 : vector<1x4xf32> to vector<4xf32>
    %352 = vector.shape_cast %351 : vector<4xf32> to vector<1x1x4xf32>
    %353 = vector.broadcast %352 : vector<1x1x4xf32> to vector<16x16x4xf32>
    %354 = arith.mulf %349, %353 : vector<16x16x4xf32>
    %355 = arith.addf %348, %354 : vector<16x16x4xf32>
    %356 = vector.extract_strided_slice %320 {offsets = [5, 0, 0], sizes = [16, 16, 4], strides = [1, 1, 1]} : vector<22x16x4xf32> to vector<16x16x4xf32>
    %357 = vector.extract_strided_slice %9 {offsets = [41, 0], sizes = [1, 4], strides = [1, 1]} : vector<49x4xf32> to vector<1x4xf32>
    %358 = vector.shape_cast %357 : vector<1x4xf32> to vector<4xf32>
    %359 = vector.shape_cast %358 : vector<4xf32> to vector<1x1x4xf32>
    %360 = vector.broadcast %359 : vector<1x1x4xf32> to vector<16x16x4xf32>
    %361 = arith.mulf %356, %360 : vector<16x16x4xf32>
    %362 = arith.addf %355, %361 : vector<16x16x4xf32>
    %363 = vector.extract_strided_slice %320 {offsets = [6, 0, 0], sizes = [16, 16, 4], strides = [1, 1, 1]} : vector<22x16x4xf32> to vector<16x16x4xf32>
    %364 = vector.extract_strided_slice %9 {offsets = [48, 0], sizes = [1, 4], strides = [1, 1]} : vector<49x4xf32> to vector<1x4xf32>
    %365 = vector.shape_cast %364 : vector<1x4xf32> to vector<4xf32>
    %366 = vector.shape_cast %365 : vector<4xf32> to vector<1x1x4xf32>
    %367 = vector.broadcast %366 : vector<1x1x4xf32> to vector<16x16x4xf32>
    %368 = arith.mulf %363, %367 : vector<16x16x4xf32>
    %369 = arith.addf %362, %368 : vector<16x16x4xf32>
    %370 = vector.shape_cast %11 : vector<4xf32> to vector<1x1x4xf32>
    %371 = vector.broadcast %370 : vector<1x1x4xf32> to vector<16x16x4xf32>
    %372 = arith.addf %369, %371 : vector<16x16x4xf32>
    %cst_27 = arith.constant dense<0.000000e+00> : vector<16x16xf32>
    %373 = vector.multi_reduction <add>, %372, %cst_27 [2] : vector<16x16x4xf32> to vector<16x16xf32>
    %374 = vector.shape_cast %373 : vector<16x16xf32> to vector<16x16x1xf32>
    %cst_28 = arith.constant 4.000000e+00 : f32
    %375 = vector.broadcast %cst_28 : f32 to vector<16x16x1xf32>
    %376 = arith.divf %374, %375 : vector<16x16x1xf32>
    %377 = vector.broadcast %376 : vector<16x16x1xf32> to vector<16x16x4xf32>
    %378 = arith.subf %372, %377 : vector<16x16x4xf32>
    %379 = arith.mulf %378, %378 : vector<16x16x4xf32>
    %cst_29 = arith.constant dense<0.000000e+00> : vector<16x16xf32>
    %380 = vector.multi_reduction <add>, %379, %cst_29 [2] : vector<16x16x4xf32> to vector<16x16xf32>
    %381 = vector.shape_cast %380 : vector<16x16xf32> to vector<16x16x1xf32>
    %cst_30 = arith.constant 4.000000e+00 : f32
    %382 = vector.broadcast %cst_30 : f32 to vector<16x16x1xf32>
    %383 = arith.divf %381, %382 : vector<16x16x1xf32>
    %384 = vector.broadcast %376 : vector<16x16x1xf32> to vector<16x16x4xf32>
    %385 = arith.subf %372, %384 : vector<16x16x4xf32>
    %cst_31 = arith.constant 9.99999997E-7 : f32
    %386 = vector.broadcast %cst_31 : f32 to vector<16x16x1xf32>
    %387 = arith.addf %383, %386 : vector<16x16x1xf32>
    %388 = math.rsqrt %387 : vector<16x16x1xf32>
    %389 = vector.broadcast %388 : vector<16x16x1xf32> to vector<16x16x4xf32>
    %390 = arith.mulf %385, %389 : vector<16x16x4xf32>
    %391 = vector.shape_cast %390 : vector<16x16x4xf32> to vector<256x4xf32>
    %392 = arith.truncf %391 : vector<256x4xf32> to vector<256x4xbf16>
    %c0_32 = arith.constant 0 : index
    %c0_33 = arith.constant 0 : index
    %393 = vector.load %arg4[%c0_32, %c0_33] : memref<4x16xbf16, #tpu.memory_space<vmem>>, vector<4x16xbf16>
    %cst_34 = arith.constant dense<0.000000e+00> : vector<256x16xf32>
    %394 = tpu.matmul %392, %393, %cst_34 {dimension_numbers = #tpu.dot_dimension_numbers<[1], [0], [0], [1], [0, 0, 1, 1], [], []>} : vector<256x4xbf16>, vector<4x16xbf16>, vector<256x16xf32> -> vector<256x16xf32>
    %395 = vector.broadcast %14 : vector<1x16xf32> to vector<256x16xf32>
    %396 = arith.addf %394, %395 : vector<256x16xf32>
    %cst_35 = arith.constant 5.000000e-01 : f32
    %397 = vector.broadcast %cst_35 : f32 to vector<256x16xf32>
    %398 = arith.mulf %397, %396 : vector<256x16xf32>
    %399 = arith.mulf %396, %396 : vector<256x16xf32>
    %400 = arith.mulf %399, %396 : vector<256x16xf32>
    %cst_36 = arith.constant 4.471500e-02 : f32
    %401 = vector.broadcast %cst_36 : f32 to vector<256x16xf32>
    %402 = arith.mulf %401, %400 : vector<256x16xf32>
    %403 = arith.addf %396, %402 : vector<256x16xf32>
    %cst_37 = arith.constant 0.797884583 : f32
    %404 = vector.broadcast %cst_37 : f32 to vector<256x16xf32>
    %405 = arith.mulf %404, %403 : vector<256x16xf32>
    %406 = math.tanh %405 : vector<256x16xf32>
    %cst_38 = arith.constant 1.000000e+00 : f32
    %407 = vector.broadcast %cst_38 : f32 to vector<256x16xf32>
    %408 = arith.addf %407, %406 : vector<256x16xf32>
    %409 = arith.mulf %398, %408 : vector<256x16xf32>
    %410 = arith.mulf %409, %409 : vector<256x16xf32>
    %cst_39 = arith.constant dense<0.000000e+00> : vector<16xf32>
    %411 = vector.multi_reduction <add>, %410, %cst_39 [0] : vector<256x16xf32> to vector<16xf32>
    %412 = vector.shape_cast %411 : vector<16xf32> to vector<1x16xf32>
    %413 = arith.addf %15, %412 : vector<1x16xf32>
    %414 = arith.truncf %409 : vector<256x16xf32> to vector<256x16xbf16>
    %c16_i32_40 = arith.constant 16 : i32
    %415 = arith.muli %16, %c16_i32_40 : i32
    %416 = arith.index_cast %415 : i32 to index
    %c0_41 = arith.constant 0 : index
    %417 = vector.load %arg11[%416, %c0_41] : memref<256x16xbf16, #tpu.memory_space<vmem>>, vector<256x16xbf16>
    tpu.vector_store %arg11[%416, %c0_41], %414 {strides = array<i32>} : memref<256x16xbf16, #tpu.memory_space<vmem>>, vector<256x16xbf16>,
    %c1_i32 = arith.constant 1 : i32
    %418 = math.sqrt %413 : vector<1x16xf32>
    %cst_42 = arith.constant dense<0.000000e+00> : vector<1xf32>
    %419 = vector.multi_reduction <add>, %418, %cst_42 [1] : vector<1x16xf32> to vector<1xf32>
    %420 = vector.shape_cast %419 : vector<1xf32> to vector<1x1xf32>
    %cst_43 = arith.constant 1.600000e+01 : f32
    %421 = vector.broadcast %cst_43 : f32 to vector<1x1xf32>
    %422 = arith.divf %420, %421 : vector<1x1xf32>
    %cst_44 = arith.constant 9.99999997E-7 : f32
    %423 = vector.broadcast %cst_44 : f32 to vector<1x1xf32>
    %424 = arith.addf %422, %423 : vector<1x1xf32>
    %425 = vector.broadcast %424 : vector<1x1xf32> to vector<1x16xf32>
    %426 = arith.divf %418, %425 : vector<1x16xf32>
    %c0_45 = arith.constant 0 : index
    %c0_46 = arith.constant 0 : index
    %427 = vector.load %arg6[%c0_45, %c0_46] : memref<1x16xf32, #tpu.memory_space<vmem>>, vector<1x16xf32>
    %428 = vector.shape_cast %427 : vector<1x16xf32> to vector<16xf32>
    %429 = vector.shape_cast %428 : vector<16xf32> to vector<1x16xf32>
    %430 = arith.mulf %429, %426 : vector<1x16xf32>
    %cst_47 = arith.constant 1.000000e+00 : f32
    %431 = vector.broadcast %cst_47 : f32 to vector<1x16xf32>
    %432 = arith.addf %430, %431 : vector<1x16xf32>
    %c0_48 = arith.constant 0 : index
    %c0_49 = arith.constant 0 : index
    %433 = vector.load %arg11[%c0_48, %c0_49] : memref<256x16xbf16, #tpu.memory_space<vmem>>, vector<256x16xbf16>
    %434 = arith.extf %433 : vector<256x16xbf16> to vector<256x16xf32>
    %435 = vector.broadcast %432 : vector<1x16xf32> to vector<256x16xf32>
    %436 = arith.mulf %434, %435 : vector<256x16xf32>
    %437 = arith.truncf %436 : vector<256x16xf32> to vector<256x16xbf16>
    %c0_50 = arith.constant 0 : index
    %c0_51 = arith.constant 0 : index
    %438 = vector.load %arg7[%c0_50, %c0_51] : memref<16x4xbf16, #tpu.memory_space<vmem>>, vector<16x4xbf16>
    %cst_52 = arith.constant dense<0.000000e+00> : vector<256x4xf32>
    %439 = tpu.matmul %437, %438, %cst_52 {dimension_numbers = #tpu.dot_dimension_numbers<[1], [0], [0], [1], [0, 0, 1, 1], [], []>} : vector<256x16xbf16>, vector<16x4xbf16>, vector<256x4xf32> -> vector<256x4xf32>
    %c0_53 = arith.constant 0 : index
    %c0_54 = arith.constant 0 : index
    %440 = vector.load %arg8[%c0_53, %c0_54] : memref<1x4xf32, #tpu.memory_space<vmem>>, vector<1x4xf32>
    %441 = vector.shape_cast %440 : vector<1x4xf32> to vector<4xf32>
    %442 = vector.shape_cast %441 : vector<4xf32> to vector<1x4xf32>
    %443 = vector.broadcast %442 : vector<1x4xf32> to vector<256x4xf32>
    %444 = arith.addf %439, %443 : vector<256x4xf32>
    %c0_55 = arith.constant 0 : index
    %c0_56 = arith.constant 0 : index
    %c0_57 = arith.constant 0 : index
    %c0_58 = arith.constant 0 : index
    %445 = vector.load %arg1[%c0_55, %c0_56, %c0_57, %c0_58] : memref<1x16x16x4xf32, #tpu.memory_space<vmem>>, vector<1x16x16x4xf32>
    %446 = vector.shape_cast %445 : vector<1x16x16x4xf32> to vector<16x16x4xf32>
    %447 = vector.shape_cast %444 : vector<256x4xf32> to vector<16x16x4xf32>
    %448 = arith.addf %446, %447 : vector<16x16x4xf32>
    %c0_59 = arith.constant 0 : index
    %c0_60 = arith.constant 0 : index
    %c0_61 = arith.constant 0 : index
    %c0_62 = arith.constant 0 : index
    %449 = vector.load %arg9[%c0_59, %c0_60, %c0_61, %c0_62] : memref<1x16x16x4xf32, #tpu.memory_space<vmem>>, vector<1x16x16x4xf32>
    %450 = vector.shape_cast %449 : vector<1x16x16x4xf32> to vector<16x16x4xf32>
    %451 = vector.shape_cast %448 : vector<16x16x4xf32> to vector<1x16x16x4xf32>
    tpu.vector_store %arg9[%c0_59, %c0_60, %c0_61, %c0_62], %451 {strides = array<i32>} : memref<1x16x16x4xf32, #tpu.memory_space<vmem>>, vector<1x16x16x4xf32>,
    return
  }
  func.func @transform_0(%arg0: i32) -> (i32, i32, i32, i32) {
    %c0_i32 = arith.constant 0 : i32
    %c0_i32_0 = arith.constant 0 : i32
    %c0_i32_1 = arith.constant 0 : i32
    %c0_i32_2 = arith.constant 0 : i32
    return %arg0, %c0_i32, %c0_i32_0, %c0_i32_1 : i32, i32, i32, i32
  }
  func.func @transform_1(%arg0: i32) -> (i32, i32) {
    %c0_i32 = arith.constant 0 : i32
    %c0_i32_0 = arith.constant 0 : i32
    %c0_i32_1 = arith.constant 0 : i32
    return %c0_i32, %c0_i32_0 : i32, i32
  }
  func.func @transform_2(%arg0: i32) -> (i32, i32) {
    %c0_i32 = arith.constant 0 : i32
    %c0_i32_0 = arith.constant 0 : i32
    %c0_i32_1 = arith.constant 0 : i32
    return %c0_i32, %c0_i32_0 : i32, i32
  }
  func.func @transform_3(%arg0: i32) -> (i32, i32) {
    %c0_i32 = arith.constant 0 : i32
    %c0_i32_0 = arith.constant 0 : i32
    %c0_i32_1 = arith.constant 0 : i32
    return %c0_i32, %c0_i32_0 : i32, i32
  }
  func.func @transform_4(%arg0: i32) -> (i32, i32) {
    %c0_i32 = arith.constant 0 : i32
    %c0_i32_0 = arith.constant 0 : i32
    %c0_i32_1 = arith.constant 0 : i32
    return %c0_i32, %c0_i32_0 : i32, i32
  }
  func.func @transform_5(%arg0: i32) -> (i32, i32) {
    %c0_i32 = arith.constant 0 : i32
    %c0_i32_0 = arith.constant 0 : i32
    %c0_i32_1 = arith.constant 0 : i32
    return %c0_i32, %c0_i32_0 : i32, i32
  }
  func.func @transform_6(%arg0: i32) -> (i32, i32) {
    %c0_i32 = arith.constant 0 : i32
    %c0_i32_0 = arith.constant 0 : i32
    %c0_i32_1 = arith.constant 0 : i32
    return %c0_i32, %c0_i32_0 : i32, i32
  }
  func.func @transform_7(%arg0: i32) -> (i32, i32) {
    %c0_i32 = arith.constant 0 : i32
    %c0_i32_0 = arith.constant 0 : i32
    %c0_i32_1 = arith.constant 0 : i32
    return %c0_i32, %c0_i32_0 : i32, i32
  }
  func.func @transform_8(%arg0: i32) -> (i32, i32, i32, i32) {
    %c0_i32 = arith.constant 0 : i32
    %c0_i32_0 = arith.constant 0 : i32
    %c0_i32_1 = arith.constant 0 : i32
    %c0_i32_2 = arith.constant 0 : i32
    return %arg0, %c0_i32, %c0_i32_0, %c0_i32_1 : i32, i32, i32, i32
  }
}

</mosaic_0001>

<llo_original>
// kernel: tpu_custom_call.1
$region0: #{tpu_custom_call.1}
  #allocation0 [shape = 'u32[]', space=smem, size = 0x4, offset = 0x4, fixed_abs, tag = 'smem constant byte address 0x4 - core index']
  #allocation1 [shape = 'u32[144,128]{1,0:T(1,128)}', space=vmem, size = 0x12000, scoped, tag = 'internal scratch']
  #allocation2 [shape = 'f32[22,22,4]{2,1,0:T(8,128)}', space=vmem, size = 0x42000, scoped, tag = 'scratch operand']
  #allocation3 [shape = 'bf16[256,16]{1,0:T(16,128)(2,1)}', space=vmem, size = 0x10000, scoped, tag = 'scratch operand']
  %s0 = inlined_call_operand.vmem [shape: f32[2,16,16,4], index: 0, kind: input, shape index: {}]
  %s1 = inlined_call_operand.vmem [shape: f32[49,4], index: 1, kind: input, shape index: {}]
  %s2 = inlined_call_operand.vmem [shape: f32[1,4], index: 2, kind: input, shape index: {}]
  %s3 = inlined_call_operand.vmem [shape: bf16[4,16], index: 3, kind: input, shape index: {}]
  %s4 = inlined_call_operand.vmem [shape: f32[1,16], index: 4, kind: input, shape index: {}]
  %s5 = inlined_call_operand.vmem [shape: f32[1,16], index: 5, kind: input, shape index: {}]
  %s6 = inlined_call_operand.vmem [shape: bf16[16,4], index: 6, kind: input, shape index: {}]
  %s7 = inlined_call_operand.vmem [shape: f32[1,4], index: 7, kind: input, shape index: {}]
  %s8 = inlined_call_operand.vmem [shape: f32[2,16,16,4], index: 8, kind: output, shape index: {}]
  %s9 = sld [smem:[#allocation0]]
  $region65: #{tpu_custom_call.1} parent=0
    _
  %s11 = ssub.s32 1, %s9
  %s12 = scalar_select 0, %s11, %s9
  loop: start=0, step=1, limit=4
  $region2: #{tpu_custom_call.1} parent=0 // loop_pre_header
    _
  $region3: #{tpu_custom_call.1} parent=0 // loop_header
    %s14 = sphi 0, %s18
    %p15 = scmp.ge.s32.totalorder %s14, 4
    %s24 = sphi 0, %s26
    %s27 = sphi 0, %s24
    %s28 = sphi 0, %s27
    %s44 = sphi 0, %s28
    %s48 = sphi 0, %s48
    %s50 = sphi 0, %s48
    %s51 = sphi 0, %s50
    %s65 = sphi 0, %s51
    %s69 = sphi 0, %s69
    %s71 = sphi 0, %s69
    %s72 = sphi 0, %s71
    %s86 = sphi 0, %s72
    %s90 = sphi 0, %s90
    %s92 = sphi 0, %s90
    %s93 = sphi 0, %s92
    %s107 = sphi 0, %s93
    %s111 = sphi 0, %s111
    %s113 = sphi 0, %s111
    %s114 = sphi 0, %s113
    %s128 = sphi 0, %s114
    %s132 = sphi 0, %s132
    %s134 = sphi 0, %s132
    %s135 = sphi 0, %s134
    %s149 = sphi 0, %s135
    %s153 = sphi 0, %s153
    %s155 = sphi 0, %s153
    %s156 = sphi 0, %s155
    %s170 = sphi 0, %s156
    %s174 = sphi 0, %s174
    %s176 = sphi 0, %s174
    %s177 = sphi 0, %s176
    %s191 = sphi 0, %s177
    %s197 = sphi 0, %s199
    %s200 = sphi 0, %s197
    %s201 = sphi 0, %s200
    %s217 = sphi 0, %s201
  $region4: #{tpu_custom_call.1} parent=0 // loop_header_branch
    %17 = sbr.rel (%p15) target = $region8
  $region5: #{tpu_custom_call.1} parent=0 // loop_body
    %s19 = ssub.s32 %s14, 1
    %s20 = ssub.s32 %s14, 2
    %s21 = sadd.s32 %s14, 1
    %s22 = ssub.s32 %s14, %s21
    %p23 = scmp.eq.s32.totalorder %s22, 0
    %s25 = sadd.s32 %s24, 1
    %s26 = scalar_select %p23, %s24, %s25
    %p29 = pneg %p23
    %p30 = scmp.eq.s32.totalorder %s14, 1
    %p31 = por %p29, %p30
    %p32 = scmp.ne.s32.totalorder %s24, %s27
    %p33 = scmp.eq.s32.totalorder %s14, 0
    %p34 = por %p32, %p33
    %p35 = scmp.ne.s32.totalorder %s24, %s27
    %p36 = scmp.eq.s32.totalorder %s19, 1
    %p37 = por %p35, %p36
    %p38 = scmp.ne.s32.totalorder %s27, %s28
    %p39 = scmp.eq.s32.totalorder %s19, 0
    %p40 = por %p38, %p39
    %p41 = scmp.ne.s32.totalorder %s27, %s28
    %p42 = scmp.eq.s32.totalorder %s20, 1
    %p43 = por %p41, %p42
    %p45 = scmp.ne.s32.totalorder %s28, %s44
    %p46 = scmp.eq.s32.totalorder %s20, 0
    %p47 = por %p45, %p46
    %s49 = sadd.s32 %s48, 1
    %p52 = scmp.eq.s32.totalorder %s14, 1
    %p53 = scmp.ne.s32.totalorder %s48, %s50
    %p54 = scmp.eq.s32.totalorder %s14, 0
    %p55 = por %p53, %p54
    %p56 = scmp.ne.s32.totalorder %s48, %s50
    %p57 = scmp.eq.s32.totalorder %s19, 1
    %p58 = por %p56, %p57
    %p59 = scmp.ne.s32.totalorder %s50, %s51
    %p60 = scmp.eq.s32.totalorder %s19, 0
    %p61 = por %p59, %p60
    %p62 = scmp.ne.s32.totalorder %s50, %s51
    %p63 = scmp.eq.s32.totalorder %s20, 1
    %p64 = por %p62, %p63
    %p66 = scmp.ne.s32.totalorder %s51, %s65
    %p67 = scmp.eq.s32.totalorder %s20, 0
    %p68 = por %p66, %p67
    %s70 = sadd.s32 %s69, 1
    %p73 = scmp.eq.s32.totalorder %s14, 1
    %p74 = scmp.ne.s32.totalorder %s69, %s71
    %p75 = scmp.eq.s32.totalorder %s14, 0
    %p76 = por %p74, %p75
    %p77 = scmp.ne.s32.totalorder %s69, %s71
    %p78 = scmp.eq.s32.totalorder %s19, 1
    %p79 = por %p77, %p78
    %p80 = scmp.ne.s32.totalorder %s71, %s72
    %p81 = scmp.eq.s32.totalorder %s19, 0
    %p82 = por %p80, %p81
    %p83 = scmp.ne.s32.totalorder %s71, %s72
    %p84 = scmp.eq.s32.totalorder %s20, 1
    %p85 = por %p83, %p84
    %p87 = scmp.ne.s32.totalorder %s72, %s86
    %p88 = scmp.eq.s32.totalorder %s20, 0
    %p89 = por %p87, %p88
    %s91 = sadd.s32 %s90, 1
    %p94 = scmp.eq.s32.totalorder %s14, 1
    %p95 = scmp.ne.s32.totalorder %s90, %s92
    %p96 = scmp.eq.s32.totalorder %s14, 0
    %p97 = por %p95, %p96
    %p98 = scmp.ne.s32.totalorder %s90, %s92
    %p99 = scmp.eq.s32.totalorder %s19, 1
    %p100 = por %p98, %p99
    %p101 = scmp.ne.s32.totalorder %s92, %s93
    %p102 = scmp.eq.s32.totalorder %s19, 0
    %p103 = por %p101, %p102
    %p104 = scmp.ne.s32.totalorder %s92, %s93
    %p105 = scmp.eq.s32.totalorder %s20, 1
    %p106 = por %p104, %p105
    %p108 = scmp.ne.s32.totalorder %s93, %s107
    %p109 = scmp.eq.s32.totalorder %s20, 0
    %p110 = por %p108, %p109
    %s112 = sadd.s32 %s111, 1
    %p115 = scmp.eq.s32.totalorder %s14, 1
    %p116 = scmp.ne.s32.totalorder %s111, %s113
    %p117 = scmp.eq.s32.totalorder %s14, 0
    %p118 = por %p116, %p117
    %p119 = scmp.ne.s32.totalorder %s111, %s113
    %p120 = scmp.eq.s32.totalorder %s19, 1
    %p121 = por %p119, %p120
    %p122 = scmp.ne.s32.totalorder %s113, %s114
    %p123 = scmp.eq.s32.totalorder %s19, 0
    %p124 = por %p122, %p123
    %p125 = scmp.ne.s32.totalorder %s113, %s114
    %p126 = scmp.eq.s32.totalorder %s20, 1
    %p127 = por %p125, %p126
    %p129 = scmp.ne.s32.totalorder %s114, %s128
    %p130 = scmp.eq.s32.totalorder %s20, 0
    %p131 = por %p129, %p130
    %s133 = sadd.s32 %s132, 1
    %p136 = scmp.eq.s32.totalorder %s14, 1
    %p137 = scmp.ne.s32.totalorder %s132, %s134
    %p138 = scmp.eq.s32.totalorder %s14, 0
    %p139 = por %p137, %p138
    %p140 = scmp.ne.s32.totalorder %s132, %s134
    %p141 = scmp.eq.s32.totalorder %s19, 1
    %p142 = por %p140, %p141
    %p143 = scmp.ne.s32.totalorder %s134, %s135
    %p144 = scmp.eq.s32.totalorder %s19, 0
    %p145 = por %p143, %p144
    %p146 = scmp.ne.s32.totalorder %s134, %s135
    %p147 = scmp.eq.s32.totalorder %s20, 1
    %p148 = por %p146, %p147
    %p150 = scmp.ne.s32.totalorder %s135, %s149
    %p151 = scmp.eq.s32.totalorder %s20, 0
    %p152 = por %p150, %p151
    %s154 = sadd.s32 %s153, 1
    %p157 = scmp.eq.s32.totalorder %s14, 1
    %p158 = scmp.ne.s32.totalorder %s153, %s155
    %p159 = scmp.eq.s32.totalorder %s14, 0
    %p160 = por %p158, %p159
    %p161 = scmp.ne.s32.totalorder %s153, %s155
    %p162 = scmp.eq.s32.totalorder %s19, 1
    %p163 = por %p161, %p162
    %p164 = scmp.ne.s32.totalorder %s155, %s156
    %p165 = scmp.eq.s32.totalorder %s19, 0
    %p166 = por %p164, %p165
    %p167 = scmp.ne.s32.totalorder %s155, %s156
    %p168 = scmp.eq.s32.totalorder %s20, 1
    %p169 = por %p167, %p168
    %p171 = scmp.ne.s32.totalorder %s156, %s170
    %p172 = scmp.eq.s32.totalorder %s20, 0
    %p173 = por %p171, %p172
    %s175 = sadd.s32 %s174, 1
    %p178 = scmp.eq.s32.totalorder %s14, 1
    %p179 = scmp.ne.s32.totalorder %s174, %s176
    %p180 = scmp.eq.s32.totalorder %s14, 0
    %p181 = por %p179, %p180
    %p182 = scmp.ne.s32.totalorder %s174, %s176
    %p183 = scmp.eq.s32.totalorder %s19, 1
    %p184 = por %p182, %p183
    %p185 = scmp.ne.s32.totalorder %s176, %s177
    %p186 = scmp.eq.s32.totalorder %s19, 0
    %p187 = por %p185, %p186
    %p188 = scmp.ne.s32.totalorder %s176, %s177
    %p189 = scmp.eq.s32.totalorder %s20, 1
    %p190 = por %p188, %p189
    %p192 = scmp.ne.s32.totalorder %s177, %s191
    %p193 = scmp.eq.s32.totalorder %s20, 0
    %p194 = por %p192, %p193
    %s195 = ssub.s32 %s14, %s21
    %p196 = scmp.eq.s32.totalorder %s195, 0
    %s198 = sadd.s32 %s197, 1
    %s199 = scalar_select %p196, %s197, %s198
    %p202 = pneg %p196
    %p203 = scmp.eq.s32.totalorder %s14, 1
    %p204 = por %p202, %p203
    %p205 = scmp.ne.s32.totalorder %s197, %s200
    %p206 = scmp.eq.s32.totalorder %s14, 0
    %p207 = por %p205, %p206
    %p208 = scmp.ne.s32.totalorder %s197, %s200
    %p209 = scmp.eq.s32.totalorder %s19, 1
    %p210 = por %p208, %p209
    %p211 = scmp.ne.s32.totalorder %s200, %s201
    %p212 = scmp.eq.s32.totalorder %s19, 0
    %p213 = por %p211, %p212
    %p214 = scmp.ne.s32.totalorder %s200, %s201
    %p215 = scmp.eq.s32.totalorder %s20, 1
    %p216 = por %p214, %p215
    %p218 = scmp.ne.s32.totalorder %s201, %s217
    %p219 = scmp.eq.s32.totalorder %s20, 0
    %p220 = por %p218, %p219
    %p221 = scmp.le.s32.totalorder 1, %s14
    %p222 = scmp.lt.s32.totalorder %s14, 3
    %p223 = pnand %p221, %p222
    %p224 = pneg %p223
    // Predicated region
    $region9: #{tpu_custom_call.1} parent=5 // pred_check
      _
    $region10: #{tpu_custom_call.1} parent=5 // pred_check_branch
      %226 = sbr.rel (%p223) target = $region12
    $region11: #{tpu_custom_call.1} parent=5 // pred_region
      %s227 = ssub.s32 %s14, 1
      // Predicated region
      $region13: #{tpu_custom_call.1} parent=11 // pred_check
        %p228 = pneg %p61
      $region14: #{tpu_custom_call.1} parent=11 // pred_check_branch
        %230 = sbr.rel (%p228) target = $region16
      $region15: #{tpu_custom_call.1} parent=11 // pred_region
        _
      $region16: #{tpu_custom_call.1} parent=11 // pred_fallthru
        _
      // Predicated region
      $region17: #{tpu_custom_call.1} parent=11 // pred_check
        %p231 = pneg %p82
      $region18: #{tpu_custom_call.1} parent=11 // pred_check_branch
        %233 = sbr.rel (%p231) target = $region20
      $region19: #{tpu_custom_call.1} parent=11 // pred_region
        _
      $region20: #{tpu_custom_call.1} parent=11 // pred_fallthru
        _
      // Predicated region
      $region21: #{tpu_custom_call.1} parent=11 // pred_check
        %p234 = pneg %p103
      $region22: #{tpu_custom_call.1} parent=11 // pred_check_branch
        %236 = sbr.rel (%p234) target = $region24
      $region23: #{tpu_custom_call.1} parent=11 // pred_region
        _
      $region24: #{tpu_custom_call.1} parent=11 // pred_fallthru
        _
      // Predicated region
      $region25: #{tpu_custom_call.1} parent=11 // pred_check
        %p237 = pneg %p124
      $region26: #{tpu_custom_call.1} parent=11 // pred_check_branch
        %239 = sbr.rel (%p237) target = $region28
      $region27: #{tpu_custom_call.1} parent=11 // pred_region
        _
      $region28: #{tpu_custom_call.1} parent=11 // pred_fallthru
        _
      // Predicated region
      $region29: #{tpu_custom_call.1} parent=11 // pred_check
        %p240 = pneg %p145
      $region30: #{tpu_custom_call.1} parent=11 // pred_check_branch
        %242 = sbr.rel (%p240) target = $region32
      $region31: #{tpu_custom_call.1} parent=11 // pred_region
        _
      $region32: #{tpu_custom_call.1} parent=11 // pred_fallthru
        _
      // Predicated region
      $region33: #{tpu_custom_call.1} parent=11 // pred_check
        %p243 = pneg %p166
      $region34: #{tpu_custom_call.1} parent=11 // pred_check_branch
        %245 = sbr.rel (%p243) target = $region36
      $region35: #{tpu_custom_call.1} parent=11 // pred_region
        _
      $region36: #{tpu_custom_call.1} parent=11 // pred_fallthru
        _
      // Predicated region
      $region37: #{tpu_custom_call.1} parent=11 // pred_check
        %p246 = pneg %p187
      $region38: #{tpu_custom_call.1} parent=11 // pred_check_branch
        %248 = sbr.rel (%p246) target = $region40
      $region39: #{tpu_custom_call.1} parent=11 // pred_region
        _
      $region40: #{tpu_custom_call.1} parent=11 // pred_fallthru
        _
    $region12: #{tpu_custom_call.1} parent=5 // pred_fallthru
      _
    %p249 = scmp.lt.s32.totalorder %s14, 2
    // Predicated region
    $region41: #{tpu_custom_call.1} parent=5 // pred_check
      %p250 = pneg %p249
    $region42: #{tpu_custom_call.1} parent=5 // pred_check_branch
      %252 = sbr.rel (%p250) target = $region44
    $region43: #{tpu_custom_call.1} parent=5 // pred_region
      // Predicated region
      $region45: #{tpu_custom_call.1} parent=43 // pred_check
        %p253 = pneg %p34
      $region46: #{tpu_custom_call.1} parent=43 // pred_check_branch
        %255 = sbr.rel (%p253) target = $region48
      $region47: #{tpu_custom_call.1} parent=43 // pred_region
        %p256 = scmp.lt.s32.totalorder %s14, 1
        %s257 = scalar_select %p256, %s14, 1
        %s258 = smul.addr %s257, 32
        %s259 = smul.addr %s258, 8
        %s260 = scalar_lea.vmem %s0, %s259
      $region48: #{tpu_custom_call.1} parent=43 // pred_fallthru
        _
    $region44: #{tpu_custom_call.1} parent=5 // pred_fallthru
      _
    %p261 = scmp.le.s32.totalorder 1, %s14
    %p262 = scmp.lt.s32.totalorder %s14, 3
    %p263 = pnand %p261, %p262
    %p264 = pneg %p263
    // Predicated region
    $region49: #{tpu_custom_call.1} parent=5 // pred_check
      _
    $region50: #{tpu_custom_call.1} parent=5 // pred_check_branch
      %266 = sbr.rel (%p263) target = $region52
    $region51: #{tpu_custom_call.1} parent=5 // pred_region
      %s267 = ssub.s32 %s14, 1
      %p268 = scmp.lt.s32.totalorder %s19, 1
      %s269 = scalar_select %p268, %s19, 1
      %s270 = smul.addr %s269, 32
      %s271 = smul.addr %s270, 8
      %s272 = scalar_lea.vmem %s0, %s271
      %p273 = pneg %p40
      %p274 = pneg %p37
      %p275 = pneg %p61
      %p276 = pneg %p58
      %p277 = pneg %p82
      %p278 = pneg %p79
      %p279 = pneg %p103
      %p280 = pneg %p100
      %p281 = pneg %p124
      %p282 = pneg %p121
      %p283 = pneg %p145
      %p284 = pneg %p142
      %p285 = pneg %p166
      %p286 = pneg %p163
      %p287 = pneg %p187
      %p288 = pneg %p184
      %p289 = pneg %p213
      %p290 = pneg %p210
      %p291 = scmp.lt.s32.totalorder %s19, 1
      %s292 = scalar_select %p291, %s19, 1
      %s293 = smul.addr %s292, 32
      %s294 = smul.addr %s293, 8
      %s295 = scalar_lea.vmem %s8, %s294
      %p296 = scmp.lt.s32.totalorder %s19, 1
      %s297 = scalar_select %p296, %s19, 1
      %s298 = smul.addr %s297, 32
      %s299 = smul.addr %s298, 8
      %s300 = scalar_lea.vmem %s0, %s299
      %p301 = scmp.lt.s32.totalorder %s19, 1
      %s302 = scalar_select %p301, %s19, 1
      %s303 = smul.addr %s302, 32
      %s304 = smul.addr %s303, 8
      %s305 = scalar_lea.vmem %s8, %s304
      %vm307 = vcmask 31744
      %308 = vst.msk [vmem:[#allocation2] sm:$0xff] %vm307, 0.0
      %309 = vst.msk [vmem:[#allocation2 + $0x8] sm:$0xff] %vm307, 0.0
      %vm310 = vcmask 29696
      %311 = vst.msk [vmem:[#allocation2 + $0x10] sm:$0x3f] %vm310, 0.0
      %312 = vst.msk [vmem:[#allocation2 + $0x18] sm:$0xff] %vm307, 0.0
      %313 = vst.msk [vmem:[#allocation2 + $0x20] sm:$0xff] %vm307, 0.0
      %314 = vst.msk [vmem:[#allocation2 + $0x28] sm:$0x3f] %vm310, 0.0
      %315 = vst.msk [vmem:[#allocation2 + $0x30] sm:$0xff] %vm307, 0.0
      %316 = vst.msk [vmem:[#allocation2 + $0x38] sm:$0xff] %vm307, 0.0
      %317 = vst.msk [vmem:[#allocation2 + $0x40] sm:$0x3f] %vm310, 0.0
      %s318 = scalar_lea.vmem [#allocation2], 456
      %319 = vst.msk [vmem:[%s318] sm:$0xff] %vm307, 0.0
      %320 = vst.msk [vmem:[%s318 + $0x8] sm:$0xff] %vm307, 0.0
      %321 = vst.msk [vmem:[%s318 + $0x10] sm:$0x3f] %vm310, 0.0
      %322 = vst.msk [vmem:[%s318 + $0x18] sm:$0xff] %vm307, 0.0
      %323 = vst.msk [vmem:[%s318 + $0x20] sm:$0xff] %vm307, 0.0
      %324 = vst.msk [vmem:[%s318 + $0x28] sm:$0x3f] %vm310, 0.0
      %325 = vst.msk [vmem:[%s318 + $0x30] sm:$0xff] %vm307, 0.0
      %326 = vst.msk [vmem:[%s318 + $0x38] sm:$0xff] %vm307, 0.0
      %327 = vst.msk [vmem:[%s318 + $0x40] sm:$0x3f] %vm310, 0.0
      %s328 = scalar_lea.vmem [#allocation2], 72
      %vm329 = vcmask 26624
      %330 = vst.msk [vmem:[%s328] sm:$0x7] %vm329, 0.0
      %331 = vst.msk [vmem:[%s328 + $0x18] sm:$0x7] %vm329, 0.0
      %332 = vst.msk [vmem:[%s328 + $0x30] sm:$0x7] %vm329, 0.0
      %333 = vst.msk [vmem:[%s328 + $0x48] sm:$0x7] %vm329, 0.0
      %334 = vst.msk [vmem:[%s328 + $0x60] sm:$0x7] %vm329, 0.0
      %335 = vst.msk [vmem:[%s328 + $0x78] sm:$0x7] %vm329, 0.0
      %336 = vst.msk [vmem:[%s328 + $0x90] sm:$0x7] %vm329, 0.0
      %337 = vst.msk [vmem:[%s328 + $0xa8] sm:$0x7] %vm329, 0.0
      %338 = vst.msk [vmem:[%s328 + $0xc0] sm:$0x7] %vm329, 0.0
      %339 = vst.msk [vmem:[%s328 + $0xd8] sm:$0x7] %vm329, 0.0
      %340 = vst.msk [vmem:[%s328 + $0xf0] sm:$0x7] %vm329, 0.0
      %341 = vst.msk [vmem:[%s328 + $0x108] sm:$0x7] %vm329, 0.0
      %342 = vst.msk [vmem:[%s328 + $0x120] sm:$0x7] %vm329, 0.0
      %343 = vst.msk [vmem:[%s328 + $0x138] sm:$0x7] %vm329, 0.0
      %344 = vst.msk [vmem:[%s328 + $0x150] sm:$0x7] %vm329, 0.0
      %345 = vst.msk [vmem:[%s328 + $0x168] sm:$0x7] %vm329, 0.0
      %346 = vst.msk [vmem:[%s328 + $0x13] sm:$0x7] %vm329, 0.0
      %347 = vst.msk [vmem:[%s328 + $0x2b] sm:$0x7] %vm329, 0.0
      %348 = vst.msk [vmem:[%s328 + $0x43] sm:$0x7] %vm329, 0.0
      %349 = vst.msk [vmem:[%s328 + $0x5b] sm:$0x7] %vm329, 0.0
      %350 = vst.msk [vmem:[%s328 + $0x73] sm:$0x7] %vm329, 0.0
      %351 = vst.msk [vmem:[%s328 + $0x8b] sm:$0x7] %vm329, 0.0
      %352 = vst.msk [vmem:[%s328 + $0xa3] sm:$0x7] %vm329, 0.0
      %353 = vst.msk [vmem:[%s328 + $0xbb] sm:$0x7] %vm329, 0.0
      %354 = vst.msk [vmem:[%s328 + $0xd3] sm:$0x7] %vm329, 0.0
      %355 = vst.msk [vmem:[%s328 + $0xeb] sm:$0x7] %vm329, 0.0
      %356 = vst.msk [vmem:[%s328 + $0x103] sm:$0x7] %vm329, 0.0
      %357 = vst.msk [vmem:[%s328 + $0x11b] sm:$0x7] %vm329, 0.0
      %358 = vst.msk [vmem:[%s328 + $0x133] sm:$0x7] %vm329, 0.0
      %359 = vst.msk [vmem:[%s328 + $0x14b] sm:$0x7] %vm329, 0.0
      %360 = vst.msk [vmem:[%s328 + $0x163] sm:$0x7] %vm329, 0.0
      %361 = vst.msk [vmem:[%s328 + $0x17b] sm:$0x7] %vm329, 0.0
      %v362 = vld [vmem:[%s300] sm:$0xff]
      %v363 = vld [vmem:[%s300 + $0x8] sm:$0xff]
      %v364 = vld [vmem:[%s300 + $0x10] sm:$0xff]
      %v365 = vld [vmem:[%s300 + $0x18] sm:$0xff]
      %v366 = vld [vmem:[%s300 + $0x20] sm:$0xff]
      %v367 = vld [vmem:[%s300 + $0x28] sm:$0xff]
      %v368 = vld [vmem:[%s300 + $0x30] sm:$0xff]
      %v369 = vld [vmem:[%s300 + $0x38] sm:$0xff]
      %v370 = vld [vmem:[%s300 + $0x40] sm:$0xff]
      %v371 = vld [vmem:[%s300 + $0x48] sm:$0xff]
      %v372 = vld [vmem:[%s300 + $0x50] sm:$0xff]
      %v373 = vld [vmem:[%s300 + $0x58] sm:$0xff]
      %v374 = vld [vmem:[%s300 + $0x60] sm:$0xff]
      %v375 = vld [vmem:[%s300 + $0x68] sm:$0xff]
      %v376 = vld [vmem:[%s300 + $0x70] sm:$0xff]
      %v377 = vld [vmem:[%s300 + $0x78] sm:$0xff]
      %v378 = vld [vmem:[%s300 + $0x80] sm:$0xff]
      %v379 = vld [vmem:[%s300 + $0x88] sm:$0xff]
      %v380 = vld [vmem:[%s300 + $0x90] sm:$0xff]
      %v381 = vld [vmem:[%s300 + $0x98] sm:$0xff]
      %v382 = vld [vmem:[%s300 + $0xa0] sm:$0xff]
      %v383 = vld [vmem:[%s300 + $0xa8] sm:$0xff]
      %v384 = vld [vmem:[%s300 + $0xb0] sm:$0xff]
      %v385 = vld [vmem:[%s300 + $0xb8] sm:$0xff]
      %v386 = vld [vmem:[%s300 + $0xc0] sm:$0xff]
      %v387 = vld [vmem:[%s300 + $0xc8] sm:$0xff]
      %v388 = vld [vmem:[%s300 + $0xd0] sm:$0xff]
      %v389 = vld [vmem:[%s300 + $0xd8] sm:$0xff]
      %v390 = vld [vmem:[%s300 + $0xe0] sm:$0xff]
      %v391 = vld [vmem:[%s300 + $0xe8] sm:$0xff]
      %v392 = vld [vmem:[%s300 + $0xf0] sm:$0xff]
      %v393 = vld [vmem:[%s300 + $0xf8] sm:$0xff]
      %394 = vst.msk [vmem:[%s328 + $0x3] sm:$0xff] %vm307, %v362
      %395 = vst.msk [vmem:[%s328 + $0xb] sm:$0xff] %vm307, %v363
      %396 = vst.msk [vmem:[%s328 + $0x1b] sm:$0xff] %vm307, %v364
      %397 = vst.msk [vmem:[%s328 + $0x23] sm:$0xff] %vm307, %v365
      %398 = vst.msk [vmem:[%s328 + $0x33] sm:$0xff] %vm307, %v366
      %399 = vst.msk [vmem:[%s328 + $0x3b] sm:$0xff] %vm307, %v367
      %400 = vst.msk [vmem:[%s328 + $0x4b] sm:$0xff] %vm307, %v368
      %401 = vst.msk [vmem:[%s328 + $0x53] sm:$0xff] %vm307, %v369
      %402 = vst.msk [vmem:[%s328 + $0x63] sm:$0xff] %vm307, %v370
      %403 = vst.msk [vmem:[%s328 + $0x6b] sm:$0xff] %vm307, %v371
      %404 = vst.msk [vmem:[%s328 + $0x7b] sm:$0xff] %vm307, %v372
      %405 = vst.msk [vmem:[%s328 + $0x83] sm:$0xff] %vm307, %v373
      %406 = vst.msk [vmem:[%s328 + $0x93] sm:$0xff] %vm307, %v374
      %407 = vst.msk [vmem:[%s328 + $0x9b] sm:$0xff] %vm307, %v375
      %408 = vst.msk [vmem:[%s328 + $0xab] sm:$0xff] %vm307, %v376
      %409 = vst.msk [vmem:[%s328 + $0xb3] sm:$0xff] %vm307, %v377
      %410 = vst.msk [vmem:[%s328 + $0xc3] sm:$0xff] %vm307, %v378
      %411 = vst.msk [vmem:[%s328 + $0xcb] sm:$0xff] %vm307, %v379
      %412 = vst.msk [vmem:[%s328 + $0xdb] sm:$0xff] %vm307, %v380
      %413 = vst.msk [vmem:[%s328 + $0xe3] sm:$0xff] %vm307, %v381
      %414 = vst.msk [vmem:[%s328 + $0xf3] sm:$0xff] %vm307, %v382
      %415 = vst.msk [vmem:[%s328 + $0xfb] sm:$0xff] %vm307, %v383
      %416 = vst.msk [vmem:[%s328 + $0x10b] sm:$0xff] %vm307, %v384
      %417 = vst.msk [vmem:[%s328 + $0x113] sm:$0xff] %vm307, %v385
      %418 = vst.msk [vmem:[%s328 + $0x123] sm:$0xff] %vm307, %v386
      %419 = vst.msk [vmem:[%s328 + $0x12b] sm:$0xff] %vm307, %v387
      %420 = vst.msk [vmem:[%s328 + $0x13b] sm:$0xff] %vm307, %v388
      %421 = vst.msk [vmem:[%s328 + $0x143] sm:$0xff] %vm307, %v389
      %422 = vst.msk [vmem:[%s328 + $0x153] sm:$0xff] %vm307, %v390
      %423 = vst.msk [vmem:[%s328 + $0x15b] sm:$0xff] %vm307, %v391
      %424 = vst.msk [vmem:[%s328 + $0x16b] sm:$0xff] %vm307, %v392
      %425 = vst.msk [vmem:[%s328 + $0x173] sm:$0xff] %vm307, %v393
      %v426 = vld [vmem:[%s1] sm:$0xff]
      %v427 = vld [vmem:[%s1 + $0x8] sm:$0xff]
      %v428 = vld [vmem:[%s1 + $0x10] sm:$0xff]
      %v429 = vld [vmem:[%s1 + $0x18] sm:$0xff]
      %v430 = vld [vmem:[%s1 + $0x20] sm:$0xff]
      %v431 = vld [vmem:[%s1 + $0x28] sm:$0xff]
      %v432 = vld [vmem:[%s1 + $0x30] sm:$0x1]
      %v433 = vld [vmem:[%s2] sm:$0x1]
      %v434 = vld [vmem:[%s4] sm:$0x1]
      %v435 = vld [vmem:[#allocation2] sm:$0xff]
      %v436 = vld [vmem:[#allocation2 + $0x8] sm:$0xff]
      %v437 = vld [vmem:[#allocation2 + $0x10] sm:$0x3f]
      %v438 = vld [vmem:[#allocation2 + $0x18] sm:$0xff]
      %v439 = vld [vmem:[#allocation2 + $0x20] sm:$0xff]
      %v440 = vld [vmem:[#allocation2 + $0x28] sm:$0x3f]
      %v441 = vld [vmem:[#allocation2 + $0x30] sm:$0xff]
      %v442 = vld [vmem:[#allocation2 + $0x38] sm:$0xff]
      %v443 = vld [vmem:[#allocation2 + $0x40] sm:$0x3f]
      %v444 = vld [vmem:[#allocation2 + $0x48] sm:$0xff]
      %v445 = vld [vmem:[#allocation2 + $0x50] sm:$0xff]
      %v446 = vld [vmem:[#allocation2 + $0x58] sm:$0x3f]
      %v447 = vld [vmem:[#allocation2 + $0x60] sm:$0xff]
      %v448 = vld [vmem:[#allocation2 + $0x68] sm:$0xff]
      %v449 = vld [vmem:[#allocation2 + $0x70] sm:$0x3f]
      %v450 = vld [vmem:[#allocation2 + $0x78] sm:$0xff]
      %v451 = vld [vmem:[#allocation2 + $0x80] sm:$0xff]
      %v452 = vld [vmem:[#allocation2 + $0x88] sm:$0x3f]
      %v453 = vld [vmem:[#allocation2 + $0x90] sm:$0xff]
      %v454 = vld [vmem:[#allocation2 + $0x98] sm:$0xff]
      %v455 = vld [vmem:[#allocation2 + $0xa0] sm:$0x3f]
      %v456 = vld [vmem:[#allocation2 + $0xa8] sm:$0xff]
      %v457 = vld [vmem:[#allocation2 + $0xb0] sm:$0xff]
      %v458 = vld [vmem:[#allocation2 + $0xb8] sm:$0x3f]
      %v459 = vld [vmem:[#allocation2 + $0xc0] sm:$0xff]
      %v460 = vld [vmem:[#allocation2 + $0xc8] sm:$0xff]
      %v461 = vld [vmem:[#allocation2 + $0xd0] sm:$0x3f]
      %v462 = vld [vmem:[#allocation2 + $0xd8] sm:$0xff]
      %v463 = vld [vmem:[#allocation2 + $0xe0] sm:$0xff]
      %v464 = vld [vmem:[#allocation2 + $0xe8] sm:$0x3f]
      %v465 = vld [vmem:[#allocation2 + $0xf0] sm:$0xff]
      %v466 = vld [vmem:[#allocation2 + $0xf8] sm:$0xff]
      %v467 = vld [vmem:[#allocation2 + $0x100] sm:$0x3f]
      %v468 = vld [vmem:[#allocation2 + $0x108] sm:$0xff]
      %v469 = vld [vmem:[#allocation2 + $0x110] sm:$0xff]
      %v470 = vld [vmem:[#allocation2 + $0x118] sm:$0x3f]
      %v471 = vld [vmem:[#allocation2 + $0x120] sm:$0xff]
      %v472 = vld [vmem:[#allocation2 + $0x128] sm:$0xff]
      %v473 = vld [vmem:[#allocation2 + $0x130] sm:$0x3f]
      %v474 = vld [vmem:[#allocation2 + $0x138] sm:$0xff]
      %v475 = vld [vmem:[#allocation2 + $0x140] sm:$0xff]
      %v476 = vld [vmem:[#allocation2 + $0x148] sm:$0x3f]
      %v477 = vld [vmem:[#allocation2 + $0x150] sm:$0xff]
      %v478 = vld [vmem:[#allocation2 + $0x158] sm:$0xff]
      %v479 = vld [vmem:[#allocation2 + $0x160] sm:$0x3f]
      %v480 = vld [vmem:[#allocation2 + $0x168] sm:$0xff]
      %v481 = vld [vmem:[#allocation2 + $0x170] sm:$0xff]
      %v482 = vld [vmem:[#allocation2 + $0x178] sm:$0x3f]
      %v483 = vld [vmem:[#allocation2 + $0x180] sm:$0xff]
      %v484 = vld [vmem:[#allocation2 + $0x188] sm:$0xff]
      %v485 = vld [vmem:[#allocation2 + $0x190] sm:$0x3f]
      %v486 = vld [vmem:[#allocation2 + $0x198] sm:$0xff]
      %v487 = vld [vmem:[#allocation2 + $0x1a0] sm:$0xff]
      %v488 = vld [vmem:[#allocation2 + $0x1a8] sm:$0x3f]
      %v489 = vld [vmem:[#allocation2 + $0x1b0] sm:$0xff]
      %v490 = vld [vmem:[#allocation2 + $0x1b8] sm:$0xff]
      %v491 = vld [vmem:[#allocation2 + $0x1c0] sm:$0x3f]
      %v492 = vld [vmem:[#allocation2 + $0x1c8] sm:$0xff]
      %v493 = vld [vmem:[#allocation2 + $0x1d0] sm:$0xff]
      %v494 = vld [vmem:[#allocation2 + $0x1d8] sm:$0x3f]
      %v495 = vld [vmem:[#allocation2 + $0x1e0] sm:$0xff]
      %v496 = vld [vmem:[#allocation2 + $0x1e8] sm:$0xff]
      %v497 = vld [vmem:[#allocation2 + $0x1f0] sm:$0x3f]
      %v498 = vld [vmem:[#allocation2 + $0x1f8] sm:$0xff]
      %v499 = vld [vmem:[#allocation2 + $0x200] sm:$0xff]
      %v500 = vld [vmem:[#allocation2 + $0x208] sm:$0x3f]
      %v501 = vlaneseq
      %v502 = vshrl.u32 %v501, 7
      %v503 = vsub.s32 0, %v502
      %v504 = vrot.slane %v426, %v503
      %v505 = vmul.f32 %v435, %v504
      %v506 = vmul.f32 %v436, %v504
      %v507 = vmul.f32 %v438, %v504
      %v508 = vmul.f32 %v439, %v504
      %v509 = vmul.f32 %v441, %v504
      %v510 = vmul.f32 %v442, %v504
      %v511 = vmul.f32 %v444, %v504
      %v512 = vmul.f32 %v445, %v504
      %v513 = vmul.f32 %v447, %v504
      %v514 = vmul.f32 %v448, %v504
      %v515 = vmul.f32 %v450, %v504
      %v516 = vmul.f32 %v451, %v504
      %v517 = vmul.f32 %v453, %v504
      %v518 = vmul.f32 %v454, %v504
      %v519 = vmul.f32 %v456, %v504
      %v520 = vmul.f32 %v457, %v504
      %v521 = vmul.f32 %v459, %v504
      %v522 = vmul.f32 %v460, %v504
      %v523 = vmul.f32 %v462, %v504
      %v524 = vmul.f32 %v463, %v504
      %v525 = vmul.f32 %v465, %v504
      %v526 = vmul.f32 %v466, %v504
      %v527 = vmul.f32 %v468, %v504
      %v528 = vmul.f32 %v469, %v504
      %v529 = vmul.f32 %v471, %v504
      %v530 = vmul.f32 %v472, %v504
      %v531 = vmul.f32 %v474, %v504
      %v532 = vmul.f32 %v475, %v504
      %v533 = vmul.f32 %v477, %v504
      %v534 = vmul.f32 %v478, %v504
      %v535 = vmul.f32 %v480, %v504
      %v536 = vmul.f32 %v481, %v504
      %v537 = vadd.f32 %v505, 0.0
      %v538 = vadd.f32 %v506, 0.0
      %v539 = vadd.f32 %v507, 0.0
      %v540 = vadd.f32 %v508, 0.0
      %v541 = vadd.f32 %v509, 0.0
      %v542 = vadd.f32 %v510, 0.0
      %v543 = vadd.f32 %v511, 0.0
      %v544 = vadd.f32 %v512, 0.0
      %v545 = vadd.f32 %v513, 0.0
      %v546 = vadd.f32 %v514, 0.0
      %v547 = vadd.f32 %v515, 0.0
      %v548 = vadd.f32 %v516, 0.0
      %v549 = vadd.f32 %v517, 0.0
      %v550 = vadd.f32 %v518, 0.0
      %v551 = vadd.f32 %v519, 0.0
      %v552 = vadd.f32 %v520, 0.0
      %v553 = vadd.f32 %v521, 0.0
      %v554 = vadd.f32 %v522, 0.0
      %v555 = vadd.f32 %v523, 0.0
      %v556 = vadd.f32 %v524, 0.0
      %v557 = vadd.f32 %v525, 0.0
      %v558 = vadd.f32 %v526, 0.0
      %v559 = vadd.f32 %v527, 0.0
      %v560 = vadd.f32 %v528, 0.0
      %v561 = vadd.f32 %v529, 0.0
      %v562 = vadd.f32 %v530, 0.0
      %v563 = vadd.f32 %v531, 0.0
      %v564 = vadd.f32 %v532, 0.0
      %v565 = vadd.f32 %v533, 0.0
      %v566 = vadd.f32 %v534, 0.0
      %v567 = vadd.f32 %v535, 0.0
      %v568 = vadd.f32 %v536, 0.0
      %v569 = vlaneseq
      %v570 = vshrl.u32 %v569, 7
      %v571 = vsub.s32 7, %v570
      %v572 = vrot.slane %v426, %v571
      %v573 = vmul.f32 %v438, %v572
      %v574 = vmul.f32 %v439, %v572
      %v575 = vmul.f32 %v441, %v572
      %v576 = vmul.f32 %v442, %v572
      %v577 = vmul.f32 %v444, %v572
      %v578 = vmul.f32 %v445, %v572
      %v579 = vmul.f32 %v447, %v572
      %v580 = vmul.f32 %v448, %v572
      %v581 = vmul.f32 %v450, %v572
      %v582 = vmul.f32 %v451, %v572
      %v583 = vmul.f32 %v453, %v572
      %v584 = vmul.f32 %v454, %v572
      %v585 = vmul.f32 %v456, %v572
      %v586 = vmul.f32 %v457, %v572
      %v587 = vmul.f32 %v459, %v572
      %v588 = vmul.f32 %v460, %v572
      %v589 = vmul.f32 %v462, %v572
      %v590 = vmul.f32 %v463, %v572
      %v591 = vmul.f32 %v465, %v572
      %v592 = vmul.f32 %v466, %v572
      %v593 = vmul.f32 %v468, %v572
      %v594 = vmul.f32 %v469, %v572
      %v595 = vmul.f32 %v471, %v572
      %v596 = vmul.f32 %v472, %v572
      %v597 = vmul.f32 %v474, %v572
      %v598 = vmul.f32 %v475, %v572
      %v599 = vmul.f32 %v477, %v572
      %v600 = vmul.f32 %v478, %v572
      %v601 = vmul.f32 %v480, %v572
      %v602 = vmul.f32 %v481, %v572
      %v603 = vmul.f32 %v483, %v572
      %v604 = vmul.f32 %v484, %v572
      %v605 = vadd.f32 %v537, %v573
      %v606 = vadd.f32 %v538, %v574
      %v607 = vadd.f32 %v539, %v575
      %v608 = vadd.f32 %v540, %v576
      %v609 = vadd.f32 %v541, %v577
      %v610 = vadd.f32 %v542, %v578
      %v611 = vadd.f32 %v543, %v579
      %v612 = vadd.f32 %v544, %v580
      %v613 = vadd.f32 %v545, %v581
      %v614 = vadd.f32 %v546, %v582
      %v615 = vadd.f32 %v547, %v583
      %v616 = vadd.f32 %v548, %v584
      %v617 = vadd.f32 %v549, %v585
      %v618 = vadd.f32 %v550, %v586
      %v619 = vadd.f32 %v551, %v587
      %v620 = vadd.f32 %v552, %v588
      %v621 = vadd.f32 %v553, %v589
      %v622 = vadd.f32 %v554, %v590
      %v623 = vadd.f32 %v555, %v591
      %v624 = vadd.f32 %v556, %v592
      %v625 = vadd.f32 %v557, %v593
      %v626 = vadd.f32 %v558, %v594
      %v627 = vadd.f32 %v559, %v595
      %v628 = vadd.f32 %v560, %v596
      %v629 = vadd.f32 %v561, %v597
      %v630 = vadd.f32 %v562, %v598
      %v631 = vadd.f32 %v563, %v599
      %v632 = vadd.f32 %v564, %v600
      %v633 = vadd.f32 %v565, %v601
      %v634 = vadd.f32 %v566, %v602
      %v635 = vadd.f32 %v567, %v603
      %v636 = vadd.f32 %v568, %v604
      %v637 = vlaneseq
      %v638 = vshrl.u32 %v637, 7
      %v639 = vsub.s32 6, %v638
      %v640 = vrot.slane %v427, %v639
      %v641 = vmul.f32 %v441, %v640
      %v642 = vmul.f32 %v442, %v640
      %v643 = vmul.f32 %v444, %v640
      %v644 = vmul.f32 %v445, %v640
      %v645 = vmul.f32 %v447, %v640
      %v646 = vmul.f32 %v448, %v640
      %v647 = vmul.f32 %v450, %v640
      %v648 = vmul.f32 %v451, %v640
      %v649 = vmul.f32 %v453, %v640
      %v650 = vmul.f32 %v454, %v640
      %v651 = vmul.f32 %v456, %v640
      %v652 = vmul.f32 %v457, %v640
      %v653 = vmul.f32 %v459, %v640
      %v654 = vmul.f32 %v460, %v640
      %v655 = vmul.f32 %v462, %v640
      %v656 = vmul.f32 %v463, %v640
      %v657 = vmul.f32 %v465, %v640
      %v658 = vmul.f32 %v466, %v640
      %v659 = vmul.f32 %v468, %v640
      %v660 = vmul.f32 %v469, %v640
      %v661 = vmul.f32 %v471, %v640
      %v662 = vmul.f32 %v472, %v640
      %v663 = vmul.f32 %v474, %v640
      %v664 = vmul.f32 %v475, %v640
      %v665 = vmul.f32 %v477, %v640
      %v666 = vmul.f32 %v478, %v640
      %v667 = vmul.f32 %v480, %v640
      %v668 = vmul.f32 %v481, %v640
      %v669 = vmul.f32 %v483, %v640
      %v670 = vmul.f32 %v484, %v640
      %v671 = vmul.f32 %v486, %v640
      %v672 = vmul.f32 %v487, %v640
      %v673 = vadd.f32 %v605, %v641
      %v674 = vadd.f32 %v606, %v642
      %v675 = vadd.f32 %v607, %v643
      %v676 = vadd.f32 %v608, %v644
      %v677 = vadd.f32 %v609, %v645
      %v678 = vadd.f32 %v610, %v646
      %v679 = vadd.f32 %v611, %v647
      %v680 = vadd.f32 %v612, %v648
      %v681 = vadd.f32 %v613, %v649
      %v682 = vadd.f32 %v614, %v650
      %v683 = vadd.f32 %v615, %v651
      %v684 = vadd.f32 %v616, %v652
      %v685 = vadd.f32 %v617, %v653
      %v686 = vadd.f32 %v618, %v654
      %v687 = vadd.f32 %v619, %v655
      %v688 = vadd.f32 %v620, %v656
      %v689 = vadd.f32 %v621, %v657
      %v690 = vadd.f32 %v622, %v658
      %v691 = vadd.f32 %v623, %v659
      %v692 = vadd.f32 %v624, %v660
      %v693 = vadd.f32 %v625, %v661
      %v694 = vadd.f32 %v626, %v662
      %v695 = vadd.f32 %v627, %v663
      %v696 = vadd.f32 %v628, %v664
      %v697 = vadd.f32 %v629, %v665
      %v698 = vadd.f32 %v630, %v666
      %v699 = vadd.f32 %v631, %v667
      %v700 = vadd.f32 %v632, %v668
      %v701 = vadd.f32 %v633, %v669
      %v702 = vadd.f32 %v634, %v670
      %v703 = vadd.f32 %v635, %v671
      %v704 = vadd.f32 %v636, %v672
      %v705 = vlaneseq
      %v706 = vshrl.u32 %v705, 7
      %v707 = vsub.s32 5, %v706
      %v708 = vrot.slane %v428, %v707
      %v709 = vmul.f32 %v444, %v708
      %v710 = vmul.f32 %v445, %v708
      %v711 = vmul.f32 %v447, %v708
      %v712 = vmul.f32 %v448, %v708
      %v713 = vmul.f32 %v450, %v708
      %v714 = vmul.f32 %v451, %v708
      %v715 = vmul.f32 %v453, %v708
      %v716 = vmul.f32 %v454, %v708
      %v717 = vmul.f32 %v456, %v708
      %v718 = vmul.f32 %v457, %v708
      %v719 = vmul.f32 %v459, %v708
      %v720 = vmul.f32 %v460, %v708
      %v721 = vmul.f32 %v462, %v708
      %v722 = vmul.f32 %v463, %v708
      %v723 = vmul.f32 %v465, %v708
      %v724 = vmul.f32 %v466, %v708
      %v725 = vmul.f32 %v468, %v708
      %v726 = vmul.f32 %v469, %v708
      %v727 = vmul.f32 %v471, %v708
      %v728 = vmul.f32 %v472, %v708
      %v729 = vmul.f32 %v474, %v708
      %v730 = vmul.f32 %v475, %v708
      %v731 = vmul.f32 %v477, %v708
      %v732 = vmul.f32 %v478, %v708
      %v733 = vmul.f32 %v480, %v708
      %v734 = vmul.f32 %v481, %v708
      %v735 = vmul.f32 %v483, %v708
      %v736 = vmul.f32 %v484, %v708
      %v737 = vmul.f32 %v486, %v708
      %v738 = vmul.f32 %v487, %v708
      %v739 = vmul.f32 %v489, %v708
      %v740 = vmul.f32 %v490, %v708
      %v741 = vadd.f32 %v673, %v709
      %v742 = vadd.f32 %v674, %v710
      %v743 = vadd.f32 %v675, %v711
      %v744 = vadd.f32 %v676, %v712
      %v745 = vadd.f32 %v677, %v713
      %v746 = vadd.f32 %v678, %v714
      %v747 = vadd.f32 %v679, %v715
      %v748 = vadd.f32 %v680, %v716
      %v749 = vadd.f32 %v681, %v717
      %v750 = vadd.f32 %v682, %v718
      %v751 = vadd.f32 %v683, %v719
      %v752 = vadd.f32 %v684, %v720
      %v753 = vadd.f32 %v685, %v721
      %v754 = vadd.f32 %v686, %v722
      %v755 = vadd.f32 %v687, %v723
      %v756 = vadd.f32 %v688, %v724
      %v757 = vadd.f32 %v689, %v725
      %v758 = vadd.f32 %v690, %v726
      %v759 = vadd.f32 %v691, %v727
      %v760 = vadd.f32 %v692, %v728
      %v761 = vadd.f32 %v693, %v729
      %v762 = vadd.f32 %v694, %v730
      %v763 = vadd.f32 %v695, %v731
      %v764 = vadd.f32 %v696, %v732
      %v765 = vadd.f32 %v697, %v733
      %v766 = vadd.f32 %v698, %v734
      %v767 = vadd.f32 %v699, %v735
      %v768 = vadd.f32 %v700, %v736
      %v769 = vadd.f32 %v701, %v737
      %v770 = vadd.f32 %v702, %v738
      %v771 = vadd.f32 %v703, %v739
      %v772 = vadd.f32 %v704, %v740
      %v773 = vlaneseq
      %v774 = vshrl.u32 %v773, 7
      %v775 = vsub.s32 4, %v774
      %v776 = vrot.slane %v429, %v775
      %v777 = vmul.f32 %v447, %v776
      %v778 = vmul.f32 %v448, %v776
      %v779 = vmul.f32 %v450, %v776
      %v780 = vmul.f32 %v451, %v776
      %v781 = vmul.f32 %v453, %v776
      %v782 = vmul.f32 %v454, %v776
      %v783 = vmul.f32 %v456, %v776
      %v784 = vmul.f32 %v457, %v776
      %v785 = vmul.f32 %v459, %v776
      %v786 = vmul.f32 %v460, %v776
      %v787 = vmul.f32 %v462, %v776
      %v788 = vmul.f32 %v463, %v776
      %v789 = vmul.f32 %v465, %v776
      %v790 = vmul.f32 %v466, %v776
      %v791 = vmul.f32 %v468, %v776
      %v792 = vmul.f32 %v469, %v776
      %v793 = vmul.f32 %v471, %v776
      %v794 = vmul.f32 %v472, %v776
      %v795 = vmul.f32 %v474, %v776
      %v796 = vmul.f32 %v475, %v776
      %v797 = vmul.f32 %v477, %v776
      %v798 = vmul.f32 %v478, %v776
      %v799 = vmul.f32 %v480, %v776
      %v800 = vmul.f32 %v481, %v776
      %v801 = vmul.f32 %v483, %v776
      %v802 = vmul.f32 %v484, %v776
      %v803 = vmul.f32 %v486, %v776
      %v804 = vmul.f32 %v487, %v776
      %v805 = vmul.f32 %v489, %v776
      %v806 = vmul.f32 %v490, %v776
      %v807 = vmul.f32 %v492, %v776
      %v808 = vmul.f32 %v493, %v776
      %v809 = vadd.f32 %v741, %v777
      %v810 = vadd.f32 %v742, %v778
      %v811 = vadd.f32 %v743, %v779
      %v812 = vadd.f32 %v744, %v780
      %v813 = vadd.f32 %v745, %v781
      %v814 = vadd.f32 %v746, %v782
      %v815 = vadd.f32 %v747, %v783
      %v816 = vadd.f32 %v748, %v784
      %v817 = vadd.f32 %v749, %v785
      %v818 = vadd.f32 %v750, %v786
      %v819 = vadd.f32 %v751, %v787
      %v820 = vadd.f32 %v752, %v788
      %v821 = vadd.f32 %v753, %v789
      %v822 = vadd.f32 %v754, %v790
      %v823 = vadd.f32 %v755, %v791
      %v824 = vadd.f32 %v756, %v792
      %v825 = vadd.f32 %v757, %v793
      %v826 = vadd.f32 %v758, %v794
      %v827 = vadd.f32 %v759, %v795
      %v828 = vadd.f32 %v760, %v796
      %v829 = vadd.f32 %v761, %v797
      %v830 = vadd.f32 %v762, %v798
      %v831 = vadd.f32 %v763, %v799
      %v832 = vadd.f32 %v764, %v800
      %v833 = vadd.f32 %v765, %v801
      %v834 = vadd.f32 %v766, %v802
      %v835 = vadd.f32 %v767, %v803
      %v836 = vadd.f32 %v768, %v804
      %v837 = vadd.f32 %v769, %v805
      %v838 = vadd.f32 %v770, %v806
      %v839 = vadd.f32 %v771, %v807
      %v840 = vadd.f32 %v772, %v808
      %v841 = vlaneseq
      %v842 = vshrl.u32 %v841, 7
      %v843 = vsub.s32 3, %v842
      %v844 = vrot.slane %v430, %v843
      %v845 = vmul.f32 %v450, %v844
      %v846 = vmul.f32 %v451, %v844
      %v847 = vmul.f32 %v453, %v844
      %v848 = vmul.f32 %v454, %v844
      %v849 = vmul.f32 %v456, %v844
      %v850 = vmul.f32 %v457, %v844
      %v851 = vmul.f32 %v459, %v844
      %v852 = vmul.f32 %v460, %v844
      %v853 = vmul.f32 %v462, %v844
      %v854 = vmul.f32 %v463, %v844
      %v855 = vmul.f32 %v465, %v844
      %v856 = vmul.f32 %v466, %v844
      %v857 = vmul.f32 %v468, %v844
      %v858 = vmul.f32 %v469, %v844
      %v859 = vmul.f32 %v471, %v844
      %v860 = vmul.f32 %v472, %v844
      %v861 = vmul.f32 %v474, %v844
      %v862 = vmul.f32 %v475, %v844
      %v863 = vmul.f32 %v477, %v844
      %v864 = vmul.f32 %v478, %v844
      %v865 = vmul.f32 %v480, %v844
      %v866 = vmul.f32 %v481, %v844
      %v867 = vmul.f32 %v483, %v844
      %v868 = vmul.f32 %v484, %v844
      %v869 = vmul.f32 %v486, %v844
      %v870 = vmul.f32 %v487, %v844
      %v871 = vmul.f32 %v489, %v844
      %v872 = vmul.f32 %v490, %v844
      %v873 = vmul.f32 %v492, %v844
      %v874 = vmul.f32 %v493, %v844
      %v875 = vmul.f32 %v495, %v844
      %v876 = vmul.f32 %v496, %v844
      %v877 = vadd.f32 %v809, %v845
      %v878 = vadd.f32 %v810, %v846
      %v879 = vadd.f32 %v811, %v847
      %v880 = vadd.f32 %v812, %v848
      %v881 = vadd.f32 %v813, %v849
      %v882 = vadd.f32 %v814, %v850
      %v883 = vadd.f32 %v815, %v851
      %v884 = vadd.f32 %v816, %v852
      %v885 = vadd.f32 %v817, %v853
      %v886 = vadd.f32 %v818, %v854
      %v887 = vadd.f32 %v819, %v855
      %v888 = vadd.f32 %v820, %v856
      %v889 = vadd.f32 %v821, %v857
      %v890 = vadd.f32 %v822, %v858
      %v891 = vadd.f32 %v823, %v859
      %v892 = vadd.f32 %v824, %v860
      %v893 = vadd.f32 %v825, %v861
      %v894 = vadd.f32 %v826, %v862
      %v895 = vadd.f32 %v827, %v863
      %v896 = vadd.f32 %v828, %v864
      %v897 = vadd.f32 %v829, %v865
      %v898 = vadd.f32 %v830, %v866
      %v899 = vadd.f32 %v831, %v867
      %v900 = vadd.f32 %v832, %v868
      %v901 = vadd.f32 %v833, %v869
      %v902 = vadd.f32 %v834, %v870
      %v903 = vadd.f32 %v835, %v871
      %v904 = vadd.f32 %v836, %v872
      %v905 = vadd.f32 %v837, %v873
      %v906 = vadd.f32 %v838, %v874
      %v907 = vadd.f32 %v839, %v875
      %v908 = vadd.f32 %v840, %v876
      %v909 = vlaneseq
      %v910 = vshrl.u32 %v909, 7
      %v911 = vsub.s32 2, %v910
      %v912 = vrot.slane %v431, %v911
      %v913 = vmul.f32 %v453, %v912
      %v914 = vmul.f32 %v454, %v912
      %v915 = vmul.f32 %v456, %v912
      %v916 = vmul.f32 %v457, %v912
      %v917 = vmul.f32 %v459, %v912
      %v918 = vmul.f32 %v460, %v912
      %v919 = vmul.f32 %v462, %v912
      %v920 = vmul.f32 %v463, %v912
      %v921 = vmul.f32 %v465, %v912
      %v922 = vmul.f32 %v466, %v912
      %v923 = vmul.f32 %v468, %v912
      %v924 = vmul.f32 %v469, %v912
      %v925 = vmul.f32 %v471, %v912
      %v926 = vmul.f32 %v472, %v912
      %v927 = vmul.f32 %v474, %v912
      %v928 = vmul.f32 %v475, %v912
      %v929 = vmul.f32 %v477, %v912
      %v930 = vmul.f32 %v478, %v912
      %v931 = vmul.f32 %v480, %v912
      %v932 = vmul.f32 %v481, %v912
      %v933 = vmul.f32 %v483, %v912
      %v934 = vmul.f32 %v484, %v912
      %v935 = vmul.f32 %v486, %v912
      %v936 = vmul.f32 %v487, %v912
      %v937 = vmul.f32 %v489, %v912
      %v938 = vmul.f32 %v490, %v912
      %v939 = vmul.f32 %v492, %v912
      %v940 = vmul.f32 %v493, %v912
      %v941 = vmul.f32 %v495, %v912
      %v942 = vmul.f32 %v496, %v912
      %v943 = vmul.f32 %v498, %v912
      %v944 = vmul.f32 %v499, %v912
      %v945 = vadd.f32 %v877, %v913
      %v946 = vadd.f32 %v878, %v914
      %v947 = vadd.f32 %v879, %v915
      %v948 = vadd.f32 %v880, %v916
      %v949 = vadd.f32 %v881, %v917
      %v950 = vadd.f32 %v882, %v918
      %v951 = vadd.f32 %v883, %v919
      %v952 = vadd.f32 %v884, %v920
      %v953 = vadd.f32 %v885, %v921
      %v954 = vadd.f32 %v886, %v922
      %v955 = vadd.f32 %v887, %v923
      %v956 = vadd.f32 %v888, %v924
      %v957 = vadd.f32 %v889, %v925
      %v958 = vadd.f32 %v890, %v926
      %v959 = vadd.f32 %v891, %v927
      %v960 = vadd.f32 %v892, %v928
      %v961 = vadd.f32 %v893, %v929
      %v962 = vadd.f32 %v894, %v930
      %v963 = vadd.f32 %v895, %v931
      %v964 = vadd.f32 %v896, %v932
      %v965 = vadd.f32 %v897, %v933
      %v966 = vadd.f32 %v898, %v934
      %v967 = vadd.f32 %v899, %v935
      %v968 = vadd.f32 %v900, %v936
      %v969 = vadd.f32 %v901, %v937
      %v970 = vadd.f32 %v902, %v938
      %v971 = vadd.f32 %v903, %v939
      %v972 = vadd.f32 %v904, %v940
      %v973 = vadd.f32 %v905, %v941
      %v974 = vadd.f32 %v906, %v942
      %v975 = vadd.f32 %v907, %v943
      %v976 = vadd.f32 %v908, %v944
      %v977 = vlaneseq
      %v978 = vshrl.u32 %v977, 7
      %v979 = vsub.s32 1, %v978
      %v980 = vrot.slane %v426, %v979
      %v981 = vmul.f32 %v435, %v980
      %v982 = vmul.f32 %v436, %v980
      %v983 = vmul.f32 %v437, %v980
      %v984 = vmul.f32 %v438, %v980
      %v985 = vmul.f32 %v439, %v980
      %v986 = vmul.f32 %v440, %v980
      %v987 = vmul.f32 %v441, %v980
      %v988 = vmul.f32 %v442, %v980
      %v989 = vmul.f32 %v443, %v980
      %v990 = vmul.f32 %v444, %v980
      %v991 = vmul.f32 %v445, %v980
      %v992 = vmul.f32 %v446, %v980
      %v993 = vmul.f32 %v447, %v980
      %v994 = vmul.f32 %v448, %v980
      %v995 = vmul.f32 %v449, %v980
      %v996 = vmul.f32 %v450, %v980
      %v997 = vmul.f32 %v451, %v980
      %v998 = vmul.f32 %v452, %v980
      %v999 = vmul.f32 %v453, %v980
      %v1000 = vmul.f32 %v454, %v980
      %v1001 = vmul.f32 %v455, %v980
      %v1002 = vmul.f32 %v456, %v980
      %v1003 = vmul.f32 %v457, %v980
      %v1004 = vmul.f32 %v458, %v980
      %v1005 = vmul.f32 %v459, %v980
      %v1006 = vmul.f32 %v460, %v980
      %v1007 = vmul.f32 %v461, %v980
      %v1008 = vmul.f32 %v462, %v980
      %v1009 = vmul.f32 %v463, %v980
      %v1010 = vmul.f32 %v464, %v980
      %v1011 = vmul.f32 %v465, %v980
      %v1012 = vmul.f32 %v466, %v980
      %v1013 = vmul.f32 %v467, %v980
      %v1014 = vmul.f32 %v468, %v980
      %v1015 = vmul.f32 %v469, %v980
      %v1016 = vmul.f32 %v470, %v980
      %v1017 = vmul.f32 %v471, %v980
      %v1018 = vmul.f32 %v472, %v980
      %v1019 = vmul.f32 %v473, %v980
      %v1020 = vmul.f32 %v474, %v980
      %v1021 = vmul.f32 %v475, %v980
      %v1022 = vmul.f32 %v476, %v980
      %v1023 = vmul.f32 %v477, %v980
      %v1024 = vmul.f32 %v478, %v980
      %v1025 = vmul.f32 %v479, %v980
      %v1026 = vmul.f32 %v480, %v980
      %v1027 = vmul.f32 %v481, %v980
      %v1028 = vmul.f32 %v482, %v980
      %vm1077 = vcmask 1046528
      %v1078 = vrot.slane %v981, 1
      %v1079 = vrot.slane %v982, 1
      %v1080 = vsel %vm1077, %v1078, %v1079
      %v1081 = vrot.slane %v983, 1
      %v1082 = vsel %vm1077, %v1079, %v1081
      %v1083 = vrot.slane %v984, 1
      %v1084 = vrot.slane %v985, 1
      %v1085 = vsel %vm1077, %v1083, %v1084
      %v1086 = vrot.slane %v986, 1
      %v1087 = vsel %vm1077, %v1084, %v1086
      %v1088 = vrot.slane %v987, 1
      %v1089 = vrot.slane %v988, 1
      %v1090 = vsel %vm1077, %v1088, %v1089
      %v1091 = vrot.slane %v989, 1
      %v1092 = vsel %vm1077, %v1089, %v1091
      %v1093 = vrot.slane %v990, 1
      %v1094 = vrot.slane %v991, 1
      %v1095 = vsel %vm1077, %v1093, %v1094
      %v1096 = vrot.slane %v992, 1
      %v1097 = vsel %vm1077, %v1094, %v1096
      %v1098 = vrot.slane %v993, 1
      %v1099 = vrot.slane %v994, 1
      %v1100 = vsel %vm1077, %v1098, %v1099
      %v1101 = vrot.slane %v995, 1
      %v1102 = vsel %vm1077, %v1099, %v1101
      %v1103 = vrot.slane %v996, 1
      %v1104 = vrot.slane %v997, 1
      %v1105 = vsel %vm1077, %v1103, %v1104
      %v1106 = vrot.slane %v998, 1
      %v1107 = vsel %vm1077, %v1104, %v1106
      %v1108 = vrot.slane %v999, 1
      %v1109 = vrot.slane %v1000, 1
      %v1110 = vsel %vm1077, %v1108, %v1109
      %v1111 = vrot.slane %v1001, 1
      %v1112 = vsel %vm1077, %v1109, %v1111
      %v1113 = vrot.slane %v1002, 1
      %v1114 = vrot.slane %v1003, 1
      %v1115 = vsel %vm1077, %v1113, %v1114
      %v1116 = vrot.slane %v1004, 1
      %v1117 = vsel %vm1077, %v1114, %v1116
      %v1118 = vrot.slane %v1005, 1
      %v1119 = vrot.slane %v1006, 1
      %v1120 = vsel %vm1077, %v1118, %v1119
      %v1121 = vrot.slane %v1007, 1
      %v1122 = vsel %vm1077, %v1119, %v1121
      %v1123 = vrot.slane %v1008, 1
      %v1124 = vrot.slane %v1009, 1
      %v1125 = vsel %vm1077, %v1123, %v1124
      %v1126 = vrot.slane %v1010, 1
      %v1127 = vsel %vm1077, %v1124, %v1126
      %v1128 = vrot.slane %v1011, 1
      %v1129 = vrot.slane %v1012, 1
      %v1130 = vsel %vm1077, %v1128, %v1129
      %v1131 = vrot.slane %v1013, 1
      %v1132 = vsel %vm1077, %v1129, %v1131
      %v1133 = vrot.slane %v1014, 1
      %v1134 = vrot.slane %v1015, 1
      %v1135 = vsel %vm1077, %v1133, %v1134
      %v1136 = vrot.slane %v1016, 1
      %v1137 = vsel %vm1077, %v1134, %v1136
      %v1138 = vrot.slane %v1017, 1
      %v1139 = vrot.slane %v1018, 1
      %v1140 = vsel %vm1077, %v1138, %v1139
      %v1141 = vrot.slane %v1019, 1
      %v1142 = vsel %vm1077, %v1139, %v1141
      %v1143 = vrot.slane %v1020, 1
      %v1144 = vrot.slane %v1021, 1
      %v1145 = vsel %vm1077, %v1143, %v1144
      %v1146 = vrot.slane %v1022, 1
      %v1147 = vsel %vm1077, %v1144, %v1146
      %v1148 = vrot.slane %v1023, 1
      %v1149 = vrot.slane %v1024, 1
      %v1150 = vsel %vm1077, %v1148, %v1149
      %v1151 = vrot.slane %v1025, 1
      %v1152 = vsel %vm1077, %v1149, %v1151
      %v1153 = vrot.slane %v1026, 1
      %v1154 = vrot.slane %v1027, 1
      %v1155 = vsel %vm1077, %v1153, %v1154
      %v1156 = vrot.slane %v1028, 1
      %v1157 = vsel %vm1077, %v1154, %v1156
      %v1190 = vadd.f32 %v945, %v1080
      %v1191 = vadd.f32 %v946, %v1082
      %v1192 = vadd.f32 %v947, %v1085
      %v1193 = vadd.f32 %v948, %v1087
      %v1194 = vadd.f32 %v949, %v1090
      %v1195 = vadd.f32 %v950, %v1092
      %v1196 = vadd.f32 %v951, %v1095
      %v1197 = vadd.f32 %v952, %v1097
      %v1198 = vadd.f32 %v953, %v1100
      %v1199 = vadd.f32 %v954, %v1102
      %v1200 = vadd.f32 %v955, %v1105
      %v1201 = vadd.f32 %v956, %v1107
      %v1202 = vadd.f32 %v957, %v1110
      %v1203 = vadd.f32 %v958, %v1112
      %v1204 = vadd.f32 %v959, %v1115
      %v1205 = vadd.f32 %v960, %v1117
      %v1206 = vadd.f32 %v961, %v1120
      %v1207 = vadd.f32 %v962, %v1122
      %v1208 = vadd.f32 %v963, %v1125
      %v1209 = vadd.f32 %v964, %v1127
      %v1210 = vadd.f32 %v965, %v1130
      %v1211 = vadd.f32 %v966, %v1132
      %v1212 = vadd.f32 %v967, %v1135
      %v1213 = vadd.f32 %v968, %v1137
      %v1214 = vadd.f32 %v969, %v1140
      %v1215 = vadd.f32 %v970, %v1142
      %v1216 = vadd.f32 %v971, %v1145
      %v1217 = vadd.f32 %v972, %v1147
      %v1218 = vadd.f32 %v973, %v1150
      %v1219 = vadd.f32 %v974, %v1152
      %v1220 = vadd.f32 %v975, %v1155
      %v1221 = vadd.f32 %v976, %v1157
      %v1222 = vlaneseq
      %v1223 = vshrl.u32 %v1222, 7
      %v1224 = vsub.s32 0, %v1223
      %v1225 = vrot.slane %v427, %v1224
      %v1226 = vmul.f32 %v438, %v1225
      %v1227 = vmul.f32 %v439, %v1225
      %v1228 = vmul.f32 %v440, %v1225
      %v1229 = vmul.f32 %v441, %v1225
      %v1230 = vmul.f32 %v442, %v1225
      %v1231 = vmul.f32 %v443, %v1225
      %v1232 = vmul.f32 %v444, %v1225
      %v1233 = vmul.f32 %v445, %v1225
      %v1234 = vmul.f32 %v446, %v1225
      %v1235 = vmul.f32 %v447, %v1225
      %v1236 = vmul.f32 %v448, %v1225
      %v1237 = vmul.f32 %v449, %v1225
      %v1238 = vmul.f32 %v450, %v1225
      %v1239 = vmul.f32 %v451, %v1225
      %v1240 = vmul.f32 %v452, %v1225
      %v1241 = vmul.f32 %v453, %v1225
      %v1242 = vmul.f32 %v454, %v1225
      %v1243 = vmul.f32 %v455, %v1225
      %v1244 = vmul.f32 %v456, %v1225
      %v1245 = vmul.f32 %v457, %v1225
      %v1246 = vmul.f32 %v458, %v1225
      %v1247 = vmul.f32 %v459, %v1225
      %v1248 = vmul.f32 %v460, %v1225
      %v1249 = vmul.f32 %v461, %v1225
      %v1250 = vmul.f32 %v462, %v1225
      %v1251 = vmul.f32 %v463, %v1225
      %v1252 = vmul.f32 %v464, %v1225
      %v1253 = vmul.f32 %v465, %v1225
      %v1254 = vmul.f32 %v466, %v1225
      %v1255 = vmul.f32 %v467, %v1225
      %v1256 = vmul.f32 %v468, %v1225
      %v1257 = vmul.f32 %v469, %v1225
      %v1258 = vmul.f32 %v470, %v1225
      %v1259 = vmul.f32 %v471, %v1225
      %v1260 = vmul.f32 %v472, %v1225
      %v1261 = vmul.f32 %v473, %v1225
      %v1262 = vmul.f32 %v474, %v1225
      %v1263 = vmul.f32 %v475, %v1225
      %v1264 = vmul.f32 %v476, %v1225
      %v1265 = vmul.f32 %v477, %v1225
      %v1266 = vmul.f32 %v478, %v1225
      %v1267 = vmul.f32 %v479, %v1225
      %v1268 = vmul.f32 %v480, %v1225
      %v1269 = vmul.f32 %v481, %v1225
      %v1270 = vmul.f32 %v482, %v1225
      %v1271 = vmul.f32 %v483, %v1225
      %v1272 = vmul.f32 %v484, %v1225
      %v1273 = vmul.f32 %v485, %v1225
      %v1322 = vrot.slane %v1226, 1
      %v1323 = vrot.slane %v1227, 1
      %v1324 = vsel %vm1077, %v1322, %v1323
      %v1325 = vrot.slane %v1228, 1
      %v1326 = vsel %vm1077, %v1323, %v1325
      %v1327 = vrot.slane %v1229, 1
      %v1328 = vrot.slane %v1230, 1
      %v1329 = vsel %vm1077, %v1327, %v1328
      %v1330 = vrot.slane %v1231, 1
      %v1331 = vsel %vm1077, %v1328, %v1330
      %v1332 = vrot.slane %v1232, 1
      %v1333 = vrot.slane %v1233, 1
      %v1334 = vsel %vm1077, %v1332, %v1333
      %v1335 = vrot.slane %v1234, 1
      %v1336 = vsel %vm1077, %v1333, %v1335
      %v1337 = vrot.slane %v1235, 1
      %v1338 = vrot.slane %v1236, 1
      %v1339 = vsel %vm1077, %v1337, %v1338
      %v1340 = vrot.slane %v1237, 1
      %v1341 = vsel %vm1077, %v1338, %v1340
      %v1342 = vrot.slane %v1238, 1
      %v1343 = vrot.slane %v1239, 1
      %v1344 = vsel %vm1077, %v1342, %v1343
      %v1345 = vrot.slane %v1240, 1
      %v1346 = vsel %vm1077, %v1343, %v1345
      %v1347 = vrot.slane %v1241, 1
      %v1348 = vrot.slane %v1242, 1
      %v1349 = vsel %vm1077, %v1347, %v1348
      %v1350 = vrot.slane %v1243, 1
      %v1351 = vsel %vm1077, %v1348, %v1350
      %v1352 = vrot.slane %v1244, 1
      %v1353 = vrot.slane %v1245, 1
      %v1354 = vsel %vm1077, %v1352, %v1353
      %v1355 = vrot.slane %v1246, 1
      %v1356 = vsel %vm1077, %v1353, %v1355
      %v1357 = vrot.slane %v1247, 1
      %v1358 = vrot.slane %v1248, 1
      %v1359 = vsel %vm1077, %v1357, %v1358
      %v1360 = vrot.slane %v1249, 1
      %v1361 = vsel %vm1077, %v1358, %v1360
      %v1362 = vrot.slane %v1250, 1
      %v1363 = vrot.slane %v1251, 1
      %v1364 = vsel %vm1077, %v1362, %v1363
      %v1365 = vrot.slane %v1252, 1
      %v1366 = vsel %vm1077, %v1363, %v1365
      %v1367 = vrot.slane %v1253, 1
      %v1368 = vrot.slane %v1254, 1
      %v1369 = vsel %vm1077, %v1367, %v1368
      %v1370 = vrot.slane %v1255, 1
      %v1371 = vsel %vm1077, %v1368, %v1370
      %v1372 = vrot.slane %v1256, 1
      %v1373 = vrot.slane %v1257, 1
      %v1374 = vsel %vm1077, %v1372, %v1373
      %v1375 = vrot.slane %v1258, 1
      %v1376 = vsel %vm1077, %v1373, %v1375
      %v1377 = vrot.slane %v1259, 1
      %v1378 = vrot.slane %v1260, 1
      %v1379 = vsel %vm1077, %v1377, %v1378
      %v1380 = vrot.slane %v1261, 1
      %v1381 = vsel %vm1077, %v1378, %v1380
      %v1382 = vrot.slane %v1262, 1
      %v1383 = vrot.slane %v1263, 1
      %v1384 = vsel %vm1077, %v1382, %v1383
      %v1385 = vrot.slane %v1264, 1
      %v1386 = vsel %vm1077, %v1383, %v1385
      %v1387 = vrot.slane %v1265, 1
      %v1388 = vrot.slane %v1266, 1
      %v1389 = vsel %vm1077, %v1387, %v1388
      %v1390 = vrot.slane %v1267, 1
      %v1391 = vsel %vm1077, %v1388, %v1390
      %v1392 = vrot.slane %v1268, 1
      %v1393 = vrot.slane %v1269, 1
      %v1394 = vsel %vm1077, %v1392, %v1393
      %v1395 = vrot.slane %v1270, 1
      %v1396 = vsel %vm1077, %v1393, %v1395
      %v1397 = vrot.slane %v1271, 1
      %v1398 = vrot.slane %v1272, 1
      %v1399 = vsel %vm1077, %v1397, %v1398
      %v1400 = vrot.slane %v1273, 1
      %v1401 = vsel %vm1077, %v1398, %v1400
      %v1434 = vadd.f32 %v1190, %v1324
      %v1435 = vadd.f32 %v1191, %v1326
      %v1436 = vadd.f32 %v1192, %v1329
      %v1437 = vadd.f32 %v1193, %v1331
      %v1438 = vadd.f32 %v1194, %v1334
      %v1439 = vadd.f32 %v1195, %v1336
      %v1440 = vadd.f32 %v1196, %v1339
      %v1441 = vadd.f32 %v1197, %v1341
      %v1442 = vadd.f32 %v1198, %v1344
      %v1443 = vadd.f32 %v1199, %v1346
      %v1444 = vadd.f32 %v1200, %v1349
      %v1445 = vadd.f32 %v1201, %v1351
      %v1446 = vadd.f32 %v1202, %v1354
      %v1447 = vadd.f32 %v1203, %v1356
      %v1448 = vadd.f32 %v1204, %v1359
      %v1449 = vadd.f32 %v1205, %v1361
      %v1450 = vadd.f32 %v1206, %v1364
      %v1451 = vadd.f32 %v1207, %v1366
      %v1452 = vadd.f32 %v1208, %v1369
      %v1453 = vadd.f32 %v1209, %v1371
      %v1454 = vadd.f32 %v1210, %v1374
      %v1455 = vadd.f32 %v1211, %v1376
      %v1456 = vadd.f32 %v1212, %v1379
      %v1457 = vadd.f32 %v1213, %v1381
      %v1458 = vadd.f32 %v1214, %v1384
      %v1459 = vadd.f32 %v1215, %v1386
      %v1460 = vadd.f32 %v1216, %v1389
      %v1461 = vadd.f32 %v1217, %v1391
      %v1462 = vadd.f32 %v1218, %v1394
      %v1463 = vadd.f32 %v1219, %v1396
      %v1464 = vadd.f32 %v1220, %v1399
      %v1465 = vadd.f32 %v1221, %v1401
      %v1466 = vlaneseq
      %v1467 = vshrl.u32 %v1466, 7
      %v1468 = vsub.s32 7, %v1467
      %v1469 = vrot.slane %v427, %v1468
      %v1470 = vmul.f32 %v441, %v1469
      %v1471 = vmul.f32 %v442, %v1469
      %v1472 = vmul.f32 %v443, %v1469
      %v1473 = vmul.f32 %v444, %v1469
      %v1474 = vmul.f32 %v445, %v1469
      %v1475 = vmul.f32 %v446, %v1469
      %v1476 = vmul.f32 %v447, %v1469
      %v1477 = vmul.f32 %v448, %v1469
      %v1478 = vmul.f32 %v449, %v1469
      %v1479 = vmul.f32 %v450, %v1469
      %v1480 = vmul.f32 %v451, %v1469
      %v1481 = vmul.f32 %v452, %v1469
      %v1482 = vmul.f32 %v453, %v1469
      %v1483 = vmul.f32 %v454, %v1469
      %v1484 = vmul.f32 %v455, %v1469
      %v1485 = vmul.f32 %v456, %v1469
      %v1486 = vmul.f32 %v457, %v1469
      %v1487 = vmul.f32 %v458, %v1469
      %v1488 = vmul.f32 %v459, %v1469
      %v1489 = vmul.f32 %v460, %v1469
      %v1490 = vmul.f32 %v461, %v1469
      %v1491 = vmul.f32 %v462, %v1469
      %v1492 = vmul.f32 %v463, %v1469
      %v1493 = vmul.f32 %v464, %v1469
      %v1494 = vmul.f32 %v465, %v1469
      %v1495 = vmul.f32 %v466, %v1469
      %v1496 = vmul.f32 %v467, %v1469
      %v1497 = vmul.f32 %v468, %v1469
      %v1498 = vmul.f32 %v469, %v1469
      %v1499 = vmul.f32 %v470, %v1469
      %v1500 = vmul.f32 %v471, %v1469
      %v1501 = vmul.f32 %v472, %v1469
      %v1502 = vmul.f32 %v473, %v1469
      %v1503 = vmul.f32 %v474, %v1469
      %v1504 = vmul.f32 %v475, %v1469
      %v1505 = vmul.f32 %v476, %v1469
      %v1506 = vmul.f32 %v477, %v1469
      %v1507 = vmul.f32 %v478, %v1469
      %v1508 = vmul.f32 %v479, %v1469
      %v1509 = vmul.f32 %v480, %v1469
      %v1510 = vmul.f32 %v481, %v1469
      %v1511 = vmul.f32 %v482, %v1469
      %v1512 = vmul.f32 %v483, %v1469
      %v1513 = vmul.f32 %v484, %v1469
      %v1514 = vmul.f32 %v485, %v1469
      %v1515 = vmul.f32 %v486, %v1469
      %v1516 = vmul.f32 %v487, %v1469
      %v1517 = vmul.f32 %v488, %v1469
      %v1566 = vrot.slane %v1470, 1
      %v1567 = vrot.slane %v1471, 1
      %v1568 = vsel %vm1077, %v1566, %v1567
      %v1569 = vrot.slane %v1472, 1
      %v1570 = vsel %vm1077, %v1567, %v1569
      %v1571 = vrot.slane %v1473, 1
      %v1572 = vrot.slane %v1474, 1
      %v1573 = vsel %vm1077, %v1571, %v1572
      %v1574 = vrot.slane %v1475, 1
      %v1575 = vsel %vm1077, %v1572, %v1574
      %v1576 = vrot.slane %v1476, 1
      %v1577 = vrot.slane %v1477, 1
      %v1578 = vsel %vm1077, %v1576, %v1577
      %v1579 = vrot.slane %v1478, 1
      %v1580 = vsel %vm1077, %v1577, %v1579
      %v1581 = vrot.slane %v1479, 1
      %v1582 = vrot.slane %v1480, 1
      %v1583 = vsel %vm1077, %v1581, %v1582
      %v1584 = vrot.slane %v1481, 1
      %v1585 = vsel %vm1077, %v1582, %v1584
      %v1586 = vrot.slane %v1482, 1
      %v1587 = vrot.slane %v1483, 1
      %v1588 = vsel %vm1077, %v1586, %v1587
      %v1589 = vrot.slane %v1484, 1
      %v1590 = vsel %vm1077, %v1587, %v1589
      %v1591 = vrot.slane %v1485, 1
      %v1592 = vrot.slane %v1486, 1
      %v1593 = vsel %vm1077, %v1591, %v1592
      %v1594 = vrot.slane %v1487, 1
      %v1595 = vsel %vm1077, %v1592, %v1594
      %v1596 = vrot.slane %v1488, 1
      %v1597 = vrot.slane %v1489, 1
      %v1598 = vsel %vm1077, %v1596, %v1597
      %v1599 = vrot.slane %v1490, 1
      %v1600 = vsel %vm1077, %v1597, %v1599
      %v1601 = vrot.slane %v1491, 1
      %v1602 = vrot.slane %v1492, 1
      %v1603 = vsel %vm1077, %v1601, %v1602
      %v1604 = vrot.slane %v1493, 1
      %v1605 = vsel %vm1077, %v1602, %v1604
      %v1606 = vrot.slane %v1494, 1
      %v1607 = vrot.slane %v1495, 1
      %v1608 = vsel %vm1077, %v1606, %v1607
      %v1609 = vrot.slane %v1496, 1
      %v1610 = vsel %vm1077, %v1607, %v1609
      %v1611 = vrot.slane %v1497, 1
      %v1612 = vrot.slane %v1498, 1
      %v1613 = vsel %vm1077, %v1611, %v1612
      %v1614 = vrot.slane %v1499, 1
      %v1615 = vsel %vm1077, %v1612, %v1614
      %v1616 = vrot.slane %v1500, 1
      %v1617 = vrot.slane %v1501, 1
      %v1618 = vsel %vm1077, %v1616, %v1617
      %v1619 = vrot.slane %v1502, 1
      %v1620 = vsel %vm1077, %v1617, %v1619
      %v1621 = vrot.slane %v1503, 1
      %v1622 = vrot.slane %v1504, 1
      %v1623 = vsel %vm1077, %v1621, %v1622
      %v1624 = vrot.slane %v1505, 1
      %v1625 = vsel %vm1077, %v1622, %v1624
      %v1626 = vrot.slane %v1506, 1
      %v1627 = vrot.slane %v1507, 1
      %v1628 = vsel %vm1077, %v1626, %v1627
      %v1629 = vrot.slane %v1508, 1
      %v1630 = vsel %vm1077, %v1627, %v1629
      %v1631 = vrot.slane %v1509, 1
      %v1632 = vrot.slane %v1510, 1
      %v1633 = vsel %vm1077, %v1631, %v1632
      %v1634 = vrot.slane %v1511, 1
      %v1635 = vsel %vm1077, %v1632, %v1634
      %v1636 = vrot.slane %v1512, 1
      %v1637 = vrot.slane %v1513, 1
      %v1638 = vsel %vm1077, %v1636, %v1637
      %v1639 = vrot.slane %v1514, 1
      %v1640 = vsel %vm1077, %v1637, %v1639
      %v1641 = vrot.slane %v1515, 1
      %v1642 = vrot.slane %v1516, 1
      %v1643 = vsel %vm1077, %v1641, %v1642
      %v1644 = vrot.slane %v1517, 1
      %v1645 = vsel %vm1077, %v1642, %v1644
      %v1678 = vadd.f32 %v1434, %v1568
      %v1679 = vadd.f32 %v1435, %v1570
      %v1680 = vadd.f32 %v1436, %v1573
      %v1681 = vadd.f32 %v1437, %v1575
      %v1682 = vadd.f32 %v1438, %v1578
      %v1683 = vadd.f32 %v1439, %v1580
      %v1684 = vadd.f32 %v1440, %v1583
      %v1685 = vadd.f32 %v1441, %v1585
      %v1686 = vadd.f32 %v1442, %v1588
      %v1687 = vadd.f32 %v1443, %v1590
      %v1688 = vadd.f32 %v1444, %v1593
      %v1689 = vadd.f32 %v1445, %v1595
      %v1690 = vadd.f32 %v1446, %v1598
      %v1691 = vadd.f32 %v1447, %v1600
      %v1692 = vadd.f32 %v1448, %v1603
      %v1693 = vadd.f32 %v1449, %v1605
      %v1694 = vadd.f32 %v1450, %v1608
      %v1695 = vadd.f32 %v1451, %v1610
      %v1696 = vadd.f32 %v1452, %v1613
      %v1697 = vadd.f32 %v1453, %v1615
      %v1698 = vadd.f32 %v1454, %v1618
      %v1699 = vadd.f32 %v1455, %v1620
      %v1700 = vadd.f32 %v1456, %v1623
      %v1701 = vadd.f32 %v1457, %v1625
      %v1702 = vadd.f32 %v1458, %v1628
      %v1703 = vadd.f32 %v1459, %v1630
      %v1704 = vadd.f32 %v1460, %v1633
      %v1705 = vadd.f32 %v1461, %v1635
      %v1706 = vadd.f32 %v1462, %v1638
      %v1707 = vadd.f32 %v1463, %v1640
      %v1708 = vadd.f32 %v1464, %v1643
      %v1709 = vadd.f32 %v1465, %v1645
      %v1710 = vlaneseq
      %v1711 = vshrl.u32 %v1710, 7
      %v1712 = vsub.s32 6, %v1711
      %v1713 = vrot.slane %v428, %v1712
      %v1714 = vmul.f32 %v444, %v1713
      %v1715 = vmul.f32 %v445, %v1713
      %v1716 = vmul.f32 %v446, %v1713
      %v1717 = vmul.f32 %v447, %v1713
      %v1718 = vmul.f32 %v448, %v1713
      %v1719 = vmul.f32 %v449, %v1713
      %v1720 = vmul.f32 %v450, %v1713
      %v1721 = vmul.f32 %v451, %v1713
      %v1722 = vmul.f32 %v452, %v1713
      %v1723 = vmul.f32 %v453, %v1713
      %v1724 = vmul.f32 %v454, %v1713
      %v1725 = vmul.f32 %v455, %v1713
      %v1726 = vmul.f32 %v456, %v1713
      %v1727 = vmul.f32 %v457, %v1713
      %v1728 = vmul.f32 %v458, %v1713
      %v1729 = vmul.f32 %v459, %v1713
      %v1730 = vmul.f32 %v460, %v1713
      %v1731 = vmul.f32 %v461, %v1713
      %v1732 = vmul.f32 %v462, %v1713
      %v1733 = vmul.f32 %v463, %v1713
      %v1734 = vmul.f32 %v464, %v1713
      %v1735 = vmul.f32 %v465, %v1713
      %v1736 = vmul.f32 %v466, %v1713
      %v1737 = vmul.f32 %v467, %v1713
      %v1738 = vmul.f32 %v468, %v1713
      %v1739 = vmul.f32 %v469, %v1713
      %v1740 = vmul.f32 %v470, %v1713
      %v1741 = vmul.f32 %v471, %v1713
      %v1742 = vmul.f32 %v472, %v1713
      %v1743 = vmul.f32 %v473, %v1713
      %v1744 = vmul.f32 %v474, %v1713
      %v1745 = vmul.f32 %v475, %v1713
      %v1746 = vmul.f32 %v476, %v1713
      %v1747 = vmul.f32 %v477, %v1713
      %v1748 = vmul.f32 %v478, %v1713
      %v1749 = vmul.f32 %v479, %v1713
      %v1750 = vmul.f32 %v480, %v1713
      %v1751 = vmul.f32 %v481, %v1713
      %v1752 = vmul.f32 %v482, %v1713
      %v1753 = vmul.f32 %v483, %v1713
      %v1754 = vmul.f32 %v484, %v1713
      %v1755 = vmul.f32 %v485, %v1713
      %v1756 = vmul.f32 %v486, %v1713
      %v1757 = vmul.f32 %v487, %v1713
      %v1758 = vmul.f32 %v488, %v1713
      %v1759 = vmul.f32 %v489, %v1713
      %v1760 = vmul.f32 %v490, %v1713
      %v1761 = vmul.f32 %v491, %v1713
      %v1810 = vrot.slane %v1714, 1
      %v1811 = vrot.slane %v1715, 1
      %v1812 = vsel %vm1077, %v1810, %v1811
      %v1813 = vrot.slane %v1716, 1
      %v1814 = vsel %vm1077, %v1811, %v1813
      %v1815 = vrot.slane %v1717, 1
      %v1816 = vrot.slane %v1718, 1
      %v1817 = vsel %vm1077, %v1815, %v1816
      %v1818 = vrot.slane %v1719, 1
      %v1819 = vsel %vm1077, %v1816, %v1818
      %v1820 = vrot.slane %v1720, 1
      %v1821 = vrot.slane %v1721, 1
      %v1822 = vsel %vm1077, %v1820, %v1821
      %v1823 = vrot.slane %v1722, 1
      %v1824 = vsel %vm1077, %v1821, %v1823
      %v1825 = vrot.slane %v1723, 1
      %v1826 = vrot.slane %v1724, 1
      %v1827 = vsel %vm1077, %v1825, %v1826
      %v1828 = vrot.slane %v1725, 1
      %v1829 = vsel %vm1077, %v1826, %v1828
      %v1830 = vrot.slane %v1726, 1
      %v1831 = vrot.slane %v1727, 1
      %v1832 = vsel %vm1077, %v1830, %v1831
      %v1833 = vrot.slane %v1728, 1
      %v1834 = vsel %vm1077, %v1831, %v1833
      %v1835 = vrot.slane %v1729, 1
      %v1836 = vrot.slane %v1730, 1
      %v1837 = vsel %vm1077, %v1835, %v1836
      %v1838 = vrot.slane %v1731, 1
      %v1839 = vsel %vm1077, %v1836, %v1838
      %v1840 = vrot.slane %v1732, 1
      %v1841 = vrot.slane %v1733, 1
      %v1842 = vsel %vm1077, %v1840, %v1841
      %v1843 = vrot.slane %v1734, 1
      %v1844 = vsel %vm1077, %v1841, %v1843
      %v1845 = vrot.slane %v1735, 1
      %v1846 = vrot.slane %v1736, 1
      %v1847 = vsel %vm1077, %v1845, %v1846
      %v1848 = vrot.slane %v1737, 1
      %v1849 = vsel %vm1077, %v1846, %v1848
      %v1850 = vrot.slane %v1738, 1
      %v1851 = vrot.slane %v1739, 1
      %v1852 = vsel %vm1077, %v1850, %v1851
      %v1853 = vrot.slane %v1740, 1
      %v1854 = vsel %vm1077, %v1851, %v1853
      %v1855 = vrot.slane %v1741, 1
      %v1856 = vrot.slane %v1742, 1
      %v1857 = vsel %vm1077, %v1855, %v1856
      %v1858 = vrot.slane %v1743, 1
      %v1859 = vsel %vm1077, %v1856, %v1858
      %v1860 = vrot.slane %v1744, 1
      %v1861 = vrot.slane %v1745, 1
      %v1862 = vsel %vm1077, %v1860, %v1861
      %v1863 = vrot.slane %v1746, 1
      %v1864 = vsel %vm1077, %v1861, %v1863
      %v1865 = vrot.slane %v1747, 1
      %v1866 = vrot.slane %v1748, 1
      %v1867 = vsel %vm1077, %v1865, %v1866
      %v1868 = vrot.slane %v1749, 1
      %v1869 = vsel %vm1077, %v1866, %v1868
      %v1870 = vrot.slane %v1750, 1
      %v1871 = vrot.slane %v1751, 1
      %v1872 = vsel %vm1077, %v1870, %v1871
      %v1873 = vrot.slane %v1752, 1
      %v1874 = vsel %vm1077, %v1871, %v1873
      %v1875 = vrot.slane %v1753, 1
      %v1876 = vrot.slane %v1754, 1
      %v1877 = vsel %vm1077, %v1875, %v1876
      %v1878 = vrot.slane %v1755, 1
      %v1879 = vsel %vm1077, %v1876, %v1878
      %v1880 = vrot.slane %v1756, 1
      %v1881 = vrot.slane %v1757, 1
      %v1882 = vsel %vm1077, %v1880, %v1881
      %v1883 = vrot.slane %v1758, 1
      %v1884 = vsel %vm1077, %v1881, %v1883
      %v1885 = vrot.slane %v1759, 1
      %v1886 = vrot.slane %v1760, 1
      %v1887 = vsel %vm1077, %v1885, %v1886
      %v1888 = vrot.slane %v1761, 1
      %v1889 = vsel %vm1077, %v1886, %v1888
      %v1922 = vadd.f32 %v1678, %v1812
      %v1923 = vadd.f32 %v1679, %v1814
      %v1924 = vadd.f32 %v1680, %v1817
      %v1925 = vadd.f32 %v1681, %v1819
      %v1926 = vadd.f32 %v1682, %v1822
      %v1927 = vadd.f32 %v1683, %v1824
      %v1928 = vadd.f32 %v1684, %v1827
      %v1929 = vadd.f32 %v1685, %v1829
      %v1930 = vadd.f32 %v1686, %v1832
      %v1931 = vadd.f32 %v1687, %v1834
      %v1932 = vadd.f32 %v1688, %v1837
      %v1933 = vadd.f32 %v1689, %v1839
      %v1934 = vadd.f32 %v1690, %v1842
      %v1935 = vadd.f32 %v1691, %v1844
      %v1936 = vadd.f32 %v1692, %v1847
      %v1937 = vadd.f32 %v1693, %v1849
      %v1938 = vadd.f32 %v1694, %v1852
      %v1939 = vadd.f32 %v1695, %v1854
      %v1940 = vadd.f32 %v1696, %v1857
      %v1941 = vadd.f32 %v1697, %v1859
      %v1942 = vadd.f32 %v1698, %v1862
      %v1943 = vadd.f32 %v1699, %v1864
      %v1944 = vadd.f32 %v1700, %v1867
      %v1945 = vadd.f32 %v1701, %v1869
      %v1946 = vadd.f32 %v1702, %v1872
      %v1947 = vadd.f32 %v1703, %v1874
      %v1948 = vadd.f32 %v1704, %v1877
      %v1949 = vadd.f32 %v1705, %v1879
      %v1950 = vadd.f32 %v1706, %v1882
      %v1951 = vadd.f32 %v1707, %v1884
      %v1952 = vadd.f32 %v1708, %v1887
      %v1953 = vadd.f32 %v1709, %v1889
      %v1954 = vlaneseq
      %v1955 = vshrl.u32 %v1954, 7
      %v1956 = vsub.s32 5, %v1955
      %v1957 = vrot.slane %v429, %v1956
      %v1958 = vmul.f32 %v447, %v1957
      %v1959 = vmul.f32 %v448, %v1957
      %v1960 = vmul.f32 %v449, %v1957
      %v1961 = vmul.f32 %v450, %v1957
      %v1962 = vmul.f32 %v451, %v1957
      %v1963 = vmul.f32 %v452, %v1957
      %v1964 = vmul.f32 %v453, %v1957
      %v1965 = vmul.f32 %v454, %v1957
      %v1966 = vmul.f32 %v455, %v1957
      %v1967 = vmul.f32 %v456, %v1957
      %v1968 = vmul.f32 %v457, %v1957
      %v1969 = vmul.f32 %v458, %v1957
      %v1970 = vmul.f32 %v459, %v1957
      %v1971 = vmul.f32 %v460, %v1957
      %v1972 = vmul.f32 %v461, %v1957
      %v1973 = vmul.f32 %v462, %v1957
      %v1974 = vmul.f32 %v463, %v1957
      %v1975 = vmul.f32 %v464, %v1957
      %v1976 = vmul.f32 %v465, %v1957
      %v1977 = vmul.f32 %v466, %v1957
      %v1978 = vmul.f32 %v467, %v1957
      %v1979 = vmul.f32 %v468, %v1957
      %v1980 = vmul.f32 %v469, %v1957
      %v1981 = vmul.f32 %v470, %v1957
      %v1982 = vmul.f32 %v471, %v1957
      %v1983 = vmul.f32 %v472, %v1957
      %v1984 = vmul.f32 %v473, %v1957
      %v1985 = vmul.f32 %v474, %v1957
      %v1986 = vmul.f32 %v475, %v1957
      %v1987 = vmul.f32 %v476, %v1957
      %v1988 = vmul.f32 %v477, %v1957
      %v1989 = vmul.f32 %v478, %v1957
      %v1990 = vmul.f32 %v479, %v1957
      %v1991 = vmul.f32 %v480, %v1957
      %v1992 = vmul.f32 %v481, %v1957
      %v1993 = vmul.f32 %v482, %v1957
      %v1994 = vmul.f32 %v483, %v1957
      %v1995 = vmul.f32 %v484, %v1957
      %v1996 = vmul.f32 %v485, %v1957
      %v1997 = vmul.f32 %v486, %v1957
      %v1998 = vmul.f32 %v487, %v1957
      %v1999 = vmul.f32 %v488, %v1957
      %v2000 = vmul.f32 %v489, %v1957
      %v2001 = vmul.f32 %v490, %v1957
      %v2002 = vmul.f32 %v491, %v1957
      %v2003 = vmul.f32 %v492, %v1957
      %v2004 = vmul.f32 %v493, %v1957
      %v2005 = vmul.f32 %v494, %v1957
      %v2054 = vrot.slane %v1958, 1
      %v2055 = vrot.slane %v1959, 1
      %v2056 = vsel %vm1077, %v2054, %v2055
      %v2057 = vrot.slane %v1960, 1
      %v2058 = vsel %vm1077, %v2055, %v2057
      %v2059 = vrot.slane %v1961, 1
      %v2060 = vrot.slane %v1962, 1
      %v2061 = vsel %vm1077, %v2059, %v2060
      %v2062 = vrot.slane %v1963, 1
      %v2063 = vsel %vm1077, %v2060, %v2062
      %v2064 = vrot.slane %v1964, 1
      %v2065 = vrot.slane %v1965, 1
      %v2066 = vsel %vm1077, %v2064, %v2065
      %v2067 = vrot.slane %v1966, 1
      %v2068 = vsel %vm1077, %v2065, %v2067
      %v2069 = vrot.slane %v1967, 1
      %v2070 = vrot.slane %v1968, 1
      %v2071 = vsel %vm1077, %v2069, %v2070
      %v2072 = vrot.slane %v1969, 1
      %v2073 = vsel %vm1077, %v2070, %v2072
      %v2074 = vrot.slane %v1970, 1
      %v2075 = vrot.slane %v1971, 1
      %v2076 = vsel %vm1077, %v2074, %v2075
      %v2077 = vrot.slane %v1972, 1
      %v2078 = vsel %vm1077, %v2075, %v2077
      %v2079 = vrot.slane %v1973, 1
      %v2080 = vrot.slane %v1974, 1
      %v2081 = vsel %vm1077, %v2079, %v2080
      %v2082 = vrot.slane %v1975, 1
      %v2083 = vsel %vm1077, %v2080, %v2082
      %v2084 = vrot.slane %v1976, 1
      %v2085 = vrot.slane %v1977, 1
      %v2086 = vsel %vm1077, %v2084, %v2085
      %v2087 = vrot.slane %v1978, 1
      %v2088 = vsel %vm1077, %v2085, %v2087
      %v2089 = vrot.slane %v1979, 1
      %v2090 = vrot.slane %v1980, 1
      %v2091 = vsel %vm1077, %v2089, %v2090
      %v2092 = vrot.slane %v1981, 1
      %v2093 = vsel %vm1077, %v2090, %v2092
      %v2094 = vrot.slane %v1982, 1
      %v2095 = vrot.slane %v1983, 1
      %v2096 = vsel %vm1077, %v2094, %v2095
      %v2097 = vrot.slane %v1984, 1
      %v2098 = vsel %vm1077, %v2095, %v2097
      %v2099 = vrot.slane %v1985, 1
      %v2100 = vrot.slane %v1986, 1
      %v2101 = vsel %vm1077, %v2099, %v2100
      %v2102 = vrot.slane %v1987, 1
      %v2103 = vsel %vm1077, %v2100, %v2102
      %v2104 = vrot.slane %v1988, 1
      %v2105 = vrot.slane %v1989, 1
      %v2106 = vsel %vm1077, %v2104, %v2105
      %v2107 = vrot.slane %v1990, 1
      %v2108 = vsel %vm1077, %v2105, %v2107
      %v2109 = vrot.slane %v1991, 1
      %v2110 = vrot.slane %v1992, 1
      %v2111 = vsel %vm1077, %v2109, %v2110
      %v2112 = vrot.slane %v1993, 1
      %v2113 = vsel %vm1077, %v2110, %v2112
      %v2114 = vrot.slane %v1994, 1
      %v2115 = vrot.slane %v1995, 1
      %v2116 = vsel %vm1077, %v2114, %v2115
      %v2117 = vrot.slane %v1996, 1
      %v2118 = vsel %vm1077, %v2115, %v2117
      %v2119 = vrot.slane %v1997, 1
      %v2120 = vrot.slane %v1998, 1
      %v2121 = vsel %vm1077, %v2119, %v2120
      %v2122 = vrot.slane %v1999, 1
      %v2123 = vsel %vm1077, %v2120, %v2122
      %v2124 = vrot.slane %v2000, 1
      %v2125 = vrot.slane %v2001, 1
      %v2126 = vsel %vm1077, %v2124, %v2125
      %v2127 = vrot.slane %v2002, 1
      %v2128 = vsel %vm1077, %v2125, %v2127
      %v2129 = vrot.slane %v2003, 1
      %v2130 = vrot.slane %v2004, 1
      %v2131 = vsel %vm1077, %v2129, %v2130
      %v2132 = vrot.slane %v2005, 1
      %v2133 = vsel %vm1077, %v2130, %v2132
      %v2166 = vadd.f32 %v1922, %v2056
      %v2167 = vadd.f32 %v1923, %v2058
      %v2168 = vadd.f32 %v1924, %v2061
      %v2169 = vadd.f32 %v1925, %v2063
      %v2170 = vadd.f32 %v1926, %v2066
      %v2171 = vadd.f32 %v1927, %v2068
      %v2172 = vadd.f32 %v1928, %v2071
      %v2173 = vadd.f32 %v1929, %v2073
      %v2174 = vadd.f32 %v1930, %v2076
      %v2175 = vadd.f32 %v1931, %v2078
      %v2176 = vadd.f32 %v1932, %v2081
      %v2177 = vadd.f32 %v1933, %v2083
      %v2178 = vadd.f32 %v1934, %v2086
      %v2179 = vadd.f32 %v1935, %v2088
      %v2180 = vadd.f32 %v1936, %v2091
      %v2181 = vadd.f32 %v1937, %v2093
      %v2182 = vadd.f32 %v1938, %v2096
      %v2183 = vadd.f32 %v1939, %v2098
      %v2184 = vadd.f32 %v1940, %v2101
      %v2185 = vadd.f32 %v1941, %v2103
      %v2186 = vadd.f32 %v1942, %v2106
      %v2187 = vadd.f32 %v1943, %v2108
      %v2188 = vadd.f32 %v1944, %v2111
      %v2189 = vadd.f32 %v1945, %v2113
      %v2190 = vadd.f32 %v1946, %v2116
      %v2191 = vadd.f32 %v1947, %v2118
      %v2192 = vadd.f32 %v1948, %v2121
      %v2193 = vadd.f32 %v1949, %v2123
      %v2194 = vadd.f32 %v1950, %v2126
      %v2195 = vadd.f32 %v1951, %v2128
      %v2196 = vadd.f32 %v1952, %v2131
      %v2197 = vadd.f32 %v1953, %v2133
      %v2198 = vlaneseq
      %v2199 = vshrl.u32 %v2198, 7
      %v2200 = vsub.s32 4, %v2199
      %v2201 = vrot.slane %v430, %v2200
      %v2202 = vmul.f32 %v450, %v2201
      %v2203 = vmul.f32 %v451, %v2201
      %v2204 = vmul.f32 %v452, %v2201
      %v2205 = vmul.f32 %v453, %v2201
      %v2206 = vmul.f32 %v454, %v2201
      %v2207 = vmul.f32 %v455, %v2201
      %v2208 = vmul.f32 %v456, %v2201
      %v2209 = vmul.f32 %v457, %v2201
      %v2210 = vmul.f32 %v458, %v2201
      %v2211 = vmul.f32 %v459, %v2201
      %v2212 = vmul.f32 %v460, %v2201
      %v2213 = vmul.f32 %v461, %v2201
      %v2214 = vmul.f32 %v462, %v2201
      %v2215 = vmul.f32 %v463, %v2201
      %v2216 = vmul.f32 %v464, %v2201
      %v2217 = vmul.f32 %v465, %v2201
      %v2218 = vmul.f32 %v466, %v2201
      %v2219 = vmul.f32 %v467, %v2201
      %v2220 = vmul.f32 %v468, %v2201
      %v2221 = vmul.f32 %v469, %v2201
      %v2222 = vmul.f32 %v470, %v2201
      %v2223 = vmul.f32 %v471, %v2201
      %v2224 = vmul.f32 %v472, %v2201
      %v2225 = vmul.f32 %v473, %v2201
      %v2226 = vmul.f32 %v474, %v2201
      %v2227 = vmul.f32 %v475, %v2201
      %v2228 = vmul.f32 %v476, %v2201
      %v2229 = vmul.f32 %v477, %v2201
      %v2230 = vmul.f32 %v478, %v2201
      %v2231 = vmul.f32 %v479, %v2201
      %v2232 = vmul.f32 %v480, %v2201
      %v2233 = vmul.f32 %v481, %v2201
      %v2234 = vmul.f32 %v482, %v2201
      %v2235 = vmul.f32 %v483, %v2201
      %v2236 = vmul.f32 %v484, %v2201
      %v2237 = vmul.f32 %v485, %v2201
      %v2238 = vmul.f32 %v486, %v2201
      %v2239 = vmul.f32 %v487, %v2201
      %v2240 = vmul.f32 %v488, %v2201
      %v2241 = vmul.f32 %v489, %v2201
      %v2242 = vmul.f32 %v490, %v2201
      %v2243 = vmul.f32 %v491, %v2201
      %v2244 = vmul.f32 %v492, %v2201
      %v2245 = vmul.f32 %v493, %v2201
      %v2246 = vmul.f32 %v494, %v2201
      %v2247 = vmul.f32 %v495, %v2201
      %v2248 = vmul.f32 %v496, %v2201
      %v2249 = vmul.f32 %v497, %v2201
      %v2298 = vrot.slane %v2202, 1
      %v2299 = vrot.slane %v2203, 1
      %v2300 = vsel %vm1077, %v2298, %v2299
      %v2301 = vrot.slane %v2204, 1
      %v2302 = vsel %vm1077, %v2299, %v2301
      %v2303 = vrot.slane %v2205, 1
      %v2304 = vrot.slane %v2206, 1
      %v2305 = vsel %vm1077, %v2303, %v2304
      %v2306 = vrot.slane %v2207, 1
      %v2307 = vsel %vm1077, %v2304, %v2306
      %v2308 = vrot.slane %v2208, 1
      %v2309 = vrot.slane %v2209, 1
      %v2310 = vsel %vm1077, %v2308, %v2309
      %v2311 = vrot.slane %v2210, 1
      %v2312 = vsel %vm1077, %v2309, %v2311
      %v2313 = vrot.slane %v2211, 1
      %v2314 = vrot.slane %v2212, 1
      %v2315 = vsel %vm1077, %v2313, %v2314
      %v2316 = vrot.slane %v2213, 1
      %v2317 = vsel %vm1077, %v2314, %v2316
      %v2318 = vrot.slane %v2214, 1
      %v2319 = vrot.slane %v2215, 1
      %v2320 = vsel %vm1077, %v2318, %v2319
      %v2321 = vrot.slane %v2216, 1
      %v2322 = vsel %vm1077, %v2319, %v2321
      %v2323 = vrot.slane %v2217, 1
      %v2324 = vrot.slane %v2218, 1
      %v2325 = vsel %vm1077, %v2323, %v2324
      %v2326 = vrot.slane %v2219, 1
      %v2327 = vsel %vm1077, %v2324, %v2326
      %v2328 = vrot.slane %v2220, 1
      %v2329 = vrot.slane %v2221, 1
      %v2330 = vsel %vm1077, %v2328, %v2329
      %v2331 = vrot.slane %v2222, 1
      %v2332 = vsel %vm1077, %v2329, %v2331
      %v2333 = vrot.slane %v2223, 1
      %v2334 = vrot.slane %v2224, 1
      %v2335 = vsel %vm1077, %v2333, %v2334
      %v2336 = vrot.slane %v2225, 1
      %v2337 = vsel %vm1077, %v2334, %v2336
      %v2338 = vrot.slane %v2226, 1
      %v2339 = vrot.slane %v2227, 1
      %v2340 = vsel %vm1077, %v2338, %v2339
      %v2341 = vrot.slane %v2228, 1
      %v2342 = vsel %vm1077, %v2339, %v2341
      %v2343 = vrot.slane %v2229, 1
      %v2344 = vrot.slane %v2230, 1
      %v2345 = vsel %vm1077, %v2343, %v2344
      %v2346 = vrot.slane %v2231, 1
      %v2347 = vsel %vm1077, %v2344, %v2346
      %v2348 = vrot.slane %v2232, 1
      %v2349 = vrot.slane %v2233, 1
      %v2350 = vsel %vm1077, %v2348, %v2349
      %v2351 = vrot.slane %v2234, 1
      %v2352 = vsel %vm1077, %v2349, %v2351
      %v2353 = vrot.slane %v2235, 1
      %v2354 = vrot.slane %v2236, 1
      %v2355 = vsel %vm1077, %v2353, %v2354
      %v2356 = vrot.slane %v2237, 1
      %v2357 = vsel %vm1077, %v2354, %v2356
      %v2358 = vrot.slane %v2238, 1
      %v2359 = vrot.slane %v2239, 1
      %v2360 = vsel %vm1077, %v2358, %v2359
      %v2361 = vrot.slane %v2240, 1
      %v2362 = vsel %vm1077, %v2359, %v2361
      %v2363 = vrot.slane %v2241, 1
      %v2364 = vrot.slane %v2242, 1
      %v2365 = vsel %vm1077, %v2363, %v2364
      %v2366 = vrot.slane %v2243, 1
      %v2367 = vsel %vm1077, %v2364, %v2366
      %v2368 = vrot.slane %v2244, 1
      %v2369 = vrot.slane %v2245, 1
      %v2370 = vsel %vm1077, %v2368, %v2369
      %v2371 = vrot.slane %v2246, 1
      %v2372 = vsel %vm1077, %v2369, %v2371
      %v2373 = vrot.slane %v2247, 1
      %v2374 = vrot.slane %v2248, 1
      %v2375 = vsel %vm1077, %v2373, %v2374
      %v2376 = vrot.slane %v2249, 1
      %v2377 = vsel %vm1077, %v2374, %v2376
      %v2410 = vadd.f32 %v2166, %v2300
      %v2411 = vadd.f32 %v2167, %v2302
      %v2412 = vadd.f32 %v2168, %v2305
      %v2413 = vadd.f32 %v2169, %v2307
      %v2414 = vadd.f32 %v2170, %v2310
      %v2415 = vadd.f32 %v2171, %v2312
      %v2416 = vadd.f32 %v2172, %v2315
      %v2417 = vadd.f32 %v2173, %v2317
      %v2418 = vadd.f32 %v2174, %v2320
      %v2419 = vadd.f32 %v2175, %v2322
      %v2420 = vadd.f32 %v2176, %v2325
      %v2421 = vadd.f32 %v2177, %v2327
      %v2422 = vadd.f32 %v2178, %v2330
      %v2423 = vadd.f32 %v2179, %v2332
      %v2424 = vadd.f32 %v2180, %v2335
      %v2425 = vadd.f32 %v2181, %v2337
      %v2426 = vadd.f32 %v2182, %v2340
      %v2427 = vadd.f32 %v2183, %v2342
      %v2428 = vadd.f32 %v2184, %v2345
      %v2429 = vadd.f32 %v2185, %v2347
      %v2430 = vadd.f32 %v2186, %v2350
      %v2431 = vadd.f32 %v2187, %v2352
      %v2432 = vadd.f32 %v2188, %v2355
      %v2433 = vadd.f32 %v2189, %v2357
      %v2434 = vadd.f32 %v2190, %v2360
      %v2435 = vadd.f32 %v2191, %v2362
      %v2436 = vadd.f32 %v2192, %v2365
      %v2437 = vadd.f32 %v2193, %v2367
      %v2438 = vadd.f32 %v2194, %v2370
      %v2439 = vadd.f32 %v2195, %v2372
      %v2440 = vadd.f32 %v2196, %v2375
      %v2441 = vadd.f32 %v2197, %v2377
      %v2442 = vlaneseq
      %v2443 = vshrl.u32 %v2442, 7
      %v2444 = vsub.s32 3, %v2443
      %v2445 = vrot.slane %v431, %v2444
      %v2446 = vmul.f32 %v453, %v2445
      %v2447 = vmul.f32 %v454, %v2445
      %v2448 = vmul.f32 %v455, %v2445
      %v2449 = vmul.f32 %v456, %v2445
      %v2450 = vmul.f32 %v457, %v2445
      %v2451 = vmul.f32 %v458, %v2445
      %v2452 = vmul.f32 %v459, %v2445
      %v2453 = vmul.f32 %v460, %v2445
      %v2454 = vmul.f32 %v461, %v2445
      %v2455 = vmul.f32 %v462, %v2445
      %v2456 = vmul.f32 %v463, %v2445
      %v2457 = vmul.f32 %v464, %v2445
      %v2458 = vmul.f32 %v465, %v2445
      %v2459 = vmul.f32 %v466, %v2445
      %v2460 = vmul.f32 %v467, %v2445
      %v2461 = vmul.f32 %v468, %v2445
      %v2462 = vmul.f32 %v469, %v2445
      %v2463 = vmul.f32 %v470, %v2445
      %v2464 = vmul.f32 %v471, %v2445
      %v2465 = vmul.f32 %v472, %v2445
      %v2466 = vmul.f32 %v473, %v2445
      %v2467 = vmul.f32 %v474, %v2445
      %v2468 = vmul.f32 %v475, %v2445
      %v2469 = vmul.f32 %v476, %v2445
      %v2470 = vmul.f32 %v477, %v2445
      %v2471 = vmul.f32 %v478, %v2445
      %v2472 = vmul.f32 %v479, %v2445
      %v2473 = vmul.f32 %v480, %v2445
      %v2474 = vmul.f32 %v481, %v2445
      %v2475 = vmul.f32 %v482, %v2445
      %v2476 = vmul.f32 %v483, %v2445
      %v2477 = vmul.f32 %v484, %v2445
      %v2478 = vmul.f32 %v485, %v2445
      %v2479 = vmul.f32 %v486, %v2445
      %v2480 = vmul.f32 %v487, %v2445
      %v2481 = vmul.f32 %v488, %v2445
      %v2482 = vmul.f32 %v489, %v2445
      %v2483 = vmul.f32 %v490, %v2445
      %v2484 = vmul.f32 %v491, %v2445
      %v2485 = vmul.f32 %v492, %v2445
      %v2486 = vmul.f32 %v493, %v2445
      %v2487 = vmul.f32 %v494, %v2445
      %v2488 = vmul.f32 %v495, %v2445
      %v2489 = vmul.f32 %v496, %v2445
      %v2490 = vmul.f32 %v497, %v2445
      %v2491 = vmul.f32 %v498, %v2445
      %v2492 = vmul.f32 %v499, %v2445
      %v2493 = vmul.f32 %v500, %v2445
      %v2542 = vrot.slane %v2446, 1
      %v2543 = vrot.slane %v2447, 1
      %v2544 = vsel %vm1077, %v2542, %v2543
      %v2545 = vrot.slane %v2448, 1
      %v2546 = vsel %vm1077, %v2543, %v2545
      %v2547 = vrot.slane %v2449, 1
      %v2548 = vrot.slane %v2450, 1
      %v2549 = vsel %vm1077, %v2547, %v2548
      %v2550 = vrot.slane %v2451, 1
      %v2551 = vsel %vm1077, %v2548, %v2550
      %v2552 = vrot.slane %v2452, 1
      %v2553 = vrot.slane %v2453, 1
      %v2554 = vsel %vm1077, %v2552, %v2553
      %v2555 = vrot.slane %v2454, 1
      %v2556 = vsel %vm1077, %v2553, %v2555
      %v2557 = vrot.slane %v2455, 1
      %v2558 = vrot.slane %v2456, 1
      %v2559 = vsel %vm1077, %v2557, %v2558
      %v2560 = vrot.slane %v2457, 1
      %v2561 = vsel %vm1077, %v2558, %v2560
      %v2562 = vrot.slane %v2458, 1
      %v2563 = vrot.slane %v2459, 1
      %v2564 = vsel %vm1077, %v2562, %v2563
      %v2565 = vrot.slane %v2460, 1
      %v2566 = vsel %vm1077, %v2563, %v2565
      %v2567 = vrot.slane %v2461, 1
      %v2568 = vrot.slane %v2462, 1
      %v2569 = vsel %vm1077, %v2567, %v2568
      %v2570 = vrot.slane %v2463, 1
      %v2571 = vsel %vm1077, %v2568, %v2570
      %v2572 = vrot.slane %v2464, 1
      %v2573 = vrot.slane %v2465, 1
      %v2574 = vsel %vm1077, %v2572, %v2573
      %v2575 = vrot.slane %v2466, 1
      %v2576 = vsel %vm1077, %v2573, %v2575
      %v2577 = vrot.slane %v2467, 1
      %v2578 = vrot.slane %v2468, 1
      %v2579 = vsel %vm1077, %v2577, %v2578
      %v2580 = vrot.slane %v2469, 1
      %v2581 = vsel %vm1077, %v2578, %v2580
      %v2582 = vrot.slane %v2470, 1
      %v2583 = vrot.slane %v2471, 1
      %v2584 = vsel %vm1077, %v2582, %v2583
      %v2585 = vrot.slane %v2472, 1
      %v2586 = vsel %vm1077, %v2583, %v2585
      %v2587 = vrot.slane %v2473, 1
      %v2588 = vrot.slane %v2474, 1
      %v2589 = vsel %vm1077, %v2587, %v2588
      %v2590 = vrot.slane %v2475, 1
      %v2591 = vsel %vm1077, %v2588, %v2590
      %v2592 = vrot.slane %v2476, 1
      %v2593 = vrot.slane %v2477, 1
      %v2594 = vsel %vm1077, %v2592, %v2593
      %v2595 = vrot.slane %v2478, 1
      %v2596 = vsel %vm1077, %v2593, %v2595
      %v2597 = vrot.slane %v2479, 1
      %v2598 = vrot.slane %v2480, 1
      %v2599 = vsel %vm1077, %v2597, %v2598
      %v2600 = vrot.slane %v2481, 1
      %v2601 = vsel %vm1077, %v2598, %v2600
      %v2602 = vrot.slane %v2482, 1
      %v2603 = vrot.slane %v2483, 1
      %v2604 = vsel %vm1077, %v2602, %v2603
      %v2605 = vrot.slane %v2484, 1
      %v2606 = vsel %vm1077, %v2603, %v2605
      %v2607 = vrot.slane %v2485, 1
      %v2608 = vrot.slane %v2486, 1
      %v2609 = vsel %vm1077, %v2607, %v2608
      %v2610 = vrot.slane %v2487, 1
      %v2611 = vsel %vm1077, %v2608, %v2610
      %v2612 = vrot.slane %v2488, 1
      %v2613 = vrot.slane %v2489, 1
      %v2614 = vsel %vm1077, %v2612, %v2613
      %v2615 = vrot.slane %v2490, 1
      %v2616 = vsel %vm1077, %v2613, %v2615
      %v2617 = vrot.slane %v2491, 1
      %v2618 = vrot.slane %v2492, 1
      %v2619 = vsel %vm1077, %v2617, %v2618
      %v2620 = vrot.slane %v2493, 1
      %v2621 = vsel %vm1077, %v2618, %v2620
      %v2654 = vadd.f32 %v2410, %v2544
      %v2655 = vadd.f32 %v2411, %v2546
      %v2656 = vadd.f32 %v2412, %v2549
      %v2657 = vadd.f32 %v2413, %v2551
      %v2658 = vadd.f32 %v2414, %v2554
      %v2659 = vadd.f32 %v2415, %v2556
      %v2660 = vadd.f32 %v2416, %v2559
      %v2661 = vadd.f32 %v2417, %v2561
      %v2662 = vadd.f32 %v2418, %v2564
      %v2663 = vadd.f32 %v2419, %v2566
      %v2664 = vadd.f32 %v2420, %v2569
      %v2665 = vadd.f32 %v2421, %v2571
      %v2666 = vadd.f32 %v2422, %v2574
      %v2667 = vadd.f32 %v2423, %v2576
      %v2668 = vadd.f32 %v2424, %v2579
      %v2669 = vadd.f32 %v2425, %v2581
      %v2670 = vadd.f32 %v2426, %v2584
      %v2671 = vadd.f32 %v2427, %v2586
      %v2672 = vadd.f32 %v2428, %v2589
      %v2673 = vadd.f32 %v2429, %v2591
      %v2674 = vadd.f32 %v2430, %v2594
      %v2675 = vadd.f32 %v2431, %v2596
      %v2676 = vadd.f32 %v2432, %v2599
      %v2677 = vadd.f32 %v2433, %v2601
      %v2678 = vadd.f32 %v2434, %v2604
      %v2679 = vadd.f32 %v2435, %v2606
      %v2680 = vadd.f32 %v2436, %v2609
      %v2681 = vadd.f32 %v2437, %v2611
      %v2682 = vadd.f32 %v2438, %v2614
      %v2683 = vadd.f32 %v2439, %v2616
      %v2684 = vadd.f32 %v2440, %v2619
      %v2685 = vadd.f32 %v2441, %v2621
      %v2686 = vlaneseq
      %v2687 = vshrl.u32 %v2686, 7
      %v2688 = vsub.s32 2, %v2687
      %v2689 = vrot.slane %v426, %v2688
      %v2690 = vmul.f32 %v435, %v2689
      %v2691 = vmul.f32 %v436, %v2689
      %v2692 = vmul.f32 %v437, %v2689
      %v2693 = vmul.f32 %v438, %v2689
      %v2694 = vmul.f32 %v439, %v2689
      %v2695 = vmul.f32 %v440, %v2689
      %v2696 = vmul.f32 %v441, %v2689
      %v2697 = vmul.f32 %v442, %v2689
      %v2698 = vmul.f32 %v443, %v2689
      %v2699 = vmul.f32 %v444, %v2689
      %v2700 = vmul.f32 %v445, %v2689
      %v2701 = vmul.f32 %v446, %v2689
      %v2702 = vmul.f32 %v447, %v2689
      %v2703 = vmul.f32 %v448, %v2689
      %v2704 = vmul.f32 %v449, %v2689
      %v2705 = vmul.f32 %v450, %v2689
      %v2706 = vmul.f32 %v451, %v2689
      %v2707 = vmul.f32 %v452, %v2689
      %v2708 = vmul.f32 %v453, %v2689
      %v2709 = vmul.f32 %v454, %v2689
      %v2710 = vmul.f32 %v455, %v2689
      %v2711 = vmul.f32 %v456, %v2689
      %v2712 = vmul.f32 %v457, %v2689
      %v2713 = vmul.f32 %v458, %v2689
      %v2714 = vmul.f32 %v459, %v2689
      %v2715 = vmul.f32 %v460, %v2689
      %v2716 = vmul.f32 %v461, %v2689
      %v2717 = vmul.f32 %v462, %v2689
      %v2718 = vmul.f32 %v463, %v2689
      %v2719 = vmul.f32 %v464, %v2689
      %v2720 = vmul.f32 %v465, %v2689
      %v2721 = vmul.f32 %v466, %v2689
      %v2722 = vmul.f32 %v467, %v2689
      %v2723 = vmul.f32 %v468, %v2689
      %v2724 = vmul.f32 %v469, %v2689
      %v2725 = vmul.f32 %v470, %v2689
      %v2726 = vmul.f32 %v471, %v2689
      %v2727 = vmul.f32 %v472, %v2689
      %v2728 = vmul.f32 %v473, %v2689
      %v2729 = vmul.f32 %v474, %v2689
      %v2730 = vmul.f32 %v475, %v2689
      %v2731 = vmul.f32 %v476, %v2689
      %v2732 = vmul.f32 %v477, %v2689
      %v2733 = vmul.f32 %v478, %v2689
      %v2734 = vmul.f32 %v479, %v2689
      %v2735 = vmul.f32 %v480, %v2689
      %v2736 = vmul.f32 %v481, %v2689
      %v2737 = vmul.f32 %v482, %v2689
      %vm2786 = vcmask 1045504
      %v2787 = vrot.slane %v2690, 2
      %v2788 = vrot.slane %v2691, 2
      %v2789 = vsel %vm2786, %v2787, %v2788
      %v2790 = vrot.slane %v2692, 2
      %v2791 = vsel %vm2786, %v2788, %v2790
      %v2792 = vrot.slane %v2693, 2
      %v2793 = vrot.slane %v2694, 2
      %v2794 = vsel %vm2786, %v2792, %v2793
      %v2795 = vrot.slane %v2695, 2
      %v2796 = vsel %vm2786, %v2793, %v2795
      %v2797 = vrot.slane %v2696, 2
      %v2798 = vrot.slane %v2697, 2
      %v2799 = vsel %vm2786, %v2797, %v2798
      %v2800 = vrot.slane %v2698, 2
      %v2801 = vsel %vm2786, %v2798, %v2800
      %v2802 = vrot.slane %v2699, 2
      %v2803 = vrot.slane %v2700, 2
      %v2804 = vsel %vm2786, %v2802, %v2803
      %v2805 = vrot.slane %v2701, 2
      %v2806 = vsel %vm2786, %v2803, %v2805
      %v2807 = vrot.slane %v2702, 2
      %v2808 = vrot.slane %v2703, 2
      %v2809 = vsel %vm2786, %v2807, %v2808
      %v2810 = vrot.slane %v2704, 2
      %v2811 = vsel %vm2786, %v2808, %v2810
      %v2812 = vrot.slane %v2705, 2
      %v2813 = vrot.slane %v2706, 2
      %v2814 = vsel %vm2786, %v2812, %v2813
      %v2815 = vrot.slane %v2707, 2
      %v2816 = vsel %vm2786, %v2813, %v2815
      %v2817 = vrot.slane %v2708, 2
      %v2818 = vrot.slane %v2709, 2
      %v2819 = vsel %vm2786, %v2817, %v2818
      %v2820 = vrot.slane %v2710, 2
      %v2821 = vsel %vm2786, %v2818, %v2820
      %v2822 = vrot.slane %v2711, 2
      %v2823 = vrot.slane %v2712, 2
      %v2824 = vsel %vm2786, %v2822, %v2823
      %v2825 = vrot.slane %v2713, 2
      %v2826 = vsel %vm2786, %v2823, %v2825
      %v2827 = vrot.slane %v2714, 2
      %v2828 = vrot.slane %v2715, 2
      %v2829 = vsel %vm2786, %v2827, %v2828
      %v2830 = vrot.slane %v2716, 2
      %v2831 = vsel %vm2786, %v2828, %v2830
      %v2832 = vrot.slane %v2717, 2
      %v2833 = vrot.slane %v2718, 2
      %v2834 = vsel %vm2786, %v2832, %v2833
      %v2835 = vrot.slane %v2719, 2
      %v2836 = vsel %vm2786, %v2833, %v2835
      %v2837 = vrot.slane %v2720, 2
      %v2838 = vrot.slane %v2721, 2
      %v2839 = vsel %vm2786, %v2837, %v2838
      %v2840 = vrot.slane %v2722, 2
      %v2841 = vsel %vm2786, %v2838, %v2840
      %v2842 = vrot.slane %v2723, 2
      %v2843 = vrot.slane %v2724, 2
      %v2844 = vsel %vm2786, %v2842, %v2843
      %v2845 = vrot.slane %v2725, 2
      %v2846 = vsel %vm2786, %v2843, %v2845
      %v2847 = vrot.slane %v2726, 2
      %v2848 = vrot.slane %v2727, 2
      %v2849 = vsel %vm2786, %v2847, %v2848
      %v2850 = vrot.slane %v2728, 2
      %v2851 = vsel %vm2786, %v2848, %v2850
      %v2852 = vrot.slane %v2729, 2
      %v2853 = vrot.slane %v2730, 2
      %v2854 = vsel %vm2786, %v2852, %v2853
      %v2855 = vrot.slane %v2731, 2
      %v2856 = vsel %vm2786, %v2853, %v2855
      %v2857 = vrot.slane %v2732, 2
      %v2858 = vrot.slane %v2733, 2
      %v2859 = vsel %vm2786, %v2857, %v2858
      %v2860 = vrot.slane %v2734, 2
      %v2861 = vsel %vm2786, %v2858, %v2860
      %v2862 = vrot.slane %v2735, 2
      %v2863 = vrot.slane %v2736, 2
      %v2864 = vsel %vm2786, %v2862, %v2863
      %v2865 = vrot.slane %v2737, 2
      %v2866 = vsel %vm2786, %v2863, %v2865
      %v2899 = vadd.f32 %v2654, %v2789
      %v2900 = vadd.f32 %v2655, %v2791
      %v2901 = vadd.f32 %v2656, %v2794
      %v2902 = vadd.f32 %v2657, %v2796
      %v2903 = vadd.f32 %v2658, %v2799
      %v2904 = vadd.f32 %v2659, %v2801
      %v2905 = vadd.f32 %v2660, %v2804
      %v2906 = vadd.f32 %v2661, %v2806
      %v2907 = vadd.f32 %v2662, %v2809
      %v2908 = vadd.f32 %v2663, %v2811
      %v2909 = vadd.f32 %v2664, %v2814
      %v2910 = vadd.f32 %v2665, %v2816
      %v2911 = vadd.f32 %v2666, %v2819
      %v2912 = vadd.f32 %v2667, %v2821
      %v2913 = vadd.f32 %v2668, %v2824
      %v2914 = vadd.f32 %v2669, %v2826
      %v2915 = vadd.f32 %v2670, %v2829
      %v2916 = vadd.f32 %v2671, %v2831
      %v2917 = vadd.f32 %v2672, %v2834
      %v2918 = vadd.f32 %v2673, %v2836
      %v2919 = vadd.f32 %v2674, %v2839
      %v2920 = vadd.f32 %v2675, %v2841
      %v2921 = vadd.f32 %v2676, %v2844
      %v2922 = vadd.f32 %v2677, %v2846
      %v2923 = vadd.f32 %v2678, %v2849
      %v2924 = vadd.f32 %v2679, %v2851
      %v2925 = vadd.f32 %v2680, %v2854
      %v2926 = vadd.f32 %v2681, %v2856
      %v2927 = vadd.f32 %v2682, %v2859
      %v2928 = vadd.f32 %v2683, %v2861
      %v2929 = vadd.f32 %v2684, %v2864
      %v2930 = vadd.f32 %v2685, %v2866
      %v2931 = vlaneseq
      %v2932 = vshrl.u32 %v2931, 7
      %v2933 = vsub.s32 1, %v2932
      %v2934 = vrot.slane %v427, %v2933
      %v2935 = vmul.f32 %v438, %v2934
      %v2936 = vmul.f32 %v439, %v2934
      %v2937 = vmul.f32 %v440, %v2934
      %v2938 = vmul.f32 %v441, %v2934
      %v2939 = vmul.f32 %v442, %v2934
      %v2940 = vmul.f32 %v443, %v2934
      %v2941 = vmul.f32 %v444, %v2934
      %v2942 = vmul.f32 %v445, %v2934
      %v2943 = vmul.f32 %v446, %v2934
      %v2944 = vmul.f32 %v447, %v2934
      %v2945 = vmul.f32 %v448, %v2934
      %v2946 = vmul.f32 %v449, %v2934
      %v2947 = vmul.f32 %v450, %v2934
      %v2948 = vmul.f32 %v451, %v2934
      %v2949 = vmul.f32 %v452, %v2934
      %v2950 = vmul.f32 %v453, %v2934
      %v2951 = vmul.f32 %v454, %v2934
      %v2952 = vmul.f32 %v455, %v2934
      %v2953 = vmul.f32 %v456, %v2934
      %v2954 = vmul.f32 %v457, %v2934
      %v2955 = vmul.f32 %v458, %v2934
      %v2956 = vmul.f32 %v459, %v2934
      %v2957 = vmul.f32 %v460, %v2934
      %v2958 = vmul.f32 %v461, %v2934
      %v2959 = vmul.f32 %v462, %v2934
      %v2960 = vmul.f32 %v463, %v2934
      %v2961 = vmul.f32 %v464, %v2934
      %v2962 = vmul.f32 %v465, %v2934
      %v2963 = vmul.f32 %v466, %v2934
      %v2964 = vmul.f32 %v467, %v2934
      %v2965 = vmul.f32 %v468, %v2934
      %v2966 = vmul.f32 %v469, %v2934
      %v2967 = vmul.f32 %v470, %v2934
      %v2968 = vmul.f32 %v471, %v2934
      %v2969 = vmul.f32 %v472, %v2934
      %v2970 = vmul.f32 %v473, %v2934
      %v2971 = vmul.f32 %v474, %v2934
      %v2972 = vmul.f32 %v475, %v2934
      %v2973 = vmul.f32 %v476, %v2934
      %v2974 = vmul.f32 %v477, %v2934
      %v2975 = vmul.f32 %v478, %v2934
      %v2976 = vmul.f32 %v479, %v2934
      %v2977 = vmul.f32 %v480, %v2934
      %v2978 = vmul.f32 %v481, %v2934
      %v2979 = vmul.f32 %v482, %v2934
      %v2980 = vmul.f32 %v483, %v2934
      %v2981 = vmul.f32 %v484, %v2934
      %v2982 = vmul.f32 %v485, %v2934
      %v3031 = vrot.slane %v2935, 2
      %v3032 = vrot.slane %v2936, 2
      %v3033 = vsel %vm2786, %v3031, %v3032
      %v3034 = vrot.slane %v2937, 2
      %v3035 = vsel %vm2786, %v3032, %v3034
      %v3036 = vrot.slane %v2938, 2
      %v3037 = vrot.slane %v2939, 2
      %v3038 = vsel %vm2786, %v3036, %v3037
      %v3039 = vrot.slane %v2940, 2
      %v3040 = vsel %vm2786, %v3037, %v3039
      %v3041 = vrot.slane %v2941, 2
      %v3042 = vrot.slane %v2942, 2
      %v3043 = vsel %vm2786, %v3041, %v3042
      %v3044 = vrot.slane %v2943, 2
      %v3045 = vsel %vm2786, %v3042, %v3044
      %v3046 = vrot.slane %v2944, 2
      %v3047 = vrot.slane %v2945, 2
      %v3048 = vsel %vm2786, %v3046, %v3047
      %v3049 = vrot.slane %v2946, 2
      %v3050 = vsel %vm2786, %v3047, %v3049
      %v3051 = vrot.slane %v2947, 2
      %v3052 = vrot.slane %v2948, 2
      %v3053 = vsel %vm2786, %v3051, %v3052
      %v3054 = vrot.slane %v2949, 2
      %v3055 = vsel %vm2786, %v3052, %v3054
      %v3056 = vrot.slane %v2950, 2
      %v3057 = vrot.slane %v2951, 2
      %v3058 = vsel %vm2786, %v3056, %v3057
      %v3059 = vrot.slane %v2952, 2
      %v3060 = vsel %vm2786, %v3057, %v3059
      %v3061 = vrot.slane %v2953, 2
      %v3062 = vrot.slane %v2954, 2
      %v3063 = vsel %vm2786, %v3061, %v3062
      %v3064 = vrot.slane %v2955, 2
      %v3065 = vsel %vm2786, %v3062, %v3064
      %v3066 = vrot.slane %v2956, 2
      %v3067 = vrot.slane %v2957, 2
      %v3068 = vsel %vm2786, %v3066, %v3067
      %v3069 = vrot.slane %v2958, 2
      %v3070 = vsel %vm2786, %v3067, %v3069
      %v3071 = vrot.slane %v2959, 2
      %v3072 = vrot.slane %v2960, 2
      %v3073 = vsel %vm2786, %v3071, %v3072
      %v3074 = vrot.slane %v2961, 2
      %v3075 = vsel %vm2786, %v3072, %v3074
      %v3076 = vrot.slane %v2962, 2
      %v3077 = vrot.slane %v2963, 2
      %v3078 = vsel %vm2786, %v3076, %v3077
      %v3079 = vrot.slane %v2964, 2
      %v3080 = vsel %vm2786, %v3077, %v3079
      %v3081 = vrot.slane %v2965, 2
      %v3082 = vrot.slane %v2966, 2
      %v3083 = vsel %vm2786, %v3081, %v3082
      %v3084 = vrot.slane %v2967, 2
      %v3085 = vsel %vm2786, %v3082, %v3084
      %v3086 = vrot.slane %v2968, 2
      %v3087 = vrot.slane %v2969, 2
      %v3088 = vsel %vm2786, %v3086, %v3087
      %v3089 = vrot.slane %v2970, 2
      %v3090 = vsel %vm2786, %v3087, %v3089
      %v3091 = vrot.slane %v2971, 2
      %v3092 = vrot.slane %v2972, 2
      %v3093 = vsel %vm2786, %v3091, %v3092
      %v3094 = vrot.slane %v2973, 2
      %v3095 = vsel %vm2786, %v3092, %v3094
      %v3096 = vrot.slane %v2974, 2
      %v3097 = vrot.slane %v2975, 2
      %v3098 = vsel %vm2786, %v3096, %v3097
      %v3099 = vrot.slane %v2976, 2
      %v3100 = vsel %vm2786, %v3097, %v3099
      %v3101 = vrot.slane %v2977, 2
      %v3102 = vrot.slane %v2978, 2
      %v3103 = vsel %vm2786, %v3101, %v3102
      %v3104 = vrot.slane %v2979, 2
      %v3105 = vsel %vm2786, %v3102, %v3104
      %v3106 = vrot.slane %v2980, 2
      %v3107 = vrot.slane %v2981, 2
      %v3108 = vsel %vm2786, %v3106, %v3107
      %v3109 = vrot.slane %v2982, 2
      %v3110 = vsel %vm2786, %v3107, %v3109
      %v3143 = vadd.f32 %v2899, %v3033
      %v3144 = vadd.f32 %v2900, %v3035
      %v3145 = vadd.f32 %v2901, %v3038
      %v3146 = vadd.f32 %v2902, %v3040
      %v3147 = vadd.f32 %v2903, %v3043
      %v3148 = vadd.f32 %v2904, %v3045
      %v3149 = vadd.f32 %v2905, %v3048
      %v3150 = vadd.f32 %v2906, %v3050
      %v3151 = vadd.f32 %v2907, %v3053
      %v3152 = vadd.f32 %v2908, %v3055
      %v3153 = vadd.f32 %v2909, %v3058
      %v3154 = vadd.f32 %v2910, %v3060
      %v3155 = vadd.f32 %v2911, %v3063
      %v3156 = vadd.f32 %v2912, %v3065
      %v3157 = vadd.f32 %v2913, %v3068
      %v3158 = vadd.f32 %v2914, %v3070
      %v3159 = vadd.f32 %v2915, %v3073
      %v3160 = vadd.f32 %v2916, %v3075
      %v3161 = vadd.f32 %v2917, %v3078
      %v3162 = vadd.f32 %v2918, %v3080
      %v3163 = vadd.f32 %v2919, %v3083
      %v3164 = vadd.f32 %v2920, %v3085
      %v3165 = vadd.f32 %v2921, %v3088
      %v3166 = vadd.f32 %v2922, %v3090
      %v3167 = vadd.f32 %v2923, %v3093
      %v3168 = vadd.f32 %v2924, %v3095
      %v3169 = vadd.f32 %v2925, %v3098
      %v3170 = vadd.f32 %v2926, %v3100
      %v3171 = vadd.f32 %v2927, %v3103
      %v3172 = vadd.f32 %v2928, %v3105
      %v3173 = vadd.f32 %v2929, %v3108
      %v3174 = vadd.f32 %v2930, %v3110
      %v3175 = vlaneseq
      %v3176 = vshrl.u32 %v3175, 7
      %v3177 = vsub.s32 0, %v3176
      %v3178 = vrot.slane %v428, %v3177
      %v3179 = vmul.f32 %v441, %v3178
      %v3180 = vmul.f32 %v442, %v3178
      %v3181 = vmul.f32 %v443, %v3178
      %v3182 = vmul.f32 %v444, %v3178
      %v3183 = vmul.f32 %v445, %v3178
      %v3184 = vmul.f32 %v446, %v3178
      %v3185 = vmul.f32 %v447, %v3178
      %v3186 = vmul.f32 %v448, %v3178
      %v3187 = vmul.f32 %v449, %v3178
      %v3188 = vmul.f32 %v450, %v3178
      %v3189 = vmul.f32 %v451, %v3178
      %v3190 = vmul.f32 %v452, %v3178
      %v3191 = vmul.f32 %v453, %v3178
      %v3192 = vmul.f32 %v454, %v3178
      %v3193 = vmul.f32 %v455, %v3178
      %v3194 = vmul.f32 %v456, %v3178
      %v3195 = vmul.f32 %v457, %v3178
      %v3196 = vmul.f32 %v458, %v3178
      %v3197 = vmul.f32 %v459, %v3178
      %v3198 = vmul.f32 %v460, %v3178
      %v3199 = vmul.f32 %v461, %v3178
      %v3200 = vmul.f32 %v462, %v3178
      %v3201 = vmul.f32 %v463, %v3178
      %v3202 = vmul.f32 %v464, %v3178
      %v3203 = vmul.f32 %v465, %v3178
      %v3204 = vmul.f32 %v466, %v3178
      %v3205 = vmul.f32 %v467, %v3178
      %v3206 = vmul.f32 %v468, %v3178
      %v3207 = vmul.f32 %v469, %v3178
      %v3208 = vmul.f32 %v470, %v3178
      %v3209 = vmul.f32 %v471, %v3178
      %v3210 = vmul.f32 %v472, %v3178
      %v3211 = vmul.f32 %v473, %v3178
      %v3212 = vmul.f32 %v474, %v3178
      %v3213 = vmul.f32 %v475, %v3178
      %v3214 = vmul.f32 %v476, %v3178
      %v3215 = vmul.f32 %v477, %v3178
      %v3216 = vmul.f32 %v478, %v3178
      %v3217 = vmul.f32 %v479, %v3178
      %v3218 = vmul.f32 %v480, %v3178
      %v3219 = vmul.f32 %v481, %v3178
      %v3220 = vmul.f32 %v482, %v3178
      %v3221 = vmul.f32 %v483, %v3178
      %v3222 = vmul.f32 %v484, %v3178
      %v3223 = vmul.f32 %v485, %v3178
      %v3224 = vmul.f32 %v486, %v3178
      %v3225 = vmul.f32 %v487, %v3178
      %v3226 = vmul.f32 %v488, %v3178
      %v3275 = vrot.slane %v3179, 2
      %v3276 = vrot.slane %v3180, 2
      %v3277 = vsel %vm2786, %v3275, %v3276
      %v3278 = vrot.slane %v3181, 2
      %v3279 = vsel %vm2786, %v3276, %v3278
      %v3280 = vrot.slane %v3182, 2
      %v3281 = vrot.slane %v3183, 2
      %v3282 = vsel %vm2786, %v3280, %v3281
      %v3283 = vrot.slane %v3184, 2
      %v3284 = vsel %vm2786, %v3281, %v3283
      %v3285 = vrot.slane %v3185, 2
      %v3286 = vrot.slane %v3186, 2
      %v3287 = vsel %vm2786, %v3285, %v3286
      %v3288 = vrot.slane %v3187, 2
      %v3289 = vsel %vm2786, %v3286, %v3288
      %v3290 = vrot.slane %v3188, 2
      %v3291 = vrot.slane %v3189, 2
      %v3292 = vsel %vm2786, %v3290, %v3291
      %v3293 = vrot.slane %v3190, 2
      %v3294 = vsel %vm2786, %v3291, %v3293
      %v3295 = vrot.slane %v3191, 2
      %v3296 = vrot.slane %v3192, 2
      %v3297 = vsel %vm2786, %v3295, %v3296
      %v3298 = vrot.slane %v3193, 2
      %v3299 = vsel %vm2786, %v3296, %v3298
      %v3300 = vrot.slane %v3194, 2
      %v3301 = vrot.slane %v3195, 2
      %v3302 = vsel %vm2786, %v3300, %v3301
      %v3303 = vrot.slane %v3196, 2
      %v3304 = vsel %vm2786, %v3301, %v3303
      %v3305 = vrot.slane %v3197, 2
      %v3306 = vrot.slane %v3198, 2
      %v3307 = vsel %vm2786, %v3305, %v3306
      %v3308 = vrot.slane %v3199, 2
      %v3309 = vsel %vm2786, %v3306, %v3308
      %v3310 = vrot.slane %v3200, 2
      %v3311 = vrot.slane %v3201, 2
      %v3312 = vsel %vm2786, %v3310, %v3311
      %v3313 = vrot.slane %v3202, 2
      %v3314 = vsel %vm2786, %v3311, %v3313
      %v3315 = vrot.slane %v3203, 2
      %v3316 = vrot.slane %v3204, 2
      %v3317 = vsel %vm2786, %v3315, %v3316
      %v3318 = vrot.slane %v3205, 2
      %v3319 = vsel %vm2786, %v3316, %v3318
      %v3320 = vrot.slane %v3206, 2
      %v3321 = vrot.slane %v3207, 2
      %v3322 = vsel %vm2786, %v3320, %v3321
      %v3323 = vrot.slane %v3208, 2
      %v3324 = vsel %vm2786, %v3321, %v3323
      %v3325 = vrot.slane %v3209, 2
      %v3326 = vrot.slane %v3210, 2
      %v3327 = vsel %vm2786, %v3325, %v3326
      %v3328 = vrot.slane %v3211, 2
      %v3329 = vsel %vm2786, %v3326, %v3328
      %v3330 = vrot.slane %v3212, 2
      %v3331 = vrot.slane %v3213, 2
      %v3332 = vsel %vm2786, %v3330, %v3331
      %v3333 = vrot.slane %v3214, 2
      %v3334 = vsel %vm2786, %v3331, %v3333
      %v3335 = vrot.slane %v3215, 2
      %v3336 = vrot.slane %v3216, 2
      %v3337 = vsel %vm2786, %v3335, %v3336
      %v3338 = vrot.slane %v3217, 2
      %v3339 = vsel %vm2786, %v3336, %v3338
      %v3340 = vrot.slane %v3218, 2
      %v3341 = vrot.slane %v3219, 2
      %v3342 = vsel %vm2786, %v3340, %v3341
      %v3343 = vrot.slane %v3220, 2
      %v3344 = vsel %vm2786, %v3341, %v3343
      %v3345 = vrot.slane %v3221, 2
      %v3346 = vrot.slane %v3222, 2
      %v3347 = vsel %vm2786, %v3345, %v3346
      %v3348 = vrot.slane %v3223, 2
      %v3349 = vsel %vm2786, %v3346, %v3348
      %v3350 = vrot.slane %v3224, 2
      %v3351 = vrot.slane %v3225, 2
      %v3352 = vsel %vm2786, %v3350, %v3351
      %v3353 = vrot.slane %v3226, 2
      %v3354 = vsel %vm2786, %v3351, %v3353
      %v3387 = vadd.f32 %v3143, %v3277
      %v3388 = vadd.f32 %v3144, %v3279
      %v3389 = vadd.f32 %v3145, %v3282
      %v3390 = vadd.f32 %v3146, %v3284
      %v3391 = vadd.f32 %v3147, %v3287
      %v3392 = vadd.f32 %v3148, %v3289
      %v3393 = vadd.f32 %v3149, %v3292
      %v3394 = vadd.f32 %v3150, %v3294
      %v3395 = vadd.f32 %v3151, %v3297
      %v3396 = vadd.f32 %v3152, %v3299
      %v3397 = vadd.f32 %v3153, %v3302
      %v3398 = vadd.f32 %v3154, %v3304
      %v3399 = vadd.f32 %v3155, %v3307
      %v3400 = vadd.f32 %v3156, %v3309
      %v3401 = vadd.f32 %v3157, %v3312
      %v3402 = vadd.f32 %v3158, %v3314
      %v3403 = vadd.f32 %v3159, %v3317
      %v3404 = vadd.f32 %v3160, %v3319
      %v3405 = vadd.f32 %v3161, %v3322
      %v3406 = vadd.f32 %v3162, %v3324
      %v3407 = vadd.f32 %v3163, %v3327
      %v3408 = vadd.f32 %v3164, %v3329
      %v3409 = vadd.f32 %v3165, %v3332
      %v3410 = vadd.f32 %v3166, %v3334
      %v3411 = vadd.f32 %v3167, %v3337
      %v3412 = vadd.f32 %v3168, %v3339
      %v3413 = vadd.f32 %v3169, %v3342
      %v3414 = vadd.f32 %v3170, %v3344
      %v3415 = vadd.f32 %v3171, %v3347
      %v3416 = vadd.f32 %v3172, %v3349
      %v3417 = vadd.f32 %v3173, %v3352
      %v3418 = vadd.f32 %v3174, %v3354
      %v3419 = vlaneseq
      %v3420 = vshrl.u32 %v3419, 7
      %v3421 = vsub.s32 7, %v3420
      %v3422 = vrot.slane %v428, %v3421
      %v3423 = vmul.f32 %v444, %v3422
      %v3424 = vmul.f32 %v445, %v3422
      %v3425 = vmul.f32 %v446, %v3422
      %v3426 = vmul.f32 %v447, %v3422
      %v3427 = vmul.f32 %v448, %v3422
      %v3428 = vmul.f32 %v449, %v3422
      %v3429 = vmul.f32 %v450, %v3422
      %v3430 = vmul.f32 %v451, %v3422
      %v3431 = vmul.f32 %v452, %v3422
      %v3432 = vmul.f32 %v453, %v3422
      %v3433 = vmul.f32 %v454, %v3422
      %v3434 = vmul.f32 %v455, %v3422
      %v3435 = vmul.f32 %v456, %v3422
      %v3436 = vmul.f32 %v457, %v3422
      %v3437 = vmul.f32 %v458, %v3422
      %v3438 = vmul.f32 %v459, %v3422
      %v3439 = vmul.f32 %v460, %v3422
      %v3440 = vmul.f32 %v461, %v3422
      %v3441 = vmul.f32 %v462, %v3422
      %v3442 = vmul.f32 %v463, %v3422
      %v3443 = vmul.f32 %v464, %v3422
      %v3444 = vmul.f32 %v465, %v3422
      %v3445 = vmul.f32 %v466, %v3422
      %v3446 = vmul.f32 %v467, %v3422
      %v3447 = vmul.f32 %v468, %v3422
      %v3448 = vmul.f32 %v469, %v3422
      %v3449 = vmul.f32 %v470, %v3422
      %v3450 = vmul.f32 %v471, %v3422
      %v3451 = vmul.f32 %v472, %v3422
      %v3452 = vmul.f32 %v473, %v3422
      %v3453 = vmul.f32 %v474, %v3422
      %v3454 = vmul.f32 %v475, %v3422
      %v3455 = vmul.f32 %v476, %v3422
      %v3456 = vmul.f32 %v477, %v3422
      %v3457 = vmul.f32 %v478, %v3422
      %v3458 = vmul.f32 %v479, %v3422
      %v3459 = vmul.f32 %v480, %v3422
      %v3460 = vmul.f32 %v481, %v3422
      %v3461 = vmul.f32 %v482, %v3422
      %v3462 = vmul.f32 %v483, %v3422
      %v3463 = vmul.f32 %v484, %v3422
      %v3464 = vmul.f32 %v485, %v3422
      %v3465 = vmul.f32 %v486, %v3422
      %v3466 = vmul.f32 %v487, %v3422
      %v3467 = vmul.f32 %v488, %v3422
      %v3468 = vmul.f32 %v489, %v3422
      %v3469 = vmul.f32 %v490, %v3422
      %v3470 = vmul.f32 %v491, %v3422
      %v3519 = vrot.slane %v3423, 2
      %v3520 = vrot.slane %v3424, 2
      %v3521 = vsel %vm2786, %v3519, %v3520
      %v3522 = vrot.slane %v3425, 2
      %v3523 = vsel %vm2786, %v3520, %v3522
      %v3524 = vrot.slane %v3426, 2
      %v3525 = vrot.slane %v3427, 2
      %v3526 = vsel %vm2786, %v3524, %v3525
      %v3527 = vrot.slane %v3428, 2
      %v3528 = vsel %vm2786, %v3525, %v3527
      %v3529 = vrot.slane %v3429, 2
      %v3530 = vrot.slane %v3430, 2
      %v3531 = vsel %vm2786, %v3529, %v3530
      %v3532 = vrot.slane %v3431, 2
      %v3533 = vsel %vm2786, %v3530, %v3532
      %v3534 = vrot.slane %v3432, 2
      %v3535 = vrot.slane %v3433, 2
      %v3536 = vsel %vm2786, %v3534, %v3535
      %v3537 = vrot.slane %v3434, 2
      %v3538 = vsel %vm2786, %v3535, %v3537
      %v3539 = vrot.slane %v3435, 2
      %v3540 = vrot.slane %v3436, 2
      %v3541 = vsel %vm2786, %v3539, %v3540
      %v3542 = vrot.slane %v3437, 2
      %v3543 = vsel %vm2786, %v3540, %v3542
      %v3544 = vrot.slane %v3438, 2
      %v3545 = vrot.slane %v3439, 2
      %v3546 = vsel %vm2786, %v3544, %v3545
      %v3547 = vrot.slane %v3440, 2
      %v3548 = vsel %vm2786, %v3545, %v3547
      %v3549 = vrot.slane %v3441, 2
      %v3550 = vrot.slane %v3442, 2
      %v3551 = vsel %vm2786, %v3549, %v3550
      %v3552 = vrot.slane %v3443, 2
      %v3553 = vsel %vm2786, %v3550, %v3552
      %v3554 = vrot.slane %v3444, 2
      %v3555 = vrot.slane %v3445, 2
      %v3556 = vsel %vm2786, %v3554, %v3555
      %v3557 = vrot.slane %v3446, 2
      %v3558 = vsel %vm2786, %v3555, %v3557
      %v3559 = vrot.slane %v3447, 2
      %v3560 = vrot.slane %v3448, 2
      %v3561 = vsel %vm2786, %v3559, %v3560
      %v3562 = vrot.slane %v3449, 2
      %v3563 = vsel %vm2786, %v3560, %v3562
      %v3564 = vrot.slane %v3450, 2
      %v3565 = vrot.slane %v3451, 2
      %v3566 = vsel %vm2786, %v3564, %v3565
      %v3567 = vrot.slane %v3452, 2
      %v3568 = vsel %vm2786, %v3565, %v3567
      %v3569 = vrot.slane %v3453, 2
      %v3570 = vrot.slane %v3454, 2
      %v3571 = vsel %vm2786, %v3569, %v3570
      %v3572 = vrot.slane %v3455, 2
      %v3573 = vsel %vm2786, %v3570, %v3572
      %v3574 = vrot.slane %v3456, 2
      %v3575 = vrot.slane %v3457, 2
      %v3576 = vsel %vm2786, %v3574, %v3575
      %v3577 = vrot.slane %v3458, 2
      %v3578 = vsel %vm2786, %v3575, %v3577
      %v3579 = vrot.slane %v3459, 2
      %v3580 = vrot.slane %v3460, 2
      %v3581 = vsel %vm2786, %v3579, %v3580
      %v3582 = vrot.slane %v3461, 2
      %v3583 = vsel %vm2786, %v3580, %v3582
      %v3584 = vrot.slane %v3462, 2
      %v3585 = vrot.slane %v3463, 2
      %v3586 = vsel %vm2786, %v3584, %v3585
      %v3587 = vrot.slane %v3464, 2
      %v3588 = vsel %vm2786, %v3585, %v3587
      %v3589 = vrot.slane %v3465, 2
      %v3590 = vrot.slane %v3466, 2
      %v3591 = vsel %vm2786, %v3589, %v3590
      %v3592 = vrot.slane %v3467, 2
      %v3593 = vsel %vm2786, %v3590, %v3592
      %v3594 = vrot.slane %v3468, 2
      %v3595 = vrot.slane %v3469, 2
      %v3596 = vsel %vm2786, %v3594, %v3595
      %v3597 = vrot.slane %v3470, 2
      %v3598 = vsel %vm2786, %v3595, %v3597
      %v3631 = vadd.f32 %v3387, %v3521
      %v3632 = vadd.f32 %v3388, %v3523
      %v3633 = vadd.f32 %v3389, %v3526
      %v3634 = vadd.f32 %v3390, %v3528
      %v3635 = vadd.f32 %v3391, %v3531
      %v3636 = vadd.f32 %v3392, %v3533
      %v3637 = vadd.f32 %v3393, %v3536
      %v3638 = vadd.f32 %v3394, %v3538
      %v3639 = vadd.f32 %v3395, %v3541
      %v3640 = vadd.f32 %v3396, %v3543
      %v3641 = vadd.f32 %v3397, %v3546
      %v3642 = vadd.f32 %v3398, %v3548
      %v3643 = vadd.f32 %v3399, %v3551
      %v3644 = vadd.f32 %v3400, %v3553
      %v3645 = vadd.f32 %v3401, %v3556
      %v3646 = vadd.f32 %v3402, %v3558
      %v3647 = vadd.f32 %v3403, %v3561
      %v3648 = vadd.f32 %v3404, %v3563
      %v3649 = vadd.f32 %v3405, %v3566
      %v3650 = vadd.f32 %v3406, %v3568
      %v3651 = vadd.f32 %v3407, %v3571
      %v3652 = vadd.f32 %v3408, %v3573
      %v3653 = vadd.f32 %v3409, %v3576
      %v3654 = vadd.f32 %v3410, %v3578
      %v3655 = vadd.f32 %v3411, %v3581
      %v3656 = vadd.f32 %v3412, %v3583
      %v3657 = vadd.f32 %v3413, %v3586
      %v3658 = vadd.f32 %v3414, %v3588
      %v3659 = vadd.f32 %v3415, %v3591
      %v3660 = vadd.f32 %v3416, %v3593
      %v3661 = vadd.f32 %v3417, %v3596
      %v3662 = vadd.f32 %v3418, %v3598
      %v3663 = vlaneseq
      %v3664 = vshrl.u32 %v3663, 7
      %v3665 = vsub.s32 6, %v3664
      %v3666 = vrot.slane %v429, %v3665
      %v3667 = vmul.f32 %v447, %v3666
      %v3668 = vmul.f32 %v448, %v3666
      %v3669 = vmul.f32 %v449, %v3666
      %v3670 = vmul.f32 %v450, %v3666
      %v3671 = vmul.f32 %v451, %v3666
      %v3672 = vmul.f32 %v452, %v3666
      %v3673 = vmul.f32 %v453, %v3666
      %v3674 = vmul.f32 %v454, %v3666
      %v3675 = vmul.f32 %v455, %v3666
      %v3676 = vmul.f32 %v456, %v3666
      %v3677 = vmul.f32 %v457, %v3666
      %v3678 = vmul.f32 %v458, %v3666
      %v3679 = vmul.f32 %v459, %v3666
      %v3680 = vmul.f32 %v460, %v3666
      %v3681 = vmul.f32 %v461, %v3666
      %v3682 = vmul.f32 %v462, %v3666
      %v3683 = vmul.f32 %v463, %v3666
      %v3684 = vmul.f32 %v464, %v3666
      %v3685 = vmul.f32 %v465, %v3666
      %v3686 = vmul.f32 %v466, %v3666
      %v3687 = vmul.f32 %v467, %v3666
      %v3688 = vmul.f32 %v468, %v3666
      %v3689 = vmul.f32 %v469, %v3666
      %v3690 = vmul.f32 %v470, %v3666
      %v3691 = vmul.f32 %v471, %v3666
      %v3692 = vmul.f32 %v472, %v3666
      %v3693 = vmul.f32 %v473, %v3666
      %v3694 = vmul.f32 %v474, %v3666
      %v3695 = vmul.f32 %v475, %v3666
      %v3696 = vmul.f32 %v476, %v3666
      %v3697 = vmul.f32 %v477, %v3666
      %v3698 = vmul.f32 %v478, %v3666
      %v3699 = vmul.f32 %v479, %v3666
      %v3700 = vmul.f32 %v480, %v3666
      %v3701 = vmul.f32 %v481, %v3666
      %v3702 = vmul.f32 %v482, %v3666
      %v3703 = vmul.f32 %v483, %v3666
      %v3704 = vmul.f32 %v484, %v3666
      %v3705 = vmul.f32 %v485, %v3666
      %v3706 = vmul.f32 %v486, %v3666
      %v3707 = vmul.f32 %v487, %v3666
      %v3708 = vmul.f32 %v488, %v3666
      %v3709 = vmul.f32 %v489, %v3666
      %v3710 = vmul.f32 %v490, %v3666
      %v3711 = vmul.f32 %v491, %v3666
      %v3712 = vmul.f32 %v492, %v3666
      %v3713 = vmul.f32 %v493, %v3666
      %v3714 = vmul.f32 %v494, %v3666
      %v3763 = vrot.slane %v3667, 2
      %v3764 = vrot.slane %v3668, 2
      %v3765 = vsel %vm2786, %v3763, %v3764
      %v3766 = vrot.slane %v3669, 2
      %v3767 = vsel %vm2786, %v3764, %v3766
      %v3768 = vrot.slane %v3670, 2
      %v3769 = vrot.slane %v3671, 2
      %v3770 = vsel %vm2786, %v3768, %v3769
      %v3771 = vrot.slane %v3672, 2
      %v3772 = vsel %vm2786, %v3769, %v3771
      %v3773 = vrot.slane %v3673, 2
      %v3774 = vrot.slane %v3674, 2
      %v3775 = vsel %vm2786, %v3773, %v3774
      %v3776 = vrot.slane %v3675, 2
      %v3777 = vsel %vm2786, %v3774, %v3776
      %v3778 = vrot.slane %v3676, 2
      %v3779 = vrot.slane %v3677, 2
      %v3780 = vsel %vm2786, %v3778, %v3779
      %v3781 = vrot.slane %v3678, 2
      %v3782 = vsel %vm2786, %v3779, %v3781
      %v3783 = vrot.slane %v3679, 2
      %v3784 = vrot.slane %v3680, 2
      %v3785 = vsel %vm2786, %v3783, %v3784
      %v3786 = vrot.slane %v3681, 2
      %v3787 = vsel %vm2786, %v3784, %v3786
      %v3788 = vrot.slane %v3682, 2
      %v3789 = vrot.slane %v3683, 2
      %v3790 = vsel %vm2786, %v3788, %v3789
      %v3791 = vrot.slane %v3684, 2
      %v3792 = vsel %vm2786, %v3789, %v3791
      %v3793 = vrot.slane %v3685, 2
      %v3794 = vrot.slane %v3686, 2
      %v3795 = vsel %vm2786, %v3793, %v3794
      %v3796 = vrot.slane %v3687, 2
      %v3797 = vsel %vm2786, %v3794, %v3796
      %v3798 = vrot.slane %v3688, 2
      %v3799 = vrot.slane %v3689, 2
      %v3800 = vsel %vm2786, %v3798, %v3799
      %v3801 = vrot.slane %v3690, 2
      %v3802 = vsel %vm2786, %v3799, %v3801
      %v3803 = vrot.slane %v3691, 2
      %v3804 = vrot.slane %v3692, 2
      %v3805 = vsel %vm2786, %v3803, %v3804
      %v3806 = vrot.slane %v3693, 2
      %v3807 = vsel %vm2786, %v3804, %v3806
      %v3808 = vrot.slane %v3694, 2
      %v3809 = vrot.slane %v3695, 2
      %v3810 = vsel %vm2786, %v3808, %v3809
      %v3811 = vrot.slane %v3696, 2
      %v3812 = vsel %vm2786, %v3809, %v3811
      %v3813 = vrot.slane %v3697, 2
      %v3814 = vrot.slane %v3698, 2
      %v3815 = vsel %vm2786, %v3813, %v3814
      %v3816 = vrot.slane %v3699, 2
      %v3817 = vsel %vm2786, %v3814, %v3816
      %v3818 = vrot.slane %v3700, 2
      %v3819 = vrot.slane %v3701, 2
      %v3820 = vsel %vm2786, %v3818, %v3819
      %v3821 = vrot.slane %v3702, 2
      %v3822 = vsel %vm2786, %v3819, %v3821
      %v3823 = vrot.slane %v3703, 2
      %v3824 = vrot.slane %v3704, 2
      %v3825 = vsel %vm2786, %v3823, %v3824
      %v3826 = vrot.slane %v3705, 2
      %v3827 = vsel %vm2786, %v3824, %v3826
      %v3828 = vrot.slane %v3706, 2
      %v3829 = vrot.slane %v3707, 2
      %v3830 = vsel %vm2786, %v3828, %v3829
      %v3831 = vrot.slane %v3708, 2
      %v3832 = vsel %vm2786, %v3829, %v3831
      %v3833 = vrot.slane %v3709, 2
      %v3834 = vrot.slane %v3710, 2
      %v3835 = vsel %vm2786, %v3833, %v3834
      %v3836 = vrot.slane %v3711, 2
      %v3837 = vsel %vm2786, %v3834, %v3836
      %v3838 = vrot.slane %v3712, 2
      %v3839 = vrot.slane %v3713, 2
      %v3840 = vsel %vm2786, %v3838, %v3839
      %v3841 = vrot.slane %v3714, 2
      %v3842 = vsel %vm2786, %v3839, %v3841
      %v3875 = vadd.f32 %v3631, %v3765
      %v3876 = vadd.f32 %v3632, %v3767
      %v3877 = vadd.f32 %v3633, %v3770
      %v3878 = vadd.f32 %v3634, %v3772
      %v3879 = vadd.f32 %v3635, %v3775
      %v3880 = vadd.f32 %v3636, %v3777
      %v3881 = vadd.f32 %v3637, %v3780
      %v3882 = vadd.f32 %v3638, %v3782
      %v3883 = vadd.f32 %v3639, %v3785
      %v3884 = vadd.f32 %v3640, %v3787
      %v3885 = vadd.f32 %v3641, %v3790
      %v3886 = vadd.f32 %v3642, %v3792
      %v3887 = vadd.f32 %v3643, %v3795
      %v3888 = vadd.f32 %v3644, %v3797
      %v3889 = vadd.f32 %v3645, %v3800
      %v3890 = vadd.f32 %v3646, %v3802
      %v3891 = vadd.f32 %v3647, %v3805
      %v3892 = vadd.f32 %v3648, %v3807
      %v3893 = vadd.f32 %v3649, %v3810
      %v3894 = vadd.f32 %v3650, %v3812
      %v3895 = vadd.f32 %v3651, %v3815
      %v3896 = vadd.f32 %v3652, %v3817
      %v3897 = vadd.f32 %v3653, %v3820
      %v3898 = vadd.f32 %v3654, %v3822
      %v3899 = vadd.f32 %v3655, %v3825
      %v3900 = vadd.f32 %v3656, %v3827
      %v3901 = vadd.f32 %v3657, %v3830
      %v3902 = vadd.f32 %v3658, %v3832
      %v3903 = vadd.f32 %v3659, %v3835
      %v3904 = vadd.f32 %v3660, %v3837
      %v3905 = vadd.f32 %v3661, %v3840
      %v3906 = vadd.f32 %v3662, %v3842
      %v3907 = vlaneseq
      %v3908 = vshrl.u32 %v3907, 7
      %v3909 = vsub.s32 5, %v3908
      %v3910 = vrot.slane %v430, %v3909
      %v3911 = vmul.f32 %v450, %v3910
      %v3912 = vmul.f32 %v451, %v3910
      %v3913 = vmul.f32 %v452, %v3910
      %v3914 = vmul.f32 %v453, %v3910
      %v3915 = vmul.f32 %v454, %v3910
      %v3916 = vmul.f32 %v455, %v3910
      %v3917 = vmul.f32 %v456, %v3910
      %v3918 = vmul.f32 %v457, %v3910
      %v3919 = vmul.f32 %v458, %v3910
      %v3920 = vmul.f32 %v459, %v3910
      %v3921 = vmul.f32 %v460, %v3910
      %v3922 = vmul.f32 %v461, %v3910
      %v3923 = vmul.f32 %v462, %v3910
      %v3924 = vmul.f32 %v463, %v3910
      %v3925 = vmul.f32 %v464, %v3910
      %v3926 = vmul.f32 %v465, %v3910
      %v3927 = vmul.f32 %v466, %v3910
      %v3928 = vmul.f32 %v467, %v3910
      %v3929 = vmul.f32 %v468, %v3910
      %v3930 = vmul.f32 %v469, %v3910
      %v3931 = vmul.f32 %v470, %v3910
      %v3932 = vmul.f32 %v471, %v3910
      %v3933 = vmul.f32 %v472, %v3910
      %v3934 = vmul.f32 %v473, %v3910
      %v3935 = vmul.f32 %v474, %v3910
      %v3936 = vmul.f32 %v475, %v3910
      %v3937 = vmul.f32 %v476, %v3910
      %v3938 = vmul.f32 %v477, %v3910
      %v3939 = vmul.f32 %v478, %v3910
      %v3940 = vmul.f32 %v479, %v3910
      %v3941 = vmul.f32 %v480, %v3910
      %v3942 = vmul.f32 %v481, %v3910
      %v3943 = vmul.f32 %v482, %v3910
      %v3944 = vmul.f32 %v483, %v3910
      %v3945 = vmul.f32 %v484, %v3910
      %v3946 = vmul.f32 %v485, %v3910
      %v3947 = vmul.f32 %v486, %v3910
      %v3948 = vmul.f32 %v487, %v3910
      %v3949 = vmul.f32 %v488, %v3910
      %v3950 = vmul.f32 %v489, %v3910
      %v3951 = vmul.f32 %v490, %v3910
      %v3952 = vmul.f32 %v491, %v3910
      %v3953 = vmul.f32 %v492, %v3910
      %v3954 = vmul.f32 %v493, %v3910
      %v3955 = vmul.f32 %v494, %v3910
      %v3956 = vmul.f32 %v495, %v3910
      %v3957 = vmul.f32 %v496, %v3910
      %v3958 = vmul.f32 %v497, %v3910
      %v4007 = vrot.slane %v3911, 2
      %v4008 = vrot.slane %v3912, 2
      %v4009 = vsel %vm2786, %v4007, %v4008
      %v4010 = vrot.slane %v3913, 2
      %v4011 = vsel %vm2786, %v4008, %v4010
      %v4012 = vrot.slane %v3914, 2
      %v4013 = vrot.slane %v3915, 2
      %v4014 = vsel %vm2786, %v4012, %v4013
      %v4015 = vrot.slane %v3916, 2
      %v4016 = vsel %vm2786, %v4013, %v4015
      %v4017 = vrot.slane %v3917, 2
      %v4018 = vrot.slane %v3918, 2
      %v4019 = vsel %vm2786, %v4017, %v4018
      %v4020 = vrot.slane %v3919, 2
      %v4021 = vsel %vm2786, %v4018, %v4020
      %v4022 = vrot.slane %v3920, 2
      %v4023 = vrot.slane %v3921, 2
      %v4024 = vsel %vm2786, %v4022, %v4023
      %v4025 = vrot.slane %v3922, 2
      %v4026 = vsel %vm2786, %v4023, %v4025
      %v4027 = vrot.slane %v3923, 2
      %v4028 = vrot.slane %v3924, 2
      %v4029 = vsel %vm2786, %v4027, %v4028
      %v4030 = vrot.slane %v3925, 2
      %v4031 = vsel %vm2786, %v4028, %v4030
      %v4032 = vrot.slane %v3926, 2
      %v4033 = vrot.slane %v3927, 2
      %v4034 = vsel %vm2786, %v4032, %v4033
      %v4035 = vrot.slane %v3928, 2
      %v4036 = vsel %vm2786, %v4033, %v4035
      %v4037 = vrot.slane %v3929, 2
      %v4038 = vrot.slane %v3930, 2
      %v4039 = vsel %vm2786, %v4037, %v4038
      %v4040 = vrot.slane %v3931, 2
      %v4041 = vsel %vm2786, %v4038, %v4040
      %v4042 = vrot.slane %v3932, 2
      %v4043 = vrot.slane %v3933, 2
      %v4044 = vsel %vm2786, %v4042, %v4043
      %v4045 = vrot.slane %v3934, 2
      %v4046 = vsel %vm2786, %v4043, %v4045
      %v4047 = vrot.slane %v3935, 2
      %v4048 = vrot.slane %v3936, 2
      %v4049 = vsel %vm2786, %v4047, %v4048
      %v4050 = vrot.slane %v3937, 2
      %v4051 = vsel %vm2786, %v4048, %v4050
      %v4052 = vrot.slane %v3938, 2
      %v4053 = vrot.slane %v3939, 2
      %v4054 = vsel %vm2786, %v4052, %v4053
      %v4055 = vrot.slane %v3940, 2
      %v4056 = vsel %vm2786, %v4053, %v4055
      %v4057 = vrot.slane %v3941, 2
      %v4058 = vrot.slane %v3942, 2
      %v4059 = vsel %vm2786, %v4057, %v4058
      %v4060 = vrot.slane %v3943, 2
      %v4061 = vsel %vm2786, %v4058, %v4060
      %v4062 = vrot.slane %v3944, 2
      %v4063 = vrot.slane %v3945, 2
      %v4064 = vsel %vm2786, %v4062, %v4063
      %v4065 = vrot.slane %v3946, 2
      %v4066 = vsel %vm2786, %v4063, %v4065
      %v4067 = vrot.slane %v3947, 2
      %v4068 = vrot.slane %v3948, 2
      %v4069 = vsel %vm2786, %v4067, %v4068
      %v4070 = vrot.slane %v3949, 2
      %v4071 = vsel %vm2786, %v4068, %v4070
      %v4072 = vrot.slane %v3950, 2
      %v4073 = vrot.slane %v3951, 2
      %v4074 = vsel %vm2786, %v4072, %v4073
      %v4075 = vrot.slane %v3952, 2
      %v4076 = vsel %vm2786, %v4073, %v4075
      %v4077 = vrot.slane %v3953, 2
      %v4078 = vrot.slane %v3954, 2
      %v4079 = vsel %vm2786, %v4077, %v4078
      %v4080 = vrot.slane %v3955, 2
      %v4081 = vsel %vm2786, %v4078, %v4080
      %v4082 = vrot.slane %v3956, 2
      %v4083 = vrot.slane %v3957, 2
      %v4084 = vsel %vm2786, %v4082, %v4083
      %v4085 = vrot.slane %v3958, 2
      %v4086 = vsel %vm2786, %v4083, %v4085
      %v4119 = vadd.f32 %v3875, %v4009
      %v4120 = vadd.f32 %v3876, %v4011
      %v4121 = vadd.f32 %v3877, %v4014
      %v4122 = vadd.f32 %v3878, %v4016
      %v4123 = vadd.f32 %v3879, %v4019
      %v4124 = vadd.f32 %v3880, %v4021
      %v4125 = vadd.f32 %v3881, %v4024
      %v4126 = vadd.f32 %v3882, %v4026
      %v4127 = vadd.f32 %v3883, %v4029
      %v4128 = vadd.f32 %v3884, %v4031
      %v4129 = vadd.f32 %v3885, %v4034
      %v4130 = vadd.f32 %v3886, %v4036
      %v4131 = vadd.f32 %v3887, %v4039
      %v4132 = vadd.f32 %v3888, %v4041
      %v4133 = vadd.f32 %v3889, %v4044
      %v4134 = vadd.f32 %v3890, %v4046
      %v4135 = vadd.f32 %v3891, %v4049
      %v4136 = vadd.f32 %v3892, %v4051
      %v4137 = vadd.f32 %v3893, %v4054
      %v4138 = vadd.f32 %v3894, %v4056
      %v4139 = vadd.f32 %v3895, %v4059
      %v4140 = vadd.f32 %v3896, %v4061
      %v4141 = vadd.f32 %v3897, %v4064
      %v4142 = vadd.f32 %v3898, %v4066
      %v4143 = vadd.f32 %v3899, %v4069
      %v4144 = vadd.f32 %v3900, %v4071
      %v4145 = vadd.f32 %v3901, %v4074
      %v4146 = vadd.f32 %v3902, %v4076
      %v4147 = vadd.f32 %v3903, %v4079
      %v4148 = vadd.f32 %v3904, %v4081
      %v4149 = vadd.f32 %v3905, %v4084
      %v4150 = vadd.f32 %v3906, %v4086
      %v4151 = vlaneseq
      %v4152 = vshrl.u32 %v4151, 7
      %v4153 = vsub.s32 4, %v4152
      %v4154 = vrot.slane %v431, %v4153
      %v4155 = vmul.f32 %v453, %v4154
      %v4156 = vmul.f32 %v454, %v4154
      %v4157 = vmul.f32 %v455, %v4154
      %v4158 = vmul.f32 %v456, %v4154
      %v4159 = vmul.f32 %v457, %v4154
      %v4160 = vmul.f32 %v458, %v4154
      %v4161 = vmul.f32 %v459, %v4154
      %v4162 = vmul.f32 %v460, %v4154
      %v4163 = vmul.f32 %v461, %v4154
      %v4164 = vmul.f32 %v462, %v4154
      %v4165 = vmul.f32 %v463, %v4154
      %v4166 = vmul.f32 %v464, %v4154
      %v4167 = vmul.f32 %v465, %v4154
      %v4168 = vmul.f32 %v466, %v4154
      %v4169 = vmul.f32 %v467, %v4154
      %v4170 = vmul.f32 %v468, %v4154
      %v4171 = vmul.f32 %v469, %v4154
      %v4172 = vmul.f32 %v470, %v4154
      %v4173 = vmul.f32 %v471, %v4154
      %v4174 = vmul.f32 %v472, %v4154
      %v4175 = vmul.f32 %v473, %v4154
      %v4176 = vmul.f32 %v474, %v4154
      %v4177 = vmul.f32 %v475, %v4154
      %v4178 = vmul.f32 %v476, %v4154
      %v4179 = vmul.f32 %v477, %v4154
      %v4180 = vmul.f32 %v478, %v4154
      %v4181 = vmul.f32 %v479, %v4154
      %v4182 = vmul.f32 %v480, %v4154
      %v4183 = vmul.f32 %v481, %v4154
      %v4184 = vmul.f32 %v482, %v4154
      %v4185 = vmul.f32 %v483, %v4154
      %v4186 = vmul.f32 %v484, %v4154
      %v4187 = vmul.f32 %v485, %v4154
      %v4188 = vmul.f32 %v486, %v4154
      %v4189 = vmul.f32 %v487, %v4154
      %v4190 = vmul.f32 %v488, %v4154
      %v4191 = vmul.f32 %v489, %v4154
      %v4192 = vmul.f32 %v490, %v4154
      %v4193 = vmul.f32 %v491, %v4154
      %v4194 = vmul.f32 %v492, %v4154
      %v4195 = vmul.f32 %v493, %v4154
      %v4196 = vmul.f32 %v494, %v4154
      %v4197 = vmul.f32 %v495, %v4154
      %v4198 = vmul.f32 %v496, %v4154
      %v4199 = vmul.f32 %v497, %v4154
      %v4200 = vmul.f32 %v498, %v4154
      %v4201 = vmul.f32 %v499, %v4154
      %v4202 = vmul.f32 %v500, %v4154
      %v4251 = vrot.slane %v4155, 2
      %v4252 = vrot.slane %v4156, 2
      %v4253 = vsel %vm2786, %v4251, %v4252
      %v4254 = vrot.slane %v4157, 2
      %v4255 = vsel %vm2786, %v4252, %v4254
      %v4256 = vrot.slane %v4158, 2
      %v4257 = vrot.slane %v4159, 2
      %v4258 = vsel %vm2786, %v4256, %v4257
      %v4259 = vrot.slane %v4160, 2
      %v4260 = vsel %vm2786, %v4257, %v4259
      %v4261 = vrot.slane %v4161, 2
      %v4262 = vrot.slane %v4162, 2
      %v4263 = vsel %vm2786, %v4261, %v4262
      %v4264 = vrot.slane %v4163, 2
      %v4265 = vsel %vm2786, %v4262, %v4264
      %v4266 = vrot.slane %v4164, 2
      %v4267 = vrot.slane %v4165, 2
      %v4268 = vsel %vm2786, %v4266, %v4267
      %v4269 = vrot.slane %v4166, 2
      %v4270 = vsel %vm2786, %v4267, %v4269
      %v4271 = vrot.slane %v4167, 2
      %v4272 = vrot.slane %v4168, 2
      %v4273 = vsel %vm2786, %v4271, %v4272
      %v4274 = vrot.slane %v4169, 2
      %v4275 = vsel %vm2786, %v4272, %v4274
      %v4276 = vrot.slane %v4170, 2
      %v4277 = vrot.slane %v4171, 2
      %v4278 = vsel %vm2786, %v4276, %v4277
      %v4279 = vrot.slane %v4172, 2
      %v4280 = vsel %vm2786, %v4277, %v4279
      %v4281 = vrot.slane %v4173, 2
      %v4282 = vrot.slane %v4174, 2
      %v4283 = vsel %vm2786, %v4281, %v4282
      %v4284 = vrot.slane %v4175, 2
      %v4285 = vsel %vm2786, %v4282, %v4284
      %v4286 = vrot.slane %v4176, 2
      %v4287 = vrot.slane %v4177, 2
      %v4288 = vsel %vm2786, %v4286, %v4287
      %v4289 = vrot.slane %v4178, 2
      %v4290 = vsel %vm2786, %v4287, %v4289
      %v4291 = vrot.slane %v4179, 2
      %v4292 = vrot.slane %v4180, 2
      %v4293 = vsel %vm2786, %v4291, %v4292
      %v4294 = vrot.slane %v4181, 2
      %v4295 = vsel %vm2786, %v4292, %v4294
      %v4296 = vrot.slane %v4182, 2
      %v4297 = vrot.slane %v4183, 2
      %v4298 = vsel %vm2786, %v4296, %v4297
      %v4299 = vrot.slane %v4184, 2
      %v4300 = vsel %vm2786, %v4297, %v4299
      %v4301 = vrot.slane %v4185, 2
      %v4302 = vrot.slane %v4186, 2
      %v4303 = vsel %vm2786, %v4301, %v4302
      %v4304 = vrot.slane %v4187, 2
      %v4305 = vsel %vm2786, %v4302, %v4304
      %v4306 = vrot.slane %v4188, 2
      %v4307 = vrot.slane %v4189, 2
      %v4308 = vsel %vm2786, %v4306, %v4307
      %v4309 = vrot.slane %v4190, 2
      %v4310 = vsel %vm2786, %v4307, %v4309
      %v4311 = vrot.slane %v4191, 2
      %v4312 = vrot.slane %v4192, 2
      %v4313 = vsel %vm2786, %v4311, %v4312
      %v4314 = vrot.slane %v4193, 2
      %v4315 = vsel %vm2786, %v4312, %v4314
      %v4316 = vrot.slane %v4194, 2
      %v4317 = vrot.slane %v4195, 2
      %v4318 = vsel %vm2786, %v4316, %v4317
      %v4319 = vrot.slane %v4196, 2
      %v4320 = vsel %vm2786, %v4317, %v4319
      %v4321 = vrot.slane %v4197, 2
      %v4322 = vrot.slane %v4198, 2
      %v4323 = vsel %vm2786, %v4321, %v4322
      %v4324 = vrot.slane %v4199, 2
      %v4325 = vsel %vm2786, %v4322, %v4324
      %v4326 = vrot.slane %v4200, 2
      %v4327 = vrot.slane %v4201, 2
      %v4328 = vsel %vm2786, %v4326, %v4327
      %v4329 = vrot.slane %v4202, 2
      %v4330 = vsel %vm2786, %v4327, %v4329
      %v4363 = vadd.f32 %v4119, %v4253
      %v4364 = vadd.f32 %v4120, %v4255
      %v4365 = vadd.f32 %v4121, %v4258
      %v4366 = vadd.f32 %v4122, %v4260
      %v4367 = vadd.f32 %v4123, %v4263
      %v4368 = vadd.f32 %v4124, %v4265
      %v4369 = vadd.f32 %v4125, %v4268
      %v4370 = vadd.f32 %v4126, %v4270
      %v4371 = vadd.f32 %v4127, %v4273
      %v4372 = vadd.f32 %v4128, %v4275
      %v4373 = vadd.f32 %v4129, %v4278
      %v4374 = vadd.f32 %v4130, %v4280
      %v4375 = vadd.f32 %v4131, %v4283
      %v4376 = vadd.f32 %v4132, %v4285
      %v4377 = vadd.f32 %v4133, %v4288
      %v4378 = vadd.f32 %v4134, %v4290
      %v4379 = vadd.f32 %v4135, %v4293
      %v4380 = vadd.f32 %v4136, %v4295
      %v4381 = vadd.f32 %v4137, %v4298
      %v4382 = vadd.f32 %v4138, %v4300
      %v4383 = vadd.f32 %v4139, %v4303
      %v4384 = vadd.f32 %v4140, %v4305
      %v4385 = vadd.f32 %v4141, %v4308
      %v4386 = vadd.f32 %v4142, %v4310
      %v4387 = vadd.f32 %v4143, %v4313
      %v4388 = vadd.f32 %v4144, %v4315
      %v4389 = vadd.f32 %v4145, %v4318
      %v4390 = vadd.f32 %v4146, %v4320
      %v4391 = vadd.f32 %v4147, %v4323
      %v4392 = vadd.f32 %v4148, %v4325
      %v4393 = vadd.f32 %v4149, %v4328
      %v4394 = vadd.f32 %v4150, %v4330
      %v4395 = vlaneseq
      %v4396 = vshrl.u32 %v4395, 7
      %v4397 = vsub.s32 3, %v4396
      %v4398 = vrot.slane %v426, %v4397
      %v4399 = vmul.f32 %v435, %v4398
      %v4400 = vmul.f32 %v436, %v4398
      %v4401 = vmul.f32 %v437, %v4398
      %v4402 = vmul.f32 %v438, %v4398
      %v4403 = vmul.f32 %v439, %v4398
      %v4404 = vmul.f32 %v440, %v4398
      %v4405 = vmul.f32 %v441, %v4398
      %v4406 = vmul.f32 %v442, %v4398
      %v4407 = vmul.f32 %v443, %v4398
      %v4408 = vmul.f32 %v444, %v4398
      %v4409 = vmul.f32 %v445, %v4398
      %v4410 = vmul.f32 %v446, %v4398
      %v4411 = vmul.f32 %v447, %v4398
      %v4412 = vmul.f32 %v448, %v4398
      %v4413 = vmul.f32 %v449, %v4398
      %v4414 = vmul.f32 %v450, %v4398
      %v4415 = vmul.f32 %v451, %v4398
      %v4416 = vmul.f32 %v452, %v4398
      %v4417 = vmul.f32 %v453, %v4398
      %v4418 = vmul.f32 %v454, %v4398
      %v4419 = vmul.f32 %v455, %v4398
      %v4420 = vmul.f32 %v456, %v4398
      %v4421 = vmul.f32 %v457, %v4398
      %v4422 = vmul.f32 %v458, %v4398
      %v4423 = vmul.f32 %v459, %v4398
      %v4424 = vmul.f32 %v460, %v4398
      %v4425 = vmul.f32 %v461, %v4398
      %v4426 = vmul.f32 %v462, %v4398
      %v4427 = vmul.f32 %v463, %v4398
      %v4428 = vmul.f32 %v464, %v4398
      %v4429 = vmul.f32 %v465, %v4398
      %v4430 = vmul.f32 %v466, %v4398
      %v4431 = vmul.f32 %v467, %v4398
      %v4432 = vmul.f32 %v468, %v4398
      %v4433 = vmul.f32 %v469, %v4398
      %v4434 = vmul.f32 %v470, %v4398
      %v4435 = vmul.f32 %v471, %v4398
      %v4436 = vmul.f32 %v472, %v4398
      %v4437 = vmul.f32 %v473, %v4398
      %v4438 = vmul.f32 %v474, %v4398
      %v4439 = vmul.f32 %v475, %v4398
      %v4440 = vmul.f32 %v476, %v4398
      %v4441 = vmul.f32 %v477, %v4398
      %v4442 = vmul.f32 %v478, %v4398
      %v4443 = vmul.f32 %v479, %v4398
      %v4444 = vmul.f32 %v480, %v4398
      %v4445 = vmul.f32 %v481, %v4398
      %v4446 = vmul.f32 %v482, %v4398
      %vm4495 = vcmask 1044480
      %v4496 = vrot.slane %v4399, 3
      %v4497 = vrot.slane %v4400, 3
      %v4498 = vsel %vm4495, %v4496, %v4497
      %v4499 = vrot.slane %v4401, 3
      %v4500 = vsel %vm4495, %v4497, %v4499
      %v4501 = vrot.slane %v4402, 3
      %v4502 = vrot.slane %v4403, 3
      %v4503 = vsel %vm4495, %v4501, %v4502
      %v4504 = vrot.slane %v4404, 3
      %v4505 = vsel %vm4495, %v4502, %v4504
      %v4506 = vrot.slane %v4405, 3
      %v4507 = vrot.slane %v4406, 3
      %v4508 = vsel %vm4495, %v4506, %v4507
      %v4509 = vrot.slane %v4407, 3
      %v4510 = vsel %vm4495, %v4507, %v4509
      %v4511 = vrot.slane %v4408, 3
      %v4512 = vrot.slane %v4409, 3
      %v4513 = vsel %vm4495, %v4511, %v4512
      %v4514 = vrot.slane %v4410, 3
      %v4515 = vsel %vm4495, %v4512, %v4514
      %v4516 = vrot.slane %v4411, 3
      %v4517 = vrot.slane %v4412, 3
      %v4518 = vsel %vm4495, %v4516, %v4517
      %v4519 = vrot.slane %v4413, 3
      %v4520 = vsel %vm4495, %v4517, %v4519
      %v4521 = vrot.slane %v4414, 3
      %v4522 = vrot.slane %v4415, 3
      %v4523 = vsel %vm4495, %v4521, %v4522
      %v4524 = vrot.slane %v4416, 3
      %v4525 = vsel %vm4495, %v4522, %v4524
      %v4526 = vrot.slane %v4417, 3
      %v4527 = vrot.slane %v4418, 3
      %v4528 = vsel %vm4495, %v4526, %v4527
      %v4529 = vrot.slane %v4419, 3
      %v4530 = vsel %vm4495, %v4527, %v4529
      %v4531 = vrot.slane %v4420, 3
      %v4532 = vrot.slane %v4421, 3
      %v4533 = vsel %vm4495, %v4531, %v4532
      %v4534 = vrot.slane %v4422, 3
      %v4535 = vsel %vm4495, %v4532, %v4534
      %v4536 = vrot.slane %v4423, 3
      %v4537 = vrot.slane %v4424, 3
      %v4538 = vsel %vm4495, %v4536, %v4537
      %v4539 = vrot.slane %v4425, 3
      %v4540 = vsel %vm4495, %v4537, %v4539
      %v4541 = vrot.slane %v4426, 3
      %v4542 = vrot.slane %v4427, 3
      %v4543 = vsel %vm4495, %v4541, %v4542
      %v4544 = vrot.slane %v4428, 3
      %v4545 = vsel %vm4495, %v4542, %v4544
      %v4546 = vrot.slane %v4429, 3
      %v4547 = vrot.slane %v4430, 3
      %v4548 = vsel %vm4495, %v4546, %v4547
      %v4549 = vrot.slane %v4431, 3
      %v4550 = vsel %vm4495, %v4547, %v4549
      %v4551 = vrot.slane %v4432, 3
      %v4552 = vrot.slane %v4433, 3
      %v4553 = vsel %vm4495, %v4551, %v4552
      %v4554 = vrot.slane %v4434, 3
      %v4555 = vsel %vm4495, %v4552, %v4554
      %v4556 = vrot.slane %v4435, 3
      %v4557 = vrot.slane %v4436, 3
      %v4558 = vsel %vm4495, %v4556, %v4557
      %v4559 = vrot.slane %v4437, 3
      %v4560 = vsel %vm4495, %v4557, %v4559
      %v4561 = vrot.slane %v4438, 3
      %v4562 = vrot.slane %v4439, 3
      %v4563 = vsel %vm4495, %v4561, %v4562
      %v4564 = vrot.slane %v4440, 3
      %v4565 = vsel %vm4495, %v4562, %v4564
      %v4566 = vrot.slane %v4441, 3
      %v4567 = vrot.slane %v4442, 3
      %v4568 = vsel %vm4495, %v4566, %v4567
      %v4569 = vrot.slane %v4443, 3
      %v4570 = vsel %vm4495, %v4567, %v4569
      %v4571 = vrot.slane %v4444, 3
      %v4572 = vrot.slane %v4445, 3
      %v4573 = vsel %vm4495, %v4571, %v4572
      %v4574 = vrot.slane %v4446, 3
      %v4575 = vsel %vm4495, %v4572, %v4574
      %v4608 = vadd.f32 %v4363, %v4498
      %v4609 = vadd.f32 %v4364, %v4500
      %v4610 = vadd.f32 %v4365, %v4503
      %v4611 = vadd.f32 %v4366, %v4505
      %v4612 = vadd.f32 %v4367, %v4508
      %v4613 = vadd.f32 %v4368, %v4510
      %v4614 = vadd.f32 %v4369, %v4513
      %v4615 = vadd.f32 %v4370, %v4515
      %v4616 = vadd.f32 %v4371, %v4518
      %v4617 = vadd.f32 %v4372, %v4520
      %v4618 = vadd.f32 %v4373, %v4523
      %v4619 = vadd.f32 %v4374, %v4525
      %v4620 = vadd.f32 %v4375, %v4528
      %v4621 = vadd.f32 %v4376, %v4530
      %v4622 = vadd.f32 %v4377, %v4533
      %v4623 = vadd.f32 %v4378, %v4535
      %v4624 = vadd.f32 %v4379, %v4538
      %v4625 = vadd.f32 %v4380, %v4540
      %v4626 = vadd.f32 %v4381, %v4543
      %v4627 = vadd.f32 %v4382, %v4545
      %v4628 = vadd.f32 %v4383, %v4548
      %v4629 = vadd.f32 %v4384, %v4550
      %v4630 = vadd.f32 %v4385, %v4553
      %v4631 = vadd.f32 %v4386, %v4555
      %v4632 = vadd.f32 %v4387, %v4558
      %v4633 = vadd.f32 %v4388, %v4560
      %v4634 = vadd.f32 %v4389, %v4563
      %v4635 = vadd.f32 %v4390, %v4565
      %v4636 = vadd.f32 %v4391, %v4568
      %v4637 = vadd.f32 %v4392, %v4570
      %v4638 = vadd.f32 %v4393, %v4573
      %v4639 = vadd.f32 %v4394, %v4575
      %v4640 = vlaneseq
      %v4641 = vshrl.u32 %v4640, 7
      %v4642 = vsub.s32 2, %v4641
      %v4643 = vrot.slane %v427, %v4642
      %v4644 = vmul.f32 %v438, %v4643
      %v4645 = vmul.f32 %v439, %v4643
      %v4646 = vmul.f32 %v440, %v4643
      %v4647 = vmul.f32 %v441, %v4643
      %v4648 = vmul.f32 %v442, %v4643
      %v4649 = vmul.f32 %v443, %v4643
      %v4650 = vmul.f32 %v444, %v4643
      %v4651 = vmul.f32 %v445, %v4643
      %v4652 = vmul.f32 %v446, %v4643
      %v4653 = vmul.f32 %v447, %v4643
      %v4654 = vmul.f32 %v448, %v4643
      %v4655 = vmul.f32 %v449, %v4643
      %v4656 = vmul.f32 %v450, %v4643
      %v4657 = vmul.f32 %v451, %v4643
      %v4658 = vmul.f32 %v452, %v4643
      %v4659 = vmul.f32 %v453, %v4643
      %v4660 = vmul.f32 %v454, %v4643
      %v4661 = vmul.f32 %v455, %v4643
      %v4662 = vmul.f32 %v456, %v4643
      %v4663 = vmul.f32 %v457, %v4643
      %v4664 = vmul.f32 %v458, %v4643
      %v4665 = vmul.f32 %v459, %v4643
      %v4666 = vmul.f32 %v460, %v4643
      %v4667 = vmul.f32 %v461, %v4643
      %v4668 = vmul.f32 %v462, %v4643
      %v4669 = vmul.f32 %v463, %v4643
      %v4670 = vmul.f32 %v464, %v4643
      %v4671 = vmul.f32 %v465, %v4643
      %v4672 = vmul.f32 %v466, %v4643
      %v4673 = vmul.f32 %v467, %v4643
      %v4674 = vmul.f32 %v468, %v4643
      %v4675 = vmul.f32 %v469, %v4643
      %v4676 = vmul.f32 %v470, %v4643
      %v4677 = vmul.f32 %v471, %v4643
      %v4678 = vmul.f32 %v472, %v4643
      %v4679 = vmul.f32 %v473, %v4643
      %v4680 = vmul.f32 %v474, %v4643
      %v4681 = vmul.f32 %v475, %v4643
      %v4682 = vmul.f32 %v476, %v4643
      %v4683 = vmul.f32 %v477, %v4643
      %v4684 = vmul.f32 %v478, %v4643
      %v4685 = vmul.f32 %v479, %v4643
      %v4686 = vmul.f32 %v480, %v4643
      %v4687 = vmul.f32 %v481, %v4643
      %v4688 = vmul.f32 %v482, %v4643
      %v4689 = vmul.f32 %v483, %v4643
      %v4690 = vmul.f32 %v484, %v4643
      %v4691 = vmul.f32 %v485, %v4643
      %v4740 = vrot.slane %v4644, 3
      %v4741 = vrot.slane %v4645, 3
      %v4742 = vsel %vm4495, %v4740, %v4741
      %v4743 = vrot.slane %v4646, 3
      %v4744 = vsel %vm4495, %v4741, %v4743
      %v4745 = vrot.slane %v4647, 3
      %v4746 = vrot.slane %v4648, 3
      %v4747 = vsel %vm4495, %v4745, %v4746
      %v4748 = vrot.slane %v4649, 3
      %v4749 = vsel %vm4495, %v4746, %v4748
      %v4750 = vrot.slane %v4650, 3
      %v4751 = vrot.slane %v4651, 3
      %v4752 = vsel %vm4495, %v4750, %v4751
      %v4753 = vrot.slane %v4652, 3
      %v4754 = vsel %vm4495, %v4751, %v4753
      %v4755 = vrot.slane %v4653, 3
      %v4756 = vrot.slane %v4654, 3
      %v4757 = vsel %vm4495, %v4755, %v4756
      %v4758 = vrot.slane %v4655, 3
      %v4759 = vsel %vm4495, %v4756, %v4758
      %v4760 = vrot.slane %v4656, 3
      %v4761 = vrot.slane %v4657, 3
      %v4762 = vsel %vm4495, %v4760, %v4761
      %v4763 = vrot.slane %v4658, 3
      %v4764 = vsel %vm4495, %v4761, %v4763
      %v4765 = vrot.slane %v4659, 3
      %v4766 = vrot.slane %v4660, 3
      %v4767 = vsel %vm4495, %v4765, %v4766
      %v4768 = vrot.slane %v4661, 3
      %v4769 = vsel %vm4495, %v4766, %v4768
      %v4770 = vrot.slane %v4662, 3
      %v4771 = vrot.slane %v4663, 3
      %v4772 = vsel %vm4495, %v4770, %v4771
      %v4773 = vrot.slane %v4664, 3
      %v4774 = vsel %vm4495, %v4771, %v4773
      %v4775 = vrot.slane %v4665, 3
      %v4776 = vrot.slane %v4666, 3
      %v4777 = vsel %vm4495, %v4775, %v4776
      %v4778 = vrot.slane %v4667, 3
      %v4779 = vsel %vm4495, %v4776, %v4778
      %v4780 = vrot.slane %v4668, 3
      %v4781 = vrot.slane %v4669, 3
      %v4782 = vsel %vm4495, %v4780, %v4781
      %v4783 = vrot.slane %v4670, 3
      %v4784 = vsel %vm4495, %v4781, %v4783
      %v4785 = vrot.slane %v4671, 3
      %v4786 = vrot.slane %v4672, 3
      %v4787 = vsel %vm4495, %v4785, %v4786
      %v4788 = vrot.slane %v4673, 3
      %v4789 = vsel %vm4495, %v4786, %v4788
      %v4790 = vrot.slane %v4674, 3
      %v4791 = vrot.slane %v4675, 3
      %v4792 = vsel %vm4495, %v4790, %v4791
      %v4793 = vrot.slane %v4676, 3
      %v4794 = vsel %vm4495, %v4791, %v4793
      %v4795 = vrot.slane %v4677, 3
      %v4796 = vrot.slane %v4678, 3
      %v4797 = vsel %vm4495, %v4795, %v4796
      %v4798 = vrot.slane %v4679, 3
      %v4799 = vsel %vm4495, %v4796, %v4798
      %v4800 = vrot.slane %v4680, 3
      %v4801 = vrot.slane %v4681, 3
      %v4802 = vsel %vm4495, %v4800, %v4801
      %v4803 = vrot.slane %v4682, 3
      %v4804 = vsel %vm4495, %v4801, %v4803
      %v4805 = vrot.slane %v4683, 3
      %v4806 = vrot.slane %v4684, 3
      %v4807 = vsel %vm4495, %v4805, %v4806
      %v4808 = vrot.slane %v4685, 3
      %v4809 = vsel %vm4495, %v4806, %v4808
      %v4810 = vrot.slane %v4686, 3
      %v4811 = vrot.slane %v4687, 3
      %v4812 = vsel %vm4495, %v4810, %v4811
      %v4813 = vrot.slane %v4688, 3
      %v4814 = vsel %vm4495, %v4811, %v4813
      %v4815 = vrot.slane %v4689, 3
      %v4816 = vrot.slane %v4690, 3
      %v4817 = vsel %vm4495, %v4815, %v4816
      %v4818 = vrot.slane %v4691, 3
      %v4819 = vsel %vm4495, %v4816, %v4818
      %v4852 = vadd.f32 %v4608, %v4742
      %v4853 = vadd.f32 %v4609, %v4744
      %v4854 = vadd.f32 %v4610, %v4747
      %v4855 = vadd.f32 %v4611, %v4749
      %v4856 = vadd.f32 %v4612, %v4752
      %v4857 = vadd.f32 %v4613, %v4754
      %v4858 = vadd.f32 %v4614, %v4757
      %v4859 = vadd.f32 %v4615, %v4759
      %v4860 = vadd.f32 %v4616, %v4762
      %v4861 = vadd.f32 %v4617, %v4764
      %v4862 = vadd.f32 %v4618, %v4767
      %v4863 = vadd.f32 %v4619, %v4769
      %v4864 = vadd.f32 %v4620, %v4772
      %v4865 = vadd.f32 %v4621, %v4774
      %v4866 = vadd.f32 %v4622, %v4777
      %v4867 = vadd.f32 %v4623, %v4779
      %v4868 = vadd.f32 %v4624, %v4782
      %v4869 = vadd.f32 %v4625, %v4784
      %v4870 = vadd.f32 %v4626, %v4787
      %v4871 = vadd.f32 %v4627, %v4789
      %v4872 = vadd.f32 %v4628, %v4792
      %v4873 = vadd.f32 %v4629, %v4794
      %v4874 = vadd.f32 %v4630, %v4797
      %v4875 = vadd.f32 %v4631, %v4799
      %v4876 = vadd.f32 %v4632, %v4802
      %v4877 = vadd.f32 %v4633, %v4804
      %v4878 = vadd.f32 %v4634, %v4807
      %v4879 = vadd.f32 %v4635, %v4809
      %v4880 = vadd.f32 %v4636, %v4812
      %v4881 = vadd.f32 %v4637, %v4814
      %v4882 = vadd.f32 %v4638, %v4817
      %v4883 = vadd.f32 %v4639, %v4819
      %v4884 = vlaneseq
      %v4885 = vshrl.u32 %v4884, 7
      %v4886 = vsub.s32 1, %v4885
      %v4887 = vrot.slane %v428, %v4886
      %v4888 = vmul.f32 %v441, %v4887
      %v4889 = vmul.f32 %v442, %v4887
      %v4890 = vmul.f32 %v443, %v4887
      %v4891 = vmul.f32 %v444, %v4887
      %v4892 = vmul.f32 %v445, %v4887
      %v4893 = vmul.f32 %v446, %v4887
      %v4894 = vmul.f32 %v447, %v4887
      %v4895 = vmul.f32 %v448, %v4887
      %v4896 = vmul.f32 %v449, %v4887
      %v4897 = vmul.f32 %v450, %v4887
      %v4898 = vmul.f32 %v451, %v4887
      %v4899 = vmul.f32 %v452, %v4887
      %v4900 = vmul.f32 %v453, %v4887
      %v4901 = vmul.f32 %v454, %v4887
      %v4902 = vmul.f32 %v455, %v4887
      %v4903 = vmul.f32 %v456, %v4887
      %v4904 = vmul.f32 %v457, %v4887
      %v4905 = vmul.f32 %v458, %v4887
      %v4906 = vmul.f32 %v459, %v4887
      %v4907 = vmul.f32 %v460, %v4887
      %v4908 = vmul.f32 %v461, %v4887
      %v4909 = vmul.f32 %v462, %v4887
      %v4910 = vmul.f32 %v463, %v4887
      %v4911 = vmul.f32 %v464, %v4887
      %v4912 = vmul.f32 %v465, %v4887
      %v4913 = vmul.f32 %v466, %v4887
      %v4914 = vmul.f32 %v467, %v4887
      %v4915 = vmul.f32 %v468, %v4887
      %v4916 = vmul.f32 %v469, %v4887
      %v4917 = vmul.f32 %v470, %v4887
      %v4918 = vmul.f32 %v471, %v4887
      %v4919 = vmul.f32 %v472, %v4887
      %v4920 = vmul.f32 %v473, %v4887
      %v4921 = vmul.f32 %v474, %v4887
      %v4922 = vmul.f32 %v475, %v4887
      %v4923 = vmul.f32 %v476, %v4887
      %v4924 = vmul.f32 %v477, %v4887
      %v4925 = vmul.f32 %v478, %v4887
      %v4926 = vmul.f32 %v479, %v4887
      %v4927 = vmul.f32 %v480, %v4887
      %v4928 = vmul.f32 %v481, %v4887
      %v4929 = vmul.f32 %v482, %v4887
      %v4930 = vmul.f32 %v483, %v4887
      %v4931 = vmul.f32 %v484, %v4887
      %v4932 = vmul.f32 %v485, %v4887
      %v4933 = vmul.f32 %v486, %v4887
      %v4934 = vmul.f32 %v487, %v4887
      %v4935 = vmul.f32 %v488, %v4887
      %v4984 = vrot.slane %v4888, 3
      %v4985 = vrot.slane %v4889, 3
      %v4986 = vsel %vm4495, %v4984, %v4985
      %v4987 = vrot.slane %v4890, 3
      %v4988 = vsel %vm4495, %v4985, %v4987
      %v4989 = vrot.slane %v4891, 3
      %v4990 = vrot.slane %v4892, 3
      %v4991 = vsel %vm4495, %v4989, %v4990
      %v4992 = vrot.slane %v4893, 3
      %v4993 = vsel %vm4495, %v4990, %v4992
      %v4994 = vrot.slane %v4894, 3
      %v4995 = vrot.slane %v4895, 3
      %v4996 = vsel %vm4495, %v4994, %v4995
      %v4997 = vrot.slane %v4896, 3
      %v4998 = vsel %vm4495, %v4995, %v4997
      %v4999 = vrot.slane %v4897, 3
      %v5000 = vrot.slane %v4898, 3
      %v5001 = vsel %vm4495, %v4999, %v5000
      %v5002 = vrot.slane %v4899, 3
      %v5003 = vsel %vm4495, %v5000, %v5002
      %v5004 = vrot.slane %v4900, 3
      %v5005 = vrot.slane %v4901, 3
      %v5006 = vsel %vm4495, %v5004, %v5005
      %v5007 = vrot.slane %v4902, 3
      %v5008 = vsel %vm4495, %v5005, %v5007
      %v5009 = vrot.slane %v4903, 3
      %v5010 = vrot.slane %v4904, 3
      %v5011 = vsel %vm4495, %v5009, %v5010
      %v5012 = vrot.slane %v4905, 3
      %v5013 = vsel %vm4495, %v5010, %v5012
      %v5014 = vrot.slane %v4906, 3
      %v5015 = vrot.slane %v4907, 3
      %v5016 = vsel %vm4495, %v5014, %v5015
      %v5017 = vrot.slane %v4908, 3
      %v5018 = vsel %vm4495, %v5015, %v5017
      %v5019 = vrot.slane %v4909, 3
      %v5020 = vrot.slane %v4910, 3
      %v5021 = vsel %vm4495, %v5019, %v5020
      %v5022 = vrot.slane %v4911, 3
      %v5023 = vsel %vm4495, %v5020, %v5022
      %v5024 = vrot.slane %v4912, 3
      %v5025 = vrot.slane %v4913, 3
      %v5026 = vsel %vm4495, %v5024, %v5025
      %v5027 = vrot.slane %v4914, 3
      %v5028 = vsel %vm4495, %v5025, %v5027
      %v5029 = vrot.slane %v4915, 3
      %v5030 = vrot.slane %v4916, 3
      %v5031 = vsel %vm4495, %v5029, %v5030
      %v5032 = vrot.slane %v4917, 3
      %v5033 = vsel %vm4495, %v5030, %v5032
      %v5034 = vrot.slane %v4918, 3
      %v5035 = vrot.slane %v4919, 3
      %v5036 = vsel %vm4495, %v5034, %v5035
      %v5037 = vrot.slane %v4920, 3
      %v5038 = vsel %vm4495, %v5035, %v5037
      %v5039 = vrot.slane %v4921, 3
      %v5040 = vrot.slane %v4922, 3
      %v5041 = vsel %vm4495, %v5039, %v5040
      %v5042 = vrot.slane %v4923, 3
      %v5043 = vsel %vm4495, %v5040, %v5042
      %v5044 = vrot.slane %v4924, 3
      %v5045 = vrot.slane %v4925, 3
      %v5046 = vsel %vm4495, %v5044, %v5045
      %v5047 = vrot.slane %v4926, 3
      %v5048 = vsel %vm4495, %v5045, %v5047
      %v5049 = vrot.slane %v4927, 3
      %v5050 = vrot.slane %v4928, 3
      %v5051 = vsel %vm4495, %v5049, %v5050
      %v5052 = vrot.slane %v4929, 3
      %v5053 = vsel %vm4495, %v5050, %v5052
      %v5054 = vrot.slane %v4930, 3
      %v5055 = vrot.slane %v4931, 3
      %v5056 = vsel %vm4495, %v5054, %v5055
      %v5057 = vrot.slane %v4932, 3
      %v5058 = vsel %vm4495, %v5055, %v5057
      %v5059 = vrot.slane %v4933, 3
      %v5060 = vrot.slane %v4934, 3
      %v5061 = vsel %vm4495, %v5059, %v5060
      %v5062 = vrot.slane %v4935, 3
      %v5063 = vsel %vm4495, %v5060, %v5062
      %v5096 = vadd.f32 %v4852, %v4986
      %v5097 = vadd.f32 %v4853, %v4988
      %v5098 = vadd.f32 %v4854, %v4991
      %v5099 = vadd.f32 %v4855, %v4993
      %v5100 = vadd.f32 %v4856, %v4996
      %v5101 = vadd.f32 %v4857, %v4998
      %v5102 = vadd.f32 %v4858, %v5001
      %v5103 = vadd.f32 %v4859, %v5003
      %v5104 = vadd.f32 %v4860, %v5006
      %v5105 = vadd.f32 %v4861, %v5008
      %v5106 = vadd.f32 %v4862, %v5011
      %v5107 = vadd.f32 %v4863, %v5013
      %v5108 = vadd.f32 %v4864, %v5016
      %v5109 = vadd.f32 %v4865, %v5018
      %v5110 = vadd.f32 %v4866, %v5021
      %v5111 = vadd.f32 %v4867, %v5023
      %v5112 = vadd.f32 %v4868, %v5026
      %v5113 = vadd.f32 %v4869, %v5028
      %v5114 = vadd.f32 %v4870, %v5031
      %v5115 = vadd.f32 %v4871, %v5033
      %v5116 = vadd.f32 %v4872, %v5036
      %v5117 = vadd.f32 %v4873, %v5038
      %v5118 = vadd.f32 %v4874, %v5041
      %v5119 = vadd.f32 %v4875, %v5043
      %v5120 = vadd.f32 %v4876, %v5046
      %v5121 = vadd.f32 %v4877, %v5048
      %v5122 = vadd.f32 %v4878, %v5051
      %v5123 = vadd.f32 %v4879, %v5053
      %v5124 = vadd.f32 %v4880, %v5056
      %v5125 = vadd.f32 %v4881, %v5058
      %v5126 = vadd.f32 %v4882, %v5061
      %v5127 = vadd.f32 %v4883, %v5063
      %v5128 = vlaneseq
      %v5129 = vshrl.u32 %v5128, 7
      %v5130 = vsub.s32 0, %v5129
      %v5131 = vrot.slane %v429, %v5130
      %v5132 = vmul.f32 %v444, %v5131
      %v5133 = vmul.f32 %v445, %v5131
      %v5134 = vmul.f32 %v446, %v5131
      %v5135 = vmul.f32 %v447, %v5131
      %v5136 = vmul.f32 %v448, %v5131
      %v5137 = vmul.f32 %v449, %v5131
      %v5138 = vmul.f32 %v450, %v5131
      %v5139 = vmul.f32 %v451, %v5131
      %v5140 = vmul.f32 %v452, %v5131
      %v5141 = vmul.f32 %v453, %v5131
      %v5142 = vmul.f32 %v454, %v5131
      %v5143 = vmul.f32 %v455, %v5131
      %v5144 = vmul.f32 %v456, %v5131
      %v5145 = vmul.f32 %v457, %v5131
      %v5146 = vmul.f32 %v458, %v5131
      %v5147 = vmul.f32 %v459, %v5131
      %v5148 = vmul.f32 %v460, %v5131
      %v5149 = vmul.f32 %v461, %v5131
      %v5150 = vmul.f32 %v462, %v5131
      %v5151 = vmul.f32 %v463, %v5131
      %v5152 = vmul.f32 %v464, %v5131
      %v5153 = vmul.f32 %v465, %v5131
      %v5154 = vmul.f32 %v466, %v5131
      %v5155 = vmul.f32 %v467, %v5131
      %v5156 = vmul.f32 %v468, %v5131
      %v5157 = vmul.f32 %v469, %v5131
      %v5158 = vmul.f32 %v470, %v5131
      %v5159 = vmul.f32 %v471, %v5131
      %v5160 = vmul.f32 %v472, %v5131
      %v5161 = vmul.f32 %v473, %v5131
      %v5162 = vmul.f32 %v474, %v5131
      %v5163 = vmul.f32 %v475, %v5131
      %v5164 = vmul.f32 %v476, %v5131
      %v5165 = vmul.f32 %v477, %v5131
      %v5166 = vmul.f32 %v478, %v5131
      %v5167 = vmul.f32 %v479, %v5131
      %v5168 = vmul.f32 %v480, %v5131
      %v5169 = vmul.f32 %v481, %v5131
      %v5170 = vmul.f32 %v482, %v5131
      %v5171 = vmul.f32 %v483, %v5131
      %v5172 = vmul.f32 %v484, %v5131
      %v5173 = vmul.f32 %v485, %v5131
      %v5174 = vmul.f32 %v486, %v5131
      %v5175 = vmul.f32 %v487, %v5131
      %v5176 = vmul.f32 %v488, %v5131
      %v5177 = vmul.f32 %v489, %v5131
      %v5178 = vmul.f32 %v490, %v5131
      %v5179 = vmul.f32 %v491, %v5131
      %v5228 = vrot.slane %v5132, 3
      %v5229 = vrot.slane %v5133, 3
      %v5230 = vsel %vm4495, %v5228, %v5229
      %v5231 = vrot.slane %v5134, 3
      %v5232 = vsel %vm4495, %v5229, %v5231
      %v5233 = vrot.slane %v5135, 3
      %v5234 = vrot.slane %v5136, 3
      %v5235 = vsel %vm4495, %v5233, %v5234
      %v5236 = vrot.slane %v5137, 3
      %v5237 = vsel %vm4495, %v5234, %v5236
      %v5238 = vrot.slane %v5138, 3
      %v5239 = vrot.slane %v5139, 3
      %v5240 = vsel %vm4495, %v5238, %v5239
      %v5241 = vrot.slane %v5140, 3
      %v5242 = vsel %vm4495, %v5239, %v5241
      %v5243 = vrot.slane %v5141, 3
      %v5244 = vrot.slane %v5142, 3
      %v5245 = vsel %vm4495, %v5243, %v5244
      %v5246 = vrot.slane %v5143, 3
      %v5247 = vsel %vm4495, %v5244, %v5246
      %v5248 = vrot.slane %v5144, 3
      %v5249 = vrot.slane %v5145, 3
      %v5250 = vsel %vm4495, %v5248, %v5249
      %v5251 = vrot.slane %v5146, 3
      %v5252 = vsel %vm4495, %v5249, %v5251
      %v5253 = vrot.slane %v5147, 3
      %v5254 = vrot.slane %v5148, 3
      %v5255 = vsel %vm4495, %v5253, %v5254
      %v5256 = vrot.slane %v5149, 3
      %v5257 = vsel %vm4495, %v5254, %v5256
      %v5258 = vrot.slane %v5150, 3
      %v5259 = vrot.slane %v5151, 3
      %v5260 = vsel %vm4495, %v5258, %v5259
      %v5261 = vrot.slane %v5152, 3
      %v5262 = vsel %vm4495, %v5259, %v5261
      %v5263 = vrot.slane %v5153, 3
      %v5264 = vrot.slane %v5154, 3
      %v5265 = vsel %vm4495, %v5263, %v5264
      %v5266 = vrot.slane %v5155, 3
      %v5267 = vsel %vm4495, %v5264, %v5266
      %v5268 = vrot.slane %v5156, 3
      %v5269 = vrot.slane %v5157, 3
      %v5270 = vsel %vm4495, %v5268, %v5269
      %v5271 = vrot.slane %v5158, 3
      %v5272 = vsel %vm4495, %v5269, %v5271
      %v5273 = vrot.slane %v5159, 3
      %v5274 = vrot.slane %v5160, 3
      %v5275 = vsel %vm4495, %v5273, %v5274
      %v5276 = vrot.slane %v5161, 3
      %v5277 = vsel %vm4495, %v5274, %v5276
      %v5278 = vrot.slane %v5162, 3
      %v5279 = vrot.slane %v5163, 3
      %v5280 = vsel %vm4495, %v5278, %v5279
      %v5281 = vrot.slane %v5164, 3
      %v5282 = vsel %vm4495, %v5279, %v5281
      %v5283 = vrot.slane %v5165, 3
      %v5284 = vrot.slane %v5166, 3
      %v5285 = vsel %vm4495, %v5283, %v5284
      %v5286 = vrot.slane %v5167, 3
      %v5287 = vsel %vm4495, %v5284, %v5286
      %v5288 = vrot.slane %v5168, 3
      %v5289 = vrot.slane %v5169, 3
      %v5290 = vsel %vm4495, %v5288, %v5289
      %v5291 = vrot.slane %v5170, 3
      %v5292 = vsel %vm4495, %v5289, %v5291
      %v5293 = vrot.slane %v5171, 3
      %v5294 = vrot.slane %v5172, 3
      %v5295 = vsel %vm4495, %v5293, %v5294
      %v5296 = vrot.slane %v5173, 3
      %v5297 = vsel %vm4495, %v5294, %v5296
      %v5298 = vrot.slane %v5174, 3
      %v5299 = vrot.slane %v5175, 3
      %v5300 = vsel %vm4495, %v5298, %v5299
      %v5301 = vrot.slane %v5176, 3
      %v5302 = vsel %vm4495, %v5299, %v5301
      %v5303 = vrot.slane %v5177, 3
      %v5304 = vrot.slane %v5178, 3
      %v5305 = vsel %vm4495, %v5303, %v5304
      %v5306 = vrot.slane %v5179, 3
      %v5307 = vsel %vm4495, %v5304, %v5306
      %v5340 = vadd.f32 %v5096, %v5230
      %v5341 = vadd.f32 %v5097, %v5232
      %v5342 = vadd.f32 %v5098, %v5235
      %v5343 = vadd.f32 %v5099, %v5237
      %v5344 = vadd.f32 %v5100, %v5240
      %v5345 = vadd.f32 %v5101, %v5242
      %v5346 = vadd.f32 %v5102, %v5245
      %v5347 = vadd.f32 %v5103, %v5247
      %v5348 = vadd.f32 %v5104, %v5250
      %v5349 = vadd.f32 %v5105, %v5252
      %v5350 = vadd.f32 %v5106, %v5255
      %v5351 = vadd.f32 %v5107, %v5257
      %v5352 = vadd.f32 %v5108, %v5260
      %v5353 = vadd.f32 %v5109, %v5262
      %v5354 = vadd.f32 %v5110, %v5265
      %v5355 = vadd.f32 %v5111, %v5267
      %v5356 = vadd.f32 %v5112, %v5270
      %v5357 = vadd.f32 %v5113, %v5272
      %v5358 = vadd.f32 %v5114, %v5275
      %v5359 = vadd.f32 %v5115, %v5277
      %v5360 = vadd.f32 %v5116, %v5280
      %v5361 = vadd.f32 %v5117, %v5282
      %v5362 = vadd.f32 %v5118, %v5285
      %v5363 = vadd.f32 %v5119, %v5287
      %v5364 = vadd.f32 %v5120, %v5290
      %v5365 = vadd.f32 %v5121, %v5292
      %v5366 = vadd.f32 %v5122, %v5295
      %v5367 = vadd.f32 %v5123, %v5297
      %v5368 = vadd.f32 %v5124, %v5300
      %v5369 = vadd.f32 %v5125, %v5302
      %v5370 = vadd.f32 %v5126, %v5305
      %v5371 = vadd.f32 %v5127, %v5307
      %v5372 = vlaneseq
      %v5373 = vshrl.u32 %v5372, 7
      %v5374 = vsub.s32 7, %v5373
      %v5375 = vrot.slane %v429, %v5374
      %v5376 = vmul.f32 %v447, %v5375
      %v5377 = vmul.f32 %v448, %v5375
      %v5378 = vmul.f32 %v449, %v5375
      %v5379 = vmul.f32 %v450, %v5375
      %v5380 = vmul.f32 %v451, %v5375
      %v5381 = vmul.f32 %v452, %v5375
      %v5382 = vmul.f32 %v453, %v5375
      %v5383 = vmul.f32 %v454, %v5375
      %v5384 = vmul.f32 %v455, %v5375
      %v5385 = vmul.f32 %v456, %v5375
      %v5386 = vmul.f32 %v457, %v5375
      %v5387 = vmul.f32 %v458, %v5375
      %v5388 = vmul.f32 %v459, %v5375
      %v5389 = vmul.f32 %v460, %v5375
      %v5390 = vmul.f32 %v461, %v5375
      %v5391 = vmul.f32 %v462, %v5375
      %v5392 = vmul.f32 %v463, %v5375
      %v5393 = vmul.f32 %v464, %v5375
      %v5394 = vmul.f32 %v465, %v5375
      %v5395 = vmul.f32 %v466, %v5375
      %v5396 = vmul.f32 %v467, %v5375
      %v5397 = vmul.f32 %v468, %v5375
      %v5398 = vmul.f32 %v469, %v5375
      %v5399 = vmul.f32 %v470, %v5375
      %v5400 = vmul.f32 %v471, %v5375
      %v5401 = vmul.f32 %v472, %v5375
      %v5402 = vmul.f32 %v473, %v5375
      %v5403 = vmul.f32 %v474, %v5375
      %v5404 = vmul.f32 %v475, %v5375
      %v5405 = vmul.f32 %v476, %v5375
      %v5406 = vmul.f32 %v477, %v5375
      %v5407 = vmul.f32 %v478, %v5375
      %v5408 = vmul.f32 %v479, %v5375
      %v5409 = vmul.f32 %v480, %v5375
      %v5410 = vmul.f32 %v481, %v5375
      %v5411 = vmul.f32 %v482, %v5375
      %v5412 = vmul.f32 %v483, %v5375
      %v5413 = vmul.f32 %v484, %v5375
      %v5414 = vmul.f32 %v485, %v5375
      %v5415 = vmul.f32 %v486, %v5375
      %v5416 = vmul.f32 %v487, %v5375
      %v5417 = vmul.f32 %v488, %v5375
      %v5418 = vmul.f32 %v489, %v5375
      %v5419 = vmul.f32 %v490, %v5375
      %v5420 = vmul.f32 %v491, %v5375
      %v5421 = vmul.f32 %v492, %v5375
      %v5422 = vmul.f32 %v493, %v5375
      %v5423 = vmul.f32 %v494, %v5375
      %v5472 = vrot.slane %v5376, 3
      %v5473 = vrot.slane %v5377, 3
      %v5474 = vsel %vm4495, %v5472, %v5473
      %v5475 = vrot.slane %v5378, 3
      %v5476 = vsel %vm4495, %v5473, %v5475
      %v5477 = vrot.slane %v5379, 3
      %v5478 = vrot.slane %v5380, 3
      %v5479 = vsel %vm4495, %v5477, %v5478
      %v5480 = vrot.slane %v5381, 3
      %v5481 = vsel %vm4495, %v5478, %v5480
      %v5482 = vrot.slane %v5382, 3
      %v5483 = vrot.slane %v5383, 3
      %v5484 = vsel %vm4495, %v5482, %v5483
      %v5485 = vrot.slane %v5384, 3
      %v5486 = vsel %vm4495, %v5483, %v5485
      %v5487 = vrot.slane %v5385, 3
      %v5488 = vrot.slane %v5386, 3
      %v5489 = vsel %vm4495, %v5487, %v5488
      %v5490 = vrot.slane %v5387, 3
      %v5491 = vsel %vm4495, %v5488, %v5490
      %v5492 = vrot.slane %v5388, 3
      %v5493 = vrot.slane %v5389, 3
      %v5494 = vsel %vm4495, %v5492, %v5493
      %v5495 = vrot.slane %v5390, 3
      %v5496 = vsel %vm4495, %v5493, %v5495
      %v5497 = vrot.slane %v5391, 3
      %v5498 = vrot.slane %v5392, 3
      %v5499 = vsel %vm4495, %v5497, %v5498
      %v5500 = vrot.slane %v5393, 3
      %v5501 = vsel %vm4495, %v5498, %v5500
      %v5502 = vrot.slane %v5394, 3
      %v5503 = vrot.slane %v5395, 3
      %v5504 = vsel %vm4495, %v5502, %v5503
      %v5505 = vrot.slane %v5396, 3
      %v5506 = vsel %vm4495, %v5503, %v5505
      %v5507 = vrot.slane %v5397, 3
      %v5508 = vrot.slane %v5398, 3
      %v5509 = vsel %vm4495, %v5507, %v5508
      %v5510 = vrot.slane %v5399, 3
      %v5511 = vsel %vm4495, %v5508, %v5510
      %v5512 = vrot.slane %v5400, 3
      %v5513 = vrot.slane %v5401, 3
      %v5514 = vsel %vm4495, %v5512, %v5513
      %v5515 = vrot.slane %v5402, 3
      %v5516 = vsel %vm4495, %v5513, %v5515
      %v5517 = vrot.slane %v5403, 3
      %v5518 = vrot.slane %v5404, 3
      %v5519 = vsel %vm4495, %v5517, %v5518
      %v5520 = vrot.slane %v5405, 3
      %v5521 = vsel %vm4495, %v5518, %v5520
      %v5522 = vrot.slane %v5406, 3
      %v5523 = vrot.slane %v5407, 3
      %v5524 = vsel %vm4495, %v5522, %v5523
      %v5525 = vrot.slane %v5408, 3
      %v5526 = vsel %vm4495, %v5523, %v5525
      %v5527 = vrot.slane %v5409, 3
      %v5528 = vrot.slane %v5410, 3
      %v5529 = vsel %vm4495, %v5527, %v5528
      %v5530 = vrot.slane %v5411, 3
      %v5531 = vsel %vm4495, %v5528, %v5530
      %v5532 = vrot.slane %v5412, 3
      %v5533 = vrot.slane %v5413, 3
      %v5534 = vsel %vm4495, %v5532, %v5533
      %v5535 = vrot.slane %v5414, 3
      %v5536 = vsel %vm4495, %v5533, %v5535
      %v5537 = vrot.slane %v5415, 3
      %v5538 = vrot.slane %v5416, 3
      %v5539 = vsel %vm4495, %v5537, %v5538
      %v5540 = vrot.slane %v5417, 3
      %v5541 = vsel %vm4495, %v5538, %v5540
      %v5542 = vrot.slane %v5418, 3
      %v5543 = vrot.slane %v5419, 3
      %v5544 = vsel %vm4495, %v5542, %v5543
      %v5545 = vrot.slane %v5420, 3
      %v5546 = vsel %vm4495, %v5543, %v5545
      %v5547 = vrot.slane %v5421, 3
      %v5548 = vrot.slane %v5422, 3
      %v5549 = vsel %vm4495, %v5547, %v5548
      %v5550 = vrot.slane %v5423, 3
      %v5551 = vsel %vm4495, %v5548, %v5550
      %v5584 = vadd.f32 %v5340, %v5474
      %v5585 = vadd.f32 %v5341, %v5476
      %v5586 = vadd.f32 %v5342, %v5479
      %v5587 = vadd.f32 %v5343, %v5481
      %v5588 = vadd.f32 %v5344, %v5484
      %v5589 = vadd.f32 %v5345, %v5486
      %v5590 = vadd.f32 %v5346, %v5489
      %v5591 = vadd.f32 %v5347, %v5491
      %v5592 = vadd.f32 %v5348, %v5494
      %v5593 = vadd.f32 %v5349, %v5496
      %v5594 = vadd.f32 %v5350, %v5499
      %v5595 = vadd.f32 %v5351, %v5501
      %v5596 = vadd.f32 %v5352, %v5504
      %v5597 = vadd.f32 %v5353, %v5506
      %v5598 = vadd.f32 %v5354, %v5509
      %v5599 = vadd.f32 %v5355, %v5511
      %v5600 = vadd.f32 %v5356, %v5514
      %v5601 = vadd.f32 %v5357, %v5516
      %v5602 = vadd.f32 %v5358, %v5519
      %v5603 = vadd.f32 %v5359, %v5521
      %v5604 = vadd.f32 %v5360, %v5524
      %v5605 = vadd.f32 %v5361, %v5526
      %v5606 = vadd.f32 %v5362, %v5529
      %v5607 = vadd.f32 %v5363, %v5531
      %v5608 = vadd.f32 %v5364, %v5534
      %v5609 = vadd.f32 %v5365, %v5536
      %v5610 = vadd.f32 %v5366, %v5539
      %v5611 = vadd.f32 %v5367, %v5541
      %v5612 = vadd.f32 %v5368, %v5544
      %v5613 = vadd.f32 %v5369, %v5546
      %v5614 = vadd.f32 %v5370, %v5549
      %v5615 = vadd.f32 %v5371, %v5551
      %v5616 = vlaneseq
      %v5617 = vshrl.u32 %v5616, 7
      %v5618 = vsub.s32 6, %v5617
      %v5619 = vrot.slane %v430, %v5618
      %v5620 = vmul.f32 %v450, %v5619
      %v5621 = vmul.f32 %v451, %v5619
      %v5622 = vmul.f32 %v452, %v5619
      %v5623 = vmul.f32 %v453, %v5619
      %v5624 = vmul.f32 %v454, %v5619
      %v5625 = vmul.f32 %v455, %v5619
      %v5626 = vmul.f32 %v456, %v5619
      %v5627 = vmul.f32 %v457, %v5619
      %v5628 = vmul.f32 %v458, %v5619
      %v5629 = vmul.f32 %v459, %v5619
      %v5630 = vmul.f32 %v460, %v5619
      %v5631 = vmul.f32 %v461, %v5619
      %v5632 = vmul.f32 %v462, %v5619
      %v5633 = vmul.f32 %v463, %v5619
      %v5634 = vmul.f32 %v464, %v5619
      %v5635 = vmul.f32 %v465, %v5619
      %v5636 = vmul.f32 %v466, %v5619
      %v5637 = vmul.f32 %v467, %v5619
      %v5638 = vmul.f32 %v468, %v5619
      %v5639 = vmul.f32 %v469, %v5619
      %v5640 = vmul.f32 %v470, %v5619
      %v5641 = vmul.f32 %v471, %v5619
      %v5642 = vmul.f32 %v472, %v5619
      %v5643 = vmul.f32 %v473, %v5619
      %v5644 = vmul.f32 %v474, %v5619
      %v5645 = vmul.f32 %v475, %v5619
      %v5646 = vmul.f32 %v476, %v5619
      %v5647 = vmul.f32 %v477, %v5619
      %v5648 = vmul.f32 %v478, %v5619
      %v5649 = vmul.f32 %v479, %v5619
      %v5650 = vmul.f32 %v480, %v5619
      %v5651 = vmul.f32 %v481, %v5619
      %v5652 = vmul.f32 %v482, %v5619
      %v5653 = vmul.f32 %v483, %v5619
      %v5654 = vmul.f32 %v484, %v5619
      %v5655 = vmul.f32 %v485, %v5619
      %v5656 = vmul.f32 %v486, %v5619
      %v5657 = vmul.f32 %v487, %v5619
      %v5658 = vmul.f32 %v488, %v5619
      %v5659 = vmul.f32 %v489, %v5619
      %v5660 = vmul.f32 %v490, %v5619
      %v5661 = vmul.f32 %v491, %v5619
      %v5662 = vmul.f32 %v492, %v5619
      %v5663 = vmul.f32 %v493, %v5619
      %v5664 = vmul.f32 %v494, %v5619
      %v5665 = vmul.f32 %v495, %v5619
      %v5666 = vmul.f32 %v496, %v5619
      %v5667 = vmul.f32 %v497, %v5619
      %v5716 = vrot.slane %v5620, 3
      %v5717 = vrot.slane %v5621, 3
      %v5718 = vsel %vm4495, %v5716, %v5717
      %v5719 = vrot.slane %v5622, 3
      %v5720 = vsel %vm4495, %v5717, %v5719
      %v5721 = vrot.slane %v5623, 3
      %v5722 = vrot.slane %v5624, 3
      %v5723 = vsel %vm4495, %v5721, %v5722
      %v5724 = vrot.slane %v5625, 3
      %v5725 = vsel %vm4495, %v5722, %v5724
      %v5726 = vrot.slane %v5626, 3
      %v5727 = vrot.slane %v5627, 3
      %v5728 = vsel %vm4495, %v5726, %v5727
      %v5729 = vrot.slane %v5628, 3
      %v5730 = vsel %vm4495, %v5727, %v5729
      %v5731 = vrot.slane %v5629, 3
      %v5732 = vrot.slane %v5630, 3
      %v5733 = vsel %vm4495, %v5731, %v5732
      %v5734 = vrot.slane %v5631, 3
      %v5735 = vsel %vm4495, %v5732, %v5734
      %v5736 = vrot.slane %v5632, 3
      %v5737 = vrot.slane %v5633, 3
      %v5738 = vsel %vm4495, %v5736, %v5737
      %v5739 = vrot.slane %v5634, 3
      %v5740 = vsel %vm4495, %v5737, %v5739
      %v5741 = vrot.slane %v5635, 3
      %v5742 = vrot.slane %v5636, 3
      %v5743 = vsel %vm4495, %v5741, %v5742
      %v5744 = vrot.slane %v5637, 3
      %v5745 = vsel %vm4495, %v5742, %v5744
      %v5746 = vrot.slane %v5638, 3
      %v5747 = vrot.slane %v5639, 3
      %v5748 = vsel %vm4495, %v5746, %v5747
      %v5749 = vrot.slane %v5640, 3
      %v5750 = vsel %vm4495, %v5747, %v5749
      %v5751 = vrot.slane %v5641, 3
      %v5752 = vrot.slane %v5642, 3
      %v5753 = vsel %vm4495, %v5751, %v5752
      %v5754 = vrot.slane %v5643, 3
      %v5755 = vsel %vm4495, %v5752, %v5754
      %v5756 = vrot.slane %v5644, 3
      %v5757 = vrot.slane %v5645, 3
      %v5758 = vsel %vm4495, %v5756, %v5757
      %v5759 = vrot.slane %v5646, 3
      %v5760 = vsel %vm4495, %v5757, %v5759
      %v5761 = vrot.slane %v5647, 3
      %v5762 = vrot.slane %v5648, 3
      %v5763 = vsel %vm4495, %v5761, %v5762
      %v5764 = vrot.slane %v5649, 3
      %v5765 = vsel %vm4495, %v5762, %v5764
      %v5766 = vrot.slane %v5650, 3
      %v5767 = vrot.slane %v5651, 3
      %v5768 = vsel %vm4495, %v5766, %v5767
      %v5769 = vrot.slane %v5652, 3
      %v5770 = vsel %vm4495, %v5767, %v5769
      %v5771 = vrot.slane %v5653, 3
      %v5772 = vrot.slane %v5654, 3
      %v5773 = vsel %vm4495, %v5771, %v5772
      %v5774 = vrot.slane %v5655, 3
      %v5775 = vsel %vm4495, %v5772, %v5774
      %v5776 = vrot.slane %v5656, 3
      %v5777 = vrot.slane %v5657, 3
      %v5778 = vsel %vm4495, %v5776, %v5777
      %v5779 = vrot.slane %v5658, 3
      %v5780 = vsel %vm4495, %v5777, %v5779
      %v5781 = vrot.slane %v5659, 3
      %v5782 = vrot.slane %v5660, 3
      %v5783 = vsel %vm4495, %v5781, %v5782
      %v5784 = vrot.slane %v5661, 3
      %v5785 = vsel %vm4495, %v5782, %v5784
      %v5786 = vrot.slane %v5662, 3
      %v5787 = vrot.slane %v5663, 3
      %v5788 = vsel %vm4495, %v5786, %v5787
      %v5789 = vrot.slane %v5664, 3
      %v5790 = vsel %vm4495, %v5787, %v5789
      %v5791 = vrot.slane %v5665, 3
      %v5792 = vrot.slane %v5666, 3
      %v5793 = vsel %vm4495, %v5791, %v5792
      %v5794 = vrot.slane %v5667, 3
      %v5795 = vsel %vm4495, %v5792, %v5794
      %v5828 = vadd.f32 %v5584, %v5718
      %v5829 = vadd.f32 %v5585, %v5720
      %v5830 = vadd.f32 %v5586, %v5723
      %v5831 = vadd.f32 %v5587, %v5725
      %v5832 = vadd.f32 %v5588, %v5728
      %v5833 = vadd.f32 %v5589, %v5730
      %v5834 = vadd.f32 %v5590, %v5733
      %v5835 = vadd.f32 %v5591, %v5735
      %v5836 = vadd.f32 %v5592, %v5738
      %v5837 = vadd.f32 %v5593, %v5740
      %v5838 = vadd.f32 %v5594, %v5743
      %v5839 = vadd.f32 %v5595, %v5745
      %v5840 = vadd.f32 %v5596, %v5748
      %v5841 = vadd.f32 %v5597, %v5750
      %v5842 = vadd.f32 %v5598, %v5753
      %v5843 = vadd.f32 %v5599, %v5755
      %v5844 = vadd.f32 %v5600, %v5758
      %v5845 = vadd.f32 %v5601, %v5760
      %v5846 = vadd.f32 %v5602, %v5763
      %v5847 = vadd.f32 %v5603, %v5765
      %v5848 = vadd.f32 %v5604, %v5768
      %v5849 = vadd.f32 %v5605, %v5770
      %v5850 = vadd.f32 %v5606, %v5773
      %v5851 = vadd.f32 %v5607, %v5775
      %v5852 = vadd.f32 %v5608, %v5778
      %v5853 = vadd.f32 %v5609, %v5780
      %v5854 = vadd.f32 %v5610, %v5783
      %v5855 = vadd.f32 %v5611, %v5785
      %v5856 = vadd.f32 %v5612, %v5788
      %v5857 = vadd.f32 %v5613, %v5790
      %v5858 = vadd.f32 %v5614, %v5793
      %v5859 = vadd.f32 %v5615, %v5795
      %v5860 = vlaneseq
      %v5861 = vshrl.u32 %v5860, 7
      %v5862 = vsub.s32 5, %v5861
      %v5863 = vrot.slane %v431, %v5862
      %v5864 = vmul.f32 %v453, %v5863
      %v5865 = vmul.f32 %v454, %v5863
      %v5866 = vmul.f32 %v455, %v5863
      %v5867 = vmul.f32 %v456, %v5863
      %v5868 = vmul.f32 %v457, %v5863
      %v5869 = vmul.f32 %v458, %v5863
      %v5870 = vmul.f32 %v459, %v5863
      %v5871 = vmul.f32 %v460, %v5863
      %v5872 = vmul.f32 %v461, %v5863
      %v5873 = vmul.f32 %v462, %v5863
      %v5874 = vmul.f32 %v463, %v5863
      %v5875 = vmul.f32 %v464, %v5863
      %v5876 = vmul.f32 %v465, %v5863
      %v5877 = vmul.f32 %v466, %v5863
      %v5878 = vmul.f32 %v467, %v5863
      %v5879 = vmul.f32 %v468, %v5863
      %v5880 = vmul.f32 %v469, %v5863
      %v5881 = vmul.f32 %v470, %v5863
      %v5882 = vmul.f32 %v471, %v5863
      %v5883 = vmul.f32 %v472, %v5863
      %v5884 = vmul.f32 %v473, %v5863
      %v5885 = vmul.f32 %v474, %v5863
      %v5886 = vmul.f32 %v475, %v5863
      %v5887 = vmul.f32 %v476, %v5863
      %v5888 = vmul.f32 %v477, %v5863
      %v5889 = vmul.f32 %v478, %v5863
      %v5890 = vmul.f32 %v479, %v5863
      %v5891 = vmul.f32 %v480, %v5863
      %v5892 = vmul.f32 %v481, %v5863
      %v5893 = vmul.f32 %v482, %v5863
      %v5894 = vmul.f32 %v483, %v5863
      %v5895 = vmul.f32 %v484, %v5863
      %v5896 = vmul.f32 %v485, %v5863
      %v5897 = vmul.f32 %v486, %v5863
      %v5898 = vmul.f32 %v487, %v5863
      %v5899 = vmul.f32 %v488, %v5863
      %v5900 = vmul.f32 %v489, %v5863
      %v5901 = vmul.f32 %v490, %v5863
      %v5902 = vmul.f32 %v491, %v5863
      %v5903 = vmul.f32 %v492, %v5863
      %v5904 = vmul.f32 %v493, %v5863
      %v5905 = vmul.f32 %v494, %v5863
      %v5906 = vmul.f32 %v495, %v5863
      %v5907 = vmul.f32 %v496, %v5863
      %v5908 = vmul.f32 %v497, %v5863
      %v5909 = vmul.f32 %v498, %v5863
      %v5910 = vmul.f32 %v499, %v5863
      %v5911 = vmul.f32 %v500, %v5863
      %v5960 = vrot.slane %v5864, 3
      %v5961 = vrot.slane %v5865, 3
      %v5962 = vsel %vm4495, %v5960, %v5961
      %v5963 = vrot.slane %v5866, 3
      %v5964 = vsel %vm4495, %v5961, %v5963
      %v5965 = vrot.slane %v5867, 3
      %v5966 = vrot.slane %v5868, 3
      %v5967 = vsel %vm4495, %v5965, %v5966
      %v5968 = vrot.slane %v5869, 3
      %v5969 = vsel %vm4495, %v5966, %v5968
      %v5970 = vrot.slane %v5870, 3
      %v5971 = vrot.slane %v5871, 3
      %v5972 = vsel %vm4495, %v5970, %v5971
      %v5973 = vrot.slane %v5872, 3
      %v5974 = vsel %vm4495, %v5971, %v5973
      %v5975 = vrot.slane %v5873, 3
      %v5976 = vrot.slane %v5874, 3
      %v5977 = vsel %vm4495, %v5975, %v5976
      %v5978 = vrot.slane %v5875, 3
      %v5979 = vsel %vm4495, %v5976, %v5978
      %v5980 = vrot.slane %v5876, 3
      %v5981 = vrot.slane %v5877, 3
      %v5982 = vsel %vm4495, %v5980, %v5981
      %v5983 = vrot.slane %v5878, 3
      %v5984 = vsel %vm4495, %v5981, %v5983
      %v5985 = vrot.slane %v5879, 3
      %v5986 = vrot.slane %v5880, 3
      %v5987 = vsel %vm4495, %v5985, %v5986
      %v5988 = vrot.slane %v5881, 3
      %v5989 = vsel %vm4495, %v5986, %v5988
      %v5990 = vrot.slane %v5882, 3
      %v5991 = vrot.slane %v5883, 3
      %v5992 = vsel %vm4495, %v5990, %v5991
      %v5993 = vrot.slane %v5884, 3
      %v5994 = vsel %vm4495, %v5991, %v5993
      %v5995 = vrot.slane %v5885, 3
      %v5996 = vrot.slane %v5886, 3
      %v5997 = vsel %vm4495, %v5995, %v5996
      %v5998 = vrot.slane %v5887, 3
      %v5999 = vsel %vm4495, %v5996, %v5998
      %v6000 = vrot.slane %v5888, 3
      %v6001 = vrot.slane %v5889, 3
      %v6002 = vsel %vm4495, %v6000, %v6001
      %v6003 = vrot.slane %v5890, 3
      %v6004 = vsel %vm4495, %v6001, %v6003
      %v6005 = vrot.slane %v5891, 3
      %v6006 = vrot.slane %v5892, 3
      %v6007 = vsel %vm4495, %v6005, %v6006
      %v6008 = vrot.slane %v5893, 3
      %v6009 = vsel %vm4495, %v6006, %v6008
      %v6010 = vrot.slane %v5894, 3
      %v6011 = vrot.slane %v5895, 3
      %v6012 = vsel %vm4495, %v6010, %v6011
      %v6013 = vrot.slane %v5896, 3
      %v6014 = vsel %vm4495, %v6011, %v6013
      %v6015 = vrot.slane %v5897, 3
      %v6016 = vrot.slane %v5898, 3
      %v6017 = vsel %vm4495, %v6015, %v6016
      %v6018 = vrot.slane %v5899, 3
      %v6019 = vsel %vm4495, %v6016, %v6018
      %v6020 = vrot.slane %v5900, 3
      %v6021 = vrot.slane %v5901, 3
      %v6022 = vsel %vm4495, %v6020, %v6021
      %v6023 = vrot.slane %v5902, 3
      %v6024 = vsel %vm4495, %v6021, %v6023
      %v6025 = vrot.slane %v5903, 3
      %v6026 = vrot.slane %v5904, 3
      %v6027 = vsel %vm4495, %v6025, %v6026
      %v6028 = vrot.slane %v5905, 3
      %v6029 = vsel %vm4495, %v6026, %v6028
      %v6030 = vrot.slane %v5906, 3
      %v6031 = vrot.slane %v5907, 3
      %v6032 = vsel %vm4495, %v6030, %v6031
      %v6033 = vrot.slane %v5908, 3
      %v6034 = vsel %vm4495, %v6031, %v6033
      %v6035 = vrot.slane %v5909, 3
      %v6036 = vrot.slane %v5910, 3
      %v6037 = vsel %vm4495, %v6035, %v6036
      %v6038 = vrot.slane %v5911, 3
      %v6039 = vsel %vm4495, %v6036, %v6038
      %v6072 = vadd.f32 %v5828, %v5962
      %v6073 = vadd.f32 %v5829, %v5964
      %v6074 = vadd.f32 %v5830, %v5967
      %v6075 = vadd.f32 %v5831, %v5969
      %v6076 = vadd.f32 %v5832, %v5972
      %v6077 = vadd.f32 %v5833, %v5974
      %v6078 = vadd.f32 %v5834, %v5977
      %v6079 = vadd.f32 %v5835, %v5979
      %v6080 = vadd.f32 %v5836, %v5982
      %v6081 = vadd.f32 %v5837, %v5984
      %v6082 = vadd.f32 %v5838, %v5987
      %v6083 = vadd.f32 %v5839, %v5989
      %v6084 = vadd.f32 %v5840, %v5992
      %v6085 = vadd.f32 %v5841, %v5994
      %v6086 = vadd.f32 %v5842, %v5997
      %v6087 = vadd.f32 %v5843, %v5999
      %v6088 = vadd.f32 %v5844, %v6002
      %v6089 = vadd.f32 %v5845, %v6004
      %v6090 = vadd.f32 %v5846, %v6007
      %v6091 = vadd.f32 %v5847, %v6009
      %v6092 = vadd.f32 %v5848, %v6012
      %v6093 = vadd.f32 %v5849, %v6014
      %v6094 = vadd.f32 %v5850, %v6017
      %v6095 = vadd.f32 %v5851, %v6019
      %v6096 = vadd.f32 %v5852, %v6022
      %v6097 = vadd.f32 %v5853, %v6024
      %v6098 = vadd.f32 %v5854, %v6027
      %v6099 = vadd.f32 %v5855, %v6029
      %v6100 = vadd.f32 %v5856, %v6032
      %v6101 = vadd.f32 %v5857, %v6034
      %v6102 = vadd.f32 %v5858, %v6037
      %v6103 = vadd.f32 %v5859, %v6039
      %v6104 = vlaneseq
      %v6105 = vshrl.u32 %v6104, 7
      %v6106 = vsub.s32 4, %v6105
      %v6107 = vrot.slane %v426, %v6106
      %v6108 = vmul.f32 %v435, %v6107
      %v6109 = vmul.f32 %v436, %v6107
      %v6110 = vmul.f32 %v437, %v6107
      %v6111 = vmul.f32 %v438, %v6107
      %v6112 = vmul.f32 %v439, %v6107
      %v6113 = vmul.f32 %v440, %v6107
      %v6114 = vmul.f32 %v441, %v6107
      %v6115 = vmul.f32 %v442, %v6107
      %v6116 = vmul.f32 %v443, %v6107
      %v6117 = vmul.f32 %v444, %v6107
      %v6118 = vmul.f32 %v445, %v6107
      %v6119 = vmul.f32 %v446, %v6107
      %v6120 = vmul.f32 %v447, %v6107
      %v6121 = vmul.f32 %v448, %v6107
      %v6122 = vmul.f32 %v449, %v6107
      %v6123 = vmul.f32 %v450, %v6107
      %v6124 = vmul.f32 %v451, %v6107
      %v6125 = vmul.f32 %v452, %v6107
      %v6126 = vmul.f32 %v453, %v6107
      %v6127 = vmul.f32 %v454, %v6107
      %v6128 = vmul.f32 %v455, %v6107
      %v6129 = vmul.f32 %v456, %v6107
      %v6130 = vmul.f32 %v457, %v6107
      %v6131 = vmul.f32 %v458, %v6107
      %v6132 = vmul.f32 %v459, %v6107
      %v6133 = vmul.f32 %v460, %v6107
      %v6134 = vmul.f32 %v461, %v6107
      %v6135 = vmul.f32 %v462, %v6107
      %v6136 = vmul.f32 %v463, %v6107
      %v6137 = vmul.f32 %v464, %v6107
      %v6138 = vmul.f32 %v465, %v6107
      %v6139 = vmul.f32 %v466, %v6107
      %v6140 = vmul.f32 %v467, %v6107
      %v6141 = vmul.f32 %v468, %v6107
      %v6142 = vmul.f32 %v469, %v6107
      %v6143 = vmul.f32 %v470, %v6107
      %v6144 = vmul.f32 %v471, %v6107
      %v6145 = vmul.f32 %v472, %v6107
      %v6146 = vmul.f32 %v473, %v6107
      %v6147 = vmul.f32 %v474, %v6107
      %v6148 = vmul.f32 %v475, %v6107
      %v6149 = vmul.f32 %v476, %v6107
      %v6150 = vmul.f32 %v477, %v6107
      %v6151 = vmul.f32 %v478, %v6107
      %v6152 = vmul.f32 %v479, %v6107
      %v6153 = vmul.f32 %v480, %v6107
      %v6154 = vmul.f32 %v481, %v6107
      %v6155 = vmul.f32 %v482, %v6107
      %vm6204 = vcmask 1043456
      %v6205 = vrot.slane %v6108, 4
      %v6206 = vrot.slane %v6109, 4
      %v6207 = vsel %vm6204, %v6205, %v6206
      %v6208 = vrot.slane %v6110, 4
      %v6209 = vsel %vm6204, %v6206, %v6208
      %v6210 = vrot.slane %v6111, 4
      %v6211 = vrot.slane %v6112, 4
      %v6212 = vsel %vm6204, %v6210, %v6211
      %v6213 = vrot.slane %v6113, 4
      %v6214 = vsel %vm6204, %v6211, %v6213
      %v6215 = vrot.slane %v6114, 4
      %v6216 = vrot.slane %v6115, 4
      %v6217 = vsel %vm6204, %v6215, %v6216
      %v6218 = vrot.slane %v6116, 4
      %v6219 = vsel %vm6204, %v6216, %v6218
      %v6220 = vrot.slane %v6117, 4
      %v6221 = vrot.slane %v6118, 4
      %v6222 = vsel %vm6204, %v6220, %v6221
      %v6223 = vrot.slane %v6119, 4
      %v6224 = vsel %vm6204, %v6221, %v6223
      %v6225 = vrot.slane %v6120, 4
      %v6226 = vrot.slane %v6121, 4
      %v6227 = vsel %vm6204, %v6225, %v6226
      %v6228 = vrot.slane %v6122, 4
      %v6229 = vsel %vm6204, %v6226, %v6228
      %v6230 = vrot.slane %v6123, 4
      %v6231 = vrot.slane %v6124, 4
      %v6232 = vsel %vm6204, %v6230, %v6231
      %v6233 = vrot.slane %v6125, 4
      %v6234 = vsel %vm6204, %v6231, %v6233
      %v6235 = vrot.slane %v6126, 4
      %v6236 = vrot.slane %v6127, 4
      %v6237 = vsel %vm6204, %v6235, %v6236
      %v6238 = vrot.slane %v6128, 4
      %v6239 = vsel %vm6204, %v6236, %v6238
      %v6240 = vrot.slane %v6129, 4
      %v6241 = vrot.slane %v6130, 4
      %v6242 = vsel %vm6204, %v6240, %v6241
      %v6243 = vrot.slane %v6131, 4
      %v6244 = vsel %vm6204, %v6241, %v6243
      %v6245 = vrot.slane %v6132, 4
      %v6246 = vrot.slane %v6133, 4
      %v6247 = vsel %vm6204, %v6245, %v6246
      %v6248 = vrot.slane %v6134, 4
      %v6249 = vsel %vm6204, %v6246, %v6248
      %v6250 = vrot.slane %v6135, 4
      %v6251 = vrot.slane %v6136, 4
      %v6252 = vsel %vm6204, %v6250, %v6251
      %v6253 = vrot.slane %v6137, 4
      %v6254 = vsel %vm6204, %v6251, %v6253
      %v6255 = vrot.slane %v6138, 4
      %v6256 = vrot.slane %v6139, 4
      %v6257 = vsel %vm6204, %v6255, %v6256
      %v6258 = vrot.slane %v6140, 4
      %v6259 = vsel %vm6204, %v6256, %v6258
      %v6260 = vrot.slane %v6141, 4
      %v6261 = vrot.slane %v6142, 4
      %v6262 = vsel %vm6204, %v6260, %v6261
      %v6263 = vrot.slane %v6143, 4
      %v6264 = vsel %vm6204, %v6261, %v6263
      %v6265 = vrot.slane %v6144, 4
      %v6266 = vrot.slane %v6145, 4
      %v6267 = vsel %vm6204, %v6265, %v6266
      %v6268 = vrot.slane %v6146, 4
      %v6269 = vsel %vm6204, %v6266, %v6268
      %v6270 = vrot.slane %v6147, 4
      %v6271 = vrot.slane %v6148, 4
      %v6272 = vsel %vm6204, %v6270, %v6271
      %v6273 = vrot.slane %v6149, 4
      %v6274 = vsel %vm6204, %v6271, %v6273
      %v6275 = vrot.slane %v6150, 4
      %v6276 = vrot.slane %v6151, 4
      %v6277 = vsel %vm6204, %v6275, %v6276
      %v6278 = vrot.slane %v6152, 4
      %v6279 = vsel %vm6204, %v6276, %v6278
      %v6280 = vrot.slane %v6153, 4
      %v6281 = vrot.slane %v6154, 4
      %v6282 = vsel %vm6204, %v6280, %v6281
      %v6283 = vrot.slane %v6155, 4
      %v6284 = vsel %vm6204, %v6281, %v6283
      %v6317 = vadd.f32 %v6072, %v6207
      %v6318 = vadd.f32 %v6073, %v6209
      %v6319 = vadd.f32 %v6074, %v6212
      %v6320 = vadd.f32 %v6075, %v6214
      %v6321 = vadd.f32 %v6076, %v6217
      %v6322 = vadd.f32 %v6077, %v6219
      %v6323 = vadd.f32 %v6078, %v6222
      %v6324 = vadd.f32 %v6079, %v6224
      %v6325 = vadd.f32 %v6080, %v6227
      %v6326 = vadd.f32 %v6081, %v6229
      %v6327 = vadd.f32 %v6082, %v6232
      %v6328 = vadd.f32 %v6083, %v6234
      %v6329 = vadd.f32 %v6084, %v6237
      %v6330 = vadd.f32 %v6085, %v6239
      %v6331 = vadd.f32 %v6086, %v6242
      %v6332 = vadd.f32 %v6087, %v6244
      %v6333 = vadd.f32 %v6088, %v6247
      %v6334 = vadd.f32 %v6089, %v6249
      %v6335 = vadd.f32 %v6090, %v6252
      %v6336 = vadd.f32 %v6091, %v6254
      %v6337 = vadd.f32 %v6092, %v6257
      %v6338 = vadd.f32 %v6093, %v6259
      %v6339 = vadd.f32 %v6094, %v6262
      %v6340 = vadd.f32 %v6095, %v6264
      %v6341 = vadd.f32 %v6096, %v6267
      %v6342 = vadd.f32 %v6097, %v6269
      %v6343 = vadd.f32 %v6098, %v6272
      %v6344 = vadd.f32 %v6099, %v6274
      %v6345 = vadd.f32 %v6100, %v6277
      %v6346 = vadd.f32 %v6101, %v6279
      %v6347 = vadd.f32 %v6102, %v6282
      %v6348 = vadd.f32 %v6103, %v6284
      %v6349 = vlaneseq
      %v6350 = vshrl.u32 %v6349, 7
      %v6351 = vsub.s32 3, %v6350
      %v6352 = vrot.slane %v427, %v6351
      %v6353 = vmul.f32 %v438, %v6352
      %v6354 = vmul.f32 %v439, %v6352
      %v6355 = vmul.f32 %v440, %v6352
      %v6356 = vmul.f32 %v441, %v6352
      %v6357 = vmul.f32 %v442, %v6352
      %v6358 = vmul.f32 %v443, %v6352
      %v6359 = vmul.f32 %v444, %v6352
      %v6360 = vmul.f32 %v445, %v6352
      %v6361 = vmul.f32 %v446, %v6352
      %v6362 = vmul.f32 %v447, %v6352
      %v6363 = vmul.f32 %v448, %v6352
      %v6364 = vmul.f32 %v449, %v6352
      %v6365 = vmul.f32 %v450, %v6352
      %v6366 = vmul.f32 %v451, %v6352
      %v6367 = vmul.f32 %v452, %v6352
      %v6368 = vmul.f32 %v453, %v6352
      %v6369 = vmul.f32 %v454, %v6352
      %v6370 = vmul.f32 %v455, %v6352
      %v6371 = vmul.f32 %v456, %v6352
      %v6372 = vmul.f32 %v457, %v6352
      %v6373 = vmul.f32 %v458, %v6352
      %v6374 = vmul.f32 %v459, %v6352
      %v6375 = vmul.f32 %v460, %v6352
      %v6376 = vmul.f32 %v461, %v6352
      %v6377 = vmul.f32 %v462, %v6352
      %v6378 = vmul.f32 %v463, %v6352
      %v6379 = vmul.f32 %v464, %v6352
      %v6380 = vmul.f32 %v465, %v6352
      %v6381 = vmul.f32 %v466, %v6352
      %v6382 = vmul.f32 %v467, %v6352
      %v6383 = vmul.f32 %v468, %v6352
      %v6384 = vmul.f32 %v469, %v6352
      %v6385 = vmul.f32 %v470, %v6352
      %v6386 = vmul.f32 %v471, %v6352
      %v6387 = vmul.f32 %v472, %v6352
      %v6388 = vmul.f32 %v473, %v6352
      %v6389 = vmul.f32 %v474, %v6352
      %v6390 = vmul.f32 %v475, %v6352
      %v6391 = vmul.f32 %v476, %v6352
      %v6392 = vmul.f32 %v477, %v6352
      %v6393 = vmul.f32 %v478, %v6352
      %v6394 = vmul.f32 %v479, %v6352
      %v6395 = vmul.f32 %v480, %v6352
      %v6396 = vmul.f32 %v481, %v6352
      %v6397 = vmul.f32 %v482, %v6352
      %v6398 = vmul.f32 %v483, %v6352
      %v6399 = vmul.f32 %v484, %v6352
      %v6400 = vmul.f32 %v485, %v6352
      %v6449 = vrot.slane %v6353, 4
      %v6450 = vrot.slane %v6354, 4
      %v6451 = vsel %vm6204, %v6449, %v6450
      %v6452 = vrot.slane %v6355, 4
      %v6453 = vsel %vm6204, %v6450, %v6452
      %v6454 = vrot.slane %v6356, 4
      %v6455 = vrot.slane %v6357, 4
      %v6456 = vsel %vm6204, %v6454, %v6455
      %v6457 = vrot.slane %v6358, 4
      %v6458 = vsel %vm6204, %v6455, %v6457
      %v6459 = vrot.slane %v6359, 4
      %v6460 = vrot.slane %v6360, 4
      %v6461 = vsel %vm6204, %v6459, %v6460
      %v6462 = vrot.slane %v6361, 4
      %v6463 = vsel %vm6204, %v6460, %v6462
      %v6464 = vrot.slane %v6362, 4
      %v6465 = vrot.slane %v6363, 4
      %v6466 = vsel %vm6204, %v6464, %v6465
      %v6467 = vrot.slane %v6364, 4
      %v6468 = vsel %vm6204, %v6465, %v6467
      %v6469 = vrot.slane %v6365, 4
      %v6470 = vrot.slane %v6366, 4
      %v6471 = vsel %vm6204, %v6469, %v6470
      %v6472 = vrot.slane %v6367, 4
      %v6473 = vsel %vm6204, %v6470, %v6472
      %v6474 = vrot.slane %v6368, 4
      %v6475 = vrot.slane %v6369, 4
      %v6476 = vsel %vm6204, %v6474, %v6475
      %v6477 = vrot.slane %v6370, 4
      %v6478 = vsel %vm6204, %v6475, %v6477
      %v6479 = vrot.slane %v6371, 4
      %v6480 = vrot.slane %v6372, 4
      %v6481 = vsel %vm6204, %v6479, %v6480
      %v6482 = vrot.slane %v6373, 4
      %v6483 = vsel %vm6204, %v6480, %v6482
      %v6484 = vrot.slane %v6374, 4
      %v6485 = vrot.slane %v6375, 4
      %v6486 = vsel %vm6204, %v6484, %v6485
      %v6487 = vrot.slane %v6376, 4
      %v6488 = vsel %vm6204, %v6485, %v6487
      %v6489 = vrot.slane %v6377, 4
      %v6490 = vrot.slane %v6378, 4
      %v6491 = vsel %vm6204, %v6489, %v6490
      %v6492 = vrot.slane %v6379, 4
      %v6493 = vsel %vm6204, %v6490, %v6492
      %v6494 = vrot.slane %v6380, 4
      %v6495 = vrot.slane %v6381, 4
      %v6496 = vsel %vm6204, %v6494, %v6495
      %v6497 = vrot.slane %v6382, 4
      %v6498 = vsel %vm6204, %v6495, %v6497
      %v6499 = vrot.slane %v6383, 4
      %v6500 = vrot.slane %v6384, 4
      %v6501 = vsel %vm6204, %v6499, %v6500
      %v6502 = vrot.slane %v6385, 4
      %v6503 = vsel %vm6204, %v6500, %v6502
      %v6504 = vrot.slane %v6386, 4
      %v6505 = vrot.slane %v6387, 4
      %v6506 = vsel %vm6204, %v6504, %v6505
      %v6507 = vrot.slane %v6388, 4
      %v6508 = vsel %vm6204, %v6505, %v6507
      %v6509 = vrot.slane %v6389, 4
      %v6510 = vrot.slane %v6390, 4
      %v6511 = vsel %vm6204, %v6509, %v6510
      %v6512 = vrot.slane %v6391, 4
      %v6513 = vsel %vm6204, %v6510, %v6512
      %v6514 = vrot.slane %v6392, 4
      %v6515 = vrot.slane %v6393, 4
      %v6516 = vsel %vm6204, %v6514, %v6515
      %v6517 = vrot.slane %v6394, 4
      %v6518 = vsel %vm6204, %v6515, %v6517
      %v6519 = vrot.slane %v6395, 4
      %v6520 = vrot.slane %v6396, 4
      %v6521 = vsel %vm6204, %v6519, %v6520
      %v6522 = vrot.slane %v6397, 4
      %v6523 = vsel %vm6204, %v6520, %v6522
      %v6524 = vrot.slane %v6398, 4
      %v6525 = vrot.slane %v6399, 4
      %v6526 = vsel %vm6204, %v6524, %v6525
      %v6527 = vrot.slane %v6400, 4
      %v6528 = vsel %vm6204, %v6525, %v6527
      %v6561 = vadd.f32 %v6317, %v6451
      %v6562 = vadd.f32 %v6318, %v6453
      %v6563 = vadd.f32 %v6319, %v6456
      %v6564 = vadd.f32 %v6320, %v6458
      %v6565 = vadd.f32 %v6321, %v6461
      %v6566 = vadd.f32 %v6322, %v6463
      %v6567 = vadd.f32 %v6323, %v6466
      %v6568 = vadd.f32 %v6324, %v6468
      %v6569 = vadd.f32 %v6325, %v6471
      %v6570 = vadd.f32 %v6326, %v6473
      %v6571 = vadd.f32 %v6327, %v6476
      %v6572 = vadd.f32 %v6328, %v6478
      %v6573 = vadd.f32 %v6329, %v6481
      %v6574 = vadd.f32 %v6330, %v6483
      %v6575 = vadd.f32 %v6331, %v6486
      %v6576 = vadd.f32 %v6332, %v6488
      %v6577 = vadd.f32 %v6333, %v6491
      %v6578 = vadd.f32 %v6334, %v6493
      %v6579 = vadd.f32 %v6335, %v6496
      %v6580 = vadd.f32 %v6336, %v6498
      %v6581 = vadd.f32 %v6337, %v6501
      %v6582 = vadd.f32 %v6338, %v6503
      %v6583 = vadd.f32 %v6339, %v6506
      %v6584 = vadd.f32 %v6340, %v6508
      %v6585 = vadd.f32 %v6341, %v6511
      %v6586 = vadd.f32 %v6342, %v6513
      %v6587 = vadd.f32 %v6343, %v6516
      %v6588 = vadd.f32 %v6344, %v6518
      %v6589 = vadd.f32 %v6345, %v6521
      %v6590 = vadd.f32 %v6346, %v6523
      %v6591 = vadd.f32 %v6347, %v6526
      %v6592 = vadd.f32 %v6348, %v6528
      %v6593 = vlaneseq
      %v6594 = vshrl.u32 %v6593, 7
      %v6595 = vsub.s32 2, %v6594
      %v6596 = vrot.slane %v428, %v6595
      %v6597 = vmul.f32 %v441, %v6596
      %v6598 = vmul.f32 %v442, %v6596
      %v6599 = vmul.f32 %v443, %v6596
      %v6600 = vmul.f32 %v444, %v6596
      %v6601 = vmul.f32 %v445, %v6596
      %v6602 = vmul.f32 %v446, %v6596
      %v6603 = vmul.f32 %v447, %v6596
      %v6604 = vmul.f32 %v448, %v6596
      %v6605 = vmul.f32 %v449, %v6596
      %v6606 = vmul.f32 %v450, %v6596
      %v6607 = vmul.f32 %v451, %v6596
      %v6608 = vmul.f32 %v452, %v6596
      %v6609 = vmul.f32 %v453, %v6596
      %v6610 = vmul.f32 %v454, %v6596
      %v6611 = vmul.f32 %v455, %v6596
      %v6612 = vmul.f32 %v456, %v6596
      %v6613 = vmul.f32 %v457, %v6596
      %v6614 = vmul.f32 %v458, %v6596
      %v6615 = vmul.f32 %v459, %v6596
      %v6616 = vmul.f32 %v460, %v6596
      %v6617 = vmul.f32 %v461, %v6596
      %v6618 = vmul.f32 %v462, %v6596
      %v6619 = vmul.f32 %v463, %v6596
      %v6620 = vmul.f32 %v464, %v6596
      %v6621 = vmul.f32 %v465, %v6596
      %v6622 = vmul.f32 %v466, %v6596
      %v6623 = vmul.f32 %v467, %v6596
      %v6624 = vmul.f32 %v468, %v6596
      %v6625 = vmul.f32 %v469, %v6596
      %v6626 = vmul.f32 %v470, %v6596
      %v6627 = vmul.f32 %v471, %v6596
      %v6628 = vmul.f32 %v472, %v6596
      %v6629 = vmul.f32 %v473, %v6596
      %v6630 = vmul.f32 %v474, %v6596
      %v6631 = vmul.f32 %v475, %v6596
      %v6632 = vmul.f32 %v476, %v6596
      %v6633 = vmul.f32 %v477, %v6596
      %v6634 = vmul.f32 %v478, %v6596
      %v6635 = vmul.f32 %v479, %v6596
      %v6636 = vmul.f32 %v480, %v6596
      %v6637 = vmul.f32 %v481, %v6596
      %v6638 = vmul.f32 %v482, %v6596
      %v6639 = vmul.f32 %v483, %v6596
      %v6640 = vmul.f32 %v484, %v6596
      %v6641 = vmul.f32 %v485, %v6596
      %v6642 = vmul.f32 %v486, %v6596
      %v6643 = vmul.f32 %v487, %v6596
      %v6644 = vmul.f32 %v488, %v6596
      %v6693 = vrot.slane %v6597, 4
      %v6694 = vrot.slane %v6598, 4
      %v6695 = vsel %vm6204, %v6693, %v6694
      %v6696 = vrot.slane %v6599, 4
      %v6697 = vsel %vm6204, %v6694, %v6696
      %v6698 = vrot.slane %v6600, 4
      %v6699 = vrot.slane %v6601, 4
      %v6700 = vsel %vm6204, %v6698, %v6699
      %v6701 = vrot.slane %v6602, 4
      %v6702 = vsel %vm6204, %v6699, %v6701
      %v6703 = vrot.slane %v6603, 4
      %v6704 = vrot.slane %v6604, 4
      %v6705 = vsel %vm6204, %v6703, %v6704
      %v6706 = vrot.slane %v6605, 4
      %v6707 = vsel %vm6204, %v6704, %v6706
      %v6708 = vrot.slane %v6606, 4
      %v6709 = vrot.slane %v6607, 4
      %v6710 = vsel %vm6204, %v6708, %v6709
      %v6711 = vrot.slane %v6608, 4
      %v6712 = vsel %vm6204, %v6709, %v6711
      %v6713 = vrot.slane %v6609, 4
      %v6714 = vrot.slane %v6610, 4
      %v6715 = vsel %vm6204, %v6713, %v6714
      %v6716 = vrot.slane %v6611, 4
      %v6717 = vsel %vm6204, %v6714, %v6716
      %v6718 = vrot.slane %v6612, 4
      %v6719 = vrot.slane %v6613, 4
      %v6720 = vsel %vm6204, %v6718, %v6719
      %v6721 = vrot.slane %v6614, 4
      %v6722 = vsel %vm6204, %v6719, %v6721
      %v6723 = vrot.slane %v6615, 4
      %v6724 = vrot.slane %v6616, 4
      %v6725 = vsel %vm6204, %v6723, %v6724
      %v6726 = vrot.slane %v6617, 4
      %v6727 = vsel %vm6204, %v6724, %v6726
      %v6728 = vrot.slane %v6618, 4
      %v6729 = vrot.slane %v6619, 4
      %v6730 = vsel %vm6204, %v6728, %v6729
      %v6731 = vrot.slane %v6620, 4
      %v6732 = vsel %vm6204, %v6729, %v6731
      %v6733 = vrot.slane %v6621, 4
      %v6734 = vrot.slane %v6622, 4
      %v6735 = vsel %vm6204, %v6733, %v6734
      %v6736 = vrot.slane %v6623, 4
      %v6737 = vsel %vm6204, %v6734, %v6736
      %v6738 = vrot.slane %v6624, 4
      %v6739 = vrot.slane %v6625, 4
      %v6740 = vsel %vm6204, %v6738, %v6739
      %v6741 = vrot.slane %v6626, 4
      %v6742 = vsel %vm6204, %v6739, %v6741
      %v6743 = vrot.slane %v6627, 4
      %v6744 = vrot.slane %v6628, 4
      %v6745 = vsel %vm6204, %v6743, %v6744
      %v6746 = vrot.slane %v6629, 4
      %v6747 = vsel %vm6204, %v6744, %v6746
      %v6748 = vrot.slane %v6630, 4
      %v6749 = vrot.slane %v6631, 4
      %v6750 = vsel %vm6204, %v6748, %v6749
      %v6751 = vrot.slane %v6632, 4
      %v6752 = vsel %vm6204, %v6749, %v6751
      %v6753 = vrot.slane %v6633, 4
      %v6754 = vrot.slane %v6634, 4
      %v6755 = vsel %vm6204, %v6753, %v6754
      %v6756 = vrot.slane %v6635, 4
      %v6757 = vsel %vm6204, %v6754, %v6756
      %v6758 = vrot.slane %v6636, 4
      %v6759 = vrot.slane %v6637, 4
      %v6760 = vsel %vm6204, %v6758, %v6759
      %v6761 = vrot.slane %v6638, 4
      %v6762 = vsel %vm6204, %v6759, %v6761
      %v6763 = vrot.slane %v6639, 4
      %v6764 = vrot.slane %v6640, 4
      %v6765 = vsel %vm6204, %v6763, %v6764
      %v6766 = vrot.slane %v6641, 4
      %v6767 = vsel %vm6204, %v6764, %v6766
      %v6768 = vrot.slane %v6642, 4
      %v6769 = vrot.slane %v6643, 4
      %v6770 = vsel %vm6204, %v6768, %v6769
      %v6771 = vrot.slane %v6644, 4
      %v6772 = vsel %vm6204, %v6769, %v6771
      %v6805 = vadd.f32 %v6561, %v6695
      %v6806 = vadd.f32 %v6562, %v6697
      %v6807 = vadd.f32 %v6563, %v6700
      %v6808 = vadd.f32 %v6564, %v6702
      %v6809 = vadd.f32 %v6565, %v6705
      %v6810 = vadd.f32 %v6566, %v6707
      %v6811 = vadd.f32 %v6567, %v6710
      %v6812 = vadd.f32 %v6568, %v6712
      %v6813 = vadd.f32 %v6569, %v6715
      %v6814 = vadd.f32 %v6570, %v6717
      %v6815 = vadd.f32 %v6571, %v6720
      %v6816 = vadd.f32 %v6572, %v6722
      %v6817 = vadd.f32 %v6573, %v6725
      %v6818 = vadd.f32 %v6574, %v6727
      %v6819 = vadd.f32 %v6575, %v6730
      %v6820 = vadd.f32 %v6576, %v6732
      %v6821 = vadd.f32 %v6577, %v6735
      %v6822 = vadd.f32 %v6578, %v6737
      %v6823 = vadd.f32 %v6579, %v6740
      %v6824 = vadd.f32 %v6580, %v6742
      %v6825 = vadd.f32 %v6581, %v6745
      %v6826 = vadd.f32 %v6582, %v6747
      %v6827 = vadd.f32 %v6583, %v6750
      %v6828 = vadd.f32 %v6584, %v6752
      %v6829 = vadd.f32 %v6585, %v6755
      %v6830 = vadd.f32 %v6586, %v6757
      %v6831 = vadd.f32 %v6587, %v6760
      %v6832 = vadd.f32 %v6588, %v6762
      %v6833 = vadd.f32 %v6589, %v6765
      %v6834 = vadd.f32 %v6590, %v6767
      %v6835 = vadd.f32 %v6591, %v6770
      %v6836 = vadd.f32 %v6592, %v6772
      %v6837 = vlaneseq
      %v6838 = vshrl.u32 %v6837, 7
      %v6839 = vsub.s32 1, %v6838
      %v6840 = vrot.slane %v429, %v6839
      %v6841 = vmul.f32 %v444, %v6840
      %v6842 = vmul.f32 %v445, %v6840
      %v6843 = vmul.f32 %v446, %v6840
      %v6844 = vmul.f32 %v447, %v6840
      %v6845 = vmul.f32 %v448, %v6840
      %v6846 = vmul.f32 %v449, %v6840
      %v6847 = vmul.f32 %v450, %v6840
      %v6848 = vmul.f32 %v451, %v6840
      %v6849 = vmul.f32 %v452, %v6840
      %v6850 = vmul.f32 %v453, %v6840
      %v6851 = vmul.f32 %v454, %v6840
      %v6852 = vmul.f32 %v455, %v6840
      %v6853 = vmul.f32 %v456, %v6840
      %v6854 = vmul.f32 %v457, %v6840
      %v6855 = vmul.f32 %v458, %v6840
      %v6856 = vmul.f32 %v459, %v6840
      %v6857 = vmul.f32 %v460, %v6840
      %v6858 = vmul.f32 %v461, %v6840
      %v6859 = vmul.f32 %v462, %v6840
      %v6860 = vmul.f32 %v463, %v6840
      %v6861 = vmul.f32 %v464, %v6840
      %v6862 = vmul.f32 %v465, %v6840
      %v6863 = vmul.f32 %v466, %v6840
      %v6864 = vmul.f32 %v467, %v6840
      %v6865 = vmul.f32 %v468, %v6840
      %v6866 = vmul.f32 %v469, %v6840
      %v6867 = vmul.f32 %v470, %v6840
      %v6868 = vmul.f32 %v471, %v6840
      %v6869 = vmul.f32 %v472, %v6840
      %v6870 = vmul.f32 %v473, %v6840
      %v6871 = vmul.f32 %v474, %v6840
      %v6872 = vmul.f32 %v475, %v6840
      %v6873 = vmul.f32 %v476, %v6840
      %v6874 = vmul.f32 %v477, %v6840
      %v6875 = vmul.f32 %v478, %v6840
      %v6876 = vmul.f32 %v479, %v6840
      %v6877 = vmul.f32 %v480, %v6840
      %v6878 = vmul.f32 %v481, %v6840
      %v6879 = vmul.f32 %v482, %v6840
      %v6880 = vmul.f32 %v483, %v6840
      %v6881 = vmul.f32 %v484, %v6840
      %v6882 = vmul.f32 %v485, %v6840
      %v6883 = vmul.f32 %v486, %v6840
      %v6884 = vmul.f32 %v487, %v6840
      %v6885 = vmul.f32 %v488, %v6840
      %v6886 = vmul.f32 %v489, %v6840
      %v6887 = vmul.f32 %v490, %v6840
      %v6888 = vmul.f32 %v491, %v6840
      %v6937 = vrot.slane %v6841, 4
      %v6938 = vrot.slane %v6842, 4
      %v6939 = vsel %vm6204, %v6937, %v6938
      %v6940 = vrot.slane %v6843, 4
      %v6941 = vsel %vm6204, %v6938, %v6940
      %v6942 = vrot.slane %v6844, 4
      %v6943 = vrot.slane %v6845, 4
      %v6944 = vsel %vm6204, %v6942, %v6943
      %v6945 = vrot.slane %v6846, 4
      %v6946 = vsel %vm6204, %v6943, %v6945
      %v6947 = vrot.slane %v6847, 4
      %v6948 = vrot.slane %v6848, 4
      %v6949 = vsel %vm6204, %v6947, %v6948
      %v6950 = vrot.slane %v6849, 4
      %v6951 = vsel %vm6204, %v6948, %v6950
      %v6952 = vrot.slane %v6850, 4
      %v6953 = vrot.slane %v6851, 4
      %v6954 = vsel %vm6204, %v6952, %v6953
      %v6955 = vrot.slane %v6852, 4
      %v6956 = vsel %vm6204, %v6953, %v6955
      %v6957 = vrot.slane %v6853, 4
      %v6958 = vrot.slane %v6854, 4
      %v6959 = vsel %vm6204, %v6957, %v6958
      %v6960 = vrot.slane %v6855, 4
      %v6961 = vsel %vm6204, %v6958, %v6960
      %v6962 = vrot.slane %v6856, 4
      %v6963 = vrot.slane %v6857, 4
      %v6964 = vsel %vm6204, %v6962, %v6963
      %v6965 = vrot.slane %v6858, 4
      %v6966 = vsel %vm6204, %v6963, %v6965
      %v6967 = vrot.slane %v6859, 4
      %v6968 = vrot.slane %v6860, 4
      %v6969 = vsel %vm6204, %v6967, %v6968
      %v6970 = vrot.slane %v6861, 4
      %v6971 = vsel %vm6204, %v6968, %v6970
      %v6972 = vrot.slane %v6862, 4
      %v6973 = vrot.slane %v6863, 4
      %v6974 = vsel %vm6204, %v6972, %v6973
      %v6975 = vrot.slane %v6864, 4
      %v6976 = vsel %vm6204, %v6973, %v6975
      %v6977 = vrot.slane %v6865, 4
      %v6978 = vrot.slane %v6866, 4
      %v6979 = vsel %vm6204, %v6977, %v6978
      %v6980 = vrot.slane %v6867, 4
      %v6981 = vsel %vm6204, %v6978, %v6980
      %v6982 = vrot.slane %v6868, 4
      %v6983 = vrot.slane %v6869, 4
      %v6984 = vsel %vm6204, %v6982, %v6983
      %v6985 = vrot.slane %v6870, 4
      %v6986 = vsel %vm6204, %v6983, %v6985
      %v6987 = vrot.slane %v6871, 4
      %v6988 = vrot.slane %v6872, 4
      %v6989 = vsel %vm6204, %v6987, %v6988
      %v6990 = vrot.slane %v6873, 4
      %v6991 = vsel %vm6204, %v6988, %v6990
      %v6992 = vrot.slane %v6874, 4
      %v6993 = vrot.slane %v6875, 4
      %v6994 = vsel %vm6204, %v6992, %v6993
      %v6995 = vrot.slane %v6876, 4
      %v6996 = vsel %vm6204, %v6993, %v6995
      %v6997 = vrot.slane %v6877, 4
      %v6998 = vrot.slane %v6878, 4
      %v6999 = vsel %vm6204, %v6997, %v6998
      %v7000 = vrot.slane %v6879, 4
      %v7001 = vsel %vm6204, %v6998, %v7000
      %v7002 = vrot.slane %v6880, 4
      %v7003 = vrot.slane %v6881, 4
      %v7004 = vsel %vm6204, %v7002, %v7003
      %v7005 = vrot.slane %v6882, 4
      %v7006 = vsel %vm6204, %v7003, %v7005
      %v7007 = vrot.slane %v6883, 4
      %v7008 = vrot.slane %v6884, 4
      %v7009 = vsel %vm6204, %v7007, %v7008
      %v7010 = vrot.slane %v6885, 4
      %v7011 = vsel %vm6204, %v7008, %v7010
      %v7012 = vrot.slane %v6886, 4
      %v7013 = vrot.slane %v6887, 4
      %v7014 = vsel %vm6204, %v7012, %v7013
      %v7015 = vrot.slane %v6888, 4
      %v7016 = vsel %vm6204, %v7013, %v7015
      %v7049 = vadd.f32 %v6805, %v6939
      %v7050 = vadd.f32 %v6806, %v6941
      %v7051 = vadd.f32 %v6807, %v6944
      %v7052 = vadd.f32 %v6808, %v6946
      %v7053 = vadd.f32 %v6809, %v6949
      %v7054 = vadd.f32 %v6810, %v6951
      %v7055 = vadd.f32 %v6811, %v6954
      %v7056 = vadd.f32 %v6812, %v6956
      %v7057 = vadd.f32 %v6813, %v6959
      %v7058 = vadd.f32 %v6814, %v6961
      %v7059 = vadd.f32 %v6815, %v6964
      %v7060 = vadd.f32 %v6816, %v6966
      %v7061 = vadd.f32 %v6817, %v6969
      %v7062 = vadd.f32 %v6818, %v6971
      %v7063 = vadd.f32 %v6819, %v6974
      %v7064 = vadd.f32 %v6820, %v6976
      %v7065 = vadd.f32 %v6821, %v6979
      %v7066 = vadd.f32 %v6822, %v6981
      %v7067 = vadd.f32 %v6823, %v6984
      %v7068 = vadd.f32 %v6824, %v6986
      %v7069 = vadd.f32 %v6825, %v6989
      %v7070 = vadd.f32 %v6826, %v6991
      %v7071 = vadd.f32 %v6827, %v6994
      %v7072 = vadd.f32 %v6828, %v6996
      %v7073 = vadd.f32 %v6829, %v6999
      %v7074 = vadd.f32 %v6830, %v7001
      %v7075 = vadd.f32 %v6831, %v7004
      %v7076 = vadd.f32 %v6832, %v7006
      %v7077 = vadd.f32 %v6833, %v7009
      %v7078 = vadd.f32 %v6834, %v7011
      %v7079 = vadd.f32 %v6835, %v7014
      %v7080 = vadd.f32 %v6836, %v7016
      %v7081 = vlaneseq
      %v7082 = vshrl.u32 %v7081, 7
      %v7083 = vsub.s32 0, %v7082
      %v7084 = vrot.slane %v430, %v7083
      %v7085 = vmul.f32 %v447, %v7084
      %v7086 = vmul.f32 %v448, %v7084
      %v7087 = vmul.f32 %v449, %v7084
      %v7088 = vmul.f32 %v450, %v7084
      %v7089 = vmul.f32 %v451, %v7084
      %v7090 = vmul.f32 %v452, %v7084
      %v7091 = vmul.f32 %v453, %v7084
      %v7092 = vmul.f32 %v454, %v7084
      %v7093 = vmul.f32 %v455, %v7084
      %v7094 = vmul.f32 %v456, %v7084
      %v7095 = vmul.f32 %v457, %v7084
      %v7096 = vmul.f32 %v458, %v7084
      %v7097 = vmul.f32 %v459, %v7084
      %v7098 = vmul.f32 %v460, %v7084
      %v7099 = vmul.f32 %v461, %v7084
      %v7100 = vmul.f32 %v462, %v7084
      %v7101 = vmul.f32 %v463, %v7084
      %v7102 = vmul.f32 %v464, %v7084
      %v7103 = vmul.f32 %v465, %v7084
      %v7104 = vmul.f32 %v466, %v7084
      %v7105 = vmul.f32 %v467, %v7084
      %v7106 = vmul.f32 %v468, %v7084
      %v7107 = vmul.f32 %v469, %v7084
      %v7108 = vmul.f32 %v470, %v7084
      %v7109 = vmul.f32 %v471, %v7084
      %v7110 = vmul.f32 %v472, %v7084
      %v7111 = vmul.f32 %v473, %v7084
      %v7112 = vmul.f32 %v474, %v7084
      %v7113 = vmul.f32 %v475, %v7084
      %v7114 = vmul.f32 %v476, %v7084
      %v7115 = vmul.f32 %v477, %v7084
      %v7116 = vmul.f32 %v478, %v7084
      %v7117 = vmul.f32 %v479, %v7084
      %v7118 = vmul.f32 %v480, %v7084
      %v7119 = vmul.f32 %v481, %v7084
      %v7120 = vmul.f32 %v482, %v7084
      %v7121 = vmul.f32 %v483, %v7084
      %v7122 = vmul.f32 %v484, %v7084
      %v7123 = vmul.f32 %v485, %v7084
      %v7124 = vmul.f32 %v486, %v7084
      %v7125 = vmul.f32 %v487, %v7084
      %v7126 = vmul.f32 %v488, %v7084
      %v7127 = vmul.f32 %v489, %v7084
      %v7128 = vmul.f32 %v490, %v7084
      %v7129 = vmul.f32 %v491, %v7084
      %v7130 = vmul.f32 %v492, %v7084
      %v7131 = vmul.f32 %v493, %v7084
      %v7132 = vmul.f32 %v494, %v7084
      %v7181 = vrot.slane %v7085, 4
      %v7182 = vrot.slane %v7086, 4
      %v7183 = vsel %vm6204, %v7181, %v7182
      %v7184 = vrot.slane %v7087, 4
      %v7185 = vsel %vm6204, %v7182, %v7184
      %v7186 = vrot.slane %v7088, 4
      %v7187 = vrot.slane %v7089, 4
      %v7188 = vsel %vm6204, %v7186, %v7187
      %v7189 = vrot.slane %v7090, 4
      %v7190 = vsel %vm6204, %v7187, %v7189
      %v7191 = vrot.slane %v7091, 4
      %v7192 = vrot.slane %v7092, 4
      %v7193 = vsel %vm6204, %v7191, %v7192
      %v7194 = vrot.slane %v7093, 4
      %v7195 = vsel %vm6204, %v7192, %v7194
      %v7196 = vrot.slane %v7094, 4
      %v7197 = vrot.slane %v7095, 4
      %v7198 = vsel %vm6204, %v7196, %v7197
      %v7199 = vrot.slane %v7096, 4
      %v7200 = vsel %vm6204, %v7197, %v7199
      %v7201 = vrot.slane %v7097, 4
      %v7202 = vrot.slane %v7098, 4
      %v7203 = vsel %vm6204, %v7201, %v7202
      %v7204 = vrot.slane %v7099, 4
      %v7205 = vsel %vm6204, %v7202, %v7204
      %v7206 = vrot.slane %v7100, 4
      %v7207 = vrot.slane %v7101, 4
      %v7208 = vsel %vm6204, %v7206, %v7207
      %v7209 = vrot.slane %v7102, 4
      %v7210 = vsel %vm6204, %v7207, %v7209
      %v7211 = vrot.slane %v7103, 4
      %v7212 = vrot.slane %v7104, 4
      %v7213 = vsel %vm6204, %v7211, %v7212
      %v7214 = vrot.slane %v7105, 4
      %v7215 = vsel %vm6204, %v7212, %v7214
      %v7216 = vrot.slane %v7106, 4
      %v7217 = vrot.slane %v7107, 4
      %v7218 = vsel %vm6204, %v7216, %v7217
      %v7219 = vrot.slane %v7108, 4
      %v7220 = vsel %vm6204, %v7217, %v7219
      %v7221 = vrot.slane %v7109, 4
      %v7222 = vrot.slane %v7110, 4
      %v7223 = vsel %vm6204, %v7221, %v7222
      %v7224 = vrot.slane %v7111, 4
      %v7225 = vsel %vm6204, %v7222, %v7224
      %v7226 = vrot.slane %v7112, 4
      %v7227 = vrot.slane %v7113, 4
      %v7228 = vsel %vm6204, %v7226, %v7227
      %v7229 = vrot.slane %v7114, 4
      %v7230 = vsel %vm6204, %v7227, %v7229
      %v7231 = vrot.slane %v7115, 4
      %v7232 = vrot.slane %v7116, 4
      %v7233 = vsel %vm6204, %v7231, %v7232
      %v7234 = vrot.slane %v7117, 4
      %v7235 = vsel %vm6204, %v7232, %v7234
      %v7236 = vrot.slane %v7118, 4
      %v7237 = vrot.slane %v7119, 4
      %v7238 = vsel %vm6204, %v7236, %v7237
      %v7239 = vrot.slane %v7120, 4
      %v7240 = vsel %vm6204, %v7237, %v7239
      %v7241 = vrot.slane %v7121, 4
      %v7242 = vrot.slane %v7122, 4
      %v7243 = vsel %vm6204, %v7241, %v7242
      %v7244 = vrot.slane %v7123, 4
      %v7245 = vsel %vm6204, %v7242, %v7244
      %v7246 = vrot.slane %v7124, 4
      %v7247 = vrot.slane %v7125, 4
      %v7248 = vsel %vm6204, %v7246, %v7247
      %v7249 = vrot.slane %v7126, 4
      %v7250 = vsel %vm6204, %v7247, %v7249
      %v7251 = vrot.slane %v7127, 4
      %v7252 = vrot.slane %v7128, 4
      %v7253 = vsel %vm6204, %v7251, %v7252
      %v7254 = vrot.slane %v7129, 4
      %v7255 = vsel %vm6204, %v7252, %v7254
      %v7256 = vrot.slane %v7130, 4
      %v7257 = vrot.slane %v7131, 4
      %v7258 = vsel %vm6204, %v7256, %v7257
      %v7259 = vrot.slane %v7132, 4
      %v7260 = vsel %vm6204, %v7257, %v7259
      %v7293 = vadd.f32 %v7049, %v7183
      %v7294 = vadd.f32 %v7050, %v7185
      %v7295 = vadd.f32 %v7051, %v7188
      %v7296 = vadd.f32 %v7052, %v7190
      %v7297 = vadd.f32 %v7053, %v7193
      %v7298 = vadd.f32 %v7054, %v7195
      %v7299 = vadd.f32 %v7055, %v7198
      %v7300 = vadd.f32 %v7056, %v7200
      %v7301 = vadd.f32 %v7057, %v7203
      %v7302 = vadd.f32 %v7058, %v7205
      %v7303 = vadd.f32 %v7059, %v7208
      %v7304 = vadd.f32 %v7060, %v7210
      %v7305 = vadd.f32 %v7061, %v7213
      %v7306 = vadd.f32 %v7062, %v7215
      %v7307 = vadd.f32 %v7063, %v7218
      %v7308 = vadd.f32 %v7064, %v7220
      %v7309 = vadd.f32 %v7065, %v7223
      %v7310 = vadd.f32 %v7066, %v7225
      %v7311 = vadd.f32 %v7067, %v7228
      %v7312 = vadd.f32 %v7068, %v7230
      %v7313 = vadd.f32 %v7069, %v7233
      %v7314 = vadd.f32 %v7070, %v7235
      %v7315 = vadd.f32 %v7071, %v7238
      %v7316 = vadd.f32 %v7072, %v7240
      %v7317 = vadd.f32 %v7073, %v7243
      %v7318 = vadd.f32 %v7074, %v7245
      %v7319 = vadd.f32 %v7075, %v7248
      %v7320 = vadd.f32 %v7076, %v7250
      %v7321 = vadd.f32 %v7077, %v7253
      %v7322 = vadd.f32 %v7078, %v7255
      %v7323 = vadd.f32 %v7079, %v7258
      %v7324 = vadd.f32 %v7080, %v7260
      %v7325 = vlaneseq
      %v7326 = vshrl.u32 %v7325, 7
      %v7327 = vsub.s32 7, %v7326
      %v7328 = vrot.slane %v430, %v7327
      %v7329 = vmul.f32 %v450, %v7328
      %v7330 = vmul.f32 %v451, %v7328
      %v7331 = vmul.f32 %v452, %v7328
      %v7332 = vmul.f32 %v453, %v7328
      %v7333 = vmul.f32 %v454, %v7328
      %v7334 = vmul.f32 %v455, %v7328
      %v7335 = vmul.f32 %v456, %v7328
      %v7336 = vmul.f32 %v457, %v7328
      %v7337 = vmul.f32 %v458, %v7328
      %v7338 = vmul.f32 %v459, %v7328
      %v7339 = vmul.f32 %v460, %v7328
      %v7340 = vmul.f32 %v461, %v7328
      %v7341 = vmul.f32 %v462, %v7328
      %v7342 = vmul.f32 %v463, %v7328
      %v7343 = vmul.f32 %v464, %v7328
      %v7344 = vmul.f32 %v465, %v7328
      %v7345 = vmul.f32 %v466, %v7328
      %v7346 = vmul.f32 %v467, %v7328
      %v7347 = vmul.f32 %v468, %v7328
      %v7348 = vmul.f32 %v469, %v7328
      %v7349 = vmul.f32 %v470, %v7328
      %v7350 = vmul.f32 %v471, %v7328
      %v7351 = vmul.f32 %v472, %v7328
      %v7352 = vmul.f32 %v473, %v7328
      %v7353 = vmul.f32 %v474, %v7328
      %v7354 = vmul.f32 %v475, %v7328
      %v7355 = vmul.f32 %v476, %v7328
      %v7356 = vmul.f32 %v477, %v7328
      %v7357 = vmul.f32 %v478, %v7328
      %v7358 = vmul.f32 %v479, %v7328
      %v7359 = vmul.f32 %v480, %v7328
      %v7360 = vmul.f32 %v481, %v7328
      %v7361 = vmul.f32 %v482, %v7328
      %v7362 = vmul.f32 %v483, %v7328
      %v7363 = vmul.f32 %v484, %v7328
      %v7364 = vmul.f32 %v485, %v7328
      %v7365 = vmul.f32 %v486, %v7328
      %v7366 = vmul.f32 %v487, %v7328
      %v7367 = vmul.f32 %v488, %v7328
      %v7368 = vmul.f32 %v489, %v7328
      %v7369 = vmul.f32 %v490, %v7328
      %v7370 = vmul.f32 %v491, %v7328
      %v7371 = vmul.f32 %v492, %v7328
      %v7372 = vmul.f32 %v493, %v7328
      %v7373 = vmul.f32 %v494, %v7328
      %v7374 = vmul.f32 %v495, %v7328
      %v7375 = vmul.f32 %v496, %v7328
      %v7376 = vmul.f32 %v497, %v7328
      %v7425 = vrot.slane %v7329, 4
      %v7426 = vrot.slane %v7330, 4
      %v7427 = vsel %vm6204, %v7425, %v7426
      %v7428 = vrot.slane %v7331, 4
      %v7429 = vsel %vm6204, %v7426, %v7428
      %v7430 = vrot.slane %v7332, 4
      %v7431 = vrot.slane %v7333, 4
      %v7432 = vsel %vm6204, %v7430, %v7431
      %v7433 = vrot.slane %v7334, 4
      %v7434 = vsel %vm6204, %v7431, %v7433
      %v7435 = vrot.slane %v7335, 4
      %v7436 = vrot.slane %v7336, 4
      %v7437 = vsel %vm6204, %v7435, %v7436
      %v7438 = vrot.slane %v7337, 4
      %v7439 = vsel %vm6204, %v7436, %v7438
      %v7440 = vrot.slane %v7338, 4
      %v7441 = vrot.slane %v7339, 4
      %v7442 = vsel %vm6204, %v7440, %v7441
      %v7443 = vrot.slane %v7340, 4
      %v7444 = vsel %vm6204, %v7441, %v7443
      %v7445 = vrot.slane %v7341, 4
      %v7446 = vrot.slane %v7342, 4
      %v7447 = vsel %vm6204, %v7445, %v7446
      %v7448 = vrot.slane %v7343, 4
      %v7449 = vsel %vm6204, %v7446, %v7448
      %v7450 = vrot.slane %v7344, 4
      %v7451 = vrot.slane %v7345, 4
      %v7452 = vsel %vm6204, %v7450, %v7451
      %v7453 = vrot.slane %v7346, 4
      %v7454 = vsel %vm6204, %v7451, %v7453
      %v7455 = vrot.slane %v7347, 4
      %v7456 = vrot.slane %v7348, 4
      %v7457 = vsel %vm6204, %v7455, %v7456
      %v7458 = vrot.slane %v7349, 4
      %v7459 = vsel %vm6204, %v7456, %v7458
      %v7460 = vrot.slane %v7350, 4
      %v7461 = vrot.slane %v7351, 4
      %v7462 = vsel %vm6204, %v7460, %v7461
      %v7463 = vrot.slane %v7352, 4
      %v7464 = vsel %vm6204, %v7461, %v7463
      %v7465 = vrot.slane %v7353, 4
      %v7466 = vrot.slane %v7354, 4
      %v7467 = vsel %vm6204, %v7465, %v7466
      %v7468 = vrot.slane %v7355, 4
      %v7469 = vsel %vm6204, %v7466, %v7468
      %v7470 = vrot.slane %v7356, 4
      %v7471 = vrot.slane %v7357, 4
      %v7472 = vsel %vm6204, %v7470, %v7471
      %v7473 = vrot.slane %v7358, 4
      %v7474 = vsel %vm6204, %v7471, %v7473
      %v7475 = vrot.slane %v7359, 4
      %v7476 = vrot.slane %v7360, 4
      %v7477 = vsel %vm6204, %v7475, %v7476
      %v7478 = vrot.slane %v7361, 4
      %v7479 = vsel %vm6204, %v7476, %v7478
      %v7480 = vrot.slane %v7362, 4
      %v7481 = vrot.slane %v7363, 4
      %v7482 = vsel %vm6204, %v7480, %v7481
      %v7483 = vrot.slane %v7364, 4
      %v7484 = vsel %vm6204, %v7481, %v7483
      %v7485 = vrot.slane %v7365, 4
      %v7486 = vrot.slane %v7366, 4
      %v7487 = vsel %vm6204, %v7485, %v7486
      %v7488 = vrot.slane %v7367, 4
      %v7489 = vsel %vm6204, %v7486, %v7488
      %v7490 = vrot.slane %v7368, 4
      %v7491 = vrot.slane %v7369, 4
      %v7492 = vsel %vm6204, %v7490, %v7491
      %v7493 = vrot.slane %v7370, 4
      %v7494 = vsel %vm6204, %v7491, %v7493
      %v7495 = vrot.slane %v7371, 4
      %v7496 = vrot.slane %v7372, 4
      %v7497 = vsel %vm6204, %v7495, %v7496
      %v7498 = vrot.slane %v7373, 4
      %v7499 = vsel %vm6204, %v7496, %v7498
      %v7500 = vrot.slane %v7374, 4
      %v7501 = vrot.slane %v7375, 4
      %v7502 = vsel %vm6204, %v7500, %v7501
      %v7503 = vrot.slane %v7376, 4
      %v7504 = vsel %vm6204, %v7501, %v7503
      %v7537 = vadd.f32 %v7293, %v7427
      %v7538 = vadd.f32 %v7294, %v7429
      %v7539 = vadd.f32 %v7295, %v7432
      %v7540 = vadd.f32 %v7296, %v7434
      %v7541 = vadd.f32 %v7297, %v7437
      %v7542 = vadd.f32 %v7298, %v7439
      %v7543 = vadd.f32 %v7299, %v7442
      %v7544 = vadd.f32 %v7300, %v7444
      %v7545 = vadd.f32 %v7301, %v7447
      %v7546 = vadd.f32 %v7302, %v7449
      %v7547 = vadd.f32 %v7303, %v7452
      %v7548 = vadd.f32 %v7304, %v7454
      %v7549 = vadd.f32 %v7305, %v7457
      %v7550 = vadd.f32 %v7306, %v7459
      %v7551 = vadd.f32 %v7307, %v7462
      %v7552 = vadd.f32 %v7308, %v7464
      %v7553 = vadd.f32 %v7309, %v7467
      %v7554 = vadd.f32 %v7310, %v7469
      %v7555 = vadd.f32 %v7311, %v7472
      %v7556 = vadd.f32 %v7312, %v7474
      %v7557 = vadd.f32 %v7313, %v7477
      %v7558 = vadd.f32 %v7314, %v7479
      %v7559 = vadd.f32 %v7315, %v7482
      %v7560 = vadd.f32 %v7316, %v7484
      %v7561 = vadd.f32 %v7317, %v7487
      %v7562 = vadd.f32 %v7318, %v7489
      %v7563 = vadd.f32 %v7319, %v7492
      %v7564 = vadd.f32 %v7320, %v7494
      %v7565 = vadd.f32 %v7321, %v7497
      %v7566 = vadd.f32 %v7322, %v7499
      %v7567 = vadd.f32 %v7323, %v7502
      %v7568 = vadd.f32 %v7324, %v7504
      %v7569 = vlaneseq
      %v7570 = vshrl.u32 %v7569, 7
      %v7571 = vsub.s32 6, %v7570
      %v7572 = vrot.slane %v431, %v7571
      %v7573 = vmul.f32 %v453, %v7572
      %v7574 = vmul.f32 %v454, %v7572
      %v7575 = vmul.f32 %v455, %v7572
      %v7576 = vmul.f32 %v456, %v7572
      %v7577 = vmul.f32 %v457, %v7572
      %v7578 = vmul.f32 %v458, %v7572
      %v7579 = vmul.f32 %v459, %v7572
      %v7580 = vmul.f32 %v460, %v7572
      %v7581 = vmul.f32 %v461, %v7572
      %v7582 = vmul.f32 %v462, %v7572
      %v7583 = vmul.f32 %v463, %v7572
      %v7584 = vmul.f32 %v464, %v7572
      %v7585 = vmul.f32 %v465, %v7572
      %v7586 = vmul.f32 %v466, %v7572
      %v7587 = vmul.f32 %v467, %v7572
      %v7588 = vmul.f32 %v468, %v7572
      %v7589 = vmul.f32 %v469, %v7572
      %v7590 = vmul.f32 %v470, %v7572
      %v7591 = vmul.f32 %v471, %v7572
      %v7592 = vmul.f32 %v472, %v7572
      %v7593 = vmul.f32 %v473, %v7572
      %v7594 = vmul.f32 %v474, %v7572
      %v7595 = vmul.f32 %v475, %v7572
      %v7596 = vmul.f32 %v476, %v7572
      %v7597 = vmul.f32 %v477, %v7572
      %v7598 = vmul.f32 %v478, %v7572
      %v7599 = vmul.f32 %v479, %v7572
      %v7600 = vmul.f32 %v480, %v7572
      %v7601 = vmul.f32 %v481, %v7572
      %v7602 = vmul.f32 %v482, %v7572
      %v7603 = vmul.f32 %v483, %v7572
      %v7604 = vmul.f32 %v484, %v7572
      %v7605 = vmul.f32 %v485, %v7572
      %v7606 = vmul.f32 %v486, %v7572
      %v7607 = vmul.f32 %v487, %v7572
      %v7608 = vmul.f32 %v488, %v7572
      %v7609 = vmul.f32 %v489, %v7572
      %v7610 = vmul.f32 %v490, %v7572
      %v7611 = vmul.f32 %v491, %v7572
      %v7612 = vmul.f32 %v492, %v7572
      %v7613 = vmul.f32 %v493, %v7572
      %v7614 = vmul.f32 %v494, %v7572
      %v7615 = vmul.f32 %v495, %v7572
      %v7616 = vmul.f32 %v496, %v7572
      %v7617 = vmul.f32 %v497, %v7572
      %v7618 = vmul.f32 %v498, %v7572
      %v7619 = vmul.f32 %v499, %v7572
      %v7620 = vmul.f32 %v500, %v7572
      %v7669 = vrot.slane %v7573, 4
      %v7670 = vrot.slane %v7574, 4
      %v7671 = vsel %vm6204, %v7669, %v7670
      %v7672 = vrot.slane %v7575, 4
      %v7673 = vsel %vm6204, %v7670, %v7672
      %v7674 = vrot.slane %v7576, 4
      %v7675 = vrot.slane %v7577, 4
      %v7676 = vsel %vm6204, %v7674, %v7675
      %v7677 = vrot.slane %v7578, 4
      %v7678 = vsel %vm6204, %v7675, %v7677
      %v7679 = vrot.slane %v7579, 4
      %v7680 = vrot.slane %v7580, 4
      %v7681 = vsel %vm6204, %v7679, %v7680
      %v7682 = vrot.slane %v7581, 4
      %v7683 = vsel %vm6204, %v7680, %v7682
      %v7684 = vrot.slane %v7582, 4
      %v7685 = vrot.slane %v7583, 4
      %v7686 = vsel %vm6204, %v7684, %v7685
      %v7687 = vrot.slane %v7584, 4
      %v7688 = vsel %vm6204, %v7685, %v7687
      %v7689 = vrot.slane %v7585, 4
      %v7690 = vrot.slane %v7586, 4
      %v7691 = vsel %vm6204, %v7689, %v7690
      %v7692 = vrot.slane %v7587, 4
      %v7693 = vsel %vm6204, %v7690, %v7692
      %v7694 = vrot.slane %v7588, 4
      %v7695 = vrot.slane %v7589, 4
      %v7696 = vsel %vm6204, %v7694, %v7695
      %v7697 = vrot.slane %v7590, 4
      %v7698 = vsel %vm6204, %v7695, %v7697
      %v7699 = vrot.slane %v7591, 4
      %v7700 = vrot.slane %v7592, 4
      %v7701 = vsel %vm6204, %v7699, %v7700
      %v7702 = vrot.slane %v7593, 4
      %v7703 = vsel %vm6204, %v7700, %v7702
      %v7704 = vrot.slane %v7594, 4
      %v7705 = vrot.slane %v7595, 4
      %v7706 = vsel %vm6204, %v7704, %v7705
      %v7707 = vrot.slane %v7596, 4
      %v7708 = vsel %vm6204, %v7705, %v7707
      %v7709 = vrot.slane %v7597, 4
      %v7710 = vrot.slane %v7598, 4
      %v7711 = vsel %vm6204, %v7709, %v7710
      %v7712 = vrot.slane %v7599, 4
      %v7713 = vsel %vm6204, %v7710, %v7712
      %v7714 = vrot.slane %v7600, 4
      %v7715 = vrot.slane %v7601, 4
      %v7716 = vsel %vm6204, %v7714, %v7715
      %v7717 = vrot.slane %v7602, 4
      %v7718 = vsel %vm6204, %v7715, %v7717
      %v7719 = vrot.slane %v7603, 4
      %v7720 = vrot.slane %v7604, 4
      %v7721 = vsel %vm6204, %v7719, %v7720
      %v7722 = vrot.slane %v7605, 4
      %v7723 = vsel %vm6204, %v7720, %v7722
      %v7724 = vrot.slane %v7606, 4
      %v7725 = vrot.slane %v7607, 4
      %v7726 = vsel %vm6204, %v7724, %v7725
      %v7727 = vrot.slane %v7608, 4
      %v7728 = vsel %vm6204, %v7725, %v7727
      %v7729 = vrot.slane %v7609, 4
      %v7730 = vrot.slane %v7610, 4
      %v7731 = vsel %vm6204, %v7729, %v7730
      %v7732 = vrot.slane %v7611, 4
      %v7733 = vsel %vm6204, %v7730, %v7732
      %v7734 = vrot.slane %v7612, 4
      %v7735 = vrot.slane %v7613, 4
      %v7736 = vsel %vm6204, %v7734, %v7735
      %v7737 = vrot.slane %v7614, 4
      %v7738 = vsel %vm6204, %v7735, %v7737
      %v7739 = vrot.slane %v7615, 4
      %v7740 = vrot.slane %v7616, 4
      %v7741 = vsel %vm6204, %v7739, %v7740
      %v7742 = vrot.slane %v7617, 4
      %v7743 = vsel %vm6204, %v7740, %v7742
      %v7744 = vrot.slane %v7618, 4
      %v7745 = vrot.slane %v7619, 4
      %v7746 = vsel %vm6204, %v7744, %v7745
      %v7747 = vrot.slane %v7620, 4
      %v7748 = vsel %vm6204, %v7745, %v7747
      %v7781 = vadd.f32 %v7537, %v7671
      %v7782 = vadd.f32 %v7538, %v7673
      %v7783 = vadd.f32 %v7539, %v7676
      %v7784 = vadd.f32 %v7540, %v7678
      %v7785 = vadd.f32 %v7541, %v7681
      %v7786 = vadd.f32 %v7542, %v7683
      %v7787 = vadd.f32 %v7543, %v7686
      %v7788 = vadd.f32 %v7544, %v7688
      %v7789 = vadd.f32 %v7545, %v7691
      %v7790 = vadd.f32 %v7546, %v7693
      %v7791 = vadd.f32 %v7547, %v7696
      %v7792 = vadd.f32 %v7548, %v7698
      %v7793 = vadd.f32 %v7549, %v7701
      %v7794 = vadd.f32 %v7550, %v7703
      %v7795 = vadd.f32 %v7551, %v7706
      %v7796 = vadd.f32 %v7552, %v7708
      %v7797 = vadd.f32 %v7553, %v7711
      %v7798 = vadd.f32 %v7554, %v7713
      %v7799 = vadd.f32 %v7555, %v7716
      %v7800 = vadd.f32 %v7556, %v7718
      %v7801 = vadd.f32 %v7557, %v7721
      %v7802 = vadd.f32 %v7558, %v7723
      %v7803 = vadd.f32 %v7559, %v7726
      %v7804 = vadd.f32 %v7560, %v7728
      %v7805 = vadd.f32 %v7561, %v7731
      %v7806 = vadd.f32 %v7562, %v7733
      %v7807 = vadd.f32 %v7563, %v7736
      %v7808 = vadd.f32 %v7564, %v7738
      %v7809 = vadd.f32 %v7565, %v7741
      %v7810 = vadd.f32 %v7566, %v7743
      %v7811 = vadd.f32 %v7567, %v7746
      %v7812 = vadd.f32 %v7568, %v7748
      %v7813 = vlaneseq
      %v7814 = vshrl.u32 %v7813, 7
      %v7815 = vsub.s32 5, %v7814
      %v7816 = vrot.slane %v426, %v7815
      %v7817 = vmul.f32 %v435, %v7816
      %v7818 = vmul.f32 %v436, %v7816
      %v7819 = vmul.f32 %v437, %v7816
      %v7820 = vmul.f32 %v438, %v7816
      %v7821 = vmul.f32 %v439, %v7816
      %v7822 = vmul.f32 %v440, %v7816
      %v7823 = vmul.f32 %v441, %v7816
      %v7824 = vmul.f32 %v442, %v7816
      %v7825 = vmul.f32 %v443, %v7816
      %v7826 = vmul.f32 %v444, %v7816
      %v7827 = vmul.f32 %v445, %v7816
      %v7828 = vmul.f32 %v446, %v7816
      %v7829 = vmul.f32 %v447, %v7816
      %v7830 = vmul.f32 %v448, %v7816
      %v7831 = vmul.f32 %v449, %v7816
      %v7832 = vmul.f32 %v450, %v7816
      %v7833 = vmul.f32 %v451, %v7816
      %v7834 = vmul.f32 %v452, %v7816
      %v7835 = vmul.f32 %v453, %v7816
      %v7836 = vmul.f32 %v454, %v7816
      %v7837 = vmul.f32 %v455, %v7816
      %v7838 = vmul.f32 %v456, %v7816
      %v7839 = vmul.f32 %v457, %v7816
      %v7840 = vmul.f32 %v458, %v7816
      %v7841 = vmul.f32 %v459, %v7816
      %v7842 = vmul.f32 %v460, %v7816
      %v7843 = vmul.f32 %v461, %v7816
      %v7844 = vmul.f32 %v462, %v7816
      %v7845 = vmul.f32 %v463, %v7816
      %v7846 = vmul.f32 %v464, %v7816
      %v7847 = vmul.f32 %v465, %v7816
      %v7848 = vmul.f32 %v466, %v7816
      %v7849 = vmul.f32 %v467, %v7816
      %v7850 = vmul.f32 %v468, %v7816
      %v7851 = vmul.f32 %v469, %v7816
      %v7852 = vmul.f32 %v470, %v7816
      %v7853 = vmul.f32 %v471, %v7816
      %v7854 = vmul.f32 %v472, %v7816
      %v7855 = vmul.f32 %v473, %v7816
      %v7856 = vmul.f32 %v474, %v7816
      %v7857 = vmul.f32 %v475, %v7816
      %v7858 = vmul.f32 %v476, %v7816
      %v7859 = vmul.f32 %v477, %v7816
      %v7860 = vmul.f32 %v478, %v7816
      %v7861 = vmul.f32 %v479, %v7816
      %v7862 = vmul.f32 %v480, %v7816
      %v7863 = vmul.f32 %v481, %v7816
      %v7864 = vmul.f32 %v482, %v7816
      %vm7913 = vcmask 1042432
      %v7914 = vrot.slane %v7817, 5
      %v7915 = vrot.slane %v7818, 5
      %v7916 = vsel %vm7913, %v7914, %v7915
      %v7917 = vrot.slane %v7819, 5
      %v7918 = vsel %vm7913, %v7915, %v7917
      %v7919 = vrot.slane %v7820, 5
      %v7920 = vrot.slane %v7821, 5
      %v7921 = vsel %vm7913, %v7919, %v7920
      %v7922 = vrot.slane %v7822, 5
      %v7923 = vsel %vm7913, %v7920, %v7922
      %v7924 = vrot.slane %v7823, 5
      %v7925 = vrot.slane %v7824, 5
      %v7926 = vsel %vm7913, %v7924, %v7925
      %v7927 = vrot.slane %v7825, 5
      %v7928 = vsel %vm7913, %v7925, %v7927
      %v7929 = vrot.slane %v7826, 5
      %v7930 = vrot.slane %v7827, 5
      %v7931 = vsel %vm7913, %v7929, %v7930
      %v7932 = vrot.slane %v7828, 5
      %v7933 = vsel %vm7913, %v7930, %v7932
      %v7934 = vrot.slane %v7829, 5
      %v7935 = vrot.slane %v7830, 5
      %v7936 = vsel %vm7913, %v7934, %v7935
      %v7937 = vrot.slane %v7831, 5
      %v7938 = vsel %vm7913, %v7935, %v7937
      %v7939 = vrot.slane %v7832, 5
      %v7940 = vrot.slane %v7833, 5
      %v7941 = vsel %vm7913, %v7939, %v7940
      %v7942 = vrot.slane %v7834, 5
      %v7943 = vsel %vm7913, %v7940, %v7942
      %v7944 = vrot.slane %v7835, 5
      %v7945 = vrot.slane %v7836, 5
      %v7946 = vsel %vm7913, %v7944, %v7945
      %v7947 = vrot.slane %v7837, 5
      %v7948 = vsel %vm7913, %v7945, %v7947
      %v7949 = vrot.slane %v7838, 5
      %v7950 = vrot.slane %v7839, 5
      %v7951 = vsel %vm7913, %v7949, %v7950
      %v7952 = vrot.slane %v7840, 5
      %v7953 = vsel %vm7913, %v7950, %v7952
      %v7954 = vrot.slane %v7841, 5
      %v7955 = vrot.slane %v7842, 5
      %v7956 = vsel %vm7913, %v7954, %v7955
      %v7957 = vrot.slane %v7843, 5
      %v7958 = vsel %vm7913, %v7955, %v7957
      %v7959 = vrot.slane %v7844, 5
      %v7960 = vrot.slane %v7845, 5
      %v7961 = vsel %vm7913, %v7959, %v7960
      %v7962 = vrot.slane %v7846, 5
      %v7963 = vsel %vm7913, %v7960, %v7962
      %v7964 = vrot.slane %v7847, 5
      %v7965 = vrot.slane %v7848, 5
      %v7966 = vsel %vm7913, %v7964, %v7965
      %v7967 = vrot.slane %v7849, 5
      %v7968 = vsel %vm7913, %v7965, %v7967
      %v7969 = vrot.slane %v7850, 5
      %v7970 = vrot.slane %v7851, 5
      %v7971 = vsel %vm7913, %v7969, %v7970
      %v7972 = vrot.slane %v7852, 5
      %v7973 = vsel %vm7913, %v7970, %v7972
      %v7974 = vrot.slane %v7853, 5
      %v7975 = vrot.slane %v7854, 5
      %v7976 = vsel %vm7913, %v7974, %v7975
      %v7977 = vrot.slane %v7855, 5
      %v7978 = vsel %vm7913, %v7975, %v7977
      %v7979 = vrot.slane %v7856, 5
      %v7980 = vrot.slane %v7857, 5
      %v7981 = vsel %vm7913, %v7979, %v7980
      %v7982 = vrot.slane %v7858, 5
      %v7983 = vsel %vm7913, %v7980, %v7982
      %v7984 = vrot.slane %v7859, 5
      %v7985 = vrot.slane %v7860, 5
      %v7986 = vsel %vm7913, %v7984, %v7985
      %v7987 = vrot.slane %v7861, 5
      %v7988 = vsel %vm7913, %v7985, %v7987
      %v7989 = vrot.slane %v7862, 5
      %v7990 = vrot.slane %v7863, 5
      %v7991 = vsel %vm7913, %v7989, %v7990
      %v7992 = vrot.slane %v7864, 5
      %v7993 = vsel %vm7913, %v7990, %v7992
      %v8026 = vadd.f32 %v7781, %v7916
      %v8027 = vadd.f32 %v7782, %v7918
      %v8028 = vadd.f32 %v7783, %v7921
      %v8029 = vadd.f32 %v7784, %v7923
      %v8030 = vadd.f32 %v7785, %v7926
      %v8031 = vadd.f32 %v7786, %v7928
      %v8032 = vadd.f32 %v7787, %v7931
      %v8033 = vadd.f32 %v7788, %v7933
      %v8034 = vadd.f32 %v7789, %v7936
      %v8035 = vadd.f32 %v7790, %v7938
      %v8036 = vadd.f32 %v7791, %v7941
      %v8037 = vadd.f32 %v7792, %v7943
      %v8038 = vadd.f32 %v7793, %v7946
      %v8039 = vadd.f32 %v7794, %v7948
      %v8040 = vadd.f32 %v7795, %v7951
      %v8041 = vadd.f32 %v7796, %v7953
      %v8042 = vadd.f32 %v7797, %v7956
      %v8043 = vadd.f32 %v7798, %v7958
      %v8044 = vadd.f32 %v7799, %v7961
      %v8045 = vadd.f32 %v7800, %v7963
      %v8046 = vadd.f32 %v7801, %v7966
      %v8047 = vadd.f32 %v7802, %v7968
      %v8048 = vadd.f32 %v7803, %v7971
      %v8049 = vadd.f32 %v7804, %v7973
      %v8050 = vadd.f32 %v7805, %v7976
      %v8051 = vadd.f32 %v7806, %v7978
      %v8052 = vadd.f32 %v7807, %v7981
      %v8053 = vadd.f32 %v7808, %v7983
      %v8054 = vadd.f32 %v7809, %v7986
      %v8055 = vadd.f32 %v7810, %v7988
      %v8056 = vadd.f32 %v7811, %v7991
      %v8057 = vadd.f32 %v7812, %v7993
      %v8058 = vlaneseq
      %v8059 = vshrl.u32 %v8058, 7
      %v8060 = vsub.s32 4, %v8059
      %v8061 = vrot.slane %v427, %v8060
      %v8062 = vmul.f32 %v438, %v8061
      %v8063 = vmul.f32 %v439, %v8061
      %v8064 = vmul.f32 %v440, %v8061
      %v8065 = vmul.f32 %v441, %v8061
      %v8066 = vmul.f32 %v442, %v8061
      %v8067 = vmul.f32 %v443, %v8061
      %v8068 = vmul.f32 %v444, %v8061
      %v8069 = vmul.f32 %v445, %v8061
      %v8070 = vmul.f32 %v446, %v8061
      %v8071 = vmul.f32 %v447, %v8061
      %v8072 = vmul.f32 %v448, %v8061
      %v8073 = vmul.f32 %v449, %v8061
      %v8074 = vmul.f32 %v450, %v8061
      %v8075 = vmul.f32 %v451, %v8061
      %v8076 = vmul.f32 %v452, %v8061
      %v8077 = vmul.f32 %v453, %v8061
      %v8078 = vmul.f32 %v454, %v8061
      %v8079 = vmul.f32 %v455, %v8061
      %v8080 = vmul.f32 %v456, %v8061
      %v8081 = vmul.f32 %v457, %v8061
      %v8082 = vmul.f32 %v458, %v8061
      %v8083 = vmul.f32 %v459, %v8061
      %v8084 = vmul.f32 %v460, %v8061
      %v8085 = vmul.f32 %v461, %v8061
      %v8086 = vmul.f32 %v462, %v8061
      %v8087 = vmul.f32 %v463, %v8061
      %v8088 = vmul.f32 %v464, %v8061
      %v8089 = vmul.f32 %v465, %v8061
      %v8090 = vmul.f32 %v466, %v8061
      %v8091 = vmul.f32 %v467, %v8061
      %v8092 = vmul.f32 %v468, %v8061
      %v8093 = vmul.f32 %v469, %v8061
      %v8094 = vmul.f32 %v470, %v8061
      %v8095 = vmul.f32 %v471, %v8061
      %v8096 = vmul.f32 %v472, %v8061
      %v8097 = vmul.f32 %v473, %v8061
      %v8098 = vmul.f32 %v474, %v8061
      %v8099 = vmul.f32 %v475, %v8061
      %v8100 = vmul.f32 %v476, %v8061
      %v8101 = vmul.f32 %v477, %v8061
      %v8102 = vmul.f32 %v478, %v8061
      %v8103 = vmul.f32 %v479, %v8061
      %v8104 = vmul.f32 %v480, %v8061
      %v8105 = vmul.f32 %v481, %v8061
      %v8106 = vmul.f32 %v482, %v8061
      %v8107 = vmul.f32 %v483, %v8061
      %v8108 = vmul.f32 %v484, %v8061
      %v8109 = vmul.f32 %v485, %v8061
      %v8158 = vrot.slane %v8062, 5
      %v8159 = vrot.slane %v8063, 5
      %v8160 = vsel %vm7913, %v8158, %v8159
      %v8161 = vrot.slane %v8064, 5
      %v8162 = vsel %vm7913, %v8159, %v8161
      %v8163 = vrot.slane %v8065, 5
      %v8164 = vrot.slane %v8066, 5
      %v8165 = vsel %vm7913, %v8163, %v8164
      %v8166 = vrot.slane %v8067, 5
      %v8167 = vsel %vm7913, %v8164, %v8166
      %v8168 = vrot.slane %v8068, 5
      %v8169 = vrot.slane %v8069, 5
      %v8170 = vsel %vm7913, %v8168, %v8169
      %v8171 = vrot.slane %v8070, 5
      %v8172 = vsel %vm7913, %v8169, %v8171
      %v8173 = vrot.slane %v8071, 5
      %v8174 = vrot.slane %v8072, 5
      %v8175 = vsel %vm7913, %v8173, %v8174
      %v8176 = vrot.slane %v8073, 5
      %v8177 = vsel %vm7913, %v8174, %v8176
      %v8178 = vrot.slane %v8074, 5
      %v8179 = vrot.slane %v8075, 5
      %v8180 = vsel %vm7913, %v8178, %v8179
      %v8181 = vrot.slane %v8076, 5
      %v8182 = vsel %vm7913, %v8179, %v8181
      %v8183 = vrot.slane %v8077, 5
      %v8184 = vrot.slane %v8078, 5
      %v8185 = vsel %vm7913, %v8183, %v8184
      %v8186 = vrot.slane %v8079, 5
      %v8187 = vsel %vm7913, %v8184, %v8186
      %v8188 = vrot.slane %v8080, 5
      %v8189 = vrot.slane %v8081, 5
      %v8190 = vsel %vm7913, %v8188, %v8189
      %v8191 = vrot.slane %v8082, 5
      %v8192 = vsel %vm7913, %v8189, %v8191
      %v8193 = vrot.slane %v8083, 5
      %v8194 = vrot.slane %v8084, 5
      %v8195 = vsel %vm7913, %v8193, %v8194
      %v8196 = vrot.slane %v8085, 5
      %v8197 = vsel %vm7913, %v8194, %v8196
      %v8198 = vrot.slane %v8086, 5
      %v8199 = vrot.slane %v8087, 5
      %v8200 = vsel %vm7913, %v8198, %v8199
      %v8201 = vrot.slane %v8088, 5
      %v8202 = vsel %vm7913, %v8199, %v8201
      %v8203 = vrot.slane %v8089, 5
      %v8204 = vrot.slane %v8090, 5
      %v8205 = vsel %vm7913, %v8203, %v8204
      %v8206 = vrot.slane %v8091, 5
      %v8207 = vsel %vm7913, %v8204, %v8206
      %v8208 = vrot.slane %v8092, 5
      %v8209 = vrot.slane %v8093, 5
      %v8210 = vsel %vm7913, %v8208, %v8209
      %v8211 = vrot.slane %v8094, 5
      %v8212 = vsel %vm7913, %v8209, %v8211
      %v8213 = vrot.slane %v8095, 5
      %v8214 = vrot.slane %v8096, 5
      %v8215 = vsel %vm7913, %v8213, %v8214
      %v8216 = vrot.slane %v8097, 5
      %v8217 = vsel %vm7913, %v8214, %v8216
      %v8218 = vrot.slane %v8098, 5
      %v8219 = vrot.slane %v8099, 5
      %v8220 = vsel %vm7913, %v8218, %v8219
      %v8221 = vrot.slane %v8100, 5
      %v8222 = vsel %vm7913, %v8219, %v8221
      %v8223 = vrot.slane %v8101, 5
      %v8224 = vrot.slane %v8102, 5
      %v8225 = vsel %vm7913, %v8223, %v8224
      %v8226 = vrot.slane %v8103, 5
      %v8227 = vsel %vm7913, %v8224, %v8226
      %v8228 = vrot.slane %v8104, 5
      %v8229 = vrot.slane %v8105, 5
      %v8230 = vsel %vm7913, %v8228, %v8229
      %v8231 = vrot.slane %v8106, 5
      %v8232 = vsel %vm7913, %v8229, %v8231
      %v8233 = vrot.slane %v8107, 5
      %v8234 = vrot.slane %v8108, 5
      %v8235 = vsel %vm7913, %v8233, %v8234
      %v8236 = vrot.slane %v8109, 5
      %v8237 = vsel %vm7913, %v8234, %v8236
      %v8270 = vadd.f32 %v8026, %v8160
      %v8271 = vadd.f32 %v8027, %v8162
      %v8272 = vadd.f32 %v8028, %v8165
      %v8273 = vadd.f32 %v8029, %v8167
      %v8274 = vadd.f32 %v8030, %v8170
      %v8275 = vadd.f32 %v8031, %v8172
      %v8276 = vadd.f32 %v8032, %v8175
      %v8277 = vadd.f32 %v8033, %v8177
      %v8278 = vadd.f32 %v8034, %v8180
      %v8279 = vadd.f32 %v8035, %v8182
      %v8280 = vadd.f32 %v8036, %v8185
      %v8281 = vadd.f32 %v8037, %v8187
      %v8282 = vadd.f32 %v8038, %v8190
      %v8283 = vadd.f32 %v8039, %v8192
      %v8284 = vadd.f32 %v8040, %v8195
      %v8285 = vadd.f32 %v8041, %v8197
      %v8286 = vadd.f32 %v8042, %v8200
      %v8287 = vadd.f32 %v8043, %v8202
      %v8288 = vadd.f32 %v8044, %v8205
      %v8289 = vadd.f32 %v8045, %v8207
      %v8290 = vadd.f32 %v8046, %v8210
      %v8291 = vadd.f32 %v8047, %v8212
      %v8292 = vadd.f32 %v8048, %v8215
      %v8293 = vadd.f32 %v8049, %v8217
      %v8294 = vadd.f32 %v8050, %v8220
      %v8295 = vadd.f32 %v8051, %v8222
      %v8296 = vadd.f32 %v8052, %v8225
      %v8297 = vadd.f32 %v8053, %v8227
      %v8298 = vadd.f32 %v8054, %v8230
      %v8299 = vadd.f32 %v8055, %v8232
      %v8300 = vadd.f32 %v8056, %v8235
      %v8301 = vadd.f32 %v8057, %v8237
      %v8302 = vlaneseq
      %v8303 = vshrl.u32 %v8302, 7
      %v8304 = vsub.s32 3, %v8303
      %v8305 = vrot.slane %v428, %v8304
      %v8306 = vmul.f32 %v441, %v8305
      %v8307 = vmul.f32 %v442, %v8305
      %v8308 = vmul.f32 %v443, %v8305
      %v8309 = vmul.f32 %v444, %v8305
      %v8310 = vmul.f32 %v445, %v8305
      %v8311 = vmul.f32 %v446, %v8305
      %v8312 = vmul.f32 %v447, %v8305
      %v8313 = vmul.f32 %v448, %v8305
      %v8314 = vmul.f32 %v449, %v8305
      %v8315 = vmul.f32 %v450, %v8305
      %v8316 = vmul.f32 %v451, %v8305
      %v8317 = vmul.f32 %v452, %v8305
      %v8318 = vmul.f32 %v453, %v8305
      %v8319 = vmul.f32 %v454, %v8305
      %v8320 = vmul.f32 %v455, %v8305
      %v8321 = vmul.f32 %v456, %v8305
      %v8322 = vmul.f32 %v457, %v8305
      %v8323 = vmul.f32 %v458, %v8305
      %v8324 = vmul.f32 %v459, %v8305
      %v8325 = vmul.f32 %v460, %v8305
      %v8326 = vmul.f32 %v461, %v8305
      %v8327 = vmul.f32 %v462, %v8305
      %v8328 = vmul.f32 %v463, %v8305
      %v8329 = vmul.f32 %v464, %v8305
      %v8330 = vmul.f32 %v465, %v8305
      %v8331 = vmul.f32 %v466, %v8305
      %v8332 = vmul.f32 %v467, %v8305
      %v8333 = vmul.f32 %v468, %v8305
      %v8334 = vmul.f32 %v469, %v8305
      %v8335 = vmul.f32 %v470, %v8305
      %v8336 = vmul.f32 %v471, %v8305
      %v8337 = vmul.f32 %v472, %v8305
      %v8338 = vmul.f32 %v473, %v8305
      %v8339 = vmul.f32 %v474, %v8305
      %v8340 = vmul.f32 %v475, %v8305
      %v8341 = vmul.f32 %v476, %v8305
      %v8342 = vmul.f32 %v477, %v8305
      %v8343 = vmul.f32 %v478, %v8305
      %v8344 = vmul.f32 %v479, %v8305
      %v8345 = vmul.f32 %v480, %v8305
      %v8346 = vmul.f32 %v481, %v8305
      %v8347 = vmul.f32 %v482, %v8305
      %v8348 = vmul.f32 %v483, %v8305
      %v8349 = vmul.f32 %v484, %v8305
      %v8350 = vmul.f32 %v485, %v8305
      %v8351 = vmul.f32 %v486, %v8305
      %v8352 = vmul.f32 %v487, %v8305
      %v8353 = vmul.f32 %v488, %v8305
      %v8402 = vrot.slane %v8306, 5
      %v8403 = vrot.slane %v8307, 5
      %v8404 = vsel %vm7913, %v8402, %v8403
      %v8405 = vrot.slane %v8308, 5
      %v8406 = vsel %vm7913, %v8403, %v8405
      %v8407 = vrot.slane %v8309, 5
      %v8408 = vrot.slane %v8310, 5
      %v8409 = vsel %vm7913, %v8407, %v8408
      %v8410 = vrot.slane %v8311, 5
      %v8411 = vsel %vm7913, %v8408, %v8410
      %v8412 = vrot.slane %v8312, 5
      %v8413 = vrot.slane %v8313, 5
      %v8414 = vsel %vm7913, %v8412, %v8413
      %v8415 = vrot.slane %v8314, 5
      %v8416 = vsel %vm7913, %v8413, %v8415
      %v8417 = vrot.slane %v8315, 5
      %v8418 = vrot.slane %v8316, 5
      %v8419 = vsel %vm7913, %v8417, %v8418
      %v8420 = vrot.slane %v8317, 5
      %v8421 = vsel %vm7913, %v8418, %v8420
      %v8422 = vrot.slane %v8318, 5
      %v8423 = vrot.slane %v8319, 5
      %v8424 = vsel %vm7913, %v8422, %v8423
      %v8425 = vrot.slane %v8320, 5
      %v8426 = vsel %vm7913, %v8423, %v8425
      %v8427 = vrot.slane %v8321, 5
      %v8428 = vrot.slane %v8322, 5
      %v8429 = vsel %vm7913, %v8427, %v8428
      %v8430 = vrot.slane %v8323, 5
      %v8431 = vsel %vm7913, %v8428, %v8430
      %v8432 = vrot.slane %v8324, 5
      %v8433 = vrot.slane %v8325, 5
      %v8434 = vsel %vm7913, %v8432, %v8433
      %v8435 = vrot.slane %v8326, 5
      %v8436 = vsel %vm7913, %v8433, %v8435
      %v8437 = vrot.slane %v8327, 5
      %v8438 = vrot.slane %v8328, 5
      %v8439 = vsel %vm7913, %v8437, %v8438
      %v8440 = vrot.slane %v8329, 5
      %v8441 = vsel %vm7913, %v8438, %v8440
      %v8442 = vrot.slane %v8330, 5
      %v8443 = vrot.slane %v8331, 5
      %v8444 = vsel %vm7913, %v8442, %v8443
      %v8445 = vrot.slane %v8332, 5
      %v8446 = vsel %vm7913, %v8443, %v8445
      %v8447 = vrot.slane %v8333, 5
      %v8448 = vrot.slane %v8334, 5
      %v8449 = vsel %vm7913, %v8447, %v8448
      %v8450 = vrot.slane %v8335, 5
      %v8451 = vsel %vm7913, %v8448, %v8450
      %v8452 = vrot.slane %v8336, 5
      %v8453 = vrot.slane %v8337, 5
      %v8454 = vsel %vm7913, %v8452, %v8453
      %v8455 = vrot.slane %v8338, 5
      %v8456 = vsel %vm7913, %v8453, %v8455
      %v8457 = vrot.slane %v8339, 5
      %v8458 = vrot.slane %v8340, 5
      %v8459 = vsel %vm7913, %v8457, %v8458
      %v8460 = vrot.slane %v8341, 5
      %v8461 = vsel %vm7913, %v8458, %v8460
      %v8462 = vrot.slane %v8342, 5
      %v8463 = vrot.slane %v8343, 5
      %v8464 = vsel %vm7913, %v8462, %v8463
      %v8465 = vrot.slane %v8344, 5
      %v8466 = vsel %vm7913, %v8463, %v8465
      %v8467 = vrot.slane %v8345, 5
      %v8468 = vrot.slane %v8346, 5
      %v8469 = vsel %vm7913, %v8467, %v8468
      %v8470 = vrot.slane %v8347, 5
      %v8471 = vsel %vm7913, %v8468, %v8470
      %v8472 = vrot.slane %v8348, 5
      %v8473 = vrot.slane %v8349, 5
      %v8474 = vsel %vm7913, %v8472, %v8473
      %v8475 = vrot.slane %v8350, 5
      %v8476 = vsel %vm7913, %v8473, %v8475
      %v8477 = vrot.slane %v8351, 5
      %v8478 = vrot.slane %v8352, 5
      %v8479 = vsel %vm7913, %v8477, %v8478
      %v8480 = vrot.slane %v8353, 5
      %v8481 = vsel %vm7913, %v8478, %v8480
      %v8514 = vadd.f32 %v8270, %v8404
      %v8515 = vadd.f32 %v8271, %v8406
      %v8516 = vadd.f32 %v8272, %v8409
      %v8517 = vadd.f32 %v8273, %v8411
      %v8518 = vadd.f32 %v8274, %v8414
      %v8519 = vadd.f32 %v8275, %v8416
      %v8520 = vadd.f32 %v8276, %v8419
      %v8521 = vadd.f32 %v8277, %v8421
      %v8522 = vadd.f32 %v8278, %v8424
      %v8523 = vadd.f32 %v8279, %v8426
      %v8524 = vadd.f32 %v8280, %v8429
      %v8525 = vadd.f32 %v8281, %v8431
      %v8526 = vadd.f32 %v8282, %v8434
      %v8527 = vadd.f32 %v8283, %v8436
      %v8528 = vadd.f32 %v8284, %v8439
      %v8529 = vadd.f32 %v8285, %v8441
      %v8530 = vadd.f32 %v8286, %v8444
      %v8531 = vadd.f32 %v8287, %v8446
      %v8532 = vadd.f32 %v8288, %v8449
      %v8533 = vadd.f32 %v8289, %v8451
      %v8534 = vadd.f32 %v8290, %v8454
      %v8535 = vadd.f32 %v8291, %v8456
      %v8536 = vadd.f32 %v8292, %v8459
      %v8537 = vadd.f32 %v8293, %v8461
      %v8538 = vadd.f32 %v8294, %v8464
      %v8539 = vadd.f32 %v8295, %v8466
      %v8540 = vadd.f32 %v8296, %v8469
      %v8541 = vadd.f32 %v8297, %v8471
      %v8542 = vadd.f32 %v8298, %v8474
      %v8543 = vadd.f32 %v8299, %v8476
      %v8544 = vadd.f32 %v8300, %v8479
      %v8545 = vadd.f32 %v8301, %v8481
      %v8546 = vlaneseq
      %v8547 = vshrl.u32 %v8546, 7
      %v8548 = vsub.s32 2, %v8547
      %v8549 = vrot.slane %v429, %v8548
      %v8550 = vmul.f32 %v444, %v8549
      %v8551 = vmul.f32 %v445, %v8549
      %v8552 = vmul.f32 %v446, %v8549
      %v8553 = vmul.f32 %v447, %v8549
      %v8554 = vmul.f32 %v448, %v8549
      %v8555 = vmul.f32 %v449, %v8549
      %v8556 = vmul.f32 %v450, %v8549
      %v8557 = vmul.f32 %v451, %v8549
      %v8558 = vmul.f32 %v452, %v8549
      %v8559 = vmul.f32 %v453, %v8549
      %v8560 = vmul.f32 %v454, %v8549
      %v8561 = vmul.f32 %v455, %v8549
      %v8562 = vmul.f32 %v456, %v8549
      %v8563 = vmul.f32 %v457, %v8549
      %v8564 = vmul.f32 %v458, %v8549
      %v8565 = vmul.f32 %v459, %v8549
      %v8566 = vmul.f32 %v460, %v8549
      %v8567 = vmul.f32 %v461, %v8549
      %v8568 = vmul.f32 %v462, %v8549
      %v8569 = vmul.f32 %v463, %v8549
      %v8570 = vmul.f32 %v464, %v8549
      %v8571 = vmul.f32 %v465, %v8549
      %v8572 = vmul.f32 %v466, %v8549
      %v8573 = vmul.f32 %v467, %v8549
      %v8574 = vmul.f32 %v468, %v8549
      %v8575 = vmul.f32 %v469, %v8549
      %v8576 = vmul.f32 %v470, %v8549
      %v8577 = vmul.f32 %v471, %v8549
      %v8578 = vmul.f32 %v472, %v8549
      %v8579 = vmul.f32 %v473, %v8549
      %v8580 = vmul.f32 %v474, %v8549
      %v8581 = vmul.f32 %v475, %v8549
      %v8582 = vmul.f32 %v476, %v8549
      %v8583 = vmul.f32 %v477, %v8549
      %v8584 = vmul.f32 %v478, %v8549
      %v8585 = vmul.f32 %v479, %v8549
      %v8586 = vmul.f32 %v480, %v8549
      %v8587 = vmul.f32 %v481, %v8549
      %v8588 = vmul.f32 %v482, %v8549
      %v8589 = vmul.f32 %v483, %v8549
      %v8590 = vmul.f32 %v484, %v8549
      %v8591 = vmul.f32 %v485, %v8549
      %v8592 = vmul.f32 %v486, %v8549
      %v8593 = vmul.f32 %v487, %v8549
      %v8594 = vmul.f32 %v488, %v8549
      %v8595 = vmul.f32 %v489, %v8549
      %v8596 = vmul.f32 %v490, %v8549
      %v8597 = vmul.f32 %v491, %v8549
      %v8646 = vrot.slane %v8550, 5
      %v8647 = vrot.slane %v8551, 5
      %v8648 = vsel %vm7913, %v8646, %v8647
      %v8649 = vrot.slane %v8552, 5
      %v8650 = vsel %vm7913, %v8647, %v8649
      %v8651 = vrot.slane %v8553, 5
      %v8652 = vrot.slane %v8554, 5
      %v8653 = vsel %vm7913, %v8651, %v8652
      %v8654 = vrot.slane %v8555, 5
      %v8655 = vsel %vm7913, %v8652, %v8654
      %v8656 = vrot.slane %v8556, 5
      %v8657 = vrot.slane %v8557, 5
      %v8658 = vsel %vm7913, %v8656, %v8657
      %v8659 = vrot.slane %v8558, 5
      %v8660 = vsel %vm7913, %v8657, %v8659
      %v8661 = vrot.slane %v8559, 5
      %v8662 = vrot.slane %v8560, 5
      %v8663 = vsel %vm7913, %v8661, %v8662
      %v8664 = vrot.slane %v8561, 5
      %v8665 = vsel %vm7913, %v8662, %v8664
      %v8666 = vrot.slane %v8562, 5
      %v8667 = vrot.slane %v8563, 5
      %v8668 = vsel %vm7913, %v8666, %v8667
      %v8669 = vrot.slane %v8564, 5
      %v8670 = vsel %vm7913, %v8667, %v8669
      %v8671 = vrot.slane %v8565, 5
      %v8672 = vrot.slane %v8566, 5
      %v8673 = vsel %vm7913, %v8671, %v8672
      %v8674 = vrot.slane %v8567, 5
      %v8675 = vsel %vm7913, %v8672, %v8674
      %v8676 = vrot.slane %v8568, 5
      %v8677 = vrot.slane %v8569, 5
      %v8678 = vsel %vm7913, %v8676, %v8677
      %v8679 = vrot.slane %v8570, 5
      %v8680 = vsel %vm7913, %v8677, %v8679
      %v8681 = vrot.slane %v8571, 5
      %v8682 = vrot.slane %v8572, 5
      %v8683 = vsel %vm7913, %v8681, %v8682
      %v8684 = vrot.slane %v8573, 5
      %v8685 = vsel %vm7913, %v8682, %v8684
      %v8686 = vrot.slane %v8574, 5
      %v8687 = vrot.slane %v8575, 5
      %v8688 = vsel %vm7913, %v8686, %v8687
      %v8689 = vrot.slane %v8576, 5
      %v8690 = vsel %vm7913, %v8687, %v8689
      %v8691 = vrot.slane %v8577, 5
      %v8692 = vrot.slane %v8578, 5
      %v8693 = vsel %vm7913, %v8691, %v8692
      %v8694 = vrot.slane %v8579, 5
      %v8695 = vsel %vm7913, %v8692, %v8694
      %v8696 = vrot.slane %v8580, 5
      %v8697 = vrot.slane %v8581, 5
      %v8698 = vsel %vm7913, %v8696, %v8697
      %v8699 = vrot.slane %v8582, 5
      %v8700 = vsel %vm7913, %v8697, %v8699
      %v8701 = vrot.slane %v8583, 5
      %v8702 = vrot.slane %v8584, 5
      %v8703 = vsel %vm7913, %v8701, %v8702
      %v8704 = vrot.slane %v8585, 5
      %v8705 = vsel %vm7913, %v8702, %v8704
      %v8706 = vrot.slane %v8586, 5
      %v8707 = vrot.slane %v8587, 5
      %v8708 = vsel %vm7913, %v8706, %v8707
      %v8709 = vrot.slane %v8588, 5
      %v8710 = vsel %vm7913, %v8707, %v8709
      %v8711 = vrot.slane %v8589, 5
      %v8712 = vrot.slane %v8590, 5
      %v8713 = vsel %vm7913, %v8711, %v8712
      %v8714 = vrot.slane %v8591, 5
      %v8715 = vsel %vm7913, %v8712, %v8714
      %v8716 = vrot.slane %v8592, 5
      %v8717 = vrot.slane %v8593, 5
      %v8718 = vsel %vm7913, %v8716, %v8717
      %v8719 = vrot.slane %v8594, 5
      %v8720 = vsel %vm7913, %v8717, %v8719
      %v8721 = vrot.slane %v8595, 5
      %v8722 = vrot.slane %v8596, 5
      %v8723 = vsel %vm7913, %v8721, %v8722
      %v8724 = vrot.slane %v8597, 5
      %v8725 = vsel %vm7913, %v8722, %v8724
      %v8758 = vadd.f32 %v8514, %v8648
      %v8759 = vadd.f32 %v8515, %v8650
      %v8760 = vadd.f32 %v8516, %v8653
      %v8761 = vadd.f32 %v8517, %v8655
      %v8762 = vadd.f32 %v8518, %v8658
      %v8763 = vadd.f32 %v8519, %v8660
      %v8764 = vadd.f32 %v8520, %v8663
      %v8765 = vadd.f32 %v8521, %v8665
      %v8766 = vadd.f32 %v8522, %v8668
      %v8767 = vadd.f32 %v8523, %v8670
      %v8768 = vadd.f32 %v8524, %v8673
      %v8769 = vadd.f32 %v8525, %v8675
      %v8770 = vadd.f32 %v8526, %v8678
      %v8771 = vadd.f32 %v8527, %v8680
      %v8772 = vadd.f32 %v8528, %v8683
      %v8773 = vadd.f32 %v8529, %v8685
      %v8774 = vadd.f32 %v8530, %v8688
      %v8775 = vadd.f32 %v8531, %v8690
      %v8776 = vadd.f32 %v8532, %v8693
      %v8777 = vadd.f32 %v8533, %v8695
      %v8778 = vadd.f32 %v8534, %v8698
      %v8779 = vadd.f32 %v8535, %v8700
      %v8780 = vadd.f32 %v8536, %v8703
      %v8781 = vadd.f32 %v8537, %v8705
      %v8782 = vadd.f32 %v8538, %v8708
      %v8783 = vadd.f32 %v8539, %v8710
      %v8784 = vadd.f32 %v8540, %v8713
      %v8785 = vadd.f32 %v8541, %v8715
      %v8786 = vadd.f32 %v8542, %v8718
      %v8787 = vadd.f32 %v8543, %v8720
      %v8788 = vadd.f32 %v8544, %v8723
      %v8789 = vadd.f32 %v8545, %v8725
      %v8790 = vlaneseq
      %v8791 = vshrl.u32 %v8790, 7
      %v8792 = vsub.s32 1, %v8791
      %v8793 = vrot.slane %v430, %v8792
      %v8794 = vmul.f32 %v447, %v8793
      %v8795 = vmul.f32 %v448, %v8793
      %v8796 = vmul.f32 %v449, %v8793
      %v8797 = vmul.f32 %v450, %v8793
      %v8798 = vmul.f32 %v451, %v8793
      %v8799 = vmul.f32 %v452, %v8793
      %v8800 = vmul.f32 %v453, %v8793
      %v8801 = vmul.f32 %v454, %v8793
      %v8802 = vmul.f32 %v455, %v8793
      %v8803 = vmul.f32 %v456, %v8793
      %v8804 = vmul.f32 %v457, %v8793
      %v8805 = vmul.f32 %v458, %v8793
      %v8806 = vmul.f32 %v459, %v8793
      %v8807 = vmul.f32 %v460, %v8793
      %v8808 = vmul.f32 %v461, %v8793
      %v8809 = vmul.f32 %v462, %v8793
      %v8810 = vmul.f32 %v463, %v8793
      %v8811 = vmul.f32 %v464, %v8793
      %v8812 = vmul.f32 %v465, %v8793
      %v8813 = vmul.f32 %v466, %v8793
      %v8814 = vmul.f32 %v467, %v8793
      %v8815 = vmul.f32 %v468, %v8793
      %v8816 = vmul.f32 %v469, %v8793
      %v8817 = vmul.f32 %v470, %v8793
      %v8818 = vmul.f32 %v471, %v8793
      %v8819 = vmul.f32 %v472, %v8793
      %v8820 = vmul.f32 %v473, %v8793
      %v8821 = vmul.f32 %v474, %v8793
      %v8822 = vmul.f32 %v475, %v8793
      %v8823 = vmul.f32 %v476, %v8793
      %v8824 = vmul.f32 %v477, %v8793
      %v8825 = vmul.f32 %v478, %v8793
      %v8826 = vmul.f32 %v479, %v8793
      %v8827 = vmul.f32 %v480, %v8793
      %v8828 = vmul.f32 %v481, %v8793
      %v8829 = vmul.f32 %v482, %v8793
      %v8830 = vmul.f32 %v483, %v8793
      %v8831 = vmul.f32 %v484, %v8793
      %v8832 = vmul.f32 %v485, %v8793
      %v8833 = vmul.f32 %v486, %v8793
      %v8834 = vmul.f32 %v487, %v8793
      %v8835 = vmul.f32 %v488, %v8793
      %v8836 = vmul.f32 %v489, %v8793
      %v8837 = vmul.f32 %v490, %v8793
      %v8838 = vmul.f32 %v491, %v8793
      %v8839 = vmul.f32 %v492, %v8793
      %v8840 = vmul.f32 %v493, %v8793
      %v8841 = vmul.f32 %v494, %v8793
      %v8890 = vrot.slane %v8794, 5
      %v8891 = vrot.slane %v8795, 5
      %v8892 = vsel %vm7913, %v8890, %v8891
      %v8893 = vrot.slane %v8796, 5
      %v8894 = vsel %vm7913, %v8891, %v8893
      %v8895 = vrot.slane %v8797, 5
      %v8896 = vrot.slane %v8798, 5
      %v8897 = vsel %vm7913, %v8895, %v8896
      %v8898 = vrot.slane %v8799, 5
      %v8899 = vsel %vm7913, %v8896, %v8898
      %v8900 = vrot.slane %v8800, 5
      %v8901 = vrot.slane %v8801, 5
      %v8902 = vsel %vm7913, %v8900, %v8901
      %v8903 = vrot.slane %v8802, 5
      %v8904 = vsel %vm7913, %v8901, %v8903
      %v8905 = vrot.slane %v8803, 5
      %v8906 = vrot.slane %v8804, 5
      %v8907 = vsel %vm7913, %v8905, %v8906
      %v8908 = vrot.slane %v8805, 5
      %v8909 = vsel %vm7913, %v8906, %v8908
      %v8910 = vrot.slane %v8806, 5
      %v8911 = vrot.slane %v8807, 5
      %v8912 = vsel %vm7913, %v8910, %v8911
      %v8913 = vrot.slane %v8808, 5
      %v8914 = vsel %vm7913, %v8911, %v8913
      %v8915 = vrot.slane %v8809, 5
      %v8916 = vrot.slane %v8810, 5
      %v8917 = vsel %vm7913, %v8915, %v8916
      %v8918 = vrot.slane %v8811, 5
      %v8919 = vsel %vm7913, %v8916, %v8918
      %v8920 = vrot.slane %v8812, 5
      %v8921 = vrot.slane %v8813, 5
      %v8922 = vsel %vm7913, %v8920, %v8921
      %v8923 = vrot.slane %v8814, 5
      %v8924 = vsel %vm7913, %v8921, %v8923
      %v8925 = vrot.slane %v8815, 5
      %v8926 = vrot.slane %v8816, 5
      %v8927 = vsel %vm7913, %v8925, %v8926
      %v8928 = vrot.slane %v8817, 5
      %v8929 = vsel %vm7913, %v8926, %v8928
      %v8930 = vrot.slane %v8818, 5
      %v8931 = vrot.slane %v8819, 5
      %v8932 = vsel %vm7913, %v8930, %v8931
      %v8933 = vrot.slane %v8820, 5
      %v8934 = vsel %vm7913, %v8931, %v8933
      %v8935 = vrot.slane %v8821, 5
      %v8936 = vrot.slane %v8822, 5
      %v8937 = vsel %vm7913, %v8935, %v8936
      %v8938 = vrot.slane %v8823, 5
      %v8939 = vsel %vm7913, %v8936, %v8938
      %v8940 = vrot.slane %v8824, 5
      %v8941 = vrot.slane %v8825, 5
      %v8942 = vsel %vm7913, %v8940, %v8941
      %v8943 = vrot.slane %v8826, 5
      %v8944 = vsel %vm7913, %v8941, %v8943
      %v8945 = vrot.slane %v8827, 5
      %v8946 = vrot.slane %v8828, 5
      %v8947 = vsel %vm7913, %v8945, %v8946
      %v8948 = vrot.slane %v8829, 5
      %v8949 = vsel %vm7913, %v8946, %v8948
      %v8950 = vrot.slane %v8830, 5
      %v8951 = vrot.slane %v8831, 5
      %v8952 = vsel %vm7913, %v8950, %v8951
      %v8953 = vrot.slane %v8832, 5
      %v8954 = vsel %vm7913, %v8951, %v8953
      %v8955 = vrot.slane %v8833, 5
      %v8956 = vrot.slane %v8834, 5
      %v8957 = vsel %vm7913, %v8955, %v8956
      %v8958 = vrot.slane %v8835, 5
      %v8959 = vsel %vm7913, %v8956, %v8958
      %v8960 = vrot.slane %v8836, 5
      %v8961 = vrot.slane %v8837, 5
      %v8962 = vsel %vm7913, %v8960, %v8961
      %v8963 = vrot.slane %v8838, 5
      %v8964 = vsel %vm7913, %v8961, %v8963
      %v8965 = vrot.slane %v8839, 5
      %v8966 = vrot.slane %v8840, 5
      %v8967 = vsel %vm7913, %v8965, %v8966
      %v8968 = vrot.slane %v8841, 5
      %v8969 = vsel %vm7913, %v8966, %v8968
      %v9002 = vadd.f32 %v8758, %v8892
      %v9003 = vadd.f32 %v8759, %v8894
      %v9004 = vadd.f32 %v8760, %v8897
      %v9005 = vadd.f32 %v8761, %v8899
      %v9006 = vadd.f32 %v8762, %v8902
      %v9007 = vadd.f32 %v8763, %v8904
      %v9008 = vadd.f32 %v8764, %v8907
      %v9009 = vadd.f32 %v8765, %v8909
      %v9010 = vadd.f32 %v8766, %v8912
      %v9011 = vadd.f32 %v8767, %v8914
      %v9012 = vadd.f32 %v8768, %v8917
      %v9013 = vadd.f32 %v8769, %v8919
      %v9014 = vadd.f32 %v8770, %v8922
      %v9015 = vadd.f32 %v8771, %v8924
      %v9016 = vadd.f32 %v8772, %v8927
      %v9017 = vadd.f32 %v8773, %v8929
      %v9018 = vadd.f32 %v8774, %v8932
      %v9019 = vadd.f32 %v8775, %v8934
      %v9020 = vadd.f32 %v8776, %v8937
      %v9021 = vadd.f32 %v8777, %v8939
      %v9022 = vadd.f32 %v8778, %v8942
      %v9023 = vadd.f32 %v8779, %v8944
      %v9024 = vadd.f32 %v8780, %v8947
      %v9025 = vadd.f32 %v8781, %v8949
      %v9026 = vadd.f32 %v8782, %v8952
      %v9027 = vadd.f32 %v8783, %v8954
      %v9028 = vadd.f32 %v8784, %v8957
      %v9029 = vadd.f32 %v8785, %v8959
      %v9030 = vadd.f32 %v8786, %v8962
      %v9031 = vadd.f32 %v8787, %v8964
      %v9032 = vadd.f32 %v8788, %v8967
      %v9033 = vadd.f32 %v8789, %v8969
      %v9034 = vlaneseq
      %v9035 = vshrl.u32 %v9034, 7
      %v9036 = vsub.s32 0, %v9035
      %v9037 = vrot.slane %v431, %v9036
      %v9038 = vmul.f32 %v450, %v9037
      %v9039 = vmul.f32 %v451, %v9037
      %v9040 = vmul.f32 %v452, %v9037
      %v9041 = vmul.f32 %v453, %v9037
      %v9042 = vmul.f32 %v454, %v9037
      %v9043 = vmul.f32 %v455, %v9037
      %v9044 = vmul.f32 %v456, %v9037
      %v9045 = vmul.f32 %v457, %v9037
      %v9046 = vmul.f32 %v458, %v9037
      %v9047 = vmul.f32 %v459, %v9037
      %v9048 = vmul.f32 %v460, %v9037
      %v9049 = vmul.f32 %v461, %v9037
      %v9050 = vmul.f32 %v462, %v9037
      %v9051 = vmul.f32 %v463, %v9037
      %v9052 = vmul.f32 %v464, %v9037
      %v9053 = vmul.f32 %v465, %v9037
      %v9054 = vmul.f32 %v466, %v9037
      %v9055 = vmul.f32 %v467, %v9037
      %v9056 = vmul.f32 %v468, %v9037
      %v9057 = vmul.f32 %v469, %v9037
      %v9058 = vmul.f32 %v470, %v9037
      %v9059 = vmul.f32 %v471, %v9037
      %v9060 = vmul.f32 %v472, %v9037
      %v9061 = vmul.f32 %v473, %v9037
      %v9062 = vmul.f32 %v474, %v9037
      %v9063 = vmul.f32 %v475, %v9037
      %v9064 = vmul.f32 %v476, %v9037
      %v9065 = vmul.f32 %v477, %v9037
      %v9066 = vmul.f32 %v478, %v9037
      %v9067 = vmul.f32 %v479, %v9037
      %v9068 = vmul.f32 %v480, %v9037
      %v9069 = vmul.f32 %v481, %v9037
      %v9070 = vmul.f32 %v482, %v9037
      %v9071 = vmul.f32 %v483, %v9037
      %v9072 = vmul.f32 %v484, %v9037
      %v9073 = vmul.f32 %v485, %v9037
      %v9074 = vmul.f32 %v486, %v9037
      %v9075 = vmul.f32 %v487, %v9037
      %v9076 = vmul.f32 %v488, %v9037
      %v9077 = vmul.f32 %v489, %v9037
      %v9078 = vmul.f32 %v490, %v9037
      %v9079 = vmul.f32 %v491, %v9037
      %v9080 = vmul.f32 %v492, %v9037
      %v9081 = vmul.f32 %v493, %v9037
      %v9082 = vmul.f32 %v494, %v9037
      %v9083 = vmul.f32 %v495, %v9037
      %v9084 = vmul.f32 %v496, %v9037
      %v9085 = vmul.f32 %v497, %v9037
      %v9134 = vrot.slane %v9038, 5
      %v9135 = vrot.slane %v9039, 5
      %v9136 = vsel %vm7913, %v9134, %v9135
      %v9137 = vrot.slane %v9040, 5
      %v9138 = vsel %vm7913, %v9135, %v9137
      %v9139 = vrot.slane %v9041, 5
      %v9140 = vrot.slane %v9042, 5
      %v9141 = vsel %vm7913, %v9139, %v9140
      %v9142 = vrot.slane %v9043, 5
      %v9143 = vsel %vm7913, %v9140, %v9142
      %v9144 = vrot.slane %v9044, 5
      %v9145 = vrot.slane %v9045, 5
      %v9146 = vsel %vm7913, %v9144, %v9145
      %v9147 = vrot.slane %v9046, 5
      %v9148 = vsel %vm7913, %v9145, %v9147
      %v9149 = vrot.slane %v9047, 5
      %v9150 = vrot.slane %v9048, 5
      %v9151 = vsel %vm7913, %v9149, %v9150
      %v9152 = vrot.slane %v9049, 5
      %v9153 = vsel %vm7913, %v9150, %v9152
      %v9154 = vrot.slane %v9050, 5
      %v9155 = vrot.slane %v9051, 5
      %v9156 = vsel %vm7913, %v9154, %v9155
      %v9157 = vrot.slane %v9052, 5
      %v9158 = vsel %vm7913, %v9155, %v9157
      %v9159 = vrot.slane %v9053, 5
      %v9160 = vrot.slane %v9054, 5
      %v9161 = vsel %vm7913, %v9159, %v9160
      %v9162 = vrot.slane %v9055, 5
      %v9163 = vsel %vm7913, %v9160, %v9162
      %v9164 = vrot.slane %v9056, 5
      %v9165 = vrot.slane %v9057, 5
      %v9166 = vsel %vm7913, %v9164, %v9165
      %v9167 = vrot.slane %v9058, 5
      %v9168 = vsel %vm7913, %v9165, %v9167
      %v9169 = vrot.slane %v9059, 5
      %v9170 = vrot.slane %v9060, 5
      %v9171 = vsel %vm7913, %v9169, %v9170
      %v9172 = vrot.slane %v9061, 5
      %v9173 = vsel %vm7913, %v9170, %v9172
      %v9174 = vrot.slane %v9062, 5
      %v9175 = vrot.slane %v9063, 5
      %v9176 = vsel %vm7913, %v9174, %v9175
      %v9177 = vrot.slane %v9064, 5
      %v9178 = vsel %vm7913, %v9175, %v9177
      %v9179 = vrot.slane %v9065, 5
      %v9180 = vrot.slane %v9066, 5
      %v9181 = vsel %vm7913, %v9179, %v9180
      %v9182 = vrot.slane %v9067, 5
      %v9183 = vsel %vm7913, %v9180, %v9182
      %v9184 = vrot.slane %v9068, 5
      %v9185 = vrot.slane %v9069, 5
      %v9186 = vsel %vm7913, %v9184, %v9185
      %v9187 = vrot.slane %v9070, 5
      %v9188 = vsel %vm7913, %v9185, %v9187
      %v9189 = vrot.slane %v9071, 5
      %v9190 = vrot.slane %v9072, 5
      %v9191 = vsel %vm7913, %v9189, %v9190
      %v9192 = vrot.slane %v9073, 5
      %v9193 = vsel %vm7913, %v9190, %v9192
      %v9194 = vrot.slane %v9074, 5
      %v9195 = vrot.slane %v9075, 5
      %v9196 = vsel %vm7913, %v9194, %v9195
      %v9197 = vrot.slane %v9076, 5
      %v9198 = vsel %vm7913, %v9195, %v9197
      %v9199 = vrot.slane %v9077, 5
      %v9200 = vrot.slane %v9078, 5
      %v9201 = vsel %vm7913, %v9199, %v9200
      %v9202 = vrot.slane %v9079, 5
      %v9203 = vsel %vm7913, %v9200, %v9202
      %v9204 = vrot.slane %v9080, 5
      %v9205 = vrot.slane %v9081, 5
      %v9206 = vsel %vm7913, %v9204, %v9205
      %v9207 = vrot.slane %v9082, 5
      %v9208 = vsel %vm7913, %v9205, %v9207
      %v9209 = vrot.slane %v9083, 5
      %v9210 = vrot.slane %v9084, 5
      %v9211 = vsel %vm7913, %v9209, %v9210
      %v9212 = vrot.slane %v9085, 5
      %v9213 = vsel %vm7913, %v9210, %v9212
      %v9246 = vadd.f32 %v9002, %v9136
      %v9247 = vadd.f32 %v9003, %v9138
      %v9248 = vadd.f32 %v9004, %v9141
      %v9249 = vadd.f32 %v9005, %v9143
      %v9250 = vadd.f32 %v9006, %v9146
      %v9251 = vadd.f32 %v9007, %v9148
      %v9252 = vadd.f32 %v9008, %v9151
      %v9253 = vadd.f32 %v9009, %v9153
      %v9254 = vadd.f32 %v9010, %v9156
      %v9255 = vadd.f32 %v9011, %v9158
      %v9256 = vadd.f32 %v9012, %v9161
      %v9257 = vadd.f32 %v9013, %v9163
      %v9258 = vadd.f32 %v9014, %v9166
      %v9259 = vadd.f32 %v9015, %v9168
      %v9260 = vadd.f32 %v9016, %v9171
      %v9261 = vadd.f32 %v9017, %v9173
      %v9262 = vadd.f32 %v9018, %v9176
      %v9263 = vadd.f32 %v9019, %v9178
      %v9264 = vadd.f32 %v9020, %v9181
      %v9265 = vadd.f32 %v9021, %v9183
      %v9266 = vadd.f32 %v9022, %v9186
      %v9267 = vadd.f32 %v9023, %v9188
      %v9268 = vadd.f32 %v9024, %v9191
      %v9269 = vadd.f32 %v9025, %v9193
      %v9270 = vadd.f32 %v9026, %v9196
      %v9271 = vadd.f32 %v9027, %v9198
      %v9272 = vadd.f32 %v9028, %v9201
      %v9273 = vadd.f32 %v9029, %v9203
      %v9274 = vadd.f32 %v9030, %v9206
      %v9275 = vadd.f32 %v9031, %v9208
      %v9276 = vadd.f32 %v9032, %v9211
      %v9277 = vadd.f32 %v9033, %v9213
      %v9278 = vlaneseq
      %v9279 = vshrl.u32 %v9278, 7
      %v9280 = vsub.s32 7, %v9279
      %v9281 = vrot.slane %v431, %v9280
      %v9282 = vmul.f32 %v453, %v9281
      %v9283 = vmul.f32 %v454, %v9281
      %v9284 = vmul.f32 %v455, %v9281
      %v9285 = vmul.f32 %v456, %v9281
      %v9286 = vmul.f32 %v457, %v9281
      %v9287 = vmul.f32 %v458, %v9281
      %v9288 = vmul.f32 %v459, %v9281
      %v9289 = vmul.f32 %v460, %v9281
      %v9290 = vmul.f32 %v461, %v9281
      %v9291 = vmul.f32 %v462, %v9281
      %v9292 = vmul.f32 %v463, %v9281
      %v9293 = vmul.f32 %v464, %v9281
      %v9294 = vmul.f32 %v465, %v9281
      %v9295 = vmul.f32 %v466, %v9281
      %v9296 = vmul.f32 %v467, %v9281
      %v9297 = vmul.f32 %v468, %v9281
      %v9298 = vmul.f32 %v469, %v9281
      %v9299 = vmul.f32 %v470, %v9281
      %v9300 = vmul.f32 %v471, %v9281
      %v9301 = vmul.f32 %v472, %v9281
      %v9302 = vmul.f32 %v473, %v9281
      %v9303 = vmul.f32 %v474, %v9281
      %v9304 = vmul.f32 %v475, %v9281
      %v9305 = vmul.f32 %v476, %v9281
      %v9306 = vmul.f32 %v477, %v9281
      %v9307 = vmul.f32 %v478, %v9281
      %v9308 = vmul.f32 %v479, %v9281
      %v9309 = vmul.f32 %v480, %v9281
      %v9310 = vmul.f32 %v481, %v9281
      %v9311 = vmul.f32 %v482, %v9281
      %v9312 = vmul.f32 %v483, %v9281
      %v9313 = vmul.f32 %v484, %v9281
      %v9314 = vmul.f32 %v485, %v9281
      %v9315 = vmul.f32 %v486, %v9281
      %v9316 = vmul.f32 %v487, %v9281
      %v9317 = vmul.f32 %v488, %v9281
      %v9318 = vmul.f32 %v489, %v9281
      %v9319 = vmul.f32 %v490, %v9281
      %v9320 = vmul.f32 %v491, %v9281
      %v9321 = vmul.f32 %v492, %v9281
      %v9322 = vmul.f32 %v493, %v9281
      %v9323 = vmul.f32 %v494, %v9281
      %v9324 = vmul.f32 %v495, %v9281
      %v9325 = vmul.f32 %v496, %v9281
      %v9326 = vmul.f32 %v497, %v9281
      %v9327 = vmul.f32 %v498, %v9281
      %v9328 = vmul.f32 %v499, %v9281
      %v9329 = vmul.f32 %v500, %v9281
      %v9378 = vrot.slane %v9282, 5
      %v9379 = vrot.slane %v9283, 5
      %v9380 = vsel %vm7913, %v9378, %v9379
      %v9381 = vrot.slane %v9284, 5
      %v9382 = vsel %vm7913, %v9379, %v9381
      %v9383 = vrot.slane %v9285, 5
      %v9384 = vrot.slane %v9286, 5
      %v9385 = vsel %vm7913, %v9383, %v9384
      %v9386 = vrot.slane %v9287, 5
      %v9387 = vsel %vm7913, %v9384, %v9386
      %v9388 = vrot.slane %v9288, 5
      %v9389 = vrot.slane %v9289, 5
      %v9390 = vsel %vm7913, %v9388, %v9389
      %v9391 = vrot.slane %v9290, 5
      %v9392 = vsel %vm7913, %v9389, %v9391
      %v9393 = vrot.slane %v9291, 5
      %v9394 = vrot.slane %v9292, 5
      %v9395 = vsel %vm7913, %v9393, %v9394
      %v9396 = vrot.slane %v9293, 5
      %v9397 = vsel %vm7913, %v9394, %v9396
      %v9398 = vrot.slane %v9294, 5
      %v9399 = vrot.slane %v9295, 5
      %v9400 = vsel %vm7913, %v9398, %v9399
      %v9401 = vrot.slane %v9296, 5
      %v9402 = vsel %vm7913, %v9399, %v9401
      %v9403 = vrot.slane %v9297, 5
      %v9404 = vrot.slane %v9298, 5
      %v9405 = vsel %vm7913, %v9403, %v9404
      %v9406 = vrot.slane %v9299, 5
      %v9407 = vsel %vm7913, %v9404, %v9406
      %v9408 = vrot.slane %v9300, 5
      %v9409 = vrot.slane %v9301, 5
      %v9410 = vsel %vm7913, %v9408, %v9409
      %v9411 = vrot.slane %v9302, 5
      %v9412 = vsel %vm7913, %v9409, %v9411
      %v9413 = vrot.slane %v9303, 5
      %v9414 = vrot.slane %v9304, 5
      %v9415 = vsel %vm7913, %v9413, %v9414
      %v9416 = vrot.slane %v9305, 5
      %v9417 = vsel %vm7913, %v9414, %v9416
      %v9418 = vrot.slane %v9306, 5
      %v9419 = vrot.slane %v9307, 5
      %v9420 = vsel %vm7913, %v9418, %v9419
      %v9421 = vrot.slane %v9308, 5
      %v9422 = vsel %vm7913, %v9419, %v9421
      %v9423 = vrot.slane %v9309, 5
      %v9424 = vrot.slane %v9310, 5
      %v9425 = vsel %vm7913, %v9423, %v9424
      %v9426 = vrot.slane %v9311, 5
      %v9427 = vsel %vm7913, %v9424, %v9426
      %v9428 = vrot.slane %v9312, 5
      %v9429 = vrot.slane %v9313, 5
      %v9430 = vsel %vm7913, %v9428, %v9429
      %v9431 = vrot.slane %v9314, 5
      %v9432 = vsel %vm7913, %v9429, %v9431
      %v9433 = vrot.slane %v9315, 5
      %v9434 = vrot.slane %v9316, 5
      %v9435 = vsel %vm7913, %v9433, %v9434
      %v9436 = vrot.slane %v9317, 5
      %v9437 = vsel %vm7913, %v9434, %v9436
      %v9438 = vrot.slane %v9318, 5
      %v9439 = vrot.slane %v9319, 5
      %v9440 = vsel %vm7913, %v9438, %v9439
      %v9441 = vrot.slane %v9320, 5
      %v9442 = vsel %vm7913, %v9439, %v9441
      %v9443 = vrot.slane %v9321, 5
      %v9444 = vrot.slane %v9322, 5
      %v9445 = vsel %vm7913, %v9443, %v9444
      %v9446 = vrot.slane %v9323, 5
      %v9447 = vsel %vm7913, %v9444, %v9446
      %v9448 = vrot.slane %v9324, 5
      %v9449 = vrot.slane %v9325, 5
      %v9450 = vsel %vm7913, %v9448, %v9449
      %v9451 = vrot.slane %v9326, 5
      %v9452 = vsel %vm7913, %v9449, %v9451
      %v9453 = vrot.slane %v9327, 5
      %v9454 = vrot.slane %v9328, 5
      %v9455 = vsel %vm7913, %v9453, %v9454
      %v9456 = vrot.slane %v9329, 5
      %v9457 = vsel %vm7913, %v9454, %v9456
      %v9490 = vadd.f32 %v9246, %v9380
      %v9491 = vadd.f32 %v9247, %v9382
      %v9492 = vadd.f32 %v9248, %v9385
      %v9493 = vadd.f32 %v9249, %v9387
      %v9494 = vadd.f32 %v9250, %v9390
      %v9495 = vadd.f32 %v9251, %v9392
      %v9496 = vadd.f32 %v9252, %v9395
      %v9497 = vadd.f32 %v9253, %v9397
      %v9498 = vadd.f32 %v9254, %v9400
      %v9499 = vadd.f32 %v9255, %v9402
      %v9500 = vadd.f32 %v9256, %v9405
      %v9501 = vadd.f32 %v9257, %v9407
      %v9502 = vadd.f32 %v9258, %v9410
      %v9503 = vadd.f32 %v9259, %v9412
      %v9504 = vadd.f32 %v9260, %v9415
      %v9505 = vadd.f32 %v9261, %v9417
      %v9506 = vadd.f32 %v9262, %v9420
      %v9507 = vadd.f32 %v9263, %v9422
      %v9508 = vadd.f32 %v9264, %v9425
      %v9509 = vadd.f32 %v9265, %v9427
      %v9510 = vadd.f32 %v9266, %v9430
      %v9511 = vadd.f32 %v9267, %v9432
      %v9512 = vadd.f32 %v9268, %v9435
      %v9513 = vadd.f32 %v9269, %v9437
      %v9514 = vadd.f32 %v9270, %v9440
      %v9515 = vadd.f32 %v9271, %v9442
      %v9516 = vadd.f32 %v9272, %v9445
      %v9517 = vadd.f32 %v9273, %v9447
      %v9518 = vadd.f32 %v9274, %v9450
      %v9519 = vadd.f32 %v9275, %v9452
      %v9520 = vadd.f32 %v9276, %v9455
      %v9521 = vadd.f32 %v9277, %v9457
      %v9522 = vlaneseq
      %v9523 = vshrl.u32 %v9522, 7
      %v9524 = vsub.s32 6, %v9523
      %v9525 = vrot.slane %v426, %v9524
      %v9526 = vmul.f32 %v435, %v9525
      %v9527 = vmul.f32 %v436, %v9525
      %v9528 = vmul.f32 %v437, %v9525
      %v9529 = vmul.f32 %v438, %v9525
      %v9530 = vmul.f32 %v439, %v9525
      %v9531 = vmul.f32 %v440, %v9525
      %v9532 = vmul.f32 %v441, %v9525
      %v9533 = vmul.f32 %v442, %v9525
      %v9534 = vmul.f32 %v443, %v9525
      %v9535 = vmul.f32 %v444, %v9525
      %v9536 = vmul.f32 %v445, %v9525
      %v9537 = vmul.f32 %v446, %v9525
      %v9538 = vmul.f32 %v447, %v9525
      %v9539 = vmul.f32 %v448, %v9525
      %v9540 = vmul.f32 %v449, %v9525
      %v9541 = vmul.f32 %v450, %v9525
      %v9542 = vmul.f32 %v451, %v9525
      %v9543 = vmul.f32 %v452, %v9525
      %v9544 = vmul.f32 %v453, %v9525
      %v9545 = vmul.f32 %v454, %v9525
      %v9546 = vmul.f32 %v455, %v9525
      %v9547 = vmul.f32 %v456, %v9525
      %v9548 = vmul.f32 %v457, %v9525
      %v9549 = vmul.f32 %v458, %v9525
      %v9550 = vmul.f32 %v459, %v9525
      %v9551 = vmul.f32 %v460, %v9525
      %v9552 = vmul.f32 %v461, %v9525
      %v9553 = vmul.f32 %v462, %v9525
      %v9554 = vmul.f32 %v463, %v9525
      %v9555 = vmul.f32 %v464, %v9525
      %v9556 = vmul.f32 %v465, %v9525
      %v9557 = vmul.f32 %v466, %v9525
      %v9558 = vmul.f32 %v467, %v9525
      %v9559 = vmul.f32 %v468, %v9525
      %v9560 = vmul.f32 %v469, %v9525
      %v9561 = vmul.f32 %v470, %v9525
      %v9562 = vmul.f32 %v471, %v9525
      %v9563 = vmul.f32 %v472, %v9525
      %v9564 = vmul.f32 %v473, %v9525
      %v9565 = vmul.f32 %v474, %v9525
      %v9566 = vmul.f32 %v475, %v9525
      %v9567 = vmul.f32 %v476, %v9525
      %v9568 = vmul.f32 %v477, %v9525
      %v9569 = vmul.f32 %v478, %v9525
      %v9570 = vmul.f32 %v479, %v9525
      %v9571 = vmul.f32 %v480, %v9525
      %v9572 = vmul.f32 %v481, %v9525
      %v9573 = vmul.f32 %v482, %v9525
      %vm9622 = vcmask 1041408
      %v9623 = vrot.slane %v9526, 6
      %v9624 = vrot.slane %v9527, 6
      %v9625 = vsel %vm9622, %v9623, %v9624
      %v9626 = vrot.slane %v9528, 6
      %v9627 = vsel %vm9622, %v9624, %v9626
      %v9628 = vrot.slane %v9529, 6
      %v9629 = vrot.slane %v9530, 6
      %v9630 = vsel %vm9622, %v9628, %v9629
      %v9631 = vrot.slane %v9531, 6
      %v9632 = vsel %vm9622, %v9629, %v9631
      %v9633 = vrot.slane %v9532, 6
      %v9634 = vrot.slane %v9533, 6
      %v9635 = vsel %vm9622, %v9633, %v9634
      %v9636 = vrot.slane %v9534, 6
      %v9637 = vsel %vm9622, %v9634, %v9636
      %v9638 = vrot.slane %v9535, 6
      %v9639 = vrot.slane %v9536, 6
      %v9640 = vsel %vm9622, %v9638, %v9639
      %v9641 = vrot.slane %v9537, 6
      %v9642 = vsel %vm9622, %v9639, %v9641
      %v9643 = vrot.slane %v9538, 6
      %v9644 = vrot.slane %v9539, 6
      %v9645 = vsel %vm9622, %v9643, %v9644
      %v9646 = vrot.slane %v9540, 6
      %v9647 = vsel %vm9622, %v9644, %v9646
      %v9648 = vrot.slane %v9541, 6
      %v9649 = vrot.slane %v9542, 6
      %v9650 = vsel %vm9622, %v9648, %v9649
      %v9651 = vrot.slane %v9543, 6
      %v9652 = vsel %vm9622, %v9649, %v9651
      %v9653 = vrot.slane %v9544, 6
      %v9654 = vrot.slane %v9545, 6
      %v9655 = vsel %vm9622, %v9653, %v9654
      %v9656 = vrot.slane %v9546, 6
      %v9657 = vsel %vm9622, %v9654, %v9656
      %v9658 = vrot.slane %v9547, 6
      %v9659 = vrot.slane %v9548, 6
      %v9660 = vsel %vm9622, %v9658, %v9659
      %v9661 = vrot.slane %v9549, 6
      %v9662 = vsel %vm9622, %v9659, %v9661
      %v9663 = vrot.slane %v9550, 6
      %v9664 = vrot.slane %v9551, 6
      %v9665 = vsel %vm9622, %v9663, %v9664
      %v9666 = vrot.slane %v9552, 6
      %v9667 = vsel %vm9622, %v9664, %v9666
      %v9668 = vrot.slane %v9553, 6
      %v9669 = vrot.slane %v9554, 6
      %v9670 = vsel %vm9622, %v9668, %v9669
      %v9671 = vrot.slane %v9555, 6
      %v9672 = vsel %vm9622, %v9669, %v9671
      %v9673 = vrot.slane %v9556, 6
      %v9674 = vrot.slane %v9557, 6
      %v9675 = vsel %vm9622, %v9673, %v9674
      %v9676 = vrot.slane %v9558, 6
      %v9677 = vsel %vm9622, %v9674, %v9676
      %v9678 = vrot.slane %v9559, 6
      %v9679 = vrot.slane %v9560, 6
      %v9680 = vsel %vm9622, %v9678, %v9679
      %v9681 = vrot.slane %v9561, 6
      %v9682 = vsel %vm9622, %v9679, %v9681
      %v9683 = vrot.slane %v9562, 6
      %v9684 = vrot.slane %v9563, 6
      %v9685 = vsel %vm9622, %v9683, %v9684
      %v9686 = vrot.slane %v9564, 6
      %v9687 = vsel %vm9622, %v9684, %v9686
      %v9688 = vrot.slane %v9565, 6
      %v9689 = vrot.slane %v9566, 6
      %v9690 = vsel %vm9622, %v9688, %v9689
      %v9691 = vrot.slane %v9567, 6
      %v9692 = vsel %vm9622, %v9689, %v9691
      %v9693 = vrot.slane %v9568, 6
      %v9694 = vrot.slane %v9569, 6
      %v9695 = vsel %vm9622, %v9693, %v9694
      %v9696 = vrot.slane %v9570, 6
      %v9697 = vsel %vm9622, %v9694, %v9696
      %v9698 = vrot.slane %v9571, 6
      %v9699 = vrot.slane %v9572, 6
      %v9700 = vsel %vm9622, %v9698, %v9699
      %v9701 = vrot.slane %v9573, 6
      %v9702 = vsel %vm9622, %v9699, %v9701
      %v9735 = vadd.f32 %v9490, %v9625
      %v9736 = vadd.f32 %v9491, %v9627
      %v9737 = vadd.f32 %v9492, %v9630
      %v9738 = vadd.f32 %v9493, %v9632
      %v9739 = vadd.f32 %v9494, %v9635
      %v9740 = vadd.f32 %v9495, %v9637
      %v9741 = vadd.f32 %v9496, %v9640
      %v9742 = vadd.f32 %v9497, %v9642
      %v9743 = vadd.f32 %v9498, %v9645
      %v9744 = vadd.f32 %v9499, %v9647
      %v9745 = vadd.f32 %v9500, %v9650
      %v9746 = vadd.f32 %v9501, %v9652
      %v9747 = vadd.f32 %v9502, %v9655
      %v9748 = vadd.f32 %v9503, %v9657
      %v9749 = vadd.f32 %v9504, %v9660
      %v9750 = vadd.f32 %v9505, %v9662
      %v9751 = vadd.f32 %v9506, %v9665
      %v9752 = vadd.f32 %v9507, %v9667
      %v9753 = vadd.f32 %v9508, %v9670
      %v9754 = vadd.f32 %v9509, %v9672
      %v9755 = vadd.f32 %v9510, %v9675
      %v9756 = vadd.f32 %v9511, %v9677
      %v9757 = vadd.f32 %v9512, %v9680
      %v9758 = vadd.f32 %v9513, %v9682
      %v9759 = vadd.f32 %v9514, %v9685
      %v9760 = vadd.f32 %v9515, %v9687
      %v9761 = vadd.f32 %v9516, %v9690
      %v9762 = vadd.f32 %v9517, %v9692
      %v9763 = vadd.f32 %v9518, %v9695
      %v9764 = vadd.f32 %v9519, %v9697
      %v9765 = vadd.f32 %v9520, %v9700
      %v9766 = vadd.f32 %v9521, %v9702
      %v9767 = vlaneseq
      %v9768 = vshrl.u32 %v9767, 7
      %v9769 = vsub.s32 5, %v9768
      %v9770 = vrot.slane %v427, %v9769
      %v9771 = vmul.f32 %v438, %v9770
      %v9772 = vmul.f32 %v439, %v9770
      %v9773 = vmul.f32 %v440, %v9770
      %v9774 = vmul.f32 %v441, %v9770
      %v9775 = vmul.f32 %v442, %v9770
      %v9776 = vmul.f32 %v443, %v9770
      %v9777 = vmul.f32 %v444, %v9770
      %v9778 = vmul.f32 %v445, %v9770
      %v9779 = vmul.f32 %v446, %v9770
      %v9780 = vmul.f32 %v447, %v9770
      %v9781 = vmul.f32 %v448, %v9770
      %v9782 = vmul.f32 %v449, %v9770
      %v9783 = vmul.f32 %v450, %v9770
      %v9784 = vmul.f32 %v451, %v9770
      %v9785 = vmul.f32 %v452, %v9770
      %v9786 = vmul.f32 %v453, %v9770
      %v9787 = vmul.f32 %v454, %v9770
      %v9788 = vmul.f32 %v455, %v9770
      %v9789 = vmul.f32 %v456, %v9770
      %v9790 = vmul.f32 %v457, %v9770
      %v9791 = vmul.f32 %v458, %v9770
      %v9792 = vmul.f32 %v459, %v9770
      %v9793 = vmul.f32 %v460, %v9770
      %v9794 = vmul.f32 %v461, %v9770
      %v9795 = vmul.f32 %v462, %v9770
      %v9796 = vmul.f32 %v463, %v9770
      %v9797 = vmul.f32 %v464, %v9770
      %v9798 = vmul.f32 %v465, %v9770
      %v9799 = vmul.f32 %v466, %v9770
      %v9800 = vmul.f32 %v467, %v9770
      %v9801 = vmul.f32 %v468, %v9770
      %v9802 = vmul.f32 %v469, %v9770
      %v9803 = vmul.f32 %v470, %v9770
      %v9804 = vmul.f32 %v471, %v9770
      %v9805 = vmul.f32 %v472, %v9770
      %v9806 = vmul.f32 %v473, %v9770
      %v9807 = vmul.f32 %v474, %v9770
      %v9808 = vmul.f32 %v475, %v9770
      %v9809 = vmul.f32 %v476, %v9770
      %v9810 = vmul.f32 %v477, %v9770
      %v9811 = vmul.f32 %v478, %v9770
      %v9812 = vmul.f32 %v479, %v9770
      %v9813 = vmul.f32 %v480, %v9770
      %v9814 = vmul.f32 %v481, %v9770
      %v9815 = vmul.f32 %v482, %v9770
      %v9816 = vmul.f32 %v483, %v9770
      %v9817 = vmul.f32 %v484, %v9770
      %v9818 = vmul.f32 %v485, %v9770
      %v9867 = vrot.slane %v9771, 6
      %v9868 = vrot.slane %v9772, 6
      %v9869 = vsel %vm9622, %v9867, %v9868
      %v9870 = vrot.slane %v9773, 6
      %v9871 = vsel %vm9622, %v9868, %v9870
      %v9872 = vrot.slane %v9774, 6
      %v9873 = vrot.slane %v9775, 6
      %v9874 = vsel %vm9622, %v9872, %v9873
      %v9875 = vrot.slane %v9776, 6
      %v9876 = vsel %vm9622, %v9873, %v9875
      %v9877 = vrot.slane %v9777, 6
      %v9878 = vrot.slane %v9778, 6
      %v9879 = vsel %vm9622, %v9877, %v9878
      %v9880 = vrot.slane %v9779, 6
      %v9881 = vsel %vm9622, %v9878, %v9880
      %v9882 = vrot.slane %v9780, 6
      %v9883 = vrot.slane %v9781, 6
      %v9884 = vsel %vm9622, %v9882, %v9883
      %v9885 = vrot.slane %v9782, 6
      %v9886 = vsel %vm9622, %v9883, %v9885
      %v9887 = vrot.slane %v9783, 6
      %v9888 = vrot.slane %v9784, 6
      %v9889 = vsel %vm9622, %v9887, %v9888
      %v9890 = vrot.slane %v9785, 6
      %v9891 = vsel %vm9622, %v9888, %v9890
      %v9892 = vrot.slane %v9786, 6
      %v9893 = vrot.slane %v9787, 6
      %v9894 = vsel %vm9622, %v9892, %v9893
      %v9895 = vrot.slane %v9788, 6
      %v9896 = vsel %vm9622, %v9893, %v9895
      %v9897 = vrot.slane %v9789, 6
      %v9898 = vrot.slane %v9790, 6
      %v9899 = vsel %vm9622, %v9897, %v9898
      %v9900 = vrot.slane %v9791, 6
      %v9901 = vsel %vm9622, %v9898, %v9900
      %v9902 = vrot.slane %v9792, 6
      %v9903 = vrot.slane %v9793, 6
      %v9904 = vsel %vm9622, %v9902, %v9903
      %v9905 = vrot.slane %v9794, 6
      %v9906 = vsel %vm9622, %v9903, %v9905
      %v9907 = vrot.slane %v9795, 6
      %v9908 = vrot.slane %v9796, 6
      %v9909 = vsel %vm9622, %v9907, %v9908
      %v9910 = vrot.slane %v9797, 6
      %v9911 = vsel %vm9622, %v9908, %v9910
      %v9912 = vrot.slane %v9798, 6
      %v9913 = vrot.slane %v9799, 6
      %v9914 = vsel %vm9622, %v9912, %v9913
      %v9915 = vrot.slane %v9800, 6
      %v9916 = vsel %vm9622, %v9913, %v9915
      %v9917 = vrot.slane %v9801, 6
      %v9918 = vrot.slane %v9802, 6
      %v9919 = vsel %vm9622, %v9917, %v9918
      %v9920 = vrot.slane %v9803, 6
      %v9921 = vsel %vm9622, %v9918, %v9920
      %v9922 = vrot.slane %v9804, 6
      %v9923 = vrot.slane %v9805, 6
      %v9924 = vsel %vm9622, %v9922, %v9923
      %v9925 = vrot.slane %v9806, 6
      %v9926 = vsel %vm9622, %v9923, %v9925
      %v9927 = vrot.slane %v9807, 6
      %v9928 = vrot.slane %v9808, 6
      %v9929 = vsel %vm9622, %v9927, %v9928
      %v9930 = vrot.slane %v9809, 6
      %v9931 = vsel %vm9622, %v9928, %v9930
      %v9932 = vrot.slane %v9810, 6
      %v9933 = vrot.slane %v9811, 6
      %v9934 = vsel %vm9622, %v9932, %v9933
      %v9935 = vrot.slane %v9812, 6
      %v9936 = vsel %vm9622, %v9933, %v9935
      %v9937 = vrot.slane %v9813, 6
      %v9938 = vrot.slane %v9814, 6
      %v9939 = vsel %vm9622, %v9937, %v9938
      %v9940 = vrot.slane %v9815, 6
      %v9941 = vsel %vm9622, %v9938, %v9940
      %v9942 = vrot.slane %v9816, 6
      %v9943 = vrot.slane %v9817, 6
      %v9944 = vsel %vm9622, %v9942, %v9943
      %v9945 = vrot.slane %v9818, 6
      %v9946 = vsel %vm9622, %v9943, %v9945
      %v9979 = vadd.f32 %v9735, %v9869
      %v9980 = vadd.f32 %v9736, %v9871
      %v9981 = vadd.f32 %v9737, %v9874
      %v9982 = vadd.f32 %v9738, %v9876
      %v9983 = vadd.f32 %v9739, %v9879
      %v9984 = vadd.f32 %v9740, %v9881
      %v9985 = vadd.f32 %v9741, %v9884
      %v9986 = vadd.f32 %v9742, %v9886
      %v9987 = vadd.f32 %v9743, %v9889
      %v9988 = vadd.f32 %v9744, %v9891
      %v9989 = vadd.f32 %v9745, %v9894
      %v9990 = vadd.f32 %v9746, %v9896
      %v9991 = vadd.f32 %v9747, %v9899
      %v9992 = vadd.f32 %v9748, %v9901
      %v9993 = vadd.f32 %v9749, %v9904
      %v9994 = vadd.f32 %v9750, %v9906
      %v9995 = vadd.f32 %v9751, %v9909
      %v9996 = vadd.f32 %v9752, %v9911
      %v9997 = vadd.f32 %v9753, %v9914
      %v9998 = vadd.f32 %v9754, %v9916
      %v9999 = vadd.f32 %v9755, %v9919
      %v10000 = vadd.f32 %v9756, %v9921
      %v10001 = vadd.f32 %v9757, %v9924
      %v10002 = vadd.f32 %v9758, %v9926
      %v10003 = vadd.f32 %v9759, %v9929
      %v10004 = vadd.f32 %v9760, %v9931
      %v10005 = vadd.f32 %v9761, %v9934
      %v10006 = vadd.f32 %v9762, %v9936
      %v10007 = vadd.f32 %v9763, %v9939
      %v10008 = vadd.f32 %v9764, %v9941
      %v10009 = vadd.f32 %v9765, %v9944
      %v10010 = vadd.f32 %v9766, %v9946
      %v10011 = vlaneseq
      %v10012 = vshrl.u32 %v10011, 7
      %v10013 = vsub.s32 4, %v10012
      %v10014 = vrot.slane %v428, %v10013
      %v10015 = vmul.f32 %v441, %v10014
      %v10016 = vmul.f32 %v442, %v10014
      %v10017 = vmul.f32 %v443, %v10014
      %v10018 = vmul.f32 %v444, %v10014
      %v10019 = vmul.f32 %v445, %v10014
      %v10020 = vmul.f32 %v446, %v10014
      %v10021 = vmul.f32 %v447, %v10014
      %v10022 = vmul.f32 %v448, %v10014
      %v10023 = vmul.f32 %v449, %v10014
      %v10024 = vmul.f32 %v450, %v10014
      %v10025 = vmul.f32 %v451, %v10014
      %v10026 = vmul.f32 %v452, %v10014
      %v10027 = vmul.f32 %v453, %v10014
      %v10028 = vmul.f32 %v454, %v10014
      %v10029 = vmul.f32 %v455, %v10014
      %v10030 = vmul.f32 %v456, %v10014
      %v10031 = vmul.f32 %v457, %v10014
      %v10032 = vmul.f32 %v458, %v10014
      %v10033 = vmul.f32 %v459, %v10014
      %v10034 = vmul.f32 %v460, %v10014
      %v10035 = vmul.f32 %v461, %v10014
      %v10036 = vmul.f32 %v462, %v10014
      %v10037 = vmul.f32 %v463, %v10014
      %v10038 = vmul.f32 %v464, %v10014
      %v10039 = vmul.f32 %v465, %v10014
      %v10040 = vmul.f32 %v466, %v10014
      %v10041 = vmul.f32 %v467, %v10014
      %v10042 = vmul.f32 %v468, %v10014
      %v10043 = vmul.f32 %v469, %v10014
      %v10044 = vmul.f32 %v470, %v10014
      %v10045 = vmul.f32 %v471, %v10014
      %v10046 = vmul.f32 %v472, %v10014
      %v10047 = vmul.f32 %v473, %v10014
      %v10048 = vmul.f32 %v474, %v10014
      %v10049 = vmul.f32 %v475, %v10014
      %v10050 = vmul.f32 %v476, %v10014
      %v10051 = vmul.f32 %v477, %v10014
      %v10052 = vmul.f32 %v478, %v10014
      %v10053 = vmul.f32 %v479, %v10014
      %v10054 = vmul.f32 %v480, %v10014
      %v10055 = vmul.f32 %v481, %v10014
      %v10056 = vmul.f32 %v482, %v10014
      %v10057 = vmul.f32 %v483, %v10014
      %v10058 = vmul.f32 %v484, %v10014
      %v10059 = vmul.f32 %v485, %v10014
      %v10060 = vmul.f32 %v486, %v10014
      %v10061 = vmul.f32 %v487, %v10014
      %v10062 = vmul.f32 %v488, %v10014
      %v10111 = vrot.slane %v10015, 6
      %v10112 = vrot.slane %v10016, 6
      %v10113 = vsel %vm9622, %v10111, %v10112
      %v10114 = vrot.slane %v10017, 6
      %v10115 = vsel %vm9622, %v10112, %v10114
      %v10116 = vrot.slane %v10018, 6
      %v10117 = vrot.slane %v10019, 6
      %v10118 = vsel %vm9622, %v10116, %v10117
      %v10119 = vrot.slane %v10020, 6
      %v10120 = vsel %vm9622, %v10117, %v10119
      %v10121 = vrot.slane %v10021, 6
      %v10122 = vrot.slane %v10022, 6
      %v10123 = vsel %vm9622, %v10121, %v10122
      %v10124 = vrot.slane %v10023, 6
      %v10125 = vsel %vm9622, %v10122, %v10124
      %v10126 = vrot.slane %v10024, 6
      %v10127 = vrot.slane %v10025, 6
      %v10128 = vsel %vm9622, %v10126, %v10127
      %v10129 = vrot.slane %v10026, 6
      %v10130 = vsel %vm9622, %v10127, %v10129
      %v10131 = vrot.slane %v10027, 6
      %v10132 = vrot.slane %v10028, 6
      %v10133 = vsel %vm9622, %v10131, %v10132
      %v10134 = vrot.slane %v10029, 6
      %v10135 = vsel %vm9622, %v10132, %v10134
      %v10136 = vrot.slane %v10030, 6
      %v10137 = vrot.slane %v10031, 6
      %v10138 = vsel %vm9622, %v10136, %v10137
      %v10139 = vrot.slane %v10032, 6
      %v10140 = vsel %vm9622, %v10137, %v10139
      %v10141 = vrot.slane %v10033, 6
      %v10142 = vrot.slane %v10034, 6
      %v10143 = vsel %vm9622, %v10141, %v10142
      %v10144 = vrot.slane %v10035, 6
      %v10145 = vsel %vm9622, %v10142, %v10144
      %v10146 = vrot.slane %v10036, 6
      %v10147 = vrot.slane %v10037, 6
      %v10148 = vsel %vm9622, %v10146, %v10147
      %v10149 = vrot.slane %v10038, 6
      %v10150 = vsel %vm9622, %v10147, %v10149
      %v10151 = vrot.slane %v10039, 6
      %v10152 = vrot.slane %v10040, 6
      %v10153 = vsel %vm9622, %v10151, %v10152
      %v10154 = vrot.slane %v10041, 6
      %v10155 = vsel %vm9622, %v10152, %v10154
      %v10156 = vrot.slane %v10042, 6
      %v10157 = vrot.slane %v10043, 6
      %v10158 = vsel %vm9622, %v10156, %v10157
      %v10159 = vrot.slane %v10044, 6
      %v10160 = vsel %vm9622, %v10157, %v10159
      %v10161 = vrot.slane %v10045, 6
      %v10162 = vrot.slane %v10046, 6
      %v10163 = vsel %vm9622, %v10161, %v10162
      %v10164 = vrot.slane %v10047, 6
      %v10165 = vsel %vm9622, %v10162, %v10164
      %v10166 = vrot.slane %v10048, 6
      %v10167 = vrot.slane %v10049, 6
      %v10168 = vsel %vm9622, %v10166, %v10167
      %v10169 = vrot.slane %v10050, 6
      %v10170 = vsel %vm9622, %v10167, %v10169
      %v10171 = vrot.slane %v10051, 6
      %v10172 = vrot.slane %v10052, 6
      %v10173 = vsel %vm9622, %v10171, %v10172
      %v10174 = vrot.slane %v10053, 6
      %v10175 = vsel %vm9622, %v10172, %v10174
      %v10176 = vrot.slane %v10054, 6
      %v10177 = vrot.slane %v10055, 6
      %v10178 = vsel %vm9622, %v10176, %v10177
      %v10179 = vrot.slane %v10056, 6
      %v10180 = vsel %vm9622, %v10177, %v10179
      %v10181 = vrot.slane %v10057, 6
      %v10182 = vrot.slane %v10058, 6
      %v10183 = vsel %vm9622, %v10181, %v10182
      %v10184 = vrot.slane %v10059, 6
      %v10185 = vsel %vm9622, %v10182, %v10184
      %v10186 = vrot.slane %v10060, 6
      %v10187 = vrot.slane %v10061, 6
      %v10188 = vsel %vm9622, %v10186, %v10187
      %v10189 = vrot.slane %v10062, 6
      %v10190 = vsel %vm9622, %v10187, %v10189
      %v10223 = vadd.f32 %v9979, %v10113
      %v10224 = vadd.f32 %v9980, %v10115
      %v10225 = vadd.f32 %v9981, %v10118
      %v10226 = vadd.f32 %v9982, %v10120
      %v10227 = vadd.f32 %v9983, %v10123
      %v10228 = vadd.f32 %v9984, %v10125
      %v10229 = vadd.f32 %v9985, %v10128
      %v10230 = vadd.f32 %v9986, %v10130
      %v10231 = vadd.f32 %v9987, %v10133
      %v10232 = vadd.f32 %v9988, %v10135
      %v10233 = vadd.f32 %v9989, %v10138
      %v10234 = vadd.f32 %v9990, %v10140
      %v10235 = vadd.f32 %v9991, %v10143
      %v10236 = vadd.f32 %v9992, %v10145
      %v10237 = vadd.f32 %v9993, %v10148
      %v10238 = vadd.f32 %v9994, %v10150
      %v10239 = vadd.f32 %v9995, %v10153
      %v10240 = vadd.f32 %v9996, %v10155
      %v10241 = vadd.f32 %v9997, %v10158
      %v10242 = vadd.f32 %v9998, %v10160
      %v10243 = vadd.f32 %v9999, %v10163
      %v10244 = vadd.f32 %v10000, %v10165
      %v10245 = vadd.f32 %v10001, %v10168
      %v10246 = vadd.f32 %v10002, %v10170
      %v10247 = vadd.f32 %v10003, %v10173
      %v10248 = vadd.f32 %v10004, %v10175
      %v10249 = vadd.f32 %v10005, %v10178
      %v10250 = vadd.f32 %v10006, %v10180
      %v10251 = vadd.f32 %v10007, %v10183
      %v10252 = vadd.f32 %v10008, %v10185
      %v10253 = vadd.f32 %v10009, %v10188
      %v10254 = vadd.f32 %v10010, %v10190
      %v10255 = vlaneseq
      %v10256 = vshrl.u32 %v10255, 7
      %v10257 = vsub.s32 3, %v10256
      %v10258 = vrot.slane %v429, %v10257
      %v10259 = vmul.f32 %v444, %v10258
      %v10260 = vmul.f32 %v445, %v10258
      %v10261 = vmul.f32 %v446, %v10258
      %v10262 = vmul.f32 %v447, %v10258
      %v10263 = vmul.f32 %v448, %v10258
      %v10264 = vmul.f32 %v449, %v10258
      %v10265 = vmul.f32 %v450, %v10258
      %v10266 = vmul.f32 %v451, %v10258
      %v10267 = vmul.f32 %v452, %v10258
      %v10268 = vmul.f32 %v453, %v10258
      %v10269 = vmul.f32 %v454, %v10258
      %v10270 = vmul.f32 %v455, %v10258
      %v10271 = vmul.f32 %v456, %v10258
      %v10272 = vmul.f32 %v457, %v10258
      %v10273 = vmul.f32 %v458, %v10258
      %v10274 = vmul.f32 %v459, %v10258
      %v10275 = vmul.f32 %v460, %v10258
      %v10276 = vmul.f32 %v461, %v10258
      %v10277 = vmul.f32 %v462, %v10258
      %v10278 = vmul.f32 %v463, %v10258
      %v10279 = vmul.f32 %v464, %v10258
      %v10280 = vmul.f32 %v465, %v10258
      %v10281 = vmul.f32 %v466, %v10258
      %v10282 = vmul.f32 %v467, %v10258
      %v10283 = vmul.f32 %v468, %v10258
      %v10284 = vmul.f32 %v469, %v10258
      %v10285 = vmul.f32 %v470, %v10258
      %v10286 = vmul.f32 %v471, %v10258
      %v10287 = vmul.f32 %v472, %v10258
      %v10288 = vmul.f32 %v473, %v10258
      %v10289 = vmul.f32 %v474, %v10258
      %v10290 = vmul.f32 %v475, %v10258
      %v10291 = vmul.f32 %v476, %v10258
      %v10292 = vmul.f32 %v477, %v10258
      %v10293 = vmul.f32 %v478, %v10258
      %v10294 = vmul.f32 %v479, %v10258
      %v10295 = vmul.f32 %v480, %v10258
      %v10296 = vmul.f32 %v481, %v10258
      %v10297 = vmul.f32 %v482, %v10258
      %v10298 = vmul.f32 %v483, %v10258
      %v10299 = vmul.f32 %v484, %v10258
      %v10300 = vmul.f32 %v485, %v10258
      %v10301 = vmul.f32 %v486, %v10258
      %v10302 = vmul.f32 %v487, %v10258
      %v10303 = vmul.f32 %v488, %v10258
      %v10304 = vmul.f32 %v489, %v10258
      %v10305 = vmul.f32 %v490, %v10258
      %v10306 = vmul.f32 %v491, %v10258
      %v10355 = vrot.slane %v10259, 6
      %v10356 = vrot.slane %v10260, 6
      %v10357 = vsel %vm9622, %v10355, %v10356
      %v10358 = vrot.slane %v10261, 6
      %v10359 = vsel %vm9622, %v10356, %v10358
      %v10360 = vrot.slane %v10262, 6
      %v10361 = vrot.slane %v10263, 6
      %v10362 = vsel %vm9622, %v10360, %v10361
      %v10363 = vrot.slane %v10264, 6
      %v10364 = vsel %vm9622, %v10361, %v10363
      %v10365 = vrot.slane %v10265, 6
      %v10366 = vrot.slane %v10266, 6
      %v10367 = vsel %vm9622, %v10365, %v10366
      %v10368 = vrot.slane %v10267, 6
      %v10369 = vsel %vm9622, %v10366, %v10368
      %v10370 = vrot.slane %v10268, 6
      %v10371 = vrot.slane %v10269, 6
      %v10372 = vsel %vm9622, %v10370, %v10371
      %v10373 = vrot.slane %v10270, 6
      %v10374 = vsel %vm9622, %v10371, %v10373
      %v10375 = vrot.slane %v10271, 6
      %v10376 = vrot.slane %v10272, 6
      %v10377 = vsel %vm9622, %v10375, %v10376
      %v10378 = vrot.slane %v10273, 6
      %v10379 = vsel %vm9622, %v10376, %v10378
      %v10380 = vrot.slane %v10274, 6
      %v10381 = vrot.slane %v10275, 6
      %v10382 = vsel %vm9622, %v10380, %v10381
      %v10383 = vrot.slane %v10276, 6
      %v10384 = vsel %vm9622, %v10381, %v10383
      %v10385 = vrot.slane %v10277, 6
      %v10386 = vrot.slane %v10278, 6
      %v10387 = vsel %vm9622, %v10385, %v10386
      %v10388 = vrot.slane %v10279, 6
      %v10389 = vsel %vm9622, %v10386, %v10388
      %v10390 = vrot.slane %v10280, 6
      %v10391 = vrot.slane %v10281, 6
      %v10392 = vsel %vm9622, %v10390, %v10391
      %v10393 = vrot.slane %v10282, 6
      %v10394 = vsel %vm9622, %v10391, %v10393
      %v10395 = vrot.slane %v10283, 6
      %v10396 = vrot.slane %v10284, 6
      %v10397 = vsel %vm9622, %v10395, %v10396
      %v10398 = vrot.slane %v10285, 6
      %v10399 = vsel %vm9622, %v10396, %v10398
      %v10400 = vrot.slane %v10286, 6
      %v10401 = vrot.slane %v10287, 6
      %v10402 = vsel %vm9622, %v10400, %v10401
      %v10403 = vrot.slane %v10288, 6
      %v10404 = vsel %vm9622, %v10401, %v10403
      %v10405 = vrot.slane %v10289, 6
      %v10406 = vrot.slane %v10290, 6
      %v10407 = vsel %vm9622, %v10405, %v10406
      %v10408 = vrot.slane %v10291, 6
      %v10409 = vsel %vm9622, %v10406, %v10408
      %v10410 = vrot.slane %v10292, 6
      %v10411 = vrot.slane %v10293, 6
      %v10412 = vsel %vm9622, %v10410, %v10411
      %v10413 = vrot.slane %v10294, 6
      %v10414 = vsel %vm9622, %v10411, %v10413
      %v10415 = vrot.slane %v10295, 6
      %v10416 = vrot.slane %v10296, 6
      %v10417 = vsel %vm9622, %v10415, %v10416
      %v10418 = vrot.slane %v10297, 6
      %v10419 = vsel %vm9622, %v10416, %v10418
      %v10420 = vrot.slane %v10298, 6
      %v10421 = vrot.slane %v10299, 6
      %v10422 = vsel %vm9622, %v10420, %v10421
      %v10423 = vrot.slane %v10300, 6
      %v10424 = vsel %vm9622, %v10421, %v10423
      %v10425 = vrot.slane %v10301, 6
      %v10426 = vrot.slane %v10302, 6
      %v10427 = vsel %vm9622, %v10425, %v10426
      %v10428 = vrot.slane %v10303, 6
      %v10429 = vsel %vm9622, %v10426, %v10428
      %v10430 = vrot.slane %v10304, 6
      %v10431 = vrot.slane %v10305, 6
      %v10432 = vsel %vm9622, %v10430, %v10431
      %v10433 = vrot.slane %v10306, 6
      %v10434 = vsel %vm9622, %v10431, %v10433
      %v10467 = vadd.f32 %v10223, %v10357
      %v10468 = vadd.f32 %v10224, %v10359
      %v10469 = vadd.f32 %v10225, %v10362
      %v10470 = vadd.f32 %v10226, %v10364
      %v10471 = vadd.f32 %v10227, %v10367
      %v10472 = vadd.f32 %v10228, %v10369
      %v10473 = vadd.f32 %v10229, %v10372
      %v10474 = vadd.f32 %v10230, %v10374
      %v10475 = vadd.f32 %v10231, %v10377
      %v10476 = vadd.f32 %v10232, %v10379
      %v10477 = vadd.f32 %v10233, %v10382
      %v10478 = vadd.f32 %v10234, %v10384
      %v10479 = vadd.f32 %v10235, %v10387
      %v10480 = vadd.f32 %v10236, %v10389
      %v10481 = vadd.f32 %v10237, %v10392
      %v10482 = vadd.f32 %v10238, %v10394
      %v10483 = vadd.f32 %v10239, %v10397
      %v10484 = vadd.f32 %v10240, %v10399
      %v10485 = vadd.f32 %v10241, %v10402
      %v10486 = vadd.f32 %v10242, %v10404
      %v10487 = vadd.f32 %v10243, %v10407
      %v10488 = vadd.f32 %v10244, %v10409
      %v10489 = vadd.f32 %v10245, %v10412
      %v10490 = vadd.f32 %v10246, %v10414
      %v10491 = vadd.f32 %v10247, %v10417
      %v10492 = vadd.f32 %v10248, %v10419
      %v10493 = vadd.f32 %v10249, %v10422
      %v10494 = vadd.f32 %v10250, %v10424
      %v10495 = vadd.f32 %v10251, %v10427
      %v10496 = vadd.f32 %v10252, %v10429
      %v10497 = vadd.f32 %v10253, %v10432
      %v10498 = vadd.f32 %v10254, %v10434
      %v10499 = vlaneseq
      %v10500 = vshrl.u32 %v10499, 7
      %v10501 = vsub.s32 2, %v10500
      %v10502 = vrot.slane %v430, %v10501
      %v10503 = vmul.f32 %v447, %v10502
      %v10504 = vmul.f32 %v448, %v10502
      %v10505 = vmul.f32 %v449, %v10502
      %v10506 = vmul.f32 %v450, %v10502
      %v10507 = vmul.f32 %v451, %v10502
      %v10508 = vmul.f32 %v452, %v10502
      %v10509 = vmul.f32 %v453, %v10502
      %v10510 = vmul.f32 %v454, %v10502
      %v10511 = vmul.f32 %v455, %v10502
      %v10512 = vmul.f32 %v456, %v10502
      %v10513 = vmul.f32 %v457, %v10502
      %v10514 = vmul.f32 %v458, %v10502
      %v10515 = vmul.f32 %v459, %v10502
      %v10516 = vmul.f32 %v460, %v10502
      %v10517 = vmul.f32 %v461, %v10502
      %v10518 = vmul.f32 %v462, %v10502
      %v10519 = vmul.f32 %v463, %v10502
      %v10520 = vmul.f32 %v464, %v10502
      %v10521 = vmul.f32 %v465, %v10502
      %v10522 = vmul.f32 %v466, %v10502
      %v10523 = vmul.f32 %v467, %v10502
      %v10524 = vmul.f32 %v468, %v10502
      %v10525 = vmul.f32 %v469, %v10502
      %v10526 = vmul.f32 %v470, %v10502
      %v10527 = vmul.f32 %v471, %v10502
      %v10528 = vmul.f32 %v472, %v10502
      %v10529 = vmul.f32 %v473, %v10502
      %v10530 = vmul.f32 %v474, %v10502
      %v10531 = vmul.f32 %v475, %v10502
      %v10532 = vmul.f32 %v476, %v10502
      %v10533 = vmul.f32 %v477, %v10502
      %v10534 = vmul.f32 %v478, %v10502
      %v10535 = vmul.f32 %v479, %v10502
      %v10536 = vmul.f32 %v480, %v10502
      %v10537 = vmul.f32 %v481, %v10502
      %v10538 = vmul.f32 %v482, %v10502
      %v10539 = vmul.f32 %v483, %v10502
      %v10540 = vmul.f32 %v484, %v10502
      %v10541 = vmul.f32 %v485, %v10502
      %v10542 = vmul.f32 %v486, %v10502
      %v10543 = vmul.f32 %v487, %v10502
      %v10544 = vmul.f32 %v488, %v10502
      %v10545 = vmul.f32 %v489, %v10502
      %v10546 = vmul.f32 %v490, %v10502
      %v10547 = vmul.f32 %v491, %v10502
      %v10548 = vmul.f32 %v492, %v10502
      %v10549 = vmul.f32 %v493, %v10502
      %v10550 = vmul.f32 %v494, %v10502
      %v10599 = vrot.slane %v10503, 6
      %v10600 = vrot.slane %v10504, 6
      %v10601 = vsel %vm9622, %v10599, %v10600
      %v10602 = vrot.slane %v10505, 6
      %v10603 = vsel %vm9622, %v10600, %v10602
      %v10604 = vrot.slane %v10506, 6
      %v10605 = vrot.slane %v10507, 6
      %v10606 = vsel %vm9622, %v10604, %v10605
      %v10607 = vrot.slane %v10508, 6
      %v10608 = vsel %vm9622, %v10605, %v10607
      %v10609 = vrot.slane %v10509, 6
      %v10610 = vrot.slane %v10510, 6
      %v10611 = vsel %vm9622, %v10609, %v10610
      %v10612 = vrot.slane %v10511, 6
      %v10613 = vsel %vm9622, %v10610, %v10612
      %v10614 = vrot.slane %v10512, 6
      %v10615 = vrot.slane %v10513, 6
      %v10616 = vsel %vm9622, %v10614, %v10615
      %v10617 = vrot.slane %v10514, 6
      %v10618 = vsel %vm9622, %v10615, %v10617
      %v10619 = vrot.slane %v10515, 6
      %v10620 = vrot.slane %v10516, 6
      %v10621 = vsel %vm9622, %v10619, %v10620
      %v10622 = vrot.slane %v10517, 6
      %v10623 = vsel %vm9622, %v10620, %v10622
      %v10624 = vrot.slane %v10518, 6
      %v10625 = vrot.slane %v10519, 6
      %v10626 = vsel %vm9622, %v10624, %v10625
      %v10627 = vrot.slane %v10520, 6
      %v10628 = vsel %vm9622, %v10625, %v10627
      %v10629 = vrot.slane %v10521, 6
      %v10630 = vrot.slane %v10522, 6
      %v10631 = vsel %vm9622, %v10629, %v10630
      %v10632 = vrot.slane %v10523, 6
      %v10633 = vsel %vm9622, %v10630, %v10632
      %v10634 = vrot.slane %v10524, 6
      %v10635 = vrot.slane %v10525, 6
      %v10636 = vsel %vm9622, %v10634, %v10635
      %v10637 = vrot.slane %v10526, 6
      %v10638 = vsel %vm9622, %v10635, %v10637
      %v10639 = vrot.slane %v10527, 6
      %v10640 = vrot.slane %v10528, 6
      %v10641 = vsel %vm9622, %v10639, %v10640
      %v10642 = vrot.slane %v10529, 6
      %v10643 = vsel %vm9622, %v10640, %v10642
      %v10644 = vrot.slane %v10530, 6
      %v10645 = vrot.slane %v10531, 6
      %v10646 = vsel %vm9622, %v10644, %v10645
      %v10647 = vrot.slane %v10532, 6
      %v10648 = vsel %vm9622, %v10645, %v10647
      %v10649 = vrot.slane %v10533, 6
      %v10650 = vrot.slane %v10534, 6
      %v10651 = vsel %vm9622, %v10649, %v10650
      %v10652 = vrot.slane %v10535, 6
      %v10653 = vsel %vm9622, %v10650, %v10652
      %v10654 = vrot.slane %v10536, 6
      %v10655 = vrot.slane %v10537, 6
      %v10656 = vsel %vm9622, %v10654, %v10655
      %v10657 = vrot.slane %v10538, 6
      %v10658 = vsel %vm9622, %v10655, %v10657
      %v10659 = vrot.slane %v10539, 6
      %v10660 = vrot.slane %v10540, 6
      %v10661 = vsel %vm9622, %v10659, %v10660
      %v10662 = vrot.slane %v10541, 6
      %v10663 = vsel %vm9622, %v10660, %v10662
      %v10664 = vrot.slane %v10542, 6
      %v10665 = vrot.slane %v10543, 6
      %v10666 = vsel %vm9622, %v10664, %v10665
      %v10667 = vrot.slane %v10544, 6
      %v10668 = vsel %vm9622, %v10665, %v10667
      %v10669 = vrot.slane %v10545, 6
      %v10670 = vrot.slane %v10546, 6
      %v10671 = vsel %vm9622, %v10669, %v10670
      %v10672 = vrot.slane %v10547, 6
      %v10673 = vsel %vm9622, %v10670, %v10672
      %v10674 = vrot.slane %v10548, 6
      %v10675 = vrot.slane %v10549, 6
      %v10676 = vsel %vm9622, %v10674, %v10675
      %v10677 = vrot.slane %v10550, 6
      %v10678 = vsel %vm9622, %v10675, %v10677
      %v10711 = vadd.f32 %v10467, %v10601
      %v10712 = vadd.f32 %v10468, %v10603
      %v10713 = vadd.f32 %v10469, %v10606
      %v10714 = vadd.f32 %v10470, %v10608
      %v10715 = vadd.f32 %v10471, %v10611
      %v10716 = vadd.f32 %v10472, %v10613
      %v10717 = vadd.f32 %v10473, %v10616
      %v10718 = vadd.f32 %v10474, %v10618
      %v10719 = vadd.f32 %v10475, %v10621
      %v10720 = vadd.f32 %v10476, %v10623
      %v10721 = vadd.f32 %v10477, %v10626
      %v10722 = vadd.f32 %v10478, %v10628
      %v10723 = vadd.f32 %v10479, %v10631
      %v10724 = vadd.f32 %v10480, %v10633
      %v10725 = vadd.f32 %v10481, %v10636
      %v10726 = vadd.f32 %v10482, %v10638
      %v10727 = vadd.f32 %v10483, %v10641
      %v10728 = vadd.f32 %v10484, %v10643
      %v10729 = vadd.f32 %v10485, %v10646
      %v10730 = vadd.f32 %v10486, %v10648
      %v10731 = vadd.f32 %v10487, %v10651
      %v10732 = vadd.f32 %v10488, %v10653
      %v10733 = vadd.f32 %v10489, %v10656
      %v10734 = vadd.f32 %v10490, %v10658
      %v10735 = vadd.f32 %v10491, %v10661
      %v10736 = vadd.f32 %v10492, %v10663
      %v10737 = vadd.f32 %v10493, %v10666
      %v10738 = vadd.f32 %v10494, %v10668
      %v10739 = vadd.f32 %v10495, %v10671
      %v10740 = vadd.f32 %v10496, %v10673
      %v10741 = vadd.f32 %v10497, %v10676
      %v10742 = vadd.f32 %v10498, %v10678
      %v10743 = vlaneseq
      %v10744 = vshrl.u32 %v10743, 7
      %v10745 = vsub.s32 1, %v10744
      %v10746 = vrot.slane %v431, %v10745
      %v10747 = vmul.f32 %v450, %v10746
      %v10748 = vmul.f32 %v451, %v10746
      %v10749 = vmul.f32 %v452, %v10746
      %v10750 = vmul.f32 %v453, %v10746
      %v10751 = vmul.f32 %v454, %v10746
      %v10752 = vmul.f32 %v455, %v10746
      %v10753 = vmul.f32 %v456, %v10746
      %v10754 = vmul.f32 %v457, %v10746
      %v10755 = vmul.f32 %v458, %v10746
      %v10756 = vmul.f32 %v459, %v10746
      %v10757 = vmul.f32 %v460, %v10746
      %v10758 = vmul.f32 %v461, %v10746
      %v10759 = vmul.f32 %v462, %v10746
      %v10760 = vmul.f32 %v463, %v10746
      %v10761 = vmul.f32 %v464, %v10746
      %v10762 = vmul.f32 %v465, %v10746
      %v10763 = vmul.f32 %v466, %v10746
      %v10764 = vmul.f32 %v467, %v10746
      %v10765 = vmul.f32 %v468, %v10746
      %v10766 = vmul.f32 %v469, %v10746
      %v10767 = vmul.f32 %v470, %v10746
      %v10768 = vmul.f32 %v471, %v10746
      %v10769 = vmul.f32 %v472, %v10746
      %v10770 = vmul.f32 %v473, %v10746
      %v10771 = vmul.f32 %v474, %v10746
      %v10772 = vmul.f32 %v475, %v10746
      %v10773 = vmul.f32 %v476, %v10746
      %v10774 = vmul.f32 %v477, %v10746
      %v10775 = vmul.f32 %v478, %v10746
      %v10776 = vmul.f32 %v479, %v10746
      %v10777 = vmul.f32 %v480, %v10746
      %v10778 = vmul.f32 %v481, %v10746
      %v10779 = vmul.f32 %v482, %v10746
      %v10780 = vmul.f32 %v483, %v10746
      %v10781 = vmul.f32 %v484, %v10746
      %v10782 = vmul.f32 %v485, %v10746
      %v10783 = vmul.f32 %v486, %v10746
      %v10784 = vmul.f32 %v487, %v10746
      %v10785 = vmul.f32 %v488, %v10746
      %v10786 = vmul.f32 %v489, %v10746
      %v10787 = vmul.f32 %v490, %v10746
      %v10788 = vmul.f32 %v491, %v10746
      %v10789 = vmul.f32 %v492, %v10746
      %v10790 = vmul.f32 %v493, %v10746
      %v10791 = vmul.f32 %v494, %v10746
      %v10792 = vmul.f32 %v495, %v10746
      %v10793 = vmul.f32 %v496, %v10746
      %v10794 = vmul.f32 %v497, %v10746
      %v10843 = vrot.slane %v10747, 6
      %v10844 = vrot.slane %v10748, 6
      %v10845 = vsel %vm9622, %v10843, %v10844
      %v10846 = vrot.slane %v10749, 6
      %v10847 = vsel %vm9622, %v10844, %v10846
      %v10848 = vrot.slane %v10750, 6
      %v10849 = vrot.slane %v10751, 6
      %v10850 = vsel %vm9622, %v10848, %v10849
      %v10851 = vrot.slane %v10752, 6
      %v10852 = vsel %vm9622, %v10849, %v10851
      %v10853 = vrot.slane %v10753, 6
      %v10854 = vrot.slane %v10754, 6
      %v10855 = vsel %vm9622, %v10853, %v10854
      %v10856 = vrot.slane %v10755, 6
      %v10857 = vsel %vm9622, %v10854, %v10856
      %v10858 = vrot.slane %v10756, 6
      %v10859 = vrot.slane %v10757, 6
      %v10860 = vsel %vm9622, %v10858, %v10859
      %v10861 = vrot.slane %v10758, 6
      %v10862 = vsel %vm9622, %v10859, %v10861
      %v10863 = vrot.slane %v10759, 6
      %v10864 = vrot.slane %v10760, 6
      %v10865 = vsel %vm9622, %v10863, %v10864
      %v10866 = vrot.slane %v10761, 6
      %v10867 = vsel %vm9622, %v10864, %v10866
      %v10868 = vrot.slane %v10762, 6
      %v10869 = vrot.slane %v10763, 6
      %v10870 = vsel %vm9622, %v10868, %v10869
      %v10871 = vrot.slane %v10764, 6
      %v10872 = vsel %vm9622, %v10869, %v10871
      %v10873 = vrot.slane %v10765, 6
      %v10874 = vrot.slane %v10766, 6
      %v10875 = vsel %vm9622, %v10873, %v10874
      %v10876 = vrot.slane %v10767, 6
      %v10877 = vsel %vm9622, %v10874, %v10876
      %v10878 = vrot.slane %v10768, 6
      %v10879 = vrot.slane %v10769, 6
      %v10880 = vsel %vm9622, %v10878, %v10879
      %v10881 = vrot.slane %v10770, 6
      %v10882 = vsel %vm9622, %v10879, %v10881
      %v10883 = vrot.slane %v10771, 6
      %v10884 = vrot.slane %v10772, 6
      %v10885 = vsel %vm9622, %v10883, %v10884
      %v10886 = vrot.slane %v10773, 6
      %v10887 = vsel %vm9622, %v10884, %v10886
      %v10888 = vrot.slane %v10774, 6
      %v10889 = vrot.slane %v10775, 6
      %v10890 = vsel %vm9622, %v10888, %v10889
      %v10891 = vrot.slane %v10776, 6
      %v10892 = vsel %vm9622, %v10889, %v10891
      %v10893 = vrot.slane %v10777, 6
      %v10894 = vrot.slane %v10778, 6
      %v10895 = vsel %vm9622, %v10893, %v10894
      %v10896 = vrot.slane %v10779, 6
      %v10897 = vsel %vm9622, %v10894, %v10896
      %v10898 = vrot.slane %v10780, 6
      %v10899 = vrot.slane %v10781, 6
      %v10900 = vsel %vm9622, %v10898, %v10899
      %v10901 = vrot.slane %v10782, 6
      %v10902 = vsel %vm9622, %v10899, %v10901
      %v10903 = vrot.slane %v10783, 6
      %v10904 = vrot.slane %v10784, 6
      %v10905 = vsel %vm9622, %v10903, %v10904
      %v10906 = vrot.slane %v10785, 6
      %v10907 = vsel %vm9622, %v10904, %v10906
      %v10908 = vrot.slane %v10786, 6
      %v10909 = vrot.slane %v10787, 6
      %v10910 = vsel %vm9622, %v10908, %v10909
      %v10911 = vrot.slane %v10788, 6
      %v10912 = vsel %vm9622, %v10909, %v10911
      %v10913 = vrot.slane %v10789, 6
      %v10914 = vrot.slane %v10790, 6
      %v10915 = vsel %vm9622, %v10913, %v10914
      %v10916 = vrot.slane %v10791, 6
      %v10917 = vsel %vm9622, %v10914, %v10916
      %v10918 = vrot.slane %v10792, 6
      %v10919 = vrot.slane %v10793, 6
      %v10920 = vsel %vm9622, %v10918, %v10919
      %v10921 = vrot.slane %v10794, 6
      %v10922 = vsel %vm9622, %v10919, %v10921
      %v10955 = vadd.f32 %v10711, %v10845
      %v10956 = vadd.f32 %v10712, %v10847
      %v10957 = vadd.f32 %v10713, %v10850
      %v10958 = vadd.f32 %v10714, %v10852
      %v10959 = vadd.f32 %v10715, %v10855
      %v10960 = vadd.f32 %v10716, %v10857
      %v10961 = vadd.f32 %v10717, %v10860
      %v10962 = vadd.f32 %v10718, %v10862
      %v10963 = vadd.f32 %v10719, %v10865
      %v10964 = vadd.f32 %v10720, %v10867
      %v10965 = vadd.f32 %v10721, %v10870
      %v10966 = vadd.f32 %v10722, %v10872
      %v10967 = vadd.f32 %v10723, %v10875
      %v10968 = vadd.f32 %v10724, %v10877
      %v10969 = vadd.f32 %v10725, %v10880
      %v10970 = vadd.f32 %v10726, %v10882
      %v10971 = vadd.f32 %v10727, %v10885
      %v10972 = vadd.f32 %v10728, %v10887
      %v10973 = vadd.f32 %v10729, %v10890
      %v10974 = vadd.f32 %v10730, %v10892
      %v10975 = vadd.f32 %v10731, %v10895
      %v10976 = vadd.f32 %v10732, %v10897
      %v10977 = vadd.f32 %v10733, %v10900
      %v10978 = vadd.f32 %v10734, %v10902
      %v10979 = vadd.f32 %v10735, %v10905
      %v10980 = vadd.f32 %v10736, %v10907
      %v10981 = vadd.f32 %v10737, %v10910
      %v10982 = vadd.f32 %v10738, %v10912
      %v10983 = vadd.f32 %v10739, %v10915
      %v10984 = vadd.f32 %v10740, %v10917
      %v10985 = vadd.f32 %v10741, %v10920
      %v10986 = vadd.f32 %v10742, %v10922
      %v10987 = vlaneseq
      %v10988 = vshrl.u32 %v10987, 7
      %v10989 = vsub.s32 0, %v10988
      %v10990 = vrot.slane %v432, %v10989
      %v10991 = vmul.f32 %v453, %v10990
      %v10992 = vmul.f32 %v454, %v10990
      %v10993 = vmul.f32 %v455, %v10990
      %v10994 = vmul.f32 %v456, %v10990
      %v10995 = vmul.f32 %v457, %v10990
      %v10996 = vmul.f32 %v458, %v10990
      %v10997 = vmul.f32 %v459, %v10990
      %v10998 = vmul.f32 %v460, %v10990
      %v10999 = vmul.f32 %v461, %v10990
      %v11000 = vmul.f32 %v462, %v10990
      %v11001 = vmul.f32 %v463, %v10990
      %v11002 = vmul.f32 %v464, %v10990
      %v11003 = vmul.f32 %v465, %v10990
      %v11004 = vmul.f32 %v466, %v10990
      %v11005 = vmul.f32 %v467, %v10990
      %v11006 = vmul.f32 %v468, %v10990
      %v11007 = vmul.f32 %v469, %v10990
      %v11008 = vmul.f32 %v470, %v10990
      %v11009 = vmul.f32 %v471, %v10990
      %v11010 = vmul.f32 %v472, %v10990
      %v11011 = vmul.f32 %v473, %v10990
      %v11012 = vmul.f32 %v474, %v10990
      %v11013 = vmul.f32 %v475, %v10990
      %v11014 = vmul.f32 %v476, %v10990
      %v11015 = vmul.f32 %v477, %v10990
      %v11016 = vmul.f32 %v478, %v10990
      %v11017 = vmul.f32 %v479, %v10990
      %v11018 = vmul.f32 %v480, %v10990
      %v11019 = vmul.f32 %v481, %v10990
      %v11020 = vmul.f32 %v482, %v10990
      %v11021 = vmul.f32 %v483, %v10990
      %v11022 = vmul.f32 %v484, %v10990
      %v11023 = vmul.f32 %v485, %v10990
      %v11024 = vmul.f32 %v486, %v10990
      %v11025 = vmul.f32 %v487, %v10990
      %v11026 = vmul.f32 %v488, %v10990
      %v11027 = vmul.f32 %v489, %v10990
      %v11028 = vmul.f32 %v490, %v10990
      %v11029 = vmul.f32 %v491, %v10990
      %v11030 = vmul.f32 %v492, %v10990
      %v11031 = vmul.f32 %v493, %v10990
      %v11032 = vmul.f32 %v494, %v10990
      %v11033 = vmul.f32 %v495, %v10990
      %v11034 = vmul.f32 %v496, %v10990
      %v11035 = vmul.f32 %v497, %v10990
      %v11036 = vmul.f32 %v498, %v10990
      %v11037 = vmul.f32 %v499, %v10990
      %v11038 = vmul.f32 %v500, %v10990
      %v11087 = vrot.slane %v10991, 6
      %v11088 = vrot.slane %v10992, 6
      %v11089 = vsel %vm9622, %v11087, %v11088
      %v11090 = vrot.slane %v10993, 6
      %v11091 = vsel %vm9622, %v11088, %v11090
      %v11092 = vrot.slane %v10994, 6
      %v11093 = vrot.slane %v10995, 6
      %v11094 = vsel %vm9622, %v11092, %v11093
      %v11095 = vrot.slane %v10996, 6
      %v11096 = vsel %vm9622, %v11093, %v11095
      %v11097 = vrot.slane %v10997, 6
      %v11098 = vrot.slane %v10998, 6
      %v11099 = vsel %vm9622, %v11097, %v11098
      %v11100 = vrot.slane %v10999, 6
      %v11101 = vsel %vm9622, %v11098, %v11100
      %v11102 = vrot.slane %v11000, 6
      %v11103 = vrot.slane %v11001, 6
      %v11104 = vsel %vm9622, %v11102, %v11103
      %v11105 = vrot.slane %v11002, 6
      %v11106 = vsel %vm9622, %v11103, %v11105
      %v11107 = vrot.slane %v11003, 6
      %v11108 = vrot.slane %v11004, 6
      %v11109 = vsel %vm9622, %v11107, %v11108
      %v11110 = vrot.slane %v11005, 6
      %v11111 = vsel %vm9622, %v11108, %v11110
      %v11112 = vrot.slane %v11006, 6
      %v11113 = vrot.slane %v11007, 6
      %v11114 = vsel %vm9622, %v11112, %v11113
      %v11115 = vrot.slane %v11008, 6
      %v11116 = vsel %vm9622, %v11113, %v11115
      %v11117 = vrot.slane %v11009, 6
      %v11118 = vrot.slane %v11010, 6
      %v11119 = vsel %vm9622, %v11117, %v11118
      %v11120 = vrot.slane %v11011, 6
      %v11121 = vsel %vm9622, %v11118, %v11120
      %v11122 = vrot.slane %v11012, 6
      %v11123 = vrot.slane %v11013, 6
      %v11124 = vsel %vm9622, %v11122, %v11123
      %v11125 = vrot.slane %v11014, 6
      %v11126 = vsel %vm9622, %v11123, %v11125
      %v11127 = vrot.slane %v11015, 6
      %v11128 = vrot.slane %v11016, 6
      %v11129 = vsel %vm9622, %v11127, %v11128
      %v11130 = vrot.slane %v11017, 6
      %v11131 = vsel %vm9622, %v11128, %v11130
      %v11132 = vrot.slane %v11018, 6
      %v11133 = vrot.slane %v11019, 6
      %v11134 = vsel %vm9622, %v11132, %v11133
      %v11135 = vrot.slane %v11020, 6
      %v11136 = vsel %vm9622, %v11133, %v11135
      %v11137 = vrot.slane %v11021, 6
      %v11138 = vrot.slane %v11022, 6
      %v11139 = vsel %vm9622, %v11137, %v11138
      %v11140 = vrot.slane %v11023, 6
      %v11141 = vsel %vm9622, %v11138, %v11140
      %v11142 = vrot.slane %v11024, 6
      %v11143 = vrot.slane %v11025, 6
      %v11144 = vsel %vm9622, %v11142, %v11143
      %v11145 = vrot.slane %v11026, 6
      %v11146 = vsel %vm9622, %v11143, %v11145
      %v11147 = vrot.slane %v11027, 6
      %v11148 = vrot.slane %v11028, 6
      %v11149 = vsel %vm9622, %v11147, %v11148
      %v11150 = vrot.slane %v11029, 6
      %v11151 = vsel %vm9622, %v11148, %v11150
      %v11152 = vrot.slane %v11030, 6
      %v11153 = vrot.slane %v11031, 6
      %v11154 = vsel %vm9622, %v11152, %v11153
      %v11155 = vrot.slane %v11032, 6
      %v11156 = vsel %vm9622, %v11153, %v11155
      %v11157 = vrot.slane %v11033, 6
      %v11158 = vrot.slane %v11034, 6
      %v11159 = vsel %vm9622, %v11157, %v11158
      %v11160 = vrot.slane %v11035, 6
      %v11161 = vsel %vm9622, %v11158, %v11160
      %v11162 = vrot.slane %v11036, 6
      %v11163 = vrot.slane %v11037, 6
      %v11164 = vsel %vm9622, %v11162, %v11163
      %v11165 = vrot.slane %v11038, 6
      %v11166 = vsel %vm9622, %v11163, %v11165
      %v11199 = vadd.f32 %v10955, %v11089
      %v11200 = vadd.f32 %v10956, %v11091
      %v11201 = vadd.f32 %v10957, %v11094
      %v11202 = vadd.f32 %v10958, %v11096
      %v11203 = vadd.f32 %v10959, %v11099
      %v11204 = vadd.f32 %v10960, %v11101
      %v11205 = vadd.f32 %v10961, %v11104
      %v11206 = vadd.f32 %v10962, %v11106
      %v11207 = vadd.f32 %v10963, %v11109
      %v11208 = vadd.f32 %v10964, %v11111
      %v11209 = vadd.f32 %v10965, %v11114
      %v11210 = vadd.f32 %v10966, %v11116
      %v11211 = vadd.f32 %v10967, %v11119
      %v11212 = vadd.f32 %v10968, %v11121
      %v11213 = vadd.f32 %v10969, %v11124
      %v11214 = vadd.f32 %v10970, %v11126
      %v11215 = vadd.f32 %v10971, %v11129
      %v11216 = vadd.f32 %v10972, %v11131
      %v11217 = vadd.f32 %v10973, %v11134
      %v11218 = vadd.f32 %v10974, %v11136
      %v11219 = vadd.f32 %v10975, %v11139
      %v11220 = vadd.f32 %v10976, %v11141
      %v11221 = vadd.f32 %v10977, %v11144
      %v11222 = vadd.f32 %v10978, %v11146
      %v11223 = vadd.f32 %v10979, %v11149
      %v11224 = vadd.f32 %v10980, %v11151
      %v11225 = vadd.f32 %v10981, %v11154
      %v11226 = vadd.f32 %v10982, %v11156
      %v11227 = vadd.f32 %v10983, %v11159
      %v11228 = vadd.f32 %v10984, %v11161
      %v11229 = vadd.f32 %v10985, %v11164
      %v11230 = vadd.f32 %v10986, %v11166
      %v11232 = vlaneseq
      %v11233 = vshrl.u32 %v11232, 7
      %v11234 = vsub.s32 0, %v11233
      %v11235 = vrot.slane %v433, %v11234
      %v11237 = vadd.f32 %v11199, %v11235
      %v11238 = vadd.f32 %v11200, %v11235
      %v11239 = vadd.f32 %v11201, %v11235
      %v11240 = vadd.f32 %v11202, %v11235
      %v11241 = vadd.f32 %v11203, %v11235
      %v11242 = vadd.f32 %v11204, %v11235
      %v11243 = vadd.f32 %v11205, %v11235
      %v11244 = vadd.f32 %v11206, %v11235
      %v11245 = vadd.f32 %v11207, %v11235
      %v11246 = vadd.f32 %v11208, %v11235
      %v11247 = vadd.f32 %v11209, %v11235
      %v11248 = vadd.f32 %v11210, %v11235
      %v11249 = vadd.f32 %v11211, %v11235
      %v11250 = vadd.f32 %v11212, %v11235
      %v11251 = vadd.f32 %v11213, %v11235
      %v11252 = vadd.f32 %v11214, %v11235
      %v11253 = vadd.f32 %v11215, %v11235
      %v11254 = vadd.f32 %v11216, %v11235
      %v11255 = vadd.f32 %v11217, %v11235
      %v11256 = vadd.f32 %v11218, %v11235
      %v11257 = vadd.f32 %v11219, %v11235
      %v11258 = vadd.f32 %v11220, %v11235
      %v11259 = vadd.f32 %v11221, %v11235
      %v11260 = vadd.f32 %v11222, %v11235
      %v11261 = vadd.f32 %v11223, %v11235
      %v11262 = vadd.f32 %v11224, %v11235
      %v11263 = vadd.f32 %v11225, %v11235
      %v11264 = vadd.f32 %v11226, %v11235
      %v11265 = vadd.f32 %v11227, %v11235
      %v11266 = vadd.f32 %v11228, %v11235
      %v11267 = vadd.f32 %v11229, %v11235
      %v11268 = vadd.f32 %v11230, %v11235
      %v11269 = vsel %vm307, %v11237, 0.0
      %11270 = vadd.xlane.f32.xlu0 %v11269
      %v11271 = vpop.xlane.xlu0 %11270
      %v11272 = vsel %vm307, %v11238, 0.0
      %11273 = vadd.xlane.f32.xlu0 %v11272
      %v11274 = vpop.xlane.xlu0 %11273
      %v11275 = vsel %vm307, %v11239, 0.0
      %11276 = vadd.xlane.f32.xlu0 %v11275
      %v11277 = vpop.xlane.xlu0 %11276
      %v11278 = vsel %vm307, %v11240, 0.0
      %11279 = vadd.xlane.f32.xlu0 %v11278
      %v11280 = vpop.xlane.xlu0 %11279
      %v11281 = vsel %vm307, %v11241, 0.0
      %11282 = vadd.xlane.f32.xlu0 %v11281
      %v11283 = vpop.xlane.xlu0 %11282
      %v11284 = vsel %vm307, %v11242, 0.0
      %11285 = vadd.xlane.f32.xlu0 %v11284
      %v11286 = vpop.xlane.xlu0 %11285
      %v11287 = vsel %vm307, %v11243, 0.0
      %11288 = vadd.xlane.f32.xlu0 %v11287
      %v11289 = vpop.xlane.xlu0 %11288
      %v11290 = vsel %vm307, %v11244, 0.0
      %11291 = vadd.xlane.f32.xlu0 %v11290
      %v11292 = vpop.xlane.xlu0 %11291
      %v11293 = vsel %vm307, %v11245, 0.0
      %11294 = vadd.xlane.f32.xlu0 %v11293
      %v11295 = vpop.xlane.xlu0 %11294
      %v11296 = vsel %vm307, %v11246, 0.0
      %11297 = vadd.xlane.f32.xlu0 %v11296
      %v11298 = vpop.xlane.xlu0 %11297
      %v11299 = vsel %vm307, %v11247, 0.0
      %11300 = vadd.xlane.f32.xlu0 %v11299
      %v11301 = vpop.xlane.xlu0 %11300
      %v11302 = vsel %vm307, %v11248, 0.0
      %11303 = vadd.xlane.f32.xlu0 %v11302
      %v11304 = vpop.xlane.xlu0 %11303
      %v11305 = vsel %vm307, %v11249, 0.0
      %11306 = vadd.xlane.f32.xlu0 %v11305
      %v11307 = vpop.xlane.xlu0 %11306
      %v11308 = vsel %vm307, %v11250, 0.0
      %11309 = vadd.xlane.f32.xlu0 %v11308
      %v11310 = vpop.xlane.xlu0 %11309
      %v11311 = vsel %vm307, %v11251, 0.0
      %11312 = vadd.xlane.f32.xlu0 %v11311
      %v11313 = vpop.xlane.xlu0 %11312
      %v11314 = vsel %vm307, %v11252, 0.0
      %11315 = vadd.xlane.f32.xlu0 %v11314
      %v11316 = vpop.xlane.xlu0 %11315
      %v11317 = vsel %vm307, %v11253, 0.0
      %11318 = vadd.xlane.f32.xlu0 %v11317
      %v11319 = vpop.xlane.xlu0 %11318
      %v11320 = vsel %vm307, %v11254, 0.0
      %11321 = vadd.xlane.f32.xlu0 %v11320
      %v11322 = vpop.xlane.xlu0 %11321
      %v11323 = vsel %vm307, %v11255, 0.0
      %11324 = vadd.xlane.f32.xlu0 %v11323
      %v11325 = vpop.xlane.xlu0 %11324
      %v11326 = vsel %vm307, %v11256, 0.0
      %11327 = vadd.xlane.f32.xlu0 %v11326
      %v11328 = vpop.xlane.xlu0 %11327
      %v11329 = vsel %vm307, %v11257, 0.0
      %11330 = vadd.xlane.f32.xlu0 %v11329
      %v11331 = vpop.xlane.xlu0 %11330
      %v11332 = vsel %vm307, %v11258, 0.0
      %11333 = vadd.xlane.f32.xlu0 %v11332
      %v11334 = vpop.xlane.xlu0 %11333
      %v11335 = vsel %vm307, %v11259, 0.0
      %11336 = vadd.xlane.f32.xlu0 %v11335
      %v11337 = vpop.xlane.xlu0 %11336
      %v11338 = vsel %vm307, %v11260, 0.0
      %11339 = vadd.xlane.f32.xlu0 %v11338
      %v11340 = vpop.xlane.xlu0 %11339
      %v11341 = vsel %vm307, %v11261, 0.0
      %11342 = vadd.xlane.f32.xlu0 %v11341
      %v11343 = vpop.xlane.xlu0 %11342
      %v11344 = vsel %vm307, %v11262, 0.0
      %11345 = vadd.xlane.f32.xlu0 %v11344
      %v11346 = vpop.xlane.xlu0 %11345
      %v11347 = vsel %vm307, %v11263, 0.0
      %11348 = vadd.xlane.f32.xlu0 %v11347
      %v11349 = vpop.xlane.xlu0 %11348
      %v11350 = vsel %vm307, %v11264, 0.0
      %11351 = vadd.xlane.f32.xlu0 %v11350
      %v11352 = vpop.xlane.xlu0 %11351
      %v11353 = vsel %vm307, %v11265, 0.0
      %11354 = vadd.xlane.f32.xlu0 %v11353
      %v11355 = vpop.xlane.xlu0 %11354
      %v11356 = vsel %vm307, %v11266, 0.0
      %11357 = vadd.xlane.f32.xlu0 %v11356
      %v11358 = vpop.xlane.xlu0 %11357
      %v11359 = vsel %vm307, %v11267, 0.0
      %11360 = vadd.xlane.f32.xlu0 %v11359
      %v11361 = vpop.xlane.xlu0 %11360
      %v11362 = vsel %vm307, %v11268, 0.0
      %11363 = vadd.xlane.f32.xlu0 %v11362
      %v11364 = vpop.xlane.xlu0 %11363
      %v11365 = vrcp.pop 4.0
      %v11366 = vmul.f32 %v11271, %v11365
      %v11367 = vmul.f32 %v11274, %v11365
      %v11368 = vmul.f32 %v11277, %v11365
      %v11369 = vmul.f32 %v11280, %v11365
      %v11370 = vmul.f32 %v11283, %v11365
      %v11371 = vmul.f32 %v11286, %v11365
      %v11372 = vmul.f32 %v11289, %v11365
      %v11373 = vmul.f32 %v11292, %v11365
      %v11374 = vmul.f32 %v11295, %v11365
      %v11375 = vmul.f32 %v11298, %v11365
      %v11376 = vmul.f32 %v11301, %v11365
      %v11377 = vmul.f32 %v11304, %v11365
      %v11378 = vmul.f32 %v11307, %v11365
      %v11379 = vmul.f32 %v11310, %v11365
      %v11380 = vmul.f32 %v11313, %v11365
      %v11381 = vmul.f32 %v11316, %v11365
      %v11382 = vmul.f32 %v11319, %v11365
      %v11383 = vmul.f32 %v11322, %v11365
      %v11384 = vmul.f32 %v11325, %v11365
      %v11385 = vmul.f32 %v11328, %v11365
      %v11386 = vmul.f32 %v11331, %v11365
      %v11387 = vmul.f32 %v11334, %v11365
      %v11388 = vmul.f32 %v11337, %v11365
      %v11389 = vmul.f32 %v11340, %v11365
      %v11390 = vmul.f32 %v11343, %v11365
      %v11391 = vmul.f32 %v11346, %v11365
      %v11392 = vmul.f32 %v11349, %v11365
      %v11393 = vmul.f32 %v11352, %v11365
      %v11394 = vmul.f32 %v11355, %v11365
      %v11395 = vmul.f32 %v11358, %v11365
      %v11396 = vmul.f32 %v11361, %v11365
      %v11397 = vmul.f32 %v11364, %v11365
      %v11398 = vsub.f32 %v11237, %v11366
      %v11399 = vsub.f32 %v11238, %v11367
      %v11400 = vsub.f32 %v11239, %v11368
      %v11401 = vsub.f32 %v11240, %v11369
      %v11402 = vsub.f32 %v11241, %v11370
      %v11403 = vsub.f32 %v11242, %v11371
      %v11404 = vsub.f32 %v11243, %v11372
      %v11405 = vsub.f32 %v11244, %v11373
      %v11406 = vsub.f32 %v11245, %v11374
      %v11407 = vsub.f32 %v11246, %v11375
      %v11408 = vsub.f32 %v11247, %v11376
      %v11409 = vsub.f32 %v11248, %v11377
      %v11410 = vsub.f32 %v11249, %v11378
      %v11411 = vsub.f32 %v11250, %v11379
      %v11412 = vsub.f32 %v11251, %v11380
      %v11413 = vsub.f32 %v11252, %v11381
      %v11414 = vsub.f32 %v11253, %v11382
      %v11415 = vsub.f32 %v11254, %v11383
      %v11416 = vsub.f32 %v11255, %v11384
      %v11417 = vsub.f32 %v11256, %v11385
      %v11418 = vsub.f32 %v11257, %v11386
      %v11419 = vsub.f32 %v11258, %v11387
      %v11420 = vsub.f32 %v11259, %v11388
      %v11421 = vsub.f32 %v11260, %v11389
      %v11422 = vsub.f32 %v11261, %v11390
      %v11423 = vsub.f32 %v11262, %v11391
      %v11424 = vsub.f32 %v11263, %v11392
      %v11425 = vsub.f32 %v11264, %v11393
      %v11426 = vsub.f32 %v11265, %v11394
      %v11427 = vsub.f32 %v11266, %v11395
      %v11428 = vsub.f32 %v11267, %v11396
      %v11429 = vsub.f32 %v11268, %v11397
      %v11430 = vmul.f32 %v11398, %v11398
      %v11431 = vmul.f32 %v11399, %v11399
      %v11432 = vmul.f32 %v11400, %v11400
      %v11433 = vmul.f32 %v11401, %v11401
      %v11434 = vmul.f32 %v11402, %v11402
      %v11435 = vmul.f32 %v11403, %v11403
      %v11436 = vmul.f32 %v11404, %v11404
      %v11437 = vmul.f32 %v11405, %v11405
      %v11438 = vmul.f32 %v11406, %v11406
      %v11439 = vmul.f32 %v11407, %v11407
      %v11440 = vmul.f32 %v11408, %v11408
      %v11441 = vmul.f32 %v11409, %v11409
      %v11442 = vmul.f32 %v11410, %v11410
      %v11443 = vmul.f32 %v11411, %v11411
      %v11444 = vmul.f32 %v11412, %v11412
      %v11445 = vmul.f32 %v11413, %v11413
      %v11446 = vmul.f32 %v11414, %v11414
      %v11447 = vmul.f32 %v11415, %v11415
      %v11448 = vmul.f32 %v11416, %v11416
      %v11449 = vmul.f32 %v11417, %v11417
      %v11450 = vmul.f32 %v11418, %v11418
      %v11451 = vmul.f32 %v11419, %v11419
      %v11452 = vmul.f32 %v11420, %v11420
      %v11453 = vmul.f32 %v11421, %v11421
      %v11454 = vmul.f32 %v11422, %v11422
      %v11455 = vmul.f32 %v11423, %v11423
      %v11456 = vmul.f32 %v11424, %v11424
      %v11457 = vmul.f32 %v11425, %v11425
      %v11458 = vmul.f32 %v11426, %v11426
      %v11459 = vmul.f32 %v11427, %v11427
      %v11460 = vmul.f32 %v11428, %v11428
      %v11461 = vmul.f32 %v11429, %v11429
      %v11462 = vsel %vm307, %v11430, 0.0
      %11463 = vadd.xlane.f32.xlu0 %v11462
      %v11464 = vpop.xlane.xlu0 %11463
      %v11465 = vsel %vm307, %v11431, 0.0
      %11466 = vadd.xlane.f32.xlu0 %v11465
      %v11467 = vpop.xlane.xlu0 %11466
      %v11468 = vsel %vm307, %v11432, 0.0
      %11469 = vadd.xlane.f32.xlu0 %v11468
      %v11470 = vpop.xlane.xlu0 %11469
      %v11471 = vsel %vm307, %v11433, 0.0
      %11472 = vadd.xlane.f32.xlu0 %v11471
      %v11473 = vpop.xlane.xlu0 %11472
      %v11474 = vsel %vm307, %v11434, 0.0
      %11475 = vadd.xlane.f32.xlu0 %v11474
      %v11476 = vpop.xlane.xlu0 %11475
      %v11477 = vsel %vm307, %v11435, 0.0
      %11478 = vadd.xlane.f32.xlu0 %v11477
      %v11479 = vpop.xlane.xlu0 %11478
      %v11480 = vsel %vm307, %v11436, 0.0
      %11481 = vadd.xlane.f32.xlu0 %v11480
      %v11482 = vpop.xlane.xlu0 %11481
      %v11483 = vsel %vm307, %v11437, 0.0
      %11484 = vadd.xlane.f32.xlu0 %v11483
      %v11485 = vpop.xlane.xlu0 %11484
      %v11486 = vsel %vm307, %v11438, 0.0
      %11487 = vadd.xlane.f32.xlu0 %v11486
      %v11488 = vpop.xlane.xlu0 %11487
      %v11489 = vsel %vm307, %v11439, 0.0
      %11490 = vadd.xlane.f32.xlu0 %v11489
      %v11491 = vpop.xlane.xlu0 %11490
      %v11492 = vsel %vm307, %v11440, 0.0
      %11493 = vadd.xlane.f32.xlu0 %v11492
      %v11494 = vpop.xlane.xlu0 %11493
      %v11495 = vsel %vm307, %v11441, 0.0
      %11496 = vadd.xlane.f32.xlu0 %v11495
      %v11497 = vpop.xlane.xlu0 %11496
      %v11498 = vsel %vm307, %v11442, 0.0
      %11499 = vadd.xlane.f32.xlu0 %v11498
      %v11500 = vpop.xlane.xlu0 %11499
      %v11501 = vsel %vm307, %v11443, 0.0
      %11502 = vadd.xlane.f32.xlu0 %v11501
      %v11503 = vpop.xlane.xlu0 %11502
      %v11504 = vsel %vm307, %v11444, 0.0
      %11505 = vadd.xlane.f32.xlu0 %v11504
      %v11506 = vpop.xlane.xlu0 %11505
      %v11507 = vsel %vm307, %v11445, 0.0
      %11508 = vadd.xlane.f32.xlu0 %v11507
      %v11509 = vpop.xlane.xlu0 %11508
      %v11510 = vsel %vm307, %v11446, 0.0
      %11511 = vadd.xlane.f32.xlu0 %v11510
      %v11512 = vpop.xlane.xlu0 %11511
      %v11513 = vsel %vm307, %v11447, 0.0
      %11514 = vadd.xlane.f32.xlu0 %v11513
      %v11515 = vpop.xlane.xlu0 %11514
      %v11516 = vsel %vm307, %v11448, 0.0
      %11517 = vadd.xlane.f32.xlu0 %v11516
      %v11518 = vpop.xlane.xlu0 %11517
      %v11519 = vsel %vm307, %v11449, 0.0
      %11520 = vadd.xlane.f32.xlu0 %v11519
      %v11521 = vpop.xlane.xlu0 %11520
      %v11522 = vsel %vm307, %v11450, 0.0
      %11523 = vadd.xlane.f32.xlu0 %v11522
      %v11524 = vpop.xlane.xlu0 %11523
      %v11525 = vsel %vm307, %v11451, 0.0
      %11526 = vadd.xlane.f32.xlu0 %v11525
      %v11527 = vpop.xlane.xlu0 %11526
      %v11528 = vsel %vm307, %v11452, 0.0
      %11529 = vadd.xlane.f32.xlu0 %v11528
      %v11530 = vpop.xlane.xlu0 %11529
      %v11531 = vsel %vm307, %v11453, 0.0
      %11532 = vadd.xlane.f32.xlu0 %v11531
      %v11533 = vpop.xlane.xlu0 %11532
      %v11534 = vsel %vm307, %v11454, 0.0
      %11535 = vadd.xlane.f32.xlu0 %v11534
      %v11536 = vpop.xlane.xlu0 %11535
      %v11537 = vsel %vm307, %v11455, 0.0
      %11538 = vadd.xlane.f32.xlu0 %v11537
      %v11539 = vpop.xlane.xlu0 %11538
      %v11540 = vsel %vm307, %v11456, 0.0
      %11541 = vadd.xlane.f32.xlu0 %v11540
      %v11542 = vpop.xlane.xlu0 %11541
      %v11543 = vsel %vm307, %v11457, 0.0
      %11544 = vadd.xlane.f32.xlu0 %v11543
      %v11545 = vpop.xlane.xlu0 %11544
      %v11546 = vsel %vm307, %v11458, 0.0
      %11547 = vadd.xlane.f32.xlu0 %v11546
      %v11548 = vpop.xlane.xlu0 %11547
      %v11549 = vsel %vm307, %v11459, 0.0
      %11550 = vadd.xlane.f32.xlu0 %v11549
      %v11551 = vpop.xlane.xlu0 %11550
      %v11552 = vsel %vm307, %v11460, 0.0
      %11553 = vadd.xlane.f32.xlu0 %v11552
      %v11554 = vpop.xlane.xlu0 %11553
      %v11555 = vsel %vm307, %v11461, 0.0
      %11556 = vadd.xlane.f32.xlu0 %v11555
      %v11557 = vpop.xlane.xlu0 %11556
      %v11558 = vmul.f32 %v11464, %v11365
      %v11559 = vmul.f32 %v11467, %v11365
      %v11560 = vmul.f32 %v11470, %v11365
      %v11561 = vmul.f32 %v11473, %v11365
      %v11562 = vmul.f32 %v11476, %v11365
      %v11563 = vmul.f32 %v11479, %v11365
      %v11564 = vmul.f32 %v11482, %v11365
      %v11565 = vmul.f32 %v11485, %v11365
      %v11566 = vmul.f32 %v11488, %v11365
      %v11567 = vmul.f32 %v11491, %v11365
      %v11568 = vmul.f32 %v11494, %v11365
      %v11569 = vmul.f32 %v11497, %v11365
      %v11570 = vmul.f32 %v11500, %v11365
      %v11571 = vmul.f32 %v11503, %v11365
      %v11572 = vmul.f32 %v11506, %v11365
      %v11573 = vmul.f32 %v11509, %v11365
      %v11574 = vmul.f32 %v11512, %v11365
      %v11575 = vmul.f32 %v11515, %v11365
      %v11576 = vmul.f32 %v11518, %v11365
      %v11577 = vmul.f32 %v11521, %v11365
      %v11578 = vmul.f32 %v11524, %v11365
      %v11579 = vmul.f32 %v11527, %v11365
      %v11580 = vmul.f32 %v11530, %v11365
      %v11581 = vmul.f32 %v11533, %v11365
      %v11582 = vmul.f32 %v11536, %v11365
      %v11583 = vmul.f32 %v11539, %v11365
      %v11584 = vmul.f32 %v11542, %v11365
      %v11585 = vmul.f32 %v11545, %v11365
      %v11586 = vmul.f32 %v11548, %v11365
      %v11587 = vmul.f32 %v11551, %v11365
      %v11588 = vmul.f32 %v11554, %v11365
      %v11589 = vmul.f32 %v11557, %v11365
      %v11590 = vadd.f32 %v11558, 1e-06
      %v11591 = vadd.f32 %v11559, 1e-06
      %v11592 = vadd.f32 %v11560, 1e-06
      %v11593 = vadd.f32 %v11561, 1e-06
      %v11594 = vadd.f32 %v11562, 1e-06
      %v11595 = vadd.f32 %v11563, 1e-06
      %v11596 = vadd.f32 %v11564, 1e-06
      %v11597 = vadd.f32 %v11565, 1e-06
      %v11598 = vadd.f32 %v11566, 1e-06
      %v11599 = vadd.f32 %v11567, 1e-06
      %v11600 = vadd.f32 %v11568, 1e-06
      %v11601 = vadd.f32 %v11569, 1e-06
      %v11602 = vadd.f32 %v11570, 1e-06
      %v11603 = vadd.f32 %v11571, 1e-06
      %v11604 = vadd.f32 %v11572, 1e-06
      %v11605 = vadd.f32 %v11573, 1e-06
      %v11606 = vadd.f32 %v11574, 1e-06
      %v11607 = vadd.f32 %v11575, 1e-06
      %v11608 = vadd.f32 %v11576, 1e-06
      %v11609 = vadd.f32 %v11577, 1e-06
      %v11610 = vadd.f32 %v11578, 1e-06
      %v11611 = vadd.f32 %v11579, 1e-06
      %v11612 = vadd.f32 %v11580, 1e-06
      %v11613 = vadd.f32 %v11581, 1e-06
      %v11614 = vadd.f32 %v11582, 1e-06
      %v11615 = vadd.f32 %v11583, 1e-06
      %v11616 = vadd.f32 %v11584, 1e-06
      %v11617 = vadd.f32 %v11585, 1e-06
      %v11618 = vadd.f32 %v11586, 1e-06
      %v11619 = vadd.f32 %v11587, 1e-06
      %v11620 = vadd.f32 %v11588, 1e-06
      %v11621 = vadd.f32 %v11589, 1e-06
      %v11622 = vrsqrt.pop %v11590
      %v11623 = vrsqrt.pop %v11591
      %v11624 = vrsqrt.pop %v11592
      %v11625 = vrsqrt.pop %v11593
      %v11626 = vrsqrt.pop %v11594
      %v11627 = vrsqrt.pop %v11595
      %v11628 = vrsqrt.pop %v11596
      %v11629 = vrsqrt.pop %v11597
      %v11630 = vrsqrt.pop %v11598
      %v11631 = vrsqrt.pop %v11599
      %v11632 = vrsqrt.pop %v11600
      %v11633 = vrsqrt.pop %v11601
      %v11634 = vrsqrt.pop %v11602
      %v11635 = vrsqrt.pop %v11603
      %v11636 = vrsqrt.pop %v11604
      %v11637 = vrsqrt.pop %v11605
      %v11638 = vrsqrt.pop %v11606
      %v11639 = vrsqrt.pop %v11607
      %v11640 = vrsqrt.pop %v11608
      %v11641 = vrsqrt.pop %v11609
      %v11642 = vrsqrt.pop %v11610
      %v11643 = vrsqrt.pop %v11611
      %v11644 = vrsqrt.pop %v11612
      %v11645 = vrsqrt.pop %v11613
      %v11646 = vrsqrt.pop %v11614
      %v11647 = vrsqrt.pop %v11615
      %v11648 = vrsqrt.pop %v11616
      %v11649 = vrsqrt.pop %v11617
      %v11650 = vrsqrt.pop %v11618
      %v11651 = vrsqrt.pop %v11619
      %v11652 = vrsqrt.pop %v11620
      %v11653 = vrsqrt.pop %v11621
      %v11654 = vmul.f32 %v11398, %v11622
      %v11655 = vmul.f32 %v11399, %v11623
      %v11656 = vmul.f32 %v11400, %v11624
      %v11657 = vmul.f32 %v11401, %v11625
      %v11658 = vmul.f32 %v11402, %v11626
      %v11659 = vmul.f32 %v11403, %v11627
      %v11660 = vmul.f32 %v11404, %v11628
      %v11661 = vmul.f32 %v11405, %v11629
      %v11662 = vmul.f32 %v11406, %v11630
      %v11663 = vmul.f32 %v11407, %v11631
      %v11664 = vmul.f32 %v11408, %v11632
      %v11665 = vmul.f32 %v11409, %v11633
      %v11666 = vmul.f32 %v11410, %v11634
      %v11667 = vmul.f32 %v11411, %v11635
      %v11668 = vmul.f32 %v11412, %v11636
      %v11669 = vmul.f32 %v11413, %v11637
      %v11670 = vmul.f32 %v11414, %v11638
      %v11671 = vmul.f32 %v11415, %v11639
      %v11672 = vmul.f32 %v11416, %v11640
      %v11673 = vmul.f32 %v11417, %v11641
      %v11674 = vmul.f32 %v11418, %v11642
      %v11675 = vmul.f32 %v11419, %v11643
      %v11676 = vmul.f32 %v11420, %v11644
      %v11677 = vmul.f32 %v11421, %v11645
      %v11678 = vmul.f32 %v11422, %v11646
      %v11679 = vmul.f32 %v11423, %v11647
      %v11680 = vmul.f32 %v11424, %v11648
      %v11681 = vmul.f32 %v11425, %v11649
      %v11682 = vmul.f32 %v11426, %v11650
      %v11683 = vmul.f32 %v11427, %v11651
      %v11684 = vmul.f32 %v11428, %v11652
      %v11685 = vmul.f32 %v11429, %v11653
      %v11686 = vpack.c.bf16 %v11655, %v11654
      %v11687 = vpack.c.bf16 %v11657, %v11656
      %v11688 = vpack.c.bf16 %v11659, %v11658
      %v11689 = vpack.c.bf16 %v11661, %v11660
      %v11690 = vpack.c.bf16 %v11663, %v11662
      %v11691 = vpack.c.bf16 %v11665, %v11664
      %v11692 = vpack.c.bf16 %v11667, %v11666
      %v11693 = vpack.c.bf16 %v11669, %v11668
      %v11694 = vpack.c.bf16 %v11671, %v11670
      %v11695 = vpack.c.bf16 %v11673, %v11672
      %v11696 = vpack.c.bf16 %v11675, %v11674
      %v11697 = vpack.c.bf16 %v11677, %v11676
      %v11698 = vpack.c.bf16 %v11679, %v11678
      %v11699 = vpack.c.bf16 %v11681, %v11680
      %v11700 = vpack.c.bf16 %v11683, %v11682
      %v11701 = vpack.c.bf16 %v11685, %v11684
      %v11702 = vld [vmem:[%s3] sm:$0x3]
      %v11704 = vlaneseq
      %v11705 = vshrl.u32 %v11704, 7
      %v11706 = vsub.s32 0, %v11705
      %v11707 = vrot.slane %v434, %v11706
      %v11710 = vsel %vm307, %v11686, 0
      %v11713 = vsel %vm307, %v11687, 0
      %v11716 = vsel %vm307, %v11688, 0
      %v11719 = vsel %vm307, %v11689, 0
      %v11722 = vsel %vm307, %v11690, 0
      %v11725 = vsel %vm307, %v11691, 0
      %v11728 = vsel %vm307, %v11692, 0
      %v11731 = vsel %vm307, %v11693, 0
      %v11734 = vsel %vm307, %v11694, 0
      %v11737 = vsel %vm307, %v11695, 0
      %v11740 = vsel %vm307, %v11696, 0
      %v11743 = vsel %vm307, %v11697, 0
      %v11746 = vsel %vm307, %v11698, 0
      %v11749 = vsel %vm307, %v11699, 0
      %v11752 = vsel %vm307, %v11700, 0
      %v11755 = vsel %vm307, %v11701, 0
      %v11758 = vsel %vm9622, %v11702, 0
      %11760 = vmatprep.subr.bf16.mxu0 0
      %11761 = vmatpush1.bf16.msra.mxu0 %v11758
      %11762 = vmatprep.subr.bf16.mxu0 0
      %11763 = vmatpush1.bf16.msra.mxu0 0
      %11764 = vmatprep.subr.bf16.mxu0 0
      %11765 = vmatpush1.bf16.msra.mxu0 0
      %11766 = vmatprep.subr.bf16.mxu0 0
      %11767 = vmatpush1.bf16.msra.mxu0 0
      %11768 = vmatprep.subr.bf16.mxu0 0
      %11769 = vmatpush1.bf16.msra.mxu0 0
      %11770 = vmatprep.subr.bf16.mxu0 0
      %11771 = vmatpush1.bf16.msra.mxu0 0
      %11772 = vmatprep.subr.bf16.mxu0 0
      %11773 = vmatpush1.bf16.msra.mxu0 0
      %11774 = vmatprep.subr.bf16.mxu0 0
      %11775 = vmatpush1.bf16.msra.mxu0 0
      %11776 = vmatprep.subr.bf16.mxu0 0
      %11777 = vmatpush1.bf16.msra.mxu0 0
      %11778 = vmatprep.subr.bf16.mxu0 0
      %11779 = vmatpush1.bf16.msra.mxu0 0
      %11780 = vmatprep.subr.bf16.mxu0 0
      %11781 = vmatpush1.bf16.msra.mxu0 0
      %11782 = vmatprep.subr.bf16.mxu0 0
      %11783 = vmatpush1.bf16.msra.mxu0 0
      %11784 = vmatprep.subr.bf16.mxu0 0
      %11785 = vmatpush1.bf16.msra.mxu0 0
      %11786 = vmatprep.subr.bf16.mxu0 0
      %11787 = vmatpush1.bf16.msra.mxu0 0
      %11788 = vmatprep.subr.bf16.mxu0 0
      %11789 = vmatpush1.bf16.msra.mxu0 0
      %11790 = vmatprep.subr.bf16.mxu0 0
      %11791 = vmatpush1.bf16.msra.mxu0 0
      %11792 = vmatprep.mubr.bf16.mxu0 0
      %11793 = vmatmul.mubr.bf16.gmra.mrb[0].mxu0 %v11710
      %v11794 = vpop.f32.mrb[0].mxu0
      %v11795 = vadd.f32 %v11707, %v11794
      %v11796 = vpop.f32.mrb[0].mxu0
      %v11797 = vpop.f32.mrb[0].mxu0
      %v11798 = vadd.f32 %v11707, %v11797
      %v11799 = vpop.f32.mrb[0].mxu0
      %11800 = vmatprep.mubr.bf16.mxu0 0
      %11801 = vmatmul.mubr.bf16.gmra.mrb[0].mxu0 %v11713
      %v11802 = vpop.f32.mrb[0].mxu0
      %v11803 = vadd.f32 %v11707, %v11802
      %v11804 = vpop.f32.mrb[0].mxu0
      %v11805 = vpop.f32.mrb[0].mxu0
      %v11806 = vadd.f32 %v11707, %v11805
      %v11807 = vpop.f32.mrb[0].mxu0
      %11808 = vmatprep.mubr.bf16.mxu0 0
      %11809 = vmatmul.mubr.bf16.gmra.mrb[0].mxu0 %v11716
      %v11810 = vpop.f32.mrb[0].mxu0
      %v11811 = vadd.f32 %v11707, %v11810
      %v11812 = vpop.f32.mrb[0].mxu0
      %v11813 = vpop.f32.mrb[0].mxu0
      %v11814 = vadd.f32 %v11707, %v11813
      %v11815 = vpop.f32.mrb[0].mxu0
      %11816 = vmatprep.mubr.bf16.mxu0 0
      %11817 = vmatmul.mubr.bf16.gmra.mrb[0].mxu0 %v11719
      %v11818 = vpop.f32.mrb[0].mxu0
      %v11819 = vadd.f32 %v11707, %v11818
      %v11820 = vpop.f32.mrb[0].mxu0
      %v11821 = vpop.f32.mrb[0].mxu0
      %v11822 = vadd.f32 %v11707, %v11821
      %v11823 = vpop.f32.mrb[0].mxu0
      %11824 = vmatprep.mubr.bf16.mxu0 0
      %11825 = vmatmul.mubr.bf16.gmra.mrb[0].mxu0 %v11722
      %v11826 = vpop.f32.mrb[0].mxu0
      %v11827 = vadd.f32 %v11707, %v11826
      %v11828 = vpop.f32.mrb[0].mxu0
      %v11829 = vpop.f32.mrb[0].mxu0
      %v11830 = vadd.f32 %v11707, %v11829
      %v11831 = vpop.f32.mrb[0].mxu0
      %11832 = vmatprep.mubr.bf16.mxu0 0
      %11833 = vmatmul.mubr.bf16.gmra.mrb[0].mxu0 %v11725
      %v11834 = vpop.f32.mrb[0].mxu0
      %v11835 = vadd.f32 %v11707, %v11834
      %v11836 = vpop.f32.mrb[0].mxu0
      %v11837 = vpop.f32.mrb[0].mxu0
      %v11838 = vadd.f32 %v11707, %v11837
      %v11839 = vpop.f32.mrb[0].mxu0
      %11840 = vmatprep.mubr.bf16.mxu0 0
      %11841 = vmatmul.mubr.bf16.gmra.mrb[0].mxu0 %v11728
      %v11842 = vpop.f32.mrb[0].mxu0
      %v11843 = vadd.f32 %v11707, %v11842
      %v11844 = vpop.f32.mrb[0].mxu0
      %v11845 = vpop.f32.mrb[0].mxu0
      %v11846 = vadd.f32 %v11707, %v11845
      %v11847 = vpop.f32.mrb[0].mxu0
      %11848 = vmatprep.mubr.bf16.mxu0 0
      %11849 = vmatmul.mubr.bf16.gmra.mrb[0].mxu0 %v11731
      %v11850 = vpop.f32.mrb[0].mxu0
      %v11851 = vadd.f32 %v11707, %v11850
      %v11852 = vpop.f32.mrb[0].mxu0
      %v11853 = vpop.f32.mrb[0].mxu0
      %v11854 = vadd.f32 %v11707, %v11853
      %v11855 = vpop.f32.mrb[0].mxu0
      %11856 = vmatprep.mubr.bf16.mxu0 0
      %11857 = vmatmul.mubr.bf16.gmra.mrb[0].mxu0 %v11734
      %v11858 = vpop.f32.mrb[0].mxu0
      %v11859 = vadd.f32 %v11707, %v11858
      %v11860 = vpop.f32.mrb[0].mxu0
      %v11861 = vpop.f32.mrb[0].mxu0
      %v11862 = vadd.f32 %v11707, %v11861
      %v11863 = vpop.f32.mrb[0].mxu0
      %11864 = vmatprep.mubr.bf16.mxu0 0
      %11865 = vmatmul.mubr.bf16.gmra.mrb[0].mxu0 %v11737
      %v11866 = vpop.f32.mrb[0].mxu0
      %v11867 = vadd.f32 %v11707, %v11866
      %v11868 = vpop.f32.mrb[0].mxu0
      %v11869 = vpop.f32.mrb[0].mxu0
      %v11870 = vadd.f32 %v11707, %v11869
      %v11871 = vpop.f32.mrb[0].mxu0
      %11872 = vmatprep.mubr.bf16.mxu0 0
      %11873 = vmatmul.mubr.bf16.gmra.mrb[0].mxu0 %v11740
      %v11874 = vpop.f32.mrb[0].mxu0
      %v11875 = vadd.f32 %v11707, %v11874
      %v11876 = vpop.f32.mrb[0].mxu0
      %v11877 = vpop.f32.mrb[0].mxu0
      %v11878 = vadd.f32 %v11707, %v11877
      %v11879 = vpop.f32.mrb[0].mxu0
      %11880 = vmatprep.mubr.bf16.mxu0 0
      %11881 = vmatmul.mubr.bf16.gmra.mrb[0].mxu0 %v11743
      %v11882 = vpop.f32.mrb[0].mxu0
      %v11883 = vadd.f32 %v11707, %v11882
      %v11884 = vpop.f32.mrb[0].mxu0
      %v11885 = vpop.f32.mrb[0].mxu0
      %v11886 = vadd.f32 %v11707, %v11885
      %v11887 = vpop.f32.mrb[0].mxu0
      %11888 = vmatprep.mubr.bf16.mxu0 0
      %11889 = vmatmul.mubr.bf16.gmra.mrb[0].mxu0 %v11746
      %v11890 = vpop.f32.mrb[0].mxu0
      %v11891 = vadd.f32 %v11707, %v11890
      %v11892 = vpop.f32.mrb[0].mxu0
      %v11893 = vpop.f32.mrb[0].mxu0
      %v11894 = vadd.f32 %v11707, %v11893
      %v11895 = vpop.f32.mrb[0].mxu0
      %11896 = vmatprep.mubr.bf16.mxu0 0
      %11897 = vmatmul.mubr.bf16.gmra.mrb[0].mxu0 %v11749
      %v11898 = vpop.f32.mrb[0].mxu0
      %v11899 = vadd.f32 %v11707, %v11898
      %v11900 = vpop.f32.mrb[0].mxu0
      %v11901 = vpop.f32.mrb[0].mxu0
      %v11902 = vadd.f32 %v11707, %v11901
      %v11903 = vpop.f32.mrb[0].mxu0
      %11904 = vmatprep.mubr.bf16.mxu0 0
      %11905 = vmatmul.mubr.bf16.gmra.mrb[0].mxu0 %v11752
      %v11906 = vpop.f32.mrb[0].mxu0
      %v11907 = vadd.f32 %v11707, %v11906
      %v11908 = vpop.f32.mrb[0].mxu0
      %v11909 = vpop.f32.mrb[0].mxu0
      %v11910 = vadd.f32 %v11707, %v11909
      %v11911 = vpop.f32.mrb[0].mxu0
      %11912 = vmatprep.mubr.bf16.mxu0 0
      %11913 = vmatmul.mubr.bf16.gmra.mrb[0].mxu0 %v11755
      %v11914 = vpop.f32.mrb[0].mxu0
      %v11915 = vadd.f32 %v11707, %v11914
      %v11916 = vpop.f32.mrb[0].mxu0
      %v11917 = vpop.f32.mrb[0].mxu0
      %v11918 = vadd.f32 %v11707, %v11917
      %v11919 = vpop.f32.mrb[0].mxu0
      %11920 = vdwg.mxu0
      %v11921 = vmul.f32 %v11795, 0.5
      %v11922 = vmul.f32 %v11798, 0.5
      %v11923 = vmul.f32 %v11803, 0.5
      %v11924 = vmul.f32 %v11806, 0.5
      %v11925 = vmul.f32 %v11811, 0.5
      %v11926 = vmul.f32 %v11814, 0.5
      %v11927 = vmul.f32 %v11819, 0.5
      %v11928 = vmul.f32 %v11822, 0.5
      %v11929 = vmul.f32 %v11827, 0.5
      %v11930 = vmul.f32 %v11830, 0.5
      %v11931 = vmul.f32 %v11835, 0.5
      %v11932 = vmul.f32 %v11838, 0.5
      %v11933 = vmul.f32 %v11843, 0.5
      %v11934 = vmul.f32 %v11846, 0.5
      %v11935 = vmul.f32 %v11851, 0.5
      %v11936 = vmul.f32 %v11854, 0.5
      %v11937 = vmul.f32 %v11859, 0.5
      %v11938 = vmul.f32 %v11862, 0.5
      %v11939 = vmul.f32 %v11867, 0.5
      %v11940 = vmul.f32 %v11870, 0.5
      %v11941 = vmul.f32 %v11875, 0.5
      %v11942 = vmul.f32 %v11878, 0.5
      %v11943 = vmul.f32 %v11883, 0.5
      %v11944 = vmul.f32 %v11886, 0.5
      %v11945 = vmul.f32 %v11891, 0.5
      %v11946 = vmul.f32 %v11894, 0.5
      %v11947 = vmul.f32 %v11899, 0.5
      %v11948 = vmul.f32 %v11902, 0.5
      %v11949 = vmul.f32 %v11907, 0.5
      %v11950 = vmul.f32 %v11910, 0.5
      %v11951 = vmul.f32 %v11915, 0.5
      %v11952 = vmul.f32 %v11918, 0.5
      %v11953 = vmul.f32 %v11795, %v11795
      %v11954 = vmul.f32 %v11798, %v11798
      %v11955 = vmul.f32 %v11803, %v11803
      %v11956 = vmul.f32 %v11806, %v11806
      %v11957 = vmul.f32 %v11811, %v11811
      %v11958 = vmul.f32 %v11814, %v11814
      %v11959 = vmul.f32 %v11819, %v11819
      %v11960 = vmul.f32 %v11822, %v11822
      %v11961 = vmul.f32 %v11827, %v11827
      %v11962 = vmul.f32 %v11830, %v11830
      %v11963 = vmul.f32 %v11835, %v11835
      %v11964 = vmul.f32 %v11838, %v11838
      %v11965 = vmul.f32 %v11843, %v11843
      %v11966 = vmul.f32 %v11846, %v11846
      %v11967 = vmul.f32 %v11851, %v11851
      %v11968 = vmul.f32 %v11854, %v11854
      %v11969 = vmul.f32 %v11859, %v11859
      %v11970 = vmul.f32 %v11862, %v11862
      %v11971 = vmul.f32 %v11867, %v11867
      %v11972 = vmul.f32 %v11870, %v11870
      %v11973 = vmul.f32 %v11875, %v11875
      %v11974 = vmul.f32 %v11878, %v11878
      %v11975 = vmul.f32 %v11883, %v11883
      %v11976 = vmul.f32 %v11886, %v11886
      %v11977 = vmul.f32 %v11891, %v11891
      %v11978 = vmul.f32 %v11894, %v11894
      %v11979 = vmul.f32 %v11899, %v11899
      %v11980 = vmul.f32 %v11902, %v11902
      %v11981 = vmul.f32 %v11907, %v11907
      %v11982 = vmul.f32 %v11910, %v11910
      %v11983 = vmul.f32 %v11915, %v11915
      %v11984 = vmul.f32 %v11918, %v11918
      %v11985 = vmul.f32 %v11953, %v11795
      %v11986 = vmul.f32 %v11954, %v11798
      %v11987 = vmul.f32 %v11955, %v11803
      %v11988 = vmul.f32 %v11956, %v11806
      %v11989 = vmul.f32 %v11957, %v11811
      %v11990 = vmul.f32 %v11958, %v11814
      %v11991 = vmul.f32 %v11959, %v11819
      %v11992 = vmul.f32 %v11960, %v11822
      %v11993 = vmul.f32 %v11961, %v11827
      %v11994 = vmul.f32 %v11962, %v11830
      %v11995 = vmul.f32 %v11963, %v11835
      %v11996 = vmul.f32 %v11964, %v11838
      %v11997 = vmul.f32 %v11965, %v11843
      %v11998 = vmul.f32 %v11966, %v11846
      %v11999 = vmul.f32 %v11967, %v11851
      %v12000 = vmul.f32 %v11968, %v11854
      %v12001 = vmul.f32 %v11969, %v11859
      %v12002 = vmul.f32 %v11970, %v11862
      %v12003 = vmul.f32 %v11971, %v11867
      %v12004 = vmul.f32 %v11972, %v11870
      %v12005 = vmul.f32 %v11973, %v11875
      %v12006 = vmul.f32 %v11974, %v11878
      %v12007 = vmul.f32 %v11975, %v11883
      %v12008 = vmul.f32 %v11976, %v11886
      %v12009 = vmul.f32 %v11977, %v11891
      %v12010 = vmul.f32 %v11978, %v11894
      %v12011 = vmul.f32 %v11979, %v11899
      %v12012 = vmul.f32 %v11980, %v11902
      %v12013 = vmul.f32 %v11981, %v11907
      %v12014 = vmul.f32 %v11982, %v11910
      %v12015 = vmul.f32 %v11983, %v11915
      %v12016 = vmul.f32 %v11984, %v11918
      %v12017 = vmul.f32 %v11985, 0.044715
      %v12018 = vmul.f32 %v11986, 0.044715
      %v12019 = vmul.f32 %v11987, 0.044715
      %v12020 = vmul.f32 %v11988, 0.044715
      %v12021 = vmul.f32 %v11989, 0.044715
      %v12022 = vmul.f32 %v11990, 0.044715
      %v12023 = vmul.f32 %v11991, 0.044715
      %v12024 = vmul.f32 %v11992, 0.044715
      %v12025 = vmul.f32 %v11993, 0.044715
      %v12026 = vmul.f32 %v11994, 0.044715
      %v12027 = vmul.f32 %v11995, 0.044715
      %v12028 = vmul.f32 %v11996, 0.044715
      %v12029 = vmul.f32 %v11997, 0.044715
      %v12030 = vmul.f32 %v11998, 0.044715
      %v12031 = vmul.f32 %v11999, 0.044715
      %v12032 = vmul.f32 %v12000, 0.044715
      %v12033 = vmul.f32 %v12001, 0.044715
      %v12034 = vmul.f32 %v12002, 0.044715
      %v12035 = vmul.f32 %v12003, 0.044715
      %v12036 = vmul.f32 %v12004, 0.044715
      %v12037 = vmul.f32 %v12005, 0.044715
      %v12038 = vmul.f32 %v12006, 0.044715
      %v12039 = vmul.f32 %v12007, 0.044715
      %v12040 = vmul.f32 %v12008, 0.044715
      %v12041 = vmul.f32 %v12009, 0.044715
      %v12042 = vmul.f32 %v12010, 0.044715
      %v12043 = vmul.f32 %v12011, 0.044715
      %v12044 = vmul.f32 %v12012, 0.044715
      %v12045 = vmul.f32 %v12013, 0.044715
      %v12046 = vmul.f32 %v12014, 0.044715
      %v12047 = vmul.f32 %v12015, 0.044715
      %v12048 = vmul.f32 %v12016, 0.044715
      %v12049 = vadd.f32 %v11795, %v12017
      %v12050 = vadd.f32 %v11798, %v12018
      %v12051 = vadd.f32 %v11803, %v12019
      %v12052 = vadd.f32 %v11806, %v12020
      %v12053 = vadd.f32 %v11811, %v12021
      %v12054 = vadd.f32 %v11814, %v12022
      %v12055 = vadd.f32 %v11819, %v12023
      %v12056 = vadd.f32 %v11822, %v12024
      %v12057 = vadd.f32 %v11827, %v12025
      %v12058 = vadd.f32 %v11830, %v12026
      %v12059 = vadd.f32 %v11835, %v12027
      %v12060 = vadd.f32 %v11838, %v12028
      %v12061 = vadd.f32 %v11843, %v12029
      %v12062 = vadd.f32 %v11846, %v12030
      %v12063 = vadd.f32 %v11851, %v12031
      %v12064 = vadd.f32 %v11854, %v12032
      %v12065 = vadd.f32 %v11859, %v12033
      %v12066 = vadd.f32 %v11862, %v12034
      %v12067 = vadd.f32 %v11867, %v12035
      %v12068 = vadd.f32 %v11870, %v12036
      %v12069 = vadd.f32 %v11875, %v12037
      %v12070 = vadd.f32 %v11878, %v12038
      %v12071 = vadd.f32 %v11883, %v12039
      %v12072 = vadd.f32 %v11886, %v12040
      %v12073 = vadd.f32 %v11891, %v12041
      %v12074 = vadd.f32 %v11894, %v12042
      %v12075 = vadd.f32 %v11899, %v12043
      %v12076 = vadd.f32 %v11902, %v12044
      %v12077 = vadd.f32 %v11907, %v12045
      %v12078 = vadd.f32 %v11910, %v12046
      %v12079 = vadd.f32 %v11915, %v12047
      %v12080 = vadd.f32 %v11918, %v12048
      %v12081 = vmul.f32 %v12049, 0.7978846
      %v12082 = vmul.f32 %v12050, 0.7978846
      %v12083 = vmul.f32 %v12051, 0.7978846
      %v12084 = vmul.f32 %v12052, 0.7978846
      %v12085 = vmul.f32 %v12053, 0.7978846
      %v12086 = vmul.f32 %v12054, 0.7978846
      %v12087 = vmul.f32 %v12055, 0.7978846
      %v12088 = vmul.f32 %v12056, 0.7978846
      %v12089 = vmul.f32 %v12057, 0.7978846
      %v12090 = vmul.f32 %v12058, 0.7978846
      %v12091 = vmul.f32 %v12059, 0.7978846
      %v12092 = vmul.f32 %v12060, 0.7978846
      %v12093 = vmul.f32 %v12061, 0.7978846
      %v12094 = vmul.f32 %v12062, 0.7978846
      %v12095 = vmul.f32 %v12063, 0.7978846
      %v12096 = vmul.f32 %v12064, 0.7978846
      %v12097 = vmul.f32 %v12065, 0.7978846
      %v12098 = vmul.f32 %v12066, 0.7978846
      %v12099 = vmul.f32 %v12067, 0.7978846
      %v12100 = vmul.f32 %v12068, 0.7978846
      %v12101 = vmul.f32 %v12069, 0.7978846
      %v12102 = vmul.f32 %v12070, 0.7978846
      %v12103 = vmul.f32 %v12071, 0.7978846
      %v12104 = vmul.f32 %v12072, 0.7978846
      %v12105 = vmul.f32 %v12073, 0.7978846
      %v12106 = vmul.f32 %v12074, 0.7978846
      %v12107 = vmul.f32 %v12075, 0.7978846
      %v12108 = vmul.f32 %v12076, 0.7978846
      %v12109 = vmul.f32 %v12077, 0.7978846
      %v12110 = vmul.f32 %v12078, 0.7978846
      %v12111 = vmul.f32 %v12079, 0.7978846
      %v12112 = vmul.f32 %v12080, 0.7978846
      %v12113 = vtanh.pop %v12081
      %v12114 = vtanh.pop %v12082
      %v12115 = vtanh.pop %v12083
      %v12116 = vtanh.pop %v12084
      %v12117 = vtanh.pop %v12085
      %v12118 = vtanh.pop %v12086
      %v12119 = vtanh.pop %v12087
      %v12120 = vtanh.pop %v12088
      %v12121 = vtanh.pop %v12089
      %v12122 = vtanh.pop %v12090
      %v12123 = vtanh.pop %v12091
      %v12124 = vtanh.pop %v12092
      %v12125 = vtanh.pop %v12093
      %v12126 = vtanh.pop %v12094
      %v12127 = vtanh.pop %v12095
      %v12128 = vtanh.pop %v12096
      %v12129 = vtanh.pop %v12097
      %v12130 = vtanh.pop %v12098
      %v12131 = vtanh.pop %v12099
      %v12132 = vtanh.pop %v12100
      %v12133 = vtanh.pop %v12101
      %v12134 = vtanh.pop %v12102
      %v12135 = vtanh.pop %v12103
      %v12136 = vtanh.pop %v12104
      %v12137 = vtanh.pop %v12105
      %v12138 = vtanh.pop %v12106
      %v12139 = vtanh.pop %v12107
      %v12140 = vtanh.pop %v12108
      %v12141 = vtanh.pop %v12109
      %v12142 = vtanh.pop %v12110
      %v12143 = vtanh.pop %v12111
      %v12144 = vtanh.pop %v12112
      %v12145 = vadd.f32 %v12113, 1.0
      %v12146 = vadd.f32 %v12114, 1.0
      %v12147 = vadd.f32 %v12115, 1.0
      %v12148 = vadd.f32 %v12116, 1.0
      %v12149 = vadd.f32 %v12117, 1.0
      %v12150 = vadd.f32 %v12118, 1.0
      %v12151 = vadd.f32 %v12119, 1.0
      %v12152 = vadd.f32 %v12120, 1.0
      %v12153 = vadd.f32 %v12121, 1.0
      %v12154 = vadd.f32 %v12122, 1.0
      %v12155 = vadd.f32 %v12123, 1.0
      %v12156 = vadd.f32 %v12124, 1.0
      %v12157 = vadd.f32 %v12125, 1.0
      %v12158 = vadd.f32 %v12126, 1.0
      %v12159 = vadd.f32 %v12127, 1.0
      %v12160 = vadd.f32 %v12128, 1.0
      %v12161 = vadd.f32 %v12129, 1.0
      %v12162 = vadd.f32 %v12130, 1.0
      %v12163 = vadd.f32 %v12131, 1.0
      %v12164 = vadd.f32 %v12132, 1.0
      %v12165 = vadd.f32 %v12133, 1.0
      %v12166 = vadd.f32 %v12134, 1.0
      %v12167 = vadd.f32 %v12135, 1.0
      %v12168 = vadd.f32 %v12136, 1.0
      %v12169 = vadd.f32 %v12137, 1.0
      %v12170 = vadd.f32 %v12138, 1.0
      %v12171 = vadd.f32 %v12139, 1.0
      %v12172 = vadd.f32 %v12140, 1.0
      %v12173 = vadd.f32 %v12141, 1.0
      %v12174 = vadd.f32 %v12142, 1.0
      %v12175 = vadd.f32 %v12143, 1.0
      %v12176 = vadd.f32 %v12144, 1.0
      %v12177 = vmul.f32 %v11921, %v12145
      %v12178 = vmul.f32 %v11922, %v12146
      %v12179 = vmul.f32 %v11923, %v12147
      %v12180 = vmul.f32 %v11924, %v12148
      %v12181 = vmul.f32 %v11925, %v12149
      %v12182 = vmul.f32 %v11926, %v12150
      %v12183 = vmul.f32 %v11927, %v12151
      %v12184 = vmul.f32 %v11928, %v12152
      %v12185 = vmul.f32 %v11929, %v12153
      %v12186 = vmul.f32 %v11930, %v12154
      %v12187 = vmul.f32 %v11931, %v12155
      %v12188 = vmul.f32 %v11932, %v12156
      %v12189 = vmul.f32 %v11933, %v12157
      %v12190 = vmul.f32 %v11934, %v12158
      %v12191 = vmul.f32 %v11935, %v12159
      %v12192 = vmul.f32 %v11936, %v12160
      %v12193 = vmul.f32 %v11937, %v12161
      %v12194 = vmul.f32 %v11938, %v12162
      %v12195 = vmul.f32 %v11939, %v12163
      %v12196 = vmul.f32 %v11940, %v12164
      %v12197 = vmul.f32 %v11941, %v12165
      %v12198 = vmul.f32 %v11942, %v12166
      %v12199 = vmul.f32 %v11943, %v12167
      %v12200 = vmul.f32 %v11944, %v12168
      %v12201 = vmul.f32 %v11945, %v12169
      %v12202 = vmul.f32 %v11946, %v12170
      %v12203 = vmul.f32 %v11947, %v12171
      %v12204 = vmul.f32 %v11948, %v12172
      %v12205 = vmul.f32 %v11949, %v12173
      %v12206 = vmul.f32 %v11950, %v12174
      %v12207 = vmul.f32 %v11951, %v12175
      %v12208 = vmul.f32 %v11952, %v12176
      %v12209 = vmul.f32 %v12177, %v12177
      %v12210 = vmul.f32 %v12178, %v12178
      %v12211 = vmul.f32 %v12179, %v12179
      %v12212 = vmul.f32 %v12180, %v12180
      %v12213 = vmul.f32 %v12181, %v12181
      %v12214 = vmul.f32 %v12182, %v12182
      %v12215 = vmul.f32 %v12183, %v12183
      %v12216 = vmul.f32 %v12184, %v12184
      %v12217 = vmul.f32 %v12185, %v12185
      %v12218 = vmul.f32 %v12186, %v12186
      %v12219 = vmul.f32 %v12187, %v12187
      %v12220 = vmul.f32 %v12188, %v12188
      %v12221 = vmul.f32 %v12189, %v12189
      %v12222 = vmul.f32 %v12190, %v12190
      %v12223 = vmul.f32 %v12191, %v12191
      %v12224 = vmul.f32 %v12192, %v12192
      %v12225 = vmul.f32 %v12193, %v12193
      %v12226 = vmul.f32 %v12194, %v12194
      %v12227 = vmul.f32 %v12195, %v12195
      %v12228 = vmul.f32 %v12196, %v12196
      %v12229 = vmul.f32 %v12197, %v12197
      %v12230 = vmul.f32 %v12198, %v12198
      %v12231 = vmul.f32 %v12199, %v12199
      %v12232 = vmul.f32 %v12200, %v12200
      %v12233 = vmul.f32 %v12201, %v12201
      %v12234 = vmul.f32 %v12202, %v12202
      %v12235 = vmul.f32 %v12203, %v12203
      %v12236 = vmul.f32 %v12204, %v12204
      %v12237 = vmul.f32 %v12205, %v12205
      %v12238 = vmul.f32 %v12206, %v12206
      %v12239 = vmul.f32 %v12207, %v12207
      %v12240 = vmul.f32 %v12208, %v12208
      %vm12241 = vcmask 130048
      %v12242 = vsel %vm12241, %v12209, 0.0
      %v12243 = vsel %vm12241, %v12210, 0.0
      %v12244 = vadd.f32 %v12242, %v12243
      %v12245 = vsel %vm12241, %v12211, 0.0
      %v12246 = vadd.f32 %v12244, %v12245
      %v12247 = vsel %vm12241, %v12212, 0.0
      %v12248 = vadd.f32 %v12246, %v12247
      %v12249 = vsel %vm12241, %v12213, 0.0
      %v12250 = vadd.f32 %v12248, %v12249
      %v12251 = vsel %vm12241, %v12214, 0.0
      %v12252 = vadd.f32 %v12250, %v12251
      %v12253 = vsel %vm12241, %v12215, 0.0
      %v12254 = vadd.f32 %v12252, %v12253
      %v12255 = vsel %vm12241, %v12216, 0.0
      %v12256 = vadd.f32 %v12254, %v12255
      %v12257 = vsel %vm12241, %v12217, 0.0
      %v12258 = vadd.f32 %v12256, %v12257
      %v12259 = vsel %vm12241, %v12218, 0.0
      %v12260 = vadd.f32 %v12258, %v12259
      %v12261 = vsel %vm12241, %v12219, 0.0
      %v12262 = vadd.f32 %v12260, %v12261
      %v12263 = vsel %vm12241, %v12220, 0.0
      %v12264 = vadd.f32 %v12262, %v12263
      %v12265 = vsel %vm12241, %v12221, 0.0
      %v12266 = vadd.f32 %v12264, %v12265
      %v12267 = vsel %vm12241, %v12222, 0.0
      %v12268 = vadd.f32 %v12266, %v12267
      %v12269 = vsel %vm12241, %v12223, 0.0
      %v12270 = vadd.f32 %v12268, %v12269
      %v12271 = vsel %vm12241, %v12224, 0.0
      %v12272 = vadd.f32 %v12270, %v12271
      %v12273 = vsel %vm12241, %v12225, 0.0
      %v12274 = vadd.f32 %v12272, %v12273
      %v12275 = vsel %vm12241, %v12226, 0.0
      %v12276 = vadd.f32 %v12274, %v12275
      %v12277 = vsel %vm12241, %v12227, 0.0
      %v12278 = vadd.f32 %v12276, %v12277
      %v12279 = vsel %vm12241, %v12228, 0.0
      %v12280 = vadd.f32 %v12278, %v12279
      %v12281 = vsel %vm12241, %v12229, 0.0
      %v12282 = vadd.f32 %v12280, %v12281
      %v12283 = vsel %vm12241, %v12230, 0.0
      %v12284 = vadd.f32 %v12282, %v12283
      %v12285 = vsel %vm12241, %v12231, 0.0
      %v12286 = vadd.f32 %v12284, %v12285
      %v12287 = vsel %vm12241, %v12232, 0.0
      %v12288 = vadd.f32 %v12286, %v12287
      %v12289 = vsel %vm12241, %v12233, 0.0
      %v12290 = vadd.f32 %v12288, %v12289
      %v12291 = vsel %vm12241, %v12234, 0.0
      %v12292 = vadd.f32 %v12290, %v12291
      %v12293 = vsel %vm12241, %v12235, 0.0
      %v12294 = vadd.f32 %v12292, %v12293
      %v12295 = vsel %vm12241, %v12236, 0.0
      %v12296 = vadd.f32 %v12294, %v12295
      %v12297 = vsel %vm12241, %v12237, 0.0
      %v12298 = vadd.f32 %v12296, %v12297
      %v12299 = vsel %vm12241, %v12238, 0.0
      %v12300 = vadd.f32 %v12298, %v12299
      %v12301 = vsel %vm12241, %v12239, 0.0
      %v12302 = vadd.f32 %v12300, %v12301
      %v12303 = vsel %vm12241, %v12240, 0.0
      %v12304 = vadd.f32 %v12302, %v12303
      %v12305 = vrot.slane %v12304, 4
      %v12306 = vadd.f32 %v12304, %v12305
      %v12307 = vrot.slane %v12306, 2
      %v12308 = vadd.f32 %v12306, %v12307
      %v12309 = vrot.slane %v12308, 1
      %v12310 = vadd.f32 %v12308, %v12309
      %v12311 = vadd.f32 %v12310, 0.0
      %v12312 = vpack.c.bf16 %v12178, %v12177
      %v12313 = vpack.c.bf16 %v12180, %v12179
      %v12314 = vpack.c.bf16 %v12182, %v12181
      %v12315 = vpack.c.bf16 %v12184, %v12183
      %v12316 = vpack.c.bf16 %v12186, %v12185
      %v12317 = vpack.c.bf16 %v12188, %v12187
      %v12318 = vpack.c.bf16 %v12190, %v12189
      %v12319 = vpack.c.bf16 %v12192, %v12191
      %v12320 = vpack.c.bf16 %v12194, %v12193
      %v12321 = vpack.c.bf16 %v12196, %v12195
      %v12322 = vpack.c.bf16 %v12198, %v12197
      %v12323 = vpack.c.bf16 %v12200, %v12199
      %v12324 = vpack.c.bf16 %v12202, %v12201
      %v12325 = vpack.c.bf16 %v12204, %v12203
      %v12326 = vpack.c.bf16 %v12206, %v12205
      %v12327 = vpack.c.bf16 %v12208, %v12207
      %12328 = vst.msk [vmem:[#allocation3] sm:$0xff] %vm12241, %v12312
      %12329 = vst.msk [vmem:[#allocation3 + $0x8] sm:$0xff] %vm12241, %v12313
      %12330 = vst.msk [vmem:[#allocation3 + $0x10] sm:$0xff] %vm12241, %v12314
      %12331 = vst.msk [vmem:[#allocation3 + $0x18] sm:$0xff] %vm12241, %v12315
      %12332 = vst.msk [vmem:[#allocation3 + $0x20] sm:$0xff] %vm12241, %v12316
      %12333 = vst.msk [vmem:[#allocation3 + $0x28] sm:$0xff] %vm12241, %v12317
      %12334 = vst.msk [vmem:[#allocation3 + $0x30] sm:$0xff] %vm12241, %v12318
      %12335 = vst.msk [vmem:[#allocation3 + $0x38] sm:$0xff] %vm12241, %v12319
      %12336 = vst.msk [vmem:[#allocation3 + $0x40] sm:$0xff] %vm12241, %v12320
      %12337 = vst.msk [vmem:[#allocation3 + $0x48] sm:$0xff] %vm12241, %v12321
      %12338 = vst.msk [vmem:[#allocation3 + $0x50] sm:$0xff] %vm12241, %v12322
      %12339 = vst.msk [vmem:[#allocation3 + $0x58] sm:$0xff] %vm12241, %v12323
      %12340 = vst.msk [vmem:[#allocation3 + $0x60] sm:$0xff] %vm12241, %v12324
      %12341 = vst.msk [vmem:[#allocation3 + $0x68] sm:$0xff] %vm12241, %v12325
      %12342 = vst.msk [vmem:[#allocation3 + $0x70] sm:$0xff] %vm12241, %v12326
      %12343 = vst.msk [vmem:[#allocation3 + $0x78] sm:$0xff] %vm12241, %v12327
      %v12344 = vrsqrt.pop %v12311
      %v12345 = vmul.f32 %v12311, %v12344
      %vm12346 = vcmp.eq.f32.partialorder %v12311, inf
      %v12347 = vsel %vm12346, %v12311, %v12345
      %vm12348 = vcmp.eq.f32.partialorder %v12311, 0.0
      %v12349 = vand.u32 %v12311, 2147483648
      %v12350 = vsel %vm12348, %v12349, %v12347
      %v12351 = vsel %vm12241, %v12350, 0.0
      %12352 = vadd.xlane.f32.xlu0 %v12351
      %v12353 = vpop.xlane.xlu0 %12352
      %v12354 = vrcp.pop 16.0
      %v12355 = vmul.f32 %v12353, %v12354
      %v12356 = vadd.f32 %v12355, 1e-06
      %v12357 = vrcp.pop %v12356
      %v12358 = vmul.f32 %v12350, %v12357
      %v12359 = vld [vmem:[%s5] sm:$0x1]
      %v12360 = vmul.f32 %v12359, %v12358
      %v12361 = vadd.f32 %v12360, 1.0
      %v12362 = vld [vmem:[#allocation3] sm:$0xff]
      %v12363 = vld [vmem:[#allocation3 + $0x8] sm:$0xff]
      %v12364 = vld [vmem:[#allocation3 + $0x10] sm:$0xff]
      %v12365 = vld [vmem:[#allocation3 + $0x18] sm:$0xff]
      %v12366 = vld [vmem:[#allocation3 + $0x20] sm:$0xff]
      %v12367 = vld [vmem:[#allocation3 + $0x28] sm:$0xff]
      %v12368 = vld [vmem:[#allocation3 + $0x30] sm:$0xff]
      %v12369 = vld [vmem:[#allocation3 + $0x38] sm:$0xff]
      %v12370 = vld [vmem:[#allocation3 + $0x40] sm:$0xff]
      %v12371 = vld [vmem:[#allocation3 + $0x48] sm:$0xff]
      %v12372 = vld [vmem:[#allocation3 + $0x50] sm:$0xff]
      %v12373 = vld [vmem:[#allocation3 + $0x58] sm:$0xff]
      %v12374 = vld [vmem:[#allocation3 + $0x60] sm:$0xff]
      %v12375 = vld [vmem:[#allocation3 + $0x68] sm:$0xff]
      %v12376 = vld [vmem:[#allocation3 + $0x70] sm:$0xff]
      %v12377 = vld [vmem:[#allocation3 + $0x78] sm:$0xff]
      %v12378 = vunpack.c.l.bf16 %v12362
      %v12379 = vunpack.c.h.bf16 %v12362
      %v12380 = vunpack.c.l.bf16 %v12363
      %v12381 = vunpack.c.h.bf16 %v12363
      %v12382 = vunpack.c.l.bf16 %v12364
      %v12383 = vunpack.c.h.bf16 %v12364
      %v12384 = vunpack.c.l.bf16 %v12365
      %v12385 = vunpack.c.h.bf16 %v12365
      %v12386 = vunpack.c.l.bf16 %v12366
      %v12387 = vunpack.c.h.bf16 %v12366
      %v12388 = vunpack.c.l.bf16 %v12367
      %v12389 = vunpack.c.h.bf16 %v12367
      %v12390 = vunpack.c.l.bf16 %v12368
      %v12391 = vunpack.c.h.bf16 %v12368
      %v12392 = vunpack.c.l.bf16 %v12369
      %v12393 = vunpack.c.h.bf16 %v12369
      %v12394 = vunpack.c.l.bf16 %v12370
      %v12395 = vunpack.c.h.bf16 %v12370
      %v12396 = vunpack.c.l.bf16 %v12371
      %v12397 = vunpack.c.h.bf16 %v12371
      %v12398 = vunpack.c.l.bf16 %v12372
      %v12399 = vunpack.c.h.bf16 %v12372
      %v12400 = vunpack.c.l.bf16 %v12373
      %v12401 = vunpack.c.h.bf16 %v12373
      %v12402 = vunpack.c.l.bf16 %v12374
      %v12403 = vunpack.c.h.bf16 %v12374
      %v12404 = vunpack.c.l.bf16 %v12375
      %v12405 = vunpack.c.h.bf16 %v12375
      %v12406 = vunpack.c.l.bf16 %v12376
      %v12407 = vunpack.c.h.bf16 %v12376
      %v12408 = vunpack.c.l.bf16 %v12377
      %v12409 = vunpack.c.h.bf16 %v12377
      %v12411 = vlaneseq
      %v12412 = vshrl.u32 %v12411, 7
      %v12413 = vsub.s32 0, %v12412
      %v12414 = vrot.slane %v12361, %v12413
      %v12416 = vmul.f32 %v12378, %v12414
      %v12417 = vmul.f32 %v12379, %v12414
      %v12418 = vmul.f32 %v12380, %v12414
      %v12419 = vmul.f32 %v12381, %v12414
      %v12420 = vmul.f32 %v12382, %v12414
      %v12421 = vmul.f32 %v12383, %v12414
      %v12422 = vmul.f32 %v12384, %v12414
      %v12423 = vmul.f32 %v12385, %v12414
      %v12424 = vmul.f32 %v12386, %v12414
      %v12425 = vmul.f32 %v12387, %v12414
      %v12426 = vmul.f32 %v12388, %v12414
      %v12427 = vmul.f32 %v12389, %v12414
      %v12428 = vmul.f32 %v12390, %v12414
      %v12429 = vmul.f32 %v12391, %v12414
      %v12430 = vmul.f32 %v12392, %v12414
      %v12431 = vmul.f32 %v12393, %v12414
      %v12432 = vmul.f32 %v12394, %v12414
      %v12433 = vmul.f32 %v12395, %v12414
      %v12434 = vmul.f32 %v12396, %v12414
      %v12435 = vmul.f32 %v12397, %v12414
      %v12436 = vmul.f32 %v12398, %v12414
      %v12437 = vmul.f32 %v12399, %v12414
      %v12438 = vmul.f32 %v12400, %v12414
      %v12439 = vmul.f32 %v12401, %v12414
      %v12440 = vmul.f32 %v12402, %v12414
      %v12441 = vmul.f32 %v12403, %v12414
      %v12442 = vmul.f32 %v12404, %v12414
      %v12443 = vmul.f32 %v12405, %v12414
      %v12444 = vmul.f32 %v12406, %v12414
      %v12445 = vmul.f32 %v12407, %v12414
      %v12446 = vmul.f32 %v12408, %v12414
      %v12447 = vmul.f32 %v12409, %v12414
      %v12448 = vpack.c.bf16 %v12417, %v12416
      %v12449 = vpack.c.bf16 %v12419, %v12418
      %v12450 = vpack.c.bf16 %v12421, %v12420
      %v12451 = vpack.c.bf16 %v12423, %v12422
      %v12452 = vpack.c.bf16 %v12425, %v12424
      %v12453 = vpack.c.bf16 %v12427, %v12426
      %v12454 = vpack.c.bf16 %v12429, %v12428
      %v12455 = vpack.c.bf16 %v12431, %v12430
      %v12456 = vpack.c.bf16 %v12433, %v12432
      %v12457 = vpack.c.bf16 %v12435, %v12434
      %v12458 = vpack.c.bf16 %v12437, %v12436
      %v12459 = vpack.c.bf16 %v12439, %v12438
      %v12460 = vpack.c.bf16 %v12441, %v12440
      %v12461 = vpack.c.bf16 %v12443, %v12442
      %v12462 = vpack.c.bf16 %v12445, %v12444
      %v12463 = vpack.c.bf16 %v12447, %v12446
      %v12464 = vld [vmem:[%s6] sm:$0xf]
      %v12465 = vld [vmem:[%s6 + $0x4] sm:$0xf]
      %v12466 = vld [vmem:[%s7] sm:$0x1]
      %v12468 = vlaneseq
      %v12469 = vshrl.u32 %v12468, 7
      %v12470 = vsub.s32 0, %v12469
      %v12471 = vrot.slane %v12466, %v12470
      %v12475 = vunpack.c.l.b16 %v12464
      %v12476 = vunpack.c.l.b16 %v12465
      %v12477 = vpack.c.b16 %v12476, %v12475
      %v12480 = vsel %vm12241, %v12448, 0
      %v12483 = vsel %vm12241, %v12449, 0
      %v12486 = vsel %vm12241, %v12450, 0
      %v12489 = vsel %vm12241, %v12451, 0
      %v12492 = vsel %vm12241, %v12452, 0
      %v12495 = vsel %vm12241, %v12453, 0
      %v12498 = vsel %vm12241, %v12454, 0
      %v12501 = vsel %vm12241, %v12455, 0
      %v12504 = vsel %vm12241, %v12456, 0
      %v12507 = vsel %vm12241, %v12457, 0
      %v12510 = vsel %vm12241, %v12458, 0
      %v12513 = vsel %vm12241, %v12459, 0
      %v12516 = vsel %vm12241, %v12460, 0
      %v12519 = vsel %vm12241, %v12461, 0
      %v12522 = vsel %vm12241, %v12462, 0
      %v12525 = vsel %vm12241, %v12463, 0
      %12527 = vmatprep.subr.bf16.mxu0 0
      %12528 = vmatpush1.bf16.msra.mxu0 %v12477
      %12529 = vmatprep.subr.bf16.mxu0 0
      %12530 = vmatpush1.bf16.msra.mxu0 0
      %12531 = vmatprep.subr.bf16.mxu0 0
      %12532 = vmatpush1.bf16.msra.mxu0 0
      %12533 = vmatprep.subr.bf16.mxu0 0
      %12534 = vmatpush1.bf16.msra.mxu0 0
      %12535 = vmatprep.subr.bf16.mxu0 0
      %12536 = vmatpush1.bf16.msra.mxu0 0
      %12537 = vmatprep.subr.bf16.mxu0 0
      %12538 = vmatpush1.bf16.msra.mxu0 0
      %12539 = vmatprep.subr.bf16.mxu0 0
      %12540 = vmatpush1.bf16.msra.mxu0 0
      %12541 = vmatprep.subr.bf16.mxu0 0
      %12542 = vmatpush1.bf16.msra.mxu0 0
      %12543 = vmatprep.subr.bf16.mxu0 0
      %12544 = vmatpush1.bf16.msra.mxu0 0
      %12545 = vmatprep.subr.bf16.mxu0 0
      %12546 = vmatpush1.bf16.msra.mxu0 0
      %12547 = vmatprep.subr.bf16.mxu0 0
      %12548 = vmatpush1.bf16.msra.mxu0 0
      %12549 = vmatprep.subr.bf16.mxu0 0
      %12550 = vmatpush1.bf16.msra.mxu0 0
      %12551 = vmatprep.subr.bf16.mxu0 0
      %12552 = vmatpush1.bf16.msra.mxu0 0
      %12553 = vmatprep.subr.bf16.mxu0 0
      %12554 = vmatpush1.bf16.msra.mxu0 0
      %12555 = vmatprep.subr.bf16.mxu0 0
      %12556 = vmatpush1.bf16.msra.mxu0 0
      %12557 = vmatprep.subr.bf16.mxu0 0
      %12558 = vmatpush1.bf16.msra.mxu0 0
      %12559 = vmatprep.mubr.bf16.mxu0 0
      %12560 = vmatmul.mubr.bf16.gmra.mrb[0].mxu0 %v12480
      %v12561 = vpop.f32.mrb[0].mxu0
      %v12562 = vadd.f32 %v12471, %v12561
      %v12563 = vpop.f32.mrb[0].mxu0
      %v12564 = vpop.f32.mrb[0].mxu0
      %v12565 = vadd.f32 %v12471, %v12564
      %v12566 = vpop.f32.mrb[0].mxu0
      %12567 = vmatprep.mubr.bf16.mxu0 0
      %12568 = vmatmul.mubr.bf16.gmra.mrb[0].mxu0 %v12483
      %v12569 = vpop.f32.mrb[0].mxu0
      %v12570 = vadd.f32 %v12471, %v12569
      %v12571 = vpop.f32.mrb[0].mxu0
      %v12572 = vpop.f32.mrb[0].mxu0
      %v12573 = vadd.f32 %v12471, %v12572
      %v12574 = vpop.f32.mrb[0].mxu0
      %12575 = vmatprep.mubr.bf16.mxu0 0
      %12576 = vmatmul.mubr.bf16.gmra.mrb[0].mxu0 %v12486
      %v12577 = vpop.f32.mrb[0].mxu0
      %v12578 = vadd.f32 %v12471, %v12577
      %v12579 = vpop.f32.mrb[0].mxu0
      %v12580 = vpop.f32.mrb[0].mxu0
      %v12581 = vadd.f32 %v12471, %v12580
      %v12582 = vpop.f32.mrb[0].mxu0
      %12583 = vmatprep.mubr.bf16.mxu0 0
      %12584 = vmatmul.mubr.bf16.gmra.mrb[0].mxu0 %v12489
      %v12585 = vpop.f32.mrb[0].mxu0
      %v12586 = vadd.f32 %v12471, %v12585
      %v12587 = vpop.f32.mrb[0].mxu0
      %v12588 = vpop.f32.mrb[0].mxu0
      %v12589 = vadd.f32 %v12471, %v12588
      %v12590 = vpop.f32.mrb[0].mxu0
      %12591 = vmatprep.mubr.bf16.mxu0 0
      %12592 = vmatmul.mubr.bf16.gmra.mrb[0].mxu0 %v12492
      %v12593 = vpop.f32.mrb[0].mxu0
      %v12594 = vadd.f32 %v12471, %v12593
      %v12595 = vpop.f32.mrb[0].mxu0
      %v12596 = vpop.f32.mrb[0].mxu0
      %v12597 = vadd.f32 %v12471, %v12596
      %v12598 = vpop.f32.mrb[0].mxu0
      %12599 = vmatprep.mubr.bf16.mxu0 0
      %12600 = vmatmul.mubr.bf16.gmra.mrb[0].mxu0 %v12495
      %v12601 = vpop.f32.mrb[0].mxu0
      %v12602 = vadd.f32 %v12471, %v12601
      %v12603 = vpop.f32.mrb[0].mxu0
      %v12604 = vpop.f32.mrb[0].mxu0
      %v12605 = vadd.f32 %v12471, %v12604
      %v12606 = vpop.f32.mrb[0].mxu0
      %12607 = vmatprep.mubr.bf16.mxu0 0
      %12608 = vmatmul.mubr.bf16.gmra.mrb[0].mxu0 %v12498
      %v12609 = vpop.f32.mrb[0].mxu0
      %v12610 = vadd.f32 %v12471, %v12609
      %v12611 = vpop.f32.mrb[0].mxu0
      %v12612 = vpop.f32.mrb[0].mxu0
      %v12613 = vadd.f32 %v12471, %v12612
      %v12614 = vpop.f32.mrb[0].mxu0
      %12615 = vmatprep.mubr.bf16.mxu0 0
      %12616 = vmatmul.mubr.bf16.gmra.mrb[0].mxu0 %v12501
      %v12617 = vpop.f32.mrb[0].mxu0
      %v12618 = vadd.f32 %v12471, %v12617
      %v12619 = vpop.f32.mrb[0].mxu0
      %v12620 = vpop.f32.mrb[0].mxu0
      %v12621 = vadd.f32 %v12471, %v12620
      %v12622 = vpop.f32.mrb[0].mxu0
      %12623 = vmatprep.mubr.bf16.mxu0 0
      %12624 = vmatmul.mubr.bf16.gmra.mrb[0].mxu0 %v12504
      %v12625 = vpop.f32.mrb[0].mxu0
      %v12626 = vadd.f32 %v12471, %v12625
      %v12627 = vpop.f32.mrb[0].mxu0
      %v12628 = vpop.f32.mrb[0].mxu0
      %v12629 = vadd.f32 %v12471, %v12628
      %v12630 = vpop.f32.mrb[0].mxu0
      %12631 = vmatprep.mubr.bf16.mxu0 0
      %12632 = vmatmul.mubr.bf16.gmra.mrb[0].mxu0 %v12507
      %v12633 = vpop.f32.mrb[0].mxu0
      %v12634 = vadd.f32 %v12471, %v12633
      %v12635 = vpop.f32.mrb[0].mxu0
      %v12636 = vpop.f32.mrb[0].mxu0
      %v12637 = vadd.f32 %v12471, %v12636
      %v12638 = vpop.f32.mrb[0].mxu0
      %12639 = vmatprep.mubr.bf16.mxu0 0
      %12640 = vmatmul.mubr.bf16.gmra.mrb[0].mxu0 %v12510
      %v12641 = vpop.f32.mrb[0].mxu0
      %v12642 = vadd.f32 %v12471, %v12641
      %v12643 = vpop.f32.mrb[0].mxu0
      %v12644 = vpop.f32.mrb[0].mxu0
      %v12645 = vadd.f32 %v12471, %v12644
      %v12646 = vpop.f32.mrb[0].mxu0
      %12647 = vmatprep.mubr.bf16.mxu0 0
      %12648 = vmatmul.mubr.bf16.gmra.mrb[0].mxu0 %v12513
      %v12649 = vpop.f32.mrb[0].mxu0
      %v12650 = vadd.f32 %v12471, %v12649
      %v12651 = vpop.f32.mrb[0].mxu0
      %v12652 = vpop.f32.mrb[0].mxu0
      %v12653 = vadd.f32 %v12471, %v12652
      %v12654 = vpop.f32.mrb[0].mxu0
      %12655 = vmatprep.mubr.bf16.mxu0 0
      %12656 = vmatmul.mubr.bf16.gmra.mrb[0].mxu0 %v12516
      %v12657 = vpop.f32.mrb[0].mxu0
      %v12658 = vadd.f32 %v12471, %v12657
      %v12659 = vpop.f32.mrb[0].mxu0
      %v12660 = vpop.f32.mrb[0].mxu0
      %v12661 = vadd.f32 %v12471, %v12660
      %v12662 = vpop.f32.mrb[0].mxu0
      %12663 = vmatprep.mubr.bf16.mxu0 0
      %12664 = vmatmul.mubr.bf16.gmra.mrb[0].mxu0 %v12519
      %v12665 = vpop.f32.mrb[0].mxu0
      %v12666 = vadd.f32 %v12471, %v12665
      %v12667 = vpop.f32.mrb[0].mxu0
      %v12668 = vpop.f32.mrb[0].mxu0
      %v12669 = vadd.f32 %v12471, %v12668
      %v12670 = vpop.f32.mrb[0].mxu0
      %12671 = vmatprep.mubr.bf16.mxu0 0
      %12672 = vmatmul.mubr.bf16.gmra.mrb[0].mxu0 %v12522
      %v12673 = vpop.f32.mrb[0].mxu0
      %v12674 = vadd.f32 %v12471, %v12673
      %v12675 = vpop.f32.mrb[0].mxu0
      %v12676 = vpop.f32.mrb[0].mxu0
      %v12677 = vadd.f32 %v12471, %v12676
      %v12678 = vpop.f32.mrb[0].mxu0
      %12679 = vmatprep.mubr.bf16.mxu0 0
      %12680 = vmatmul.mubr.bf16.gmra.mrb[0].mxu0 %v12525
      %v12681 = vpop.f32.mrb[0].mxu0
      %v12682 = vadd.f32 %v12471, %v12681
      %v12683 = vpop.f32.mrb[0].mxu0
      %v12684 = vpop.f32.mrb[0].mxu0
      %v12685 = vadd.f32 %v12471, %v12684
      %v12686 = vpop.f32.mrb[0].mxu0
      %12687 = vdwg.mxu0
      %v12688 = vld [vmem:[%s300] sm:$0xff]
      %v12689 = vld [vmem:[%s300 + $0x8] sm:$0xff]
      %v12690 = vld [vmem:[%s300 + $0x10] sm:$0xff]
      %v12691 = vld [vmem:[%s300 + $0x18] sm:$0xff]
      %v12692 = vld [vmem:[%s300 + $0x20] sm:$0xff]
      %v12693 = vld [vmem:[%s300 + $0x28] sm:$0xff]
      %v12694 = vld [vmem:[%s300 + $0x30] sm:$0xff]
      %v12695 = vld [vmem:[%s300 + $0x38] sm:$0xff]
      %v12696 = vld [vmem:[%s300 + $0x40] sm:$0xff]
      %v12697 = vld [vmem:[%s300 + $0x48] sm:$0xff]
      %v12698 = vld [vmem:[%s300 + $0x50] sm:$0xff]
      %v12699 = vld [vmem:[%s300 + $0x58] sm:$0xff]
      %v12700 = vld [vmem:[%s300 + $0x60] sm:$0xff]
      %v12701 = vld [vmem:[%s300 + $0x68] sm:$0xff]
      %v12702 = vld [vmem:[%s300 + $0x70] sm:$0xff]
      %v12703 = vld [vmem:[%s300 + $0x78] sm:$0xff]
      %v12704 = vld [vmem:[%s300 + $0x80] sm:$0xff]
      %v12705 = vld [vmem:[%s300 + $0x88] sm:$0xff]
      %v12706 = vld [vmem:[%s300 + $0x90] sm:$0xff]
      %v12707 = vld [vmem:[%s300 + $0x98] sm:$0xff]
      %v12708 = vld [vmem:[%s300 + $0xa0] sm:$0xff]
      %v12709 = vld [vmem:[%s300 + $0xa8] sm:$0xff]
      %v12710 = vld [vmem:[%s300 + $0xb0] sm:$0xff]
      %v12711 = vld [vmem:[%s300 + $0xb8] sm:$0xff]
      %v12712 = vld [vmem:[%s300 + $0xc0] sm:$0xff]
      %v12713 = vld [vmem:[%s300 + $0xc8] sm:$0xff]
      %v12714 = vld [vmem:[%s300 + $0xd0] sm:$0xff]
      %v12715 = vld [vmem:[%s300 + $0xd8] sm:$0xff]
      %v12716 = vld [vmem:[%s300 + $0xe0] sm:$0xff]
      %v12717 = vld [vmem:[%s300 + $0xe8] sm:$0xff]
      %v12718 = vld [vmem:[%s300 + $0xf0] sm:$0xff]
      %v12719 = vld [vmem:[%s300 + $0xf8] sm:$0xff]
      %v12720 = vadd.f32 %v12688, %v12562
      %v12721 = vadd.f32 %v12689, %v12565
      %v12722 = vadd.f32 %v12690, %v12570
      %v12723 = vadd.f32 %v12691, %v12573
      %v12724 = vadd.f32 %v12692, %v12578
      %v12725 = vadd.f32 %v12693, %v12581
      %v12726 = vadd.f32 %v12694, %v12586
      %v12727 = vadd.f32 %v12695, %v12589
      %v12728 = vadd.f32 %v12696, %v12594
      %v12729 = vadd.f32 %v12697, %v12597
      %v12730 = vadd.f32 %v12698, %v12602
      %v12731 = vadd.f32 %v12699, %v12605
      %v12732 = vadd.f32 %v12700, %v12610
      %v12733 = vadd.f32 %v12701, %v12613
      %v12734 = vadd.f32 %v12702, %v12618
      %v12735 = vadd.f32 %v12703, %v12621
      %v12736 = vadd.f32 %v12704, %v12626
      %v12737 = vadd.f32 %v12705, %v12629
      %v12738 = vadd.f32 %v12706, %v12634
      %v12739 = vadd.f32 %v12707, %v12637
      %v12740 = vadd.f32 %v12708, %v12642
      %v12741 = vadd.f32 %v12709, %v12645
      %v12742 = vadd.f32 %v12710, %v12650
      %v12743 = vadd.f32 %v12711, %v12653
      %v12744 = vadd.f32 %v12712, %v12658
      %v12745 = vadd.f32 %v12713, %v12661
      %v12746 = vadd.f32 %v12714, %v12666
      %v12747 = vadd.f32 %v12715, %v12669
      %v12748 = vadd.f32 %v12716, %v12674
      %v12749 = vadd.f32 %v12717, %v12677
      %v12750 = vadd.f32 %v12718, %v12682
      %v12751 = vadd.f32 %v12719, %v12685
      %12752 = vst.msk [vmem:[%s305] sm:$0xff] %vm307, %v12720
      %12753 = vst.msk [vmem:[%s305 + $0x8] sm:$0xff] %vm307, %v12721
      %12754 = vst.msk [vmem:[%s305 + $0x10] sm:$0xff] %vm307, %v12722
      %12755 = vst.msk [vmem:[%s305 + $0x18] sm:$0xff] %vm307, %v12723
      %12756 = vst.msk [vmem:[%s305 + $0x20] sm:$0xff] %vm307, %v12724
      %12757 = vst.msk [vmem:[%s305 + $0x28] sm:$0xff] %vm307, %v12725
      %12758 = vst.msk [vmem:[%s305 + $0x30] sm:$0xff] %vm307, %v12726
      %12759 = vst.msk [vmem:[%s305 + $0x38] sm:$0xff] %vm307, %v12727
      %12760 = vst.msk [vmem:[%s305 + $0x40] sm:$0xff] %vm307, %v12728
      %12761 = vst.msk [vmem:[%s305 + $0x48] sm:$0xff] %vm307, %v12729
      %12762 = vst.msk [vmem:[%s305 + $0x50] sm:$0xff] %vm307, %v12730
      %12763 = vst.msk [vmem:[%s305 + $0x58] sm:$0xff] %vm307, %v12731
      %12764 = vst.msk [vmem:[%s305 + $0x60] sm:$0xff] %vm307, %v12732
      %12765 = vst.msk [vmem:[%s305 + $0x68] sm:$0xff] %vm307, %v12733
      %12766 = vst.msk [vmem:[%s305 + $0x70] sm:$0xff] %vm307, %v12734
      %12767 = vst.msk [vmem:[%s305 + $0x78] sm:$0xff] %vm307, %v12735
      %12768 = vst.msk [vmem:[%s305 + $0x80] sm:$0xff] %vm307, %v12736
      %12769 = vst.msk [vmem:[%s305 + $0x88] sm:$0xff] %vm307, %v12737
      %12770 = vst.msk [vmem:[%s305 + $0x90] sm:$0xff] %vm307, %v12738
      %12771 = vst.msk [vmem:[%s305 + $0x98] sm:$0xff] %vm307, %v12739
      %12772 = vst.msk [vmem:[%s305 + $0xa0] sm:$0xff] %vm307, %v12740
      %12773 = vst.msk [vmem:[%s305 + $0xa8] sm:$0xff] %vm307, %v12741
      %12774 = vst.msk [vmem:[%s305 + $0xb0] sm:$0xff] %vm307, %v12742
      %12775 = vst.msk [vmem:[%s305 + $0xb8] sm:$0xff] %vm307, %v12743
      %12776 = vst.msk [vmem:[%s305 + $0xc0] sm:$0xff] %vm307, %v12744
      %12777 = vst.msk [vmem:[%s305 + $0xc8] sm:$0xff] %vm307, %v12745
      %12778 = vst.msk [vmem:[%s305 + $0xd0] sm:$0xff] %vm307, %v12746
      %12779 = vst.msk [vmem:[%s305 + $0xd8] sm:$0xff] %vm307, %v12747
      %12780 = vst.msk [vmem:[%s305 + $0xe0] sm:$0xff] %vm307, %v12748
      %12781 = vst.msk [vmem:[%s305 + $0xe8] sm:$0xff] %vm307, %v12749
      %12782 = vst.msk [vmem:[%s305 + $0xf0] sm:$0xff] %vm307, %v12750
      %12783 = vst.msk [vmem:[%s305 + $0xf8] sm:$0xff] %vm307, %v12751
      %p12784 = scmp.lt.s32.totalorder %s19, 1
      %s12785 = scalar_select %p12784, %s19, 1
      %s12786 = smul.addr %s12785, 32
      %s12787 = smul.addr %s12786, 8
      %s12788 = scalar_lea.vmem %s8, %s12787
      // Predicated region
      $region53: #{tpu_custom_call.1} parent=51 // pred_check
        %p12789 = pneg %p210
      $region54: #{tpu_custom_call.1} parent=51 // pred_check_branch
        %12791 = sbr.rel (%p12789) target = $region56
      $region55: #{tpu_custom_call.1} parent=51 // pred_region
        _
      $region56: #{tpu_custom_call.1} parent=51 // pred_fallthru
        _
    $region52: #{tpu_custom_call.1} parent=5 // pred_fallthru
      _
    %p12792 = scmp.le.s32.totalorder 2, %s14
    // Predicated region
    $region57: #{tpu_custom_call.1} parent=5 // pred_check
      %p12793 = pneg %p12792
    $region58: #{tpu_custom_call.1} parent=5 // pred_check_branch
      %12795 = sbr.rel (%p12793) target = $region60
    $region59: #{tpu_custom_call.1} parent=5 // pred_region
      %s12796 = ssub.s32 %s14, 2
      // Predicated region
      $region61: #{tpu_custom_call.1} parent=59 // pred_check
        %p12797 = pneg %p216
      $region62: #{tpu_custom_call.1} parent=59 // pred_check_branch
        %12799 = sbr.rel (%p12797) target = $region64
      $region63: #{tpu_custom_call.1} parent=59 // pred_region
        %p12800 = scmp.lt.s32.totalorder %s20, 1
        %s12801 = scalar_select %p12800, %s20, 1
        %s12802 = smul.addr %s12801, 32
        %s12803 = smul.addr %s12802, 8
        %s12804 = scalar_lea.vmem %s8, %s12803
      $region64: #{tpu_custom_call.1} parent=59 // pred_fallthru
        _
    $region60: #{tpu_custom_call.1} parent=5 // pred_fallthru
      _
  $region6: #{tpu_custom_call.1} parent=0 // loop_footer
    %s18 = sadd.s32 1, %s14
  $region7: #{tpu_custom_call.1} parent=0 // loop_footer_branch
    %13 = sbr.rel target = $region3
  $region8: #{tpu_custom_call.1} parent=0 // loop_exit
    _

</llo_original>
